<compile_context>
chip_gen: v5e
topology: v5e:2x2
jax: 0.10.0
libtpu: 0.0.40
codegen_flags: <defaults>
</compile_context>

<pallas_src>
import functools

import jax
import jax.numpy as jnp
from jax import lax
from jax.experimental import pallas as pl
from jax.experimental.pallas import tpu as pltpu


# ----------------------------- Fused whole-model kernel -----------------------------

def _transformer_kernel(x_ref, in_w_ref, in_b_ref,
                        wq_ref, bq_ref, wk_ref, bk_ref, wv_ref, bv_ref,
                        wo_ref, bo_ref, ln1g_ref, ln1b_ref,
                        w1_ref, b1_ref, w2_ref, b2_ref, ln2g_ref, ln2b_ref,
                        out_w_ref, out_b_ref, o_ref):
    """One grid step = one batch element through the entire model.

    Shapes (all static):
      x_ref      : (1, S, Din)              f32
      in_w/in_b  : (Din, D) bf16 / (1, D) f32
      wq/wk/wv   : (L, H, D, Dh)            bf16   per-head in-proj weights
      bq/bk/bv   : (L, H, 1, Dh)            f32
      wo         : (L, H, Dh, D)            bf16   per-head rows of the out-proj
      bo         : (L, 1, D)                f32
      ln1g/ln1b, ln2g/ln2b : (L, 1, D)      f32
      w1 / b1    : (L, D, F) bf16 / (L, 1, F) f32
      w2 / b2    : (L, F, D) bf16 / (L, 1, D) f32
      out_w/out_b: (D, Dout) bf16 / (1, Dout) f32
      o_ref      : (1, 1, Dout)             f32
    """
    f32 = jnp.float32
    bf16 = jnp.bfloat16
    eps = 1e-5

    L, H, D, Dh = wq_ref.shape
    S = x_ref.shape[1]
    scale = 1.0 / float(Dh) ** 0.5

    def layer_norm(y, g, b):
        mean = jnp.mean(y, axis=-1, keepdims=True)
        var = jnp.mean((y - mean) ** 2, axis=-1, keepdims=True)
        return (y - mean) * lax.rsqrt(var + eps) * g + b

    # Input projection: (S, Din) @ (Din, D) + b -> (S, D) f32.
    x_bf = x_ref[0].astype(bf16)
    h = jnp.dot(x_bf, in_w_ref[...], preferred_element_type=f32) + in_b_ref[...]

    # Encoder layers: static unroll (num_layers is tiny), weights VMEM-resident.
    for l in range(L):
        h_bf = h.astype(bf16)

        # --- multi-head self-attention (per-head 2-D dots; no lane slicing, no concat) ---
        attn = jnp.zeros((S, D), f32)
        for hd in range(H):
            q = jnp.dot(h_bf, wq_ref[l, hd], preferred_element_type=f32) + bq_ref[l, hd]
            k = jnp.dot(h_bf, wk_ref[l, hd], preferred_element_type=f32) + bk_ref[l, hd]
            v = jnp.dot(h_bf, wv_ref[l, hd], preferred_element_type=f32) + bv_ref[l, hd]

            # scores = q k^T * scale (contract last dims directly, no materialized k.T)
            s = lax.dot_general(q.astype(bf16), k.astype(bf16),
                                (((1,), (1,)), ((), ())),
                                preferred_element_type=f32) * scale        # (S, S) f32
            m = jnp.max(s, axis=-1, keepdims=True)
            p = jnp.exp(s - m)
            p = p * pl.reciprocal(jnp.sum(p, axis=-1, keepdims=True), approx=True)

            ctx = jnp.dot(p.astype(bf16), v.astype(bf16),
                          preferred_element_type=f32)                      # (S, Dh) f32
            # Accumulate straight through the per-head slice of the out-projection.
            attn = attn + jnp.dot(ctx.astype(bf16), wo_ref[l, hd],
                                  preferred_element_type=f32)              # (S, D) f32

        # residual + LayerNorm1 (post-norm, f32)
        h = layer_norm(h + attn + bo_ref[l], ln1g_ref[l], ln1b_ref[l])

        # --- position-wise FFN: relu(h@W1+b1)@W2+b2 -> residual + LayerNorm2 ---
        f = jnp.dot(h.astype(bf16), w1_ref[l], preferred_element_type=f32) + b1_ref[l]
        f = jnp.maximum(f, 0.0)
        y = jnp.dot(f.astype(bf16), w2_ref[l], preferred_element_type=f32) + b2_ref[l]
        h = layer_norm(h + y, ln2g_ref[l], ln2b_ref[l])

    # Last token + output projection, fused (no extra pallas_call).
    last = h[S - 1:S, :]                                                   # (1, D)
    out = jnp.dot(last.astype(bf16), out_w_ref[...],
                  preferred_element_type=f32) + out_b_ref[...]             # (1, Dout)
    o_ref[0] = out.astype(o_ref.dtype)


# ----------------------------- Wrapper -----------------------------

def _resident_spec(arr):
    """Full-array block with a constant index_map: DMA'd once, VMEM-resident across steps."""
    zeros = (0,) * arr.ndim
    return pl.BlockSpec(arr.shape, lambda b: zeros)


def simple_transformer_forward(x, packed):
    """x: (B, S, input_dim) f32, packed: dict from pack_params -> (B, output_dim) f32."""
    B, S, Din = x.shape
    Dout = packed["out_w"].shape[1]

    weight_args = (packed["in_w"], packed["in_b"],
                   packed["wq"], packed["bq"], packed["wk"], packed["bk"],
                   packed["wv"], packed["bv"], packed["wo"], packed["bo"],
                   packed["ln1g"], packed["ln1b"],
                   packed["w1"], packed["b1"], packed["w2"], packed["b2"],
                   packed["ln2g"], packed["ln2b"],
                   packed["out_w"], packed["out_b"])

    out3 = pl.pallas_call(
        _transformer_kernel,
        out_shape=jax.ShapeDtypeStruct((B, 1, Dout), x.dtype),
        grid=(B,),  # one batch element per step; >=2 steps so both v7x TCs get work
        in_specs=[pl.BlockSpec((1, S, Din), lambda b: (b, 0, 0))]
                 + [_resident_spec(a) for a in weight_args],
        out_specs=pl.BlockSpec((1, 1, Dout), lambda b: (b, 0, 0)),
        compiler_params=pltpu.CompilerParams(dimension_semantics=("parallel",)),
    )(x, *weight_args)
    return out3.reshape(B, Dout)


# ----------------------------- Parameter packing -----------------------------

def pack_params(params, num_heads):
    """Repack per-layer params into stacked, kernel-friendly layouts (one-time, wrapper-side).

    The head split happens here on the WEIGHTS (free) so the kernel never lane-slices
    activations at non-128-aligned offsets.  Matmul weights are stored bf16 (MXU operands);
    biases / LayerNorm params stay f32 (applied in the f32 accumulator domain).
    """
    D = params["in_w"].shape[1]
    H = num_heads
    assert D % H == 0, (D, H)
    Dh = D // H
    L = len(params["layers"])
    bf16 = jnp.bfloat16

    def stack(name):
        return jnp.stack([p[name] for p in params["layers"]])

    w_in = stack("w_in")                                       # (L, D, 3D), cols [q | k | v]
    b_in = stack("b_in")                                       # (L, 3D)
    w_out = stack("w_out")                                     # (L, D, D)

    w_in_r = jnp.transpose(w_in.reshape(L, D, 3, H, Dh), (0, 2, 3, 1, 4))  # (L, 3, H, D, Dh)
    b_in_r = b_in.reshape(L, 3, H, 1, Dh)

    return dict(
        in_w=params["in_w"].astype(bf16),
        in_b=params["in_b"].reshape(1, D),
        wq=w_in_r[:, 0].astype(bf16), wk=w_in_r[:, 1].astype(bf16), wv=w_in_r[:, 2].astype(bf16),
        bq=b_in_r[:, 0], bk=b_in_r[:, 1], bv=b_in_r[:, 2],
        wo=w_out.reshape(L, H, Dh, D).astype(bf16),
        bo=stack("b_out").reshape(L, 1, D),
        ln1g=stack("ln1_g").reshape(L, 1, D),
        ln1b=stack("ln1_b").reshape(L, 1, D),
        w1=stack("w1").astype(bf16),
        b1=stack("b1").reshape(L, 1, -1),
        w2=stack("w2").astype(bf16),
        b2=stack("b2").reshape(L, 1, D),
        ln2g=stack("ln2_g").reshape(L, 1, D),
        ln2b=stack("ln2_b").reshape(L, 1, D),
        out_w=params["out_w"].astype(bf16),
        out_b=params["out_b"].reshape(1, -1),
    )


# ----------------------------- Parameter init (deterministic) -----------------------------

def init_params(key, input_dim, model_dim, num_heads, num_layers, output_dim, ff_dim=2048):
    def dense(k, fan_in, fan_out):
        w = jax.random.normal(k, (fan_in, fan_out), jnp.float32) * 0.02
        b = jnp.zeros((fan_out,), jnp.float32)
        return w, b

    keys = jax.random.split(key, 2 + 4 * num_layers)
    ki = iter(keys)

    params = {}
    params["in_w"], params["in_b"] = dense(next(ki), input_dim, model_dim)

    layers = []
    for _ in range(num_layers):
        p = {}
        p["w_in"], p["b_in"] = dense(next(ki), model_dim, 3 * model_dim)    # attn in_proj
        p["w_out"], p["b_out"] = dense(next(ki), model_dim, model_dim)      # attn out_proj
        p["w1"], p["b1"] = dense(next(ki), model_dim, ff_dim)               # ff linear1
        p["w2"], p["b2"] = dense(next(ki), ff_dim, model_dim)               # ff linear2
        p["ln1_g"] = jnp.ones((model_dim,), jnp.float32)
        p["ln1_b"] = jnp.zeros((model_dim,), jnp.float32)
        p["ln2_g"] = jnp.ones((model_dim,), jnp.float32)
        p["ln2_b"] = jnp.zeros((model_dim,), jnp.float32)
        layers.append(p)
    params["layers"] = layers

    params["out_w"], params["out_b"] = dense(next(ki), model_dim, output_dim)
    return params


# ----------------------------- Plain-JAX reference (f32, for a sanity check) -----------------------------

def reference_forward(x, params, num_heads):
    D = params["in_w"].shape[1]
    H = num_heads
    Dh = D // H

    def ln(y, g, b):
        mu = y.mean(-1, keepdims=True)
        var = ((y - mu) ** 2).mean(-1, keepdims=True)
        return (y - mu) / jnp.sqrt(var + 1e-5) * g + b

    h = x @ params["in_w"] + params["in_b"]
    for p in params["layers"]:
        qkv = h @ p["w_in"] + p["b_in"]
        q, k, v = jnp.split(qkv, 3, axis=-1)

        def heads(t):
            B_, S_, _ = t.shape
            return t.reshape(B_, S_, H, Dh).transpose(0, 2, 1, 3)

        qh, kh, vh = heads(q), heads(k), heads(v)
        s = jnp.einsum("bhqd,bhkd->bhqk", qh, kh) / jnp.sqrt(Dh)
        a = jax.nn.softmax(s, axis=-1)
        ctx = jnp.einsum("bhqk,bhkd->bhqd", a, vh)
        ctx = ctx.transpose(0, 2, 1, 3).reshape(h.shape)
        attn = ctx @ p["w_out"] + p["b_out"]
        h = ln(h + attn, p["ln1_g"], p["ln1_b"])
        f = jax.nn.relu(h @ p["w1"] + p["b1"])
        y = f @ p["w2"] + p["b2"]
        h = ln(h + y, p["ln2_g"], p["ln2_b"])
    return h[:, -1, :] @ params["out_w"] + params["out_b"]


# ----------------------------- Main -----------------------------

if __name__ == "__main__":
    INPUT_DIM, MODEL_DIM, NUM_HEADS, NUM_LAYERS, OUTPUT_DIM = 16, 32, 4, 2, 10
    B, S = 2, 8

    root = jax.random.PRNGKey(0)
    k_params, k_x = jax.random.split(root)
    params = init_params(k_params, INPUT_DIM, MODEL_DIM, NUM_HEADS, NUM_LAYERS, OUTPUT_DIM)
    x = jax.random.normal(k_x, (B, S, INPUT_DIM), jnp.float32)

    packed = pack_params(params, NUM_HEADS)      # one-time wrapper-side weight re-layout
    fwd = jax.jit(simple_transformer_forward)
    out = fwd(x, packed)
    jax.block_until_ready(out)

    assert out.shape == (B, OUTPUT_DIM), out.shape
    assert bool(jnp.all(jnp.isfinite(out)))

    # Loose sanity check vs. the f32 reference (bf16 MXU + approx reciprocal => not bit-exact).
    ref = reference_forward(x, params, NUM_HEADS)
    assert bool(jnp.allclose(out, ref, atol=5e-2, rtol=5e-2)), (out, ref)

    print("KERNEL_OK")
</pallas_src>

<mosaic_0001>
module attributes {stable_mosaic.version = 11 : i64} {
  func.func @_transformer_kernel(%arg0: i32, %arg1: memref<1x8x16xf32, #tpu.memory_space<vmem>>, %arg2: memref<16x32xbf16, #tpu.memory_space<vmem>>, %arg3: memref<1x32xf32, #tpu.memory_space<vmem>>, %arg4: memref<2x4x32x8xbf16, #tpu.memory_space<vmem>>, %arg5: memref<2x4x1x8xf32, #tpu.memory_space<vmem>>, %arg6: memref<2x4x32x8xbf16, #tpu.memory_space<vmem>>, %arg7: memref<2x4x1x8xf32, #tpu.memory_space<vmem>>, %arg8: memref<2x4x32x8xbf16, #tpu.memory_space<vmem>>, %arg9: memref<2x4x1x8xf32, #tpu.memory_space<vmem>>, %arg10: memref<2x4x8x32xbf16, #tpu.memory_space<vmem>>, %arg11: memref<2x1x32xf32, #tpu.memory_space<vmem>>, %arg12: memref<2x1x32xf32, #tpu.memory_space<vmem>>, %arg13: memref<2x1x32xf32, #tpu.memory_space<vmem>>, %arg14: memref<2x32x2048xbf16, #tpu.memory_space<vmem>>, %arg15: memref<2x1x2048xf32, #tpu.memory_space<vmem>>, %arg16: memref<2x2048x32xbf16, #tpu.memory_space<vmem>>, %arg17: memref<2x1x32xf32, #tpu.memory_space<vmem>>, %arg18: memref<2x1x32xf32, #tpu.memory_space<vmem>>, %arg19: memref<2x1x32xf32, #tpu.memory_space<vmem>>, %arg20: memref<32x10xbf16, #tpu.memory_space<vmem>>, %arg21: memref<1x10xf32, #tpu.memory_space<vmem>>, %arg22: memref<1x1x10xf32, #tpu.memory_space<vmem>>) attributes {dimension_semantics = [#tpu.dimension_semantics<parallel>], iteration_bounds = array<i64: 2>, scalar_prefetch = 0 : i64, scratch_operands = 0 : i64, tpu.core_type = #tpu.core_type<tc>, window_params = [{transform_indices = @transform_0, window_bounds = array<i64: 1, 8, 16>}, {pipeline_mode = #tpu.pipeline_mode<synchronous>, transform_indices = @transform_1, window_bounds = array<i64: 16, 32>}, {pipeline_mode = #tpu.pipeline_mode<synchronous>, transform_indices = @transform_2, window_bounds = array<i64: 1, 32>}, {pipeline_mode = #tpu.pipeline_mode<synchronous>, transform_indices = @transform_3, window_bounds = array<i64: 2, 4, 32, 8>}, {pipeline_mode = #tpu.pipeline_mode<synchronous>, transform_indices = @transform_4, window_bounds = array<i64: 2, 4, 1, 8>}, {pipeline_mode = #tpu.pipeline_mode<synchronous>, transform_indices = @transform_5, window_bounds = array<i64: 2, 4, 32, 8>}, {pipeline_mode = #tpu.pipeline_mode<synchronous>, transform_indices = @transform_6, window_bounds = array<i64: 2, 4, 1, 8>}, {pipeline_mode = #tpu.pipeline_mode<synchronous>, transform_indices = @transform_7, window_bounds = array<i64: 2, 4, 32, 8>}, {pipeline_mode = #tpu.pipeline_mode<synchronous>, transform_indices = @transform_8, window_bounds = array<i64: 2, 4, 1, 8>}, {pipeline_mode = #tpu.pipeline_mode<synchronous>, transform_indices = @transform_9, window_bounds = array<i64: 2, 4, 8, 32>}, {pipeline_mode = #tpu.pipeline_mode<synchronous>, transform_indices = @transform_10, window_bounds = array<i64: 2, 1, 32>}, {pipeline_mode = #tpu.pipeline_mode<synchronous>, transform_indices = @transform_11, window_bounds = array<i64: 2, 1, 32>}, {pipeline_mode = #tpu.pipeline_mode<synchronous>, transform_indices = @transform_12, window_bounds = array<i64: 2, 1, 32>}, {pipeline_mode = #tpu.pipeline_mode<synchronous>, transform_indices = @transform_13, window_bounds = array<i64: 2, 32, 2048>}, {pipeline_mode = #tpu.pipeline_mode<synchronous>, transform_indices = @transform_14, window_bounds = array<i64: 2, 1, 2048>}, {pipeline_mode = #tpu.pipeline_mode<synchronous>, transform_indices = @transform_15, window_bounds = array<i64: 2, 2048, 32>}, {pipeline_mode = #tpu.pipeline_mode<synchronous>, transform_indices = @transform_16, window_bounds = array<i64: 2, 1, 32>}, {pipeline_mode = #tpu.pipeline_mode<synchronous>, transform_indices = @transform_17, window_bounds = array<i64: 2, 1, 32>}, {pipeline_mode = #tpu.pipeline_mode<synchronous>, transform_indices = @transform_18, window_bounds = array<i64: 2, 1, 32>}, {pipeline_mode = #tpu.pipeline_mode<synchronous>, transform_indices = @transform_19, window_bounds = array<i64: 32, 10>}, {pipeline_mode = #tpu.pipeline_mode<synchronous>, transform_indices = @transform_20, window_bounds = array<i64: 1, 10>}, {transform_indices = @transform_21, window_bounds = array<i64: 1, 1, 10>}]} {
    %c0 = arith.constant 0 : index
    %c0_0 = arith.constant 0 : index
    %c0_1 = arith.constant 0 : index
    %0 = vector.load %arg1[%c0, %c0_0, %c0_1] : memref<1x8x16xf32, #tpu.memory_space<vmem>>, vector<1x8x16xf32>
    %1 = vector.shape_cast %0 : vector<1x8x16xf32> to vector<8x16xf32>
    %2 = arith.truncf %1 : vector<8x16xf32> to vector<8x16xbf16>
    %c0_2 = arith.constant 0 : index
    %c0_3 = arith.constant 0 : index
    %3 = vector.load %arg2[%c0_2, %c0_3] : memref<16x32xbf16, #tpu.memory_space<vmem>>, vector<16x32xbf16>
    %cst = arith.constant dense<0.000000e+00> : vector<8x32xf32>
    %4 = tpu.matmul %2, %3, %cst {dimension_numbers = #tpu.dot_dimension_numbers<[1], [0], [0], [1], [0, 0, 1, 1], [], []>} : vector<8x16xbf16>, vector<16x32xbf16>, vector<8x32xf32> -> vector<8x32xf32>
    %c0_4 = arith.constant 0 : index
    %c0_5 = arith.constant 0 : index
    %5 = vector.load %arg3[%c0_4, %c0_5] : memref<1x32xf32, #tpu.memory_space<vmem>>, vector<1x32xf32>
    %6 = vector.broadcast %5 : vector<1x32xf32> to vector<8x32xf32>
    %7 = arith.addf %4, %6 : vector<8x32xf32>
    %8 = arith.truncf %7 : vector<8x32xf32> to vector<8x32xbf16>
    %cst_6 = arith.constant 0.000000e+00 : f32
    %9 = vector.broadcast %cst_6 : f32 to vector<8x32xf32>
    %c0_7 = arith.constant 0 : index
    %c0_8 = arith.constant 0 : index
    %c0_9 = arith.constant 0 : index
    %c0_10 = arith.constant 0 : index
    %10 = vector.load %arg4[%c0_7, %c0_8, %c0_9, %c0_10] : memref<2x4x32x8xbf16, #tpu.memory_space<vmem>>, vector<1x1x32x8xbf16>
    %11 = vector.shape_cast %10 : vector<1x1x32x8xbf16> to vector<32x8xbf16>
    %cst_11 = arith.constant dense<0.000000e+00> : vector<8x8xf32>
    %12 = tpu.matmul %8, %11, %cst_11 {dimension_numbers = #tpu.dot_dimension_numbers<[1], [0], [0], [1], [0, 0, 1, 1], [], []>} : vector<8x32xbf16>, vector<32x8xbf16>, vector<8x8xf32> -> vector<8x8xf32>
    %c0_12 = arith.constant 0 : index
    %c0_13 = arith.constant 0 : index
    %c0_14 = arith.constant 0 : index
    %c0_15 = arith.constant 0 : index
    %13 = vector.load %arg5[%c0_12, %c0_13, %c0_14, %c0_15] : memref<2x4x1x8xf32, #tpu.memory_space<vmem>>, vector<1x1x1x8xf32>
    %14 = vector.shape_cast %13 : vector<1x1x1x8xf32> to vector<1x8xf32>
    %15 = vector.broadcast %14 : vector<1x8xf32> to vector<8x8xf32>
    %16 = arith.addf %12, %15 : vector<8x8xf32>
    %c0_16 = arith.constant 0 : index
    %c0_17 = arith.constant 0 : index
    %c0_18 = arith.constant 0 : index
    %c0_19 = arith.constant 0 : index
    %17 = vector.load %arg6[%c0_16, %c0_17, %c0_18, %c0_19] : memref<2x4x32x8xbf16, #tpu.memory_space<vmem>>, vector<1x1x32x8xbf16>
    %18 = vector.shape_cast %17 : vector<1x1x32x8xbf16> to vector<32x8xbf16>
    %cst_20 = arith.constant dense<0.000000e+00> : vector<8x8xf32>
    %19 = tpu.matmul %8, %18, %cst_20 {dimension_numbers = #tpu.dot_dimension_numbers<[1], [0], [0], [1], [0, 0, 1, 1], [], []>} : vector<8x32xbf16>, vector<32x8xbf16>, vector<8x8xf32> -> vector<8x8xf32>
    %c0_21 = arith.constant 0 : index
    %c0_22 = arith.constant 0 : index
    %c0_23 = arith.constant 0 : index
    %c0_24 = arith.constant 0 : index
    %20 = vector.load %arg7[%c0_21, %c0_22, %c0_23, %c0_24] : memref<2x4x1x8xf32, #tpu.memory_space<vmem>>, vector<1x1x1x8xf32>
    %21 = vector.shape_cast %20 : vector<1x1x1x8xf32> to vector<1x8xf32>
    %22 = vector.broadcast %21 : vector<1x8xf32> to vector<8x8xf32>
    %23 = arith.addf %19, %22 : vector<8x8xf32>
    %c0_25 = arith.constant 0 : index
    %c0_26 = arith.constant 0 : index
    %c0_27 = arith.constant 0 : index
    %c0_28 = arith.constant 0 : index
    %24 = vector.load %arg8[%c0_25, %c0_26, %c0_27, %c0_28] : memref<2x4x32x8xbf16, #tpu.memory_space<vmem>>, vector<1x1x32x8xbf16>
    %25 = vector.shape_cast %24 : vector<1x1x32x8xbf16> to vector<32x8xbf16>
    %cst_29 = arith.constant dense<0.000000e+00> : vector<8x8xf32>
    %26 = tpu.matmul %8, %25, %cst_29 {dimension_numbers = #tpu.dot_dimension_numbers<[1], [0], [0], [1], [0, 0, 1, 1], [], []>} : vector<8x32xbf16>, vector<32x8xbf16>, vector<8x8xf32> -> vector<8x8xf32>
    %c0_30 = arith.constant 0 : index
    %c0_31 = arith.constant 0 : index
    %c0_32 = arith.constant 0 : index
    %c0_33 = arith.constant 0 : index
    %27 = vector.load %arg9[%c0_30, %c0_31, %c0_32, %c0_33] : memref<2x4x1x8xf32, #tpu.memory_space<vmem>>, vector<1x1x1x8xf32>
    %28 = vector.shape_cast %27 : vector<1x1x1x8xf32> to vector<1x8xf32>
    %29 = vector.broadcast %28 : vector<1x8xf32> to vector<8x8xf32>
    %30 = arith.addf %26, %29 : vector<8x8xf32>
    %31 = arith.truncf %16 : vector<8x8xf32> to vector<8x8xbf16>
    %32 = arith.truncf %23 : vector<8x8xf32> to vector<8x8xbf16>
    %cst_34 = arith.constant dense<0.000000e+00> : vector<8x8xf32>
    %33 = tpu.matmul %31, %32, %cst_34 {dimension_numbers = #tpu.dot_dimension_numbers<[1], [1], [0], [0], [0, 0, 1, 0], [], []>} : vector<8x8xbf16>, vector<8x8xbf16>, vector<8x8xf32> -> vector<8x8xf32>
    %cst_35 = arith.constant 0.353553385 : f32
    %34 = vector.broadcast %cst_35 : f32 to vector<8x8xf32>
    %35 = arith.mulf %33, %34 : vector<8x8xf32>
    %cst_36 = arith.constant dense<0xFF800000> : vector<8xf32>
    %36 = vector.multi_reduction <maximumf>, %35, %cst_36 [1] : vector<8x8xf32> to vector<8xf32>
    %37 = vector.shape_cast %36 : vector<8xf32> to vector<8x1xf32>
    %38 = vector.broadcast %37 : vector<8x1xf32> to vector<8x8xf32>
    %39 = arith.subf %35, %38 : vector<8x8xf32>
    %40 = math.exp %39 : vector<8x8xf32>
    %cst_37 = arith.constant dense<0.000000e+00> : vector<8xf32>
    %41 = vector.multi_reduction <add>, %40, %cst_37 [1] : vector<8x8xf32> to vector<8xf32>
    %42 = vector.shape_cast %41 : vector<8xf32> to vector<8x1xf32>
    %43 = tpu.reciprocal %42 {approx = true} : vector<8x1xf32> -> vector<8x1xf32>
    %44 = vector.broadcast %43 : vector<8x1xf32> to vector<8x8xf32>
    %45 = arith.mulf %40, %44 : vector<8x8xf32>
    %46 = arith.truncf %45 : vector<8x8xf32> to vector<8x8xbf16>
    %47 = arith.truncf %30 : vector<8x8xf32> to vector<8x8xbf16>
    %cst_38 = arith.constant dense<0.000000e+00> : vector<8x8xf32>
    %48 = tpu.matmul %46, %47, %cst_38 {dimension_numbers = #tpu.dot_dimension_numbers<[1], [0], [0], [1], [0, 0, 1, 1], [], []>} : vector<8x8xbf16>, vector<8x8xbf16>, vector<8x8xf32> -> vector<8x8xf32>
    %49 = arith.truncf %48 : vector<8x8xf32> to vector<8x8xbf16>
    %c0_39 = arith.constant 0 : index
    %c0_40 = arith.constant 0 : index
    %c0_41 = arith.constant 0 : index
    %c0_42 = arith.constant 0 : index
    %50 = vector.load %arg10[%c0_39, %c0_40, %c0_41, %c0_42] : memref<2x4x8x32xbf16, #tpu.memory_space<vmem>>, vector<1x1x8x32xbf16>
    %51 = vector.shape_cast %50 : vector<1x1x8x32xbf16> to vector<8x32xbf16>
    %cst_43 = arith.constant dense<0.000000e+00> : vector<8x32xf32>
    %52 = tpu.matmul %49, %51, %cst_43 {dimension_numbers = #tpu.dot_dimension_numbers<[1], [0], [0], [1], [0, 0, 1, 1], [], []>} : vector<8x8xbf16>, vector<8x32xbf16>, vector<8x32xf32> -> vector<8x32xf32>
    %53 = arith.addf %9, %52 : vector<8x32xf32>
    %c0_44 = arith.constant 0 : index
    %c1 = arith.constant 1 : index
    %c0_45 = arith.constant 0 : index
    %c0_46 = arith.constant 0 : index
    %54 = vector.load %arg4[%c0_44, %c1, %c0_45, %c0_46] : memref<2x4x32x8xbf16, #tpu.memory_space<vmem>>, vector<1x1x32x8xbf16>
    %55 = vector.shape_cast %54 : vector<1x1x32x8xbf16> to vector<32x8xbf16>
    %cst_47 = arith.constant dense<0.000000e+00> : vector<8x8xf32>
    %56 = tpu.matmul %8, %55, %cst_47 {dimension_numbers = #tpu.dot_dimension_numbers<[1], [0], [0], [1], [0, 0, 1, 1], [], []>} : vector<8x32xbf16>, vector<32x8xbf16>, vector<8x8xf32> -> vector<8x8xf32>
    %c0_48 = arith.constant 0 : index
    %c1_49 = arith.constant 1 : index
    %c0_50 = arith.constant 0 : index
    %c0_51 = arith.constant 0 : index
    %57 = vector.load %arg5[%c0_48, %c1_49, %c0_50, %c0_51] : memref<2x4x1x8xf32, #tpu.memory_space<vmem>>, vector<1x1x1x8xf32>
    %58 = vector.shape_cast %57 : vector<1x1x1x8xf32> to vector<1x8xf32>
    %59 = vector.broadcast %58 : vector<1x8xf32> to vector<8x8xf32>
    %60 = arith.addf %56, %59 : vector<8x8xf32>
    %c0_52 = arith.constant 0 : index
    %c1_53 = arith.constant 1 : index
    %c0_54 = arith.constant 0 : index
    %c0_55 = arith.constant 0 : index
    %61 = vector.load %arg6[%c0_52, %c1_53, %c0_54, %c0_55] : memref<2x4x32x8xbf16, #tpu.memory_space<vmem>>, vector<1x1x32x8xbf16>
    %62 = vector.shape_cast %61 : vector<1x1x32x8xbf16> to vector<32x8xbf16>
    %cst_56 = arith.constant dense<0.000000e+00> : vector<8x8xf32>
    %63 = tpu.matmul %8, %62, %cst_56 {dimension_numbers = #tpu.dot_dimension_numbers<[1], [0], [0], [1], [0, 0, 1, 1], [], []>} : vector<8x32xbf16>, vector<32x8xbf16>, vector<8x8xf32> -> vector<8x8xf32>
    %c0_57 = arith.constant 0 : index
    %c1_58 = arith.constant 1 : index
    %c0_59 = arith.constant 0 : index
    %c0_60 = arith.constant 0 : index
    %64 = vector.load %arg7[%c0_57, %c1_58, %c0_59, %c0_60] : memref<2x4x1x8xf32, #tpu.memory_space<vmem>>, vector<1x1x1x8xf32>
    %65 = vector.shape_cast %64 : vector<1x1x1x8xf32> to vector<1x8xf32>
    %66 = vector.broadcast %65 : vector<1x8xf32> to vector<8x8xf32>
    %67 = arith.addf %63, %66 : vector<8x8xf32>
    %c0_61 = arith.constant 0 : index
    %c1_62 = arith.constant 1 : index
    %c0_63 = arith.constant 0 : index
    %c0_64 = arith.constant 0 : index
    %68 = vector.load %arg8[%c0_61, %c1_62, %c0_63, %c0_64] : memref<2x4x32x8xbf16, #tpu.memory_space<vmem>>, vector<1x1x32x8xbf16>
    %69 = vector.shape_cast %68 : vector<1x1x32x8xbf16> to vector<32x8xbf16>
    %cst_65 = arith.constant dense<0.000000e+00> : vector<8x8xf32>
    %70 = tpu.matmul %8, %69, %cst_65 {dimension_numbers = #tpu.dot_dimension_numbers<[1], [0], [0], [1], [0, 0, 1, 1], [], []>} : vector<8x32xbf16>, vector<32x8xbf16>, vector<8x8xf32> -> vector<8x8xf32>
    %c0_66 = arith.constant 0 : index
    %c1_67 = arith.constant 1 : index
    %c0_68 = arith.constant 0 : index
    %c0_69 = arith.constant 0 : index
    %71 = vector.load %arg9[%c0_66, %c1_67, %c0_68, %c0_69] : memref<2x4x1x8xf32, #tpu.memory_space<vmem>>, vector<1x1x1x8xf32>
    %72 = vector.shape_cast %71 : vector<1x1x1x8xf32> to vector<1x8xf32>
    %73 = vector.broadcast %72 : vector<1x8xf32> to vector<8x8xf32>
    %74 = arith.addf %70, %73 : vector<8x8xf32>
    %75 = arith.truncf %60 : vector<8x8xf32> to vector<8x8xbf16>
    %76 = arith.truncf %67 : vector<8x8xf32> to vector<8x8xbf16>
    %cst_70 = arith.constant dense<0.000000e+00> : vector<8x8xf32>
    %77 = tpu.matmul %75, %76, %cst_70 {dimension_numbers = #tpu.dot_dimension_numbers<[1], [1], [0], [0], [0, 0, 1, 0], [], []>} : vector<8x8xbf16>, vector<8x8xbf16>, vector<8x8xf32> -> vector<8x8xf32>
    %cst_71 = arith.constant 0.353553385 : f32
    %78 = vector.broadcast %cst_71 : f32 to vector<8x8xf32>
    %79 = arith.mulf %77, %78 : vector<8x8xf32>
    %cst_72 = arith.constant dense<0xFF800000> : vector<8xf32>
    %80 = vector.multi_reduction <maximumf>, %79, %cst_72 [1] : vector<8x8xf32> to vector<8xf32>
    %81 = vector.shape_cast %80 : vector<8xf32> to vector<8x1xf32>
    %82 = vector.broadcast %81 : vector<8x1xf32> to vector<8x8xf32>
    %83 = arith.subf %79, %82 : vector<8x8xf32>
    %84 = math.exp %83 : vector<8x8xf32>
    %cst_73 = arith.constant dense<0.000000e+00> : vector<8xf32>
    %85 = vector.multi_reduction <add>, %84, %cst_73 [1] : vector<8x8xf32> to vector<8xf32>
    %86 = vector.shape_cast %85 : vector<8xf32> to vector<8x1xf32>
    %87 = tpu.reciprocal %86 {approx = true} : vector<8x1xf32> -> vector<8x1xf32>
    %88 = vector.broadcast %87 : vector<8x1xf32> to vector<8x8xf32>
    %89 = arith.mulf %84, %88 : vector<8x8xf32>
    %90 = arith.truncf %89 : vector<8x8xf32> to vector<8x8xbf16>
    %91 = arith.truncf %74 : vector<8x8xf32> to vector<8x8xbf16>
    %cst_74 = arith.constant dense<0.000000e+00> : vector<8x8xf32>
    %92 = tpu.matmul %90, %91, %cst_74 {dimension_numbers = #tpu.dot_dimension_numbers<[1], [0], [0], [1], [0, 0, 1, 1], [], []>} : vector<8x8xbf16>, vector<8x8xbf16>, vector<8x8xf32> -> vector<8x8xf32>
    %93 = arith.truncf %92 : vector<8x8xf32> to vector<8x8xbf16>
    %c0_75 = arith.constant 0 : index
    %c1_76 = arith.constant 1 : index
    %c0_77 = arith.constant 0 : index
    %c0_78 = arith.constant 0 : index
    %94 = vector.load %arg10[%c0_75, %c1_76, %c0_77, %c0_78] : memref<2x4x8x32xbf16, #tpu.memory_space<vmem>>, vector<1x1x8x32xbf16>
    %95 = vector.shape_cast %94 : vector<1x1x8x32xbf16> to vector<8x32xbf16>
    %cst_79 = arith.constant dense<0.000000e+00> : vector<8x32xf32>
    %96 = tpu.matmul %93, %95, %cst_79 {dimension_numbers = #tpu.dot_dimension_numbers<[1], [0], [0], [1], [0, 0, 1, 1], [], []>} : vector<8x8xbf16>, vector<8x32xbf16>, vector<8x32xf32> -> vector<8x32xf32>
    %97 = arith.addf %53, %96 : vector<8x32xf32>
    %c0_80 = arith.constant 0 : index
    %c2 = arith.constant 2 : index
    %c0_81 = arith.constant 0 : index
    %c0_82 = arith.constant 0 : index
    %98 = vector.load %arg4[%c0_80, %c2, %c0_81, %c0_82] : memref<2x4x32x8xbf16, #tpu.memory_space<vmem>>, vector<1x1x32x8xbf16>
    %99 = vector.shape_cast %98 : vector<1x1x32x8xbf16> to vector<32x8xbf16>
    %cst_83 = arith.constant dense<0.000000e+00> : vector<8x8xf32>
    %100 = tpu.matmul %8, %99, %cst_83 {dimension_numbers = #tpu.dot_dimension_numbers<[1], [0], [0], [1], [0, 0, 1, 1], [], []>} : vector<8x32xbf16>, vector<32x8xbf16>, vector<8x8xf32> -> vector<8x8xf32>
    %c0_84 = arith.constant 0 : index
    %c2_85 = arith.constant 2 : index
    %c0_86 = arith.constant 0 : index
    %c0_87 = arith.constant 0 : index
    %101 = vector.load %arg5[%c0_84, %c2_85, %c0_86, %c0_87] : memref<2x4x1x8xf32, #tpu.memory_space<vmem>>, vector<1x1x1x8xf32>
    %102 = vector.shape_cast %101 : vector<1x1x1x8xf32> to vector<1x8xf32>
    %103 = vector.broadcast %102 : vector<1x8xf32> to vector<8x8xf32>
    %104 = arith.addf %100, %103 : vector<8x8xf32>
    %c0_88 = arith.constant 0 : index
    %c2_89 = arith.constant 2 : index
    %c0_90 = arith.constant 0 : index
    %c0_91 = arith.constant 0 : index
    %105 = vector.load %arg6[%c0_88, %c2_89, %c0_90, %c0_91] : memref<2x4x32x8xbf16, #tpu.memory_space<vmem>>, vector<1x1x32x8xbf16>
    %106 = vector.shape_cast %105 : vector<1x1x32x8xbf16> to vector<32x8xbf16>
    %cst_92 = arith.constant dense<0.000000e+00> : vector<8x8xf32>
    %107 = tpu.matmul %8, %106, %cst_92 {dimension_numbers = #tpu.dot_dimension_numbers<[1], [0], [0], [1], [0, 0, 1, 1], [], []>} : vector<8x32xbf16>, vector<32x8xbf16>, vector<8x8xf32> -> vector<8x8xf32>
    %c0_93 = arith.constant 0 : index
    %c2_94 = arith.constant 2 : index
    %c0_95 = arith.constant 0 : index
    %c0_96 = arith.constant 0 : index
    %108 = vector.load %arg7[%c0_93, %c2_94, %c0_95, %c0_96] : memref<2x4x1x8xf32, #tpu.memory_space<vmem>>, vector<1x1x1x8xf32>
    %109 = vector.shape_cast %108 : vector<1x1x1x8xf32> to vector<1x8xf32>
    %110 = vector.broadcast %109 : vector<1x8xf32> to vector<8x8xf32>
    %111 = arith.addf %107, %110 : vector<8x8xf32>
    %c0_97 = arith.constant 0 : index
    %c2_98 = arith.constant 2 : index
    %c0_99 = arith.constant 0 : index
    %c0_100 = arith.constant 0 : index
    %112 = vector.load %arg8[%c0_97, %c2_98, %c0_99, %c0_100] : memref<2x4x32x8xbf16, #tpu.memory_space<vmem>>, vector<1x1x32x8xbf16>
    %113 = vector.shape_cast %112 : vector<1x1x32x8xbf16> to vector<32x8xbf16>
    %cst_101 = arith.constant dense<0.000000e+00> : vector<8x8xf32>
    %114 = tpu.matmul %8, %113, %cst_101 {dimension_numbers = #tpu.dot_dimension_numbers<[1], [0], [0], [1], [0, 0, 1, 1], [], []>} : vector<8x32xbf16>, vector<32x8xbf16>, vector<8x8xf32> -> vector<8x8xf32>
    %c0_102 = arith.constant 0 : index
    %c2_103 = arith.constant 2 : index
    %c0_104 = arith.constant 0 : index
    %c0_105 = arith.constant 0 : index
    %115 = vector.load %arg9[%c0_102, %c2_103, %c0_104, %c0_105] : memref<2x4x1x8xf32, #tpu.memory_space<vmem>>, vector<1x1x1x8xf32>
    %116 = vector.shape_cast %115 : vector<1x1x1x8xf32> to vector<1x8xf32>
    %117 = vector.broadcast %116 : vector<1x8xf32> to vector<8x8xf32>
    %118 = arith.addf %114, %117 : vector<8x8xf32>
    %119 = arith.truncf %104 : vector<8x8xf32> to vector<8x8xbf16>
    %120 = arith.truncf %111 : vector<8x8xf32> to vector<8x8xbf16>
    %cst_106 = arith.constant dense<0.000000e+00> : vector<8x8xf32>
    %121 = tpu.matmul %119, %120, %cst_106 {dimension_numbers = #tpu.dot_dimension_numbers<[1], [1], [0], [0], [0, 0, 1, 0], [], []>} : vector<8x8xbf16>, vector<8x8xbf16>, vector<8x8xf32> -> vector<8x8xf32>
    %cst_107 = arith.constant 0.353553385 : f32
    %122 = vector.broadcast %cst_107 : f32 to vector<8x8xf32>
    %123 = arith.mulf %121, %122 : vector<8x8xf32>
    %cst_108 = arith.constant dense<0xFF800000> : vector<8xf32>
    %124 = vector.multi_reduction <maximumf>, %123, %cst_108 [1] : vector<8x8xf32> to vector<8xf32>
    %125 = vector.shape_cast %124 : vector<8xf32> to vector<8x1xf32>
    %126 = vector.broadcast %125 : vector<8x1xf32> to vector<8x8xf32>
    %127 = arith.subf %123, %126 : vector<8x8xf32>
    %128 = math.exp %127 : vector<8x8xf32>
    %cst_109 = arith.constant dense<0.000000e+00> : vector<8xf32>
    %129 = vector.multi_reduction <add>, %128, %cst_109 [1] : vector<8x8xf32> to vector<8xf32>
    %130 = vector.shape_cast %129 : vector<8xf32> to vector<8x1xf32>
    %131 = tpu.reciprocal %130 {approx = true} : vector<8x1xf32> -> vector<8x1xf32>
    %132 = vector.broadcast %131 : vector<8x1xf32> to vector<8x8xf32>
    %133 = arith.mulf %128, %132 : vector<8x8xf32>
    %134 = arith.truncf %133 : vector<8x8xf32> to vector<8x8xbf16>
    %135 = arith.truncf %118 : vector<8x8xf32> to vector<8x8xbf16>
    %cst_110 = arith.constant dense<0.000000e+00> : vector<8x8xf32>
    %136 = tpu.matmul %134, %135, %cst_110 {dimension_numbers = #tpu.dot_dimension_numbers<[1], [0], [0], [1], [0, 0, 1, 1], [], []>} : vector<8x8xbf16>, vector<8x8xbf16>, vector<8x8xf32> -> vector<8x8xf32>
    %137 = arith.truncf %136 : vector<8x8xf32> to vector<8x8xbf16>
    %c0_111 = arith.constant 0 : index
    %c2_112 = arith.constant 2 : index
    %c0_113 = arith.constant 0 : index
    %c0_114 = arith.constant 0 : index
    %138 = vector.load %arg10[%c0_111, %c2_112, %c0_113, %c0_114] : memref<2x4x8x32xbf16, #tpu.memory_space<vmem>>, vector<1x1x8x32xbf16>
    %139 = vector.shape_cast %138 : vector<1x1x8x32xbf16> to vector<8x32xbf16>
    %cst_115 = arith.constant dense<0.000000e+00> : vector<8x32xf32>
    %140 = tpu.matmul %137, %139, %cst_115 {dimension_numbers = #tpu.dot_dimension_numbers<[1], [0], [0], [1], [0, 0, 1, 1], [], []>} : vector<8x8xbf16>, vector<8x32xbf16>, vector<8x32xf32> -> vector<8x32xf32>
    %141 = arith.addf %97, %140 : vector<8x32xf32>
    %c0_116 = arith.constant 0 : index
    %c3 = arith.constant 3 : index
    %c0_117 = arith.constant 0 : index
    %c0_118 = arith.constant 0 : index
    %142 = vector.load %arg4[%c0_116, %c3, %c0_117, %c0_118] : memref<2x4x32x8xbf16, #tpu.memory_space<vmem>>, vector<1x1x32x8xbf16>
    %143 = vector.shape_cast %142 : vector<1x1x32x8xbf16> to vector<32x8xbf16>
    %cst_119 = arith.constant dense<0.000000e+00> : vector<8x8xf32>
    %144 = tpu.matmul %8, %143, %cst_119 {dimension_numbers = #tpu.dot_dimension_numbers<[1], [0], [0], [1], [0, 0, 1, 1], [], []>} : vector<8x32xbf16>, vector<32x8xbf16>, vector<8x8xf32> -> vector<8x8xf32>
    %c0_120 = arith.constant 0 : index
    %c3_121 = arith.constant 3 : index
    %c0_122 = arith.constant 0 : index
    %c0_123 = arith.constant 0 : index
    %145 = vector.load %arg5[%c0_120, %c3_121, %c0_122, %c0_123] : memref<2x4x1x8xf32, #tpu.memory_space<vmem>>, vector<1x1x1x8xf32>
    %146 = vector.shape_cast %145 : vector<1x1x1x8xf32> to vector<1x8xf32>
    %147 = vector.broadcast %146 : vector<1x8xf32> to vector<8x8xf32>
    %148 = arith.addf %144, %147 : vector<8x8xf32>
    %c0_124 = arith.constant 0 : index
    %c3_125 = arith.constant 3 : index
    %c0_126 = arith.constant 0 : index
    %c0_127 = arith.constant 0 : index
    %149 = vector.load %arg6[%c0_124, %c3_125, %c0_126, %c0_127] : memref<2x4x32x8xbf16, #tpu.memory_space<vmem>>, vector<1x1x32x8xbf16>
    %150 = vector.shape_cast %149 : vector<1x1x32x8xbf16> to vector<32x8xbf16>
    %cst_128 = arith.constant dense<0.000000e+00> : vector<8x8xf32>
    %151 = tpu.matmul %8, %150, %cst_128 {dimension_numbers = #tpu.dot_dimension_numbers<[1], [0], [0], [1], [0, 0, 1, 1], [], []>} : vector<8x32xbf16>, vector<32x8xbf16>, vector<8x8xf32> -> vector<8x8xf32>
    %c0_129 = arith.constant 0 : index
    %c3_130 = arith.constant 3 : index
    %c0_131 = arith.constant 0 : index
    %c0_132 = arith.constant 0 : index
    %152 = vector.load %arg7[%c0_129, %c3_130, %c0_131, %c0_132] : memref<2x4x1x8xf32, #tpu.memory_space<vmem>>, vector<1x1x1x8xf32>
    %153 = vector.shape_cast %152 : vector<1x1x1x8xf32> to vector<1x8xf32>
    %154 = vector.broadcast %153 : vector<1x8xf32> to vector<8x8xf32>
    %155 = arith.addf %151, %154 : vector<8x8xf32>
    %c0_133 = arith.constant 0 : index
    %c3_134 = arith.constant 3 : index
    %c0_135 = arith.constant 0 : index
    %c0_136 = arith.constant 0 : index
    %156 = vector.load %arg8[%c0_133, %c3_134, %c0_135, %c0_136] : memref<2x4x32x8xbf16, #tpu.memory_space<vmem>>, vector<1x1x32x8xbf16>
    %157 = vector.shape_cast %156 : vector<1x1x32x8xbf16> to vector<32x8xbf16>
    %cst_137 = arith.constant dense<0.000000e+00> : vector<8x8xf32>
    %158 = tpu.matmul %8, %157, %cst_137 {dimension_numbers = #tpu.dot_dimension_numbers<[1], [0], [0], [1], [0, 0, 1, 1], [], []>} : vector<8x32xbf16>, vector<32x8xbf16>, vector<8x8xf32> -> vector<8x8xf32>
    %c0_138 = arith.constant 0 : index
    %c3_139 = arith.constant 3 : index
    %c0_140 = arith.constant 0 : index
    %c0_141 = arith.constant 0 : index
    %159 = vector.load %arg9[%c0_138, %c3_139, %c0_140, %c0_141] : memref<2x4x1x8xf32, #tpu.memory_space<vmem>>, vector<1x1x1x8xf32>
    %160 = vector.shape_cast %159 : vector<1x1x1x8xf32> to vector<1x8xf32>
    %161 = vector.broadcast %160 : vector<1x8xf32> to vector<8x8xf32>
    %162 = arith.addf %158, %161 : vector<8x8xf32>
    %163 = arith.truncf %148 : vector<8x8xf32> to vector<8x8xbf16>
    %164 = arith.truncf %155 : vector<8x8xf32> to vector<8x8xbf16>
    %cst_142 = arith.constant dense<0.000000e+00> : vector<8x8xf32>
    %165 = tpu.matmul %163, %164, %cst_142 {dimension_numbers = #tpu.dot_dimension_numbers<[1], [1], [0], [0], [0, 0, 1, 0], [], []>} : vector<8x8xbf16>, vector<8x8xbf16>, vector<8x8xf32> -> vector<8x8xf32>
    %cst_143 = arith.constant 0.353553385 : f32
    %166 = vector.broadcast %cst_143 : f32 to vector<8x8xf32>
    %167 = arith.mulf %165, %166 : vector<8x8xf32>
    %cst_144 = arith.constant dense<0xFF800000> : vector<8xf32>
    %168 = vector.multi_reduction <maximumf>, %167, %cst_144 [1] : vector<8x8xf32> to vector<8xf32>
    %169 = vector.shape_cast %168 : vector<8xf32> to vector<8x1xf32>
    %170 = vector.broadcast %169 : vector<8x1xf32> to vector<8x8xf32>
    %171 = arith.subf %167, %170 : vector<8x8xf32>
    %172 = math.exp %171 : vector<8x8xf32>
    %cst_145 = arith.constant dense<0.000000e+00> : vector<8xf32>
    %173 = vector.multi_reduction <add>, %172, %cst_145 [1] : vector<8x8xf32> to vector<8xf32>
    %174 = vector.shape_cast %173 : vector<8xf32> to vector<8x1xf32>
    %175 = tpu.reciprocal %174 {approx = true} : vector<8x1xf32> -> vector<8x1xf32>
    %176 = vector.broadcast %175 : vector<8x1xf32> to vector<8x8xf32>
    %177 = arith.mulf %172, %176 : vector<8x8xf32>
    %178 = arith.truncf %177 : vector<8x8xf32> to vector<8x8xbf16>
    %179 = arith.truncf %162 : vector<8x8xf32> to vector<8x8xbf16>
    %cst_146 = arith.constant dense<0.000000e+00> : vector<8x8xf32>
    %180 = tpu.matmul %178, %179, %cst_146 {dimension_numbers = #tpu.dot_dimension_numbers<[1], [0], [0], [1], [0, 0, 1, 1], [], []>} : vector<8x8xbf16>, vector<8x8xbf16>, vector<8x8xf32> -> vector<8x8xf32>
    %181 = arith.truncf %180 : vector<8x8xf32> to vector<8x8xbf16>
    %c0_147 = arith.constant 0 : index
    %c3_148 = arith.constant 3 : index
    %c0_149 = arith.constant 0 : index
    %c0_150 = arith.constant 0 : index
    %182 = vector.load %arg10[%c0_147, %c3_148, %c0_149, %c0_150] : memref<2x4x8x32xbf16, #tpu.memory_space<vmem>>, vector<1x1x8x32xbf16>
    %183 = vector.shape_cast %182 : vector<1x1x8x32xbf16> to vector<8x32xbf16>
    %cst_151 = arith.constant dense<0.000000e+00> : vector<8x32xf32>
    %184 = tpu.matmul %181, %183, %cst_151 {dimension_numbers = #tpu.dot_dimension_numbers<[1], [0], [0], [1], [0, 0, 1, 1], [], []>} : vector<8x8xbf16>, vector<8x32xbf16>, vector<8x32xf32> -> vector<8x32xf32>
    %185 = arith.addf %141, %184 : vector<8x32xf32>
    %186 = arith.addf %7, %185 : vector<8x32xf32>
    %c0_152 = arith.constant 0 : index
    %c0_153 = arith.constant 0 : index
    %c0_154 = arith.constant 0 : index
    %187 = vector.load %arg11[%c0_152, %c0_153, %c0_154] : memref<2x1x32xf32, #tpu.memory_space<vmem>>, vector<1x1x32xf32>
    %188 = vector.shape_cast %187 : vector<1x1x32xf32> to vector<1x32xf32>
    %189 = vector.broadcast %188 : vector<1x32xf32> to vector<8x32xf32>
    %190 = arith.addf %186, %189 : vector<8x32xf32>
    %c0_155 = arith.constant 0 : index
    %c0_156 = arith.constant 0 : index
    %c0_157 = arith.constant 0 : index
    %191 = vector.load %arg12[%c0_155, %c0_156, %c0_157] : memref<2x1x32xf32, #tpu.memory_space<vmem>>, vector<1x1x32xf32>
    %192 = vector.shape_cast %191 : vector<1x1x32xf32> to vector<1x32xf32>
    %c0_158 = arith.constant 0 : index
    %c0_159 = arith.constant 0 : index
    %c0_160 = arith.constant 0 : index
    %193 = vector.load %arg13[%c0_158, %c0_159, %c0_160] : memref<2x1x32xf32, #tpu.memory_space<vmem>>, vector<1x1x32xf32>
    %194 = vector.shape_cast %193 : vector<1x1x32xf32> to vector<1x32xf32>
    %cst_161 = arith.constant dense<0.000000e+00> : vector<8xf32>
    %195 = vector.multi_reduction <add>, %190, %cst_161 [1] : vector<8x32xf32> to vector<8xf32>
    %196 = vector.shape_cast %195 : vector<8xf32> to vector<8x1xf32>
    %cst_162 = arith.constant 3.200000e+01 : f32
    %197 = vector.broadcast %cst_162 : f32 to vector<8x1xf32>
    %198 = arith.divf %196, %197 : vector<8x1xf32>
    %199 = vector.broadcast %198 : vector<8x1xf32> to vector<8x32xf32>
    %200 = arith.subf %190, %199 : vector<8x32xf32>
    %201 = arith.mulf %200, %200 : vector<8x32xf32>
    %cst_163 = arith.constant dense<0.000000e+00> : vector<8xf32>
    %202 = vector.multi_reduction <add>, %201, %cst_163 [1] : vector<8x32xf32> to vector<8xf32>
    %203 = vector.shape_cast %202 : vector<8xf32> to vector<8x1xf32>
    %cst_164 = arith.constant 3.200000e+01 : f32
    %204 = vector.broadcast %cst_164 : f32 to vector<8x1xf32>
    %205 = arith.divf %203, %204 : vector<8x1xf32>
    %206 = vector.broadcast %198 : vector<8x1xf32> to vector<8x32xf32>
    %207 = arith.subf %190, %206 : vector<8x32xf32>
    %cst_165 = arith.constant 9.99999974E-6 : f32
    %208 = vector.broadcast %cst_165 : f32 to vector<8x1xf32>
    %209 = arith.addf %205, %208 : vector<8x1xf32>
    %210 = math.rsqrt %209 : vector<8x1xf32>
    %211 = vector.broadcast %210 : vector<8x1xf32> to vector<8x32xf32>
    %212 = arith.mulf %207, %211 : vector<8x32xf32>
    %213 = vector.broadcast %192 : vector<1x32xf32> to vector<8x32xf32>
    %214 = arith.mulf %212, %213 : vector<8x32xf32>
    %215 = vector.broadcast %194 : vector<1x32xf32> to vector<8x32xf32>
    %216 = arith.addf %214, %215 : vector<8x32xf32>
    %217 = arith.truncf %216 : vector<8x32xf32> to vector<8x32xbf16>
    %c0_166 = arith.constant 0 : index
    %c0_167 = arith.constant 0 : index
    %c0_168 = arith.constant 0 : index
    %218 = vector.load %arg14[%c0_166, %c0_167, %c0_168] : memref<2x32x2048xbf16, #tpu.memory_space<vmem>>, vector<1x32x2048xbf16>
    %219 = vector.shape_cast %218 : vector<1x32x2048xbf16> to vector<32x2048xbf16>
    %cst_169 = arith.constant dense<0.000000e+00> : vector<8x2048xf32>
    %220 = tpu.matmul %217, %219, %cst_169 {dimension_numbers = #tpu.dot_dimension_numbers<[1], [0], [0], [1], [0, 0, 1, 1], [], []>} : vector<8x32xbf16>, vector<32x2048xbf16>, vector<8x2048xf32> -> vector<8x2048xf32>
    %c0_170 = arith.constant 0 : index
    %c0_171 = arith.constant 0 : index
    %c0_172 = arith.constant 0 : index
    %221 = vector.load %arg15[%c0_170, %c0_171, %c0_172] : memref<2x1x2048xf32, #tpu.memory_space<vmem>>, vector<1x1x2048xf32>
    %222 = vector.shape_cast %221 : vector<1x1x2048xf32> to vector<1x2048xf32>
    %223 = vector.broadcast %222 : vector<1x2048xf32> to vector<8x2048xf32>
    %224 = arith.addf %220, %223 : vector<8x2048xf32>
    %cst_173 = arith.constant 0.000000e+00 : f32
    %225 = vector.broadcast %cst_173 : f32 to vector<8x2048xf32>
    %226 = arith.maximumf %224, %225 : vector<8x2048xf32>
    %227 = arith.truncf %226 : vector<8x2048xf32> to vector<8x2048xbf16>
    %c0_174 = arith.constant 0 : index
    %c0_175 = arith.constant 0 : index
    %c0_176 = arith.constant 0 : index
    %228 = vector.load %arg16[%c0_174, %c0_175, %c0_176] : memref<2x2048x32xbf16, #tpu.memory_space<vmem>>, vector<1x2048x32xbf16>
    %229 = vector.shape_cast %228 : vector<1x2048x32xbf16> to vector<2048x32xbf16>
    %cst_177 = arith.constant dense<0.000000e+00> : vector<8x32xf32>
    %230 = tpu.matmul %227, %229, %cst_177 {dimension_numbers = #tpu.dot_dimension_numbers<[1], [0], [0], [1], [0, 0, 1, 1], [], []>} : vector<8x2048xbf16>, vector<2048x32xbf16>, vector<8x32xf32> -> vector<8x32xf32>
    %c0_178 = arith.constant 0 : index
    %c0_179 = arith.constant 0 : index
    %c0_180 = arith.constant 0 : index
    %231 = vector.load %arg17[%c0_178, %c0_179, %c0_180] : memref<2x1x32xf32, #tpu.memory_space<vmem>>, vector<1x1x32xf32>
    %232 = vector.shape_cast %231 : vector<1x1x32xf32> to vector<1x32xf32>
    %233 = vector.broadcast %232 : vector<1x32xf32> to vector<8x32xf32>
    %234 = arith.addf %230, %233 : vector<8x32xf32>
    %235 = arith.addf %216, %234 : vector<8x32xf32>
    %c0_181 = arith.constant 0 : index
    %c0_182 = arith.constant 0 : index
    %c0_183 = arith.constant 0 : index
    %236 = vector.load %arg18[%c0_181, %c0_182, %c0_183] : memref<2x1x32xf32, #tpu.memory_space<vmem>>, vector<1x1x32xf32>
    %237 = vector.shape_cast %236 : vector<1x1x32xf32> to vector<1x32xf32>
    %c0_184 = arith.constant 0 : index
    %c0_185 = arith.constant 0 : index
    %c0_186 = arith.constant 0 : index
    %238 = vector.load %arg19[%c0_184, %c0_185, %c0_186] : memref<2x1x32xf32, #tpu.memory_space<vmem>>, vector<1x1x32xf32>
    %239 = vector.shape_cast %238 : vector<1x1x32xf32> to vector<1x32xf32>
    %cst_187 = arith.constant dense<0.000000e+00> : vector<8xf32>
    %240 = vector.multi_reduction <add>, %235, %cst_187 [1] : vector<8x32xf32> to vector<8xf32>
    %241 = vector.shape_cast %240 : vector<8xf32> to vector<8x1xf32>
    %cst_188 = arith.constant 3.200000e+01 : f32
    %242 = vector.broadcast %cst_188 : f32 to vector<8x1xf32>
    %243 = arith.divf %241, %242 : vector<8x1xf32>
    %244 = vector.broadcast %243 : vector<8x1xf32> to vector<8x32xf32>
    %245 = arith.subf %235, %244 : vector<8x32xf32>
    %246 = arith.mulf %245, %245 : vector<8x32xf32>
    %cst_189 = arith.constant dense<0.000000e+00> : vector<8xf32>
    %247 = vector.multi_reduction <add>, %246, %cst_189 [1] : vector<8x32xf32> to vector<8xf32>
    %248 = vector.shape_cast %247 : vector<8xf32> to vector<8x1xf32>
    %cst_190 = arith.constant 3.200000e+01 : f32
    %249 = vector.broadcast %cst_190 : f32 to vector<8x1xf32>
    %250 = arith.divf %248, %249 : vector<8x1xf32>
    %251 = vector.broadcast %243 : vector<8x1xf32> to vector<8x32xf32>
    %252 = arith.subf %235, %251 : vector<8x32xf32>
    %cst_191 = arith.constant 9.99999974E-6 : f32
    %253 = vector.broadcast %cst_191 : f32 to vector<8x1xf32>
    %254 = arith.addf %250, %253 : vector<8x1xf32>
    %255 = math.rsqrt %254 : vector<8x1xf32>
    %256 = vector.broadcast %255 : vector<8x1xf32> to vector<8x32xf32>
    %257 = arith.mulf %252, %256 : vector<8x32xf32>
    %258 = vector.broadcast %237 : vector<1x32xf32> to vector<8x32xf32>
    %259 = arith.mulf %257, %258 : vector<8x32xf32>
    %260 = vector.broadcast %239 : vector<1x32xf32> to vector<8x32xf32>
    %261 = arith.addf %259, %260 : vector<8x32xf32>
    %262 = arith.truncf %261 : vector<8x32xf32> to vector<8x32xbf16>
    %cst_192 = arith.constant 0.000000e+00 : f32
    %263 = vector.broadcast %cst_192 : f32 to vector<8x32xf32>
    %c1_193 = arith.constant 1 : index
    %c0_194 = arith.constant 0 : index
    %c0_195 = arith.constant 0 : index
    %c0_196 = arith.constant 0 : index
    %264 = vector.load %arg4[%c1_193, %c0_194, %c0_195, %c0_196] : memref<2x4x32x8xbf16, #tpu.memory_space<vmem>>, vector<1x1x32x8xbf16>
    %265 = vector.shape_cast %264 : vector<1x1x32x8xbf16> to vector<32x8xbf16>
    %cst_197 = arith.constant dense<0.000000e+00> : vector<8x8xf32>
    %266 = tpu.matmul %262, %265, %cst_197 {dimension_numbers = #tpu.dot_dimension_numbers<[1], [0], [0], [1], [0, 0, 1, 1], [], []>} : vector<8x32xbf16>, vector<32x8xbf16>, vector<8x8xf32> -> vector<8x8xf32>
    %c1_198 = arith.constant 1 : index
    %c0_199 = arith.constant 0 : index
    %c0_200 = arith.constant 0 : index
    %c0_201 = arith.constant 0 : index
    %267 = vector.load %arg5[%c1_198, %c0_199, %c0_200, %c0_201] : memref<2x4x1x8xf32, #tpu.memory_space<vmem>>, vector<1x1x1x8xf32>
    %268 = vector.shape_cast %267 : vector<1x1x1x8xf32> to vector<1x8xf32>
    %269 = vector.broadcast %268 : vector<1x8xf32> to vector<8x8xf32>
    %270 = arith.addf %266, %269 : vector<8x8xf32>
    %c1_202 = arith.constant 1 : index
    %c0_203 = arith.constant 0 : index
    %c0_204 = arith.constant 0 : index
    %c0_205 = arith.constant 0 : index
    %271 = vector.load %arg6[%c1_202, %c0_203, %c0_204, %c0_205] : memref<2x4x32x8xbf16, #tpu.memory_space<vmem>>, vector<1x1x32x8xbf16>
    %272 = vector.shape_cast %271 : vector<1x1x32x8xbf16> to vector<32x8xbf16>
    %cst_206 = arith.constant dense<0.000000e+00> : vector<8x8xf32>
    %273 = tpu.matmul %262, %272, %cst_206 {dimension_numbers = #tpu.dot_dimension_numbers<[1], [0], [0], [1], [0, 0, 1, 1], [], []>} : vector<8x32xbf16>, vector<32x8xbf16>, vector<8x8xf32> -> vector<8x8xf32>
    %c1_207 = arith.constant 1 : index
    %c0_208 = arith.constant 0 : index
    %c0_209 = arith.constant 0 : index
    %c0_210 = arith.constant 0 : index
    %274 = vector.load %arg7[%c1_207, %c0_208, %c0_209, %c0_210] : memref<2x4x1x8xf32, #tpu.memory_space<vmem>>, vector<1x1x1x8xf32>
    %275 = vector.shape_cast %274 : vector<1x1x1x8xf32> to vector<1x8xf32>
    %276 = vector.broadcast %275 : vector<1x8xf32> to vector<8x8xf32>
    %277 = arith.addf %273, %276 : vector<8x8xf32>
    %c1_211 = arith.constant 1 : index
    %c0_212 = arith.constant 0 : index
    %c0_213 = arith.constant 0 : index
    %c0_214 = arith.constant 0 : index
    %278 = vector.load %arg8[%c1_211, %c0_212, %c0_213, %c0_214] : memref<2x4x32x8xbf16, #tpu.memory_space<vmem>>, vector<1x1x32x8xbf16>
    %279 = vector.shape_cast %278 : vector<1x1x32x8xbf16> to vector<32x8xbf16>
    %cst_215 = arith.constant dense<0.000000e+00> : vector<8x8xf32>
    %280 = tpu.matmul %262, %279, %cst_215 {dimension_numbers = #tpu.dot_dimension_numbers<[1], [0], [0], [1], [0, 0, 1, 1], [], []>} : vector<8x32xbf16>, vector<32x8xbf16>, vector<8x8xf32> -> vector<8x8xf32>
    %c1_216 = arith.constant 1 : index
    %c0_217 = arith.constant 0 : index
    %c0_218 = arith.constant 0 : index
    %c0_219 = arith.constant 0 : index
    %281 = vector.load %arg9[%c1_216, %c0_217, %c0_218, %c0_219] : memref<2x4x1x8xf32, #tpu.memory_space<vmem>>, vector<1x1x1x8xf32>
    %282 = vector.shape_cast %281 : vector<1x1x1x8xf32> to vector<1x8xf32>
    %283 = vector.broadcast %282 : vector<1x8xf32> to vector<8x8xf32>
    %284 = arith.addf %280, %283 : vector<8x8xf32>
    %285 = arith.truncf %270 : vector<8x8xf32> to vector<8x8xbf16>
    %286 = arith.truncf %277 : vector<8x8xf32> to vector<8x8xbf16>
    %cst_220 = arith.constant dense<0.000000e+00> : vector<8x8xf32>
    %287 = tpu.matmul %285, %286, %cst_220 {dimension_numbers = #tpu.dot_dimension_numbers<[1], [1], [0], [0], [0, 0, 1, 0], [], []>} : vector<8x8xbf16>, vector<8x8xbf16>, vector<8x8xf32> -> vector<8x8xf32>
    %cst_221 = arith.constant 0.353553385 : f32
    %288 = vector.broadcast %cst_221 : f32 to vector<8x8xf32>
    %289 = arith.mulf %287, %288 : vector<8x8xf32>
    %cst_222 = arith.constant dense<0xFF800000> : vector<8xf32>
    %290 = vector.multi_reduction <maximumf>, %289, %cst_222 [1] : vector<8x8xf32> to vector<8xf32>
    %291 = vector.shape_cast %290 : vector<8xf32> to vector<8x1xf32>
    %292 = vector.broadcast %291 : vector<8x1xf32> to vector<8x8xf32>
    %293 = arith.subf %289, %292 : vector<8x8xf32>
    %294 = math.exp %293 : vector<8x8xf32>
    %cst_223 = arith.constant dense<0.000000e+00> : vector<8xf32>
    %295 = vector.multi_reduction <add>, %294, %cst_223 [1] : vector<8x8xf32> to vector<8xf32>
    %296 = vector.shape_cast %295 : vector<8xf32> to vector<8x1xf32>
    %297 = tpu.reciprocal %296 {approx = true} : vector<8x1xf32> -> vector<8x1xf32>
    %298 = vector.broadcast %297 : vector<8x1xf32> to vector<8x8xf32>
    %299 = arith.mulf %294, %298 : vector<8x8xf32>
    %300 = arith.truncf %299 : vector<8x8xf32> to vector<8x8xbf16>
    %301 = arith.truncf %284 : vector<8x8xf32> to vector<8x8xbf16>
    %cst_224 = arith.constant dense<0.000000e+00> : vector<8x8xf32>
    %302 = tpu.matmul %300, %301, %cst_224 {dimension_numbers = #tpu.dot_dimension_numbers<[1], [0], [0], [1], [0, 0, 1, 1], [], []>} : vector<8x8xbf16>, vector<8x8xbf16>, vector<8x8xf32> -> vector<8x8xf32>
    %303 = arith.truncf %302 : vector<8x8xf32> to vector<8x8xbf16>
    %c1_225 = arith.constant 1 : index
    %c0_226 = arith.constant 0 : index
    %c0_227 = arith.constant 0 : index
    %c0_228 = arith.constant 0 : index
    %304 = vector.load %arg10[%c1_225, %c0_226, %c0_227, %c0_228] : memref<2x4x8x32xbf16, #tpu.memory_space<vmem>>, vector<1x1x8x32xbf16>
    %305 = vector.shape_cast %304 : vector<1x1x8x32xbf16> to vector<8x32xbf16>
    %cst_229 = arith.constant dense<0.000000e+00> : vector<8x32xf32>
    %306 = tpu.matmul %303, %305, %cst_229 {dimension_numbers = #tpu.dot_dimension_numbers<[1], [0], [0], [1], [0, 0, 1, 1], [], []>} : vector<8x8xbf16>, vector<8x32xbf16>, vector<8x32xf32> -> vector<8x32xf32>
    %307 = arith.addf %263, %306 : vector<8x32xf32>
    %c1_230 = arith.constant 1 : index
    %c1_231 = arith.constant 1 : index
    %c0_232 = arith.constant 0 : index
    %c0_233 = arith.constant 0 : index
    %308 = vector.load %arg4[%c1_230, %c1_231, %c0_232, %c0_233] : memref<2x4x32x8xbf16, #tpu.memory_space<vmem>>, vector<1x1x32x8xbf16>
    %309 = vector.shape_cast %308 : vector<1x1x32x8xbf16> to vector<32x8xbf16>
    %cst_234 = arith.constant dense<0.000000e+00> : vector<8x8xf32>
    %310 = tpu.matmul %262, %309, %cst_234 {dimension_numbers = #tpu.dot_dimension_numbers<[1], [0], [0], [1], [0, 0, 1, 1], [], []>} : vector<8x32xbf16>, vector<32x8xbf16>, vector<8x8xf32> -> vector<8x8xf32>
    %c1_235 = arith.constant 1 : index
    %c1_236 = arith.constant 1 : index
    %c0_237 = arith.constant 0 : index
    %c0_238 = arith.constant 0 : index
    %311 = vector.load %arg5[%c1_235, %c1_236, %c0_237, %c0_238] : memref<2x4x1x8xf32, #tpu.memory_space<vmem>>, vector<1x1x1x8xf32>
    %312 = vector.shape_cast %311 : vector<1x1x1x8xf32> to vector<1x8xf32>
    %313 = vector.broadcast %312 : vector<1x8xf32> to vector<8x8xf32>
    %314 = arith.addf %310, %313 : vector<8x8xf32>
    %c1_239 = arith.constant 1 : index
    %c1_240 = arith.constant 1 : index
    %c0_241 = arith.constant 0 : index
    %c0_242 = arith.constant 0 : index
    %315 = vector.load %arg6[%c1_239, %c1_240, %c0_241, %c0_242] : memref<2x4x32x8xbf16, #tpu.memory_space<vmem>>, vector<1x1x32x8xbf16>
    %316 = vector.shape_cast %315 : vector<1x1x32x8xbf16> to vector<32x8xbf16>
    %cst_243 = arith.constant dense<0.000000e+00> : vector<8x8xf32>
    %317 = tpu.matmul %262, %316, %cst_243 {dimension_numbers = #tpu.dot_dimension_numbers<[1], [0], [0], [1], [0, 0, 1, 1], [], []>} : vector<8x32xbf16>, vector<32x8xbf16>, vector<8x8xf32> -> vector<8x8xf32>
    %c1_244 = arith.constant 1 : index
    %c1_245 = arith.constant 1 : index
    %c0_246 = arith.constant 0 : index
    %c0_247 = arith.constant 0 : index
    %318 = vector.load %arg7[%c1_244, %c1_245, %c0_246, %c0_247] : memref<2x4x1x8xf32, #tpu.memory_space<vmem>>, vector<1x1x1x8xf32>
    %319 = vector.shape_cast %318 : vector<1x1x1x8xf32> to vector<1x8xf32>
    %320 = vector.broadcast %319 : vector<1x8xf32> to vector<8x8xf32>
    %321 = arith.addf %317, %320 : vector<8x8xf32>
    %c1_248 = arith.constant 1 : index
    %c1_249 = arith.constant 1 : index
    %c0_250 = arith.constant 0 : index
    %c0_251 = arith.constant 0 : index
    %322 = vector.load %arg8[%c1_248, %c1_249, %c0_250, %c0_251] : memref<2x4x32x8xbf16, #tpu.memory_space<vmem>>, vector<1x1x32x8xbf16>
    %323 = vector.shape_cast %322 : vector<1x1x32x8xbf16> to vector<32x8xbf16>
    %cst_252 = arith.constant dense<0.000000e+00> : vector<8x8xf32>
    %324 = tpu.matmul %262, %323, %cst_252 {dimension_numbers = #tpu.dot_dimension_numbers<[1], [0], [0], [1], [0, 0, 1, 1], [], []>} : vector<8x32xbf16>, vector<32x8xbf16>, vector<8x8xf32> -> vector<8x8xf32>
    %c1_253 = arith.constant 1 : index
    %c1_254 = arith.constant 1 : index
    %c0_255 = arith.constant 0 : index
    %c0_256 = arith.constant 0 : index
    %325 = vector.load %arg9[%c1_253, %c1_254, %c0_255, %c0_256] : memref<2x4x1x8xf32, #tpu.memory_space<vmem>>, vector<1x1x1x8xf32>
    %326 = vector.shape_cast %325 : vector<1x1x1x8xf32> to vector<1x8xf32>
    %327 = vector.broadcast %326 : vector<1x8xf32> to vector<8x8xf32>
    %328 = arith.addf %324, %327 : vector<8x8xf32>
    %329 = arith.truncf %314 : vector<8x8xf32> to vector<8x8xbf16>
    %330 = arith.truncf %321 : vector<8x8xf32> to vector<8x8xbf16>
    %cst_257 = arith.constant dense<0.000000e+00> : vector<8x8xf32>
    %331 = tpu.matmul %329, %330, %cst_257 {dimension_numbers = #tpu.dot_dimension_numbers<[1], [1], [0], [0], [0, 0, 1, 0], [], []>} : vector<8x8xbf16>, vector<8x8xbf16>, vector<8x8xf32> -> vector<8x8xf32>
    %cst_258 = arith.constant 0.353553385 : f32
    %332 = vector.broadcast %cst_258 : f32 to vector<8x8xf32>
    %333 = arith.mulf %331, %332 : vector<8x8xf32>
    %cst_259 = arith.constant dense<0xFF800000> : vector<8xf32>
    %334 = vector.multi_reduction <maximumf>, %333, %cst_259 [1] : vector<8x8xf32> to vector<8xf32>
    %335 = vector.shape_cast %334 : vector<8xf32> to vector<8x1xf32>
    %336 = vector.broadcast %335 : vector<8x1xf32> to vector<8x8xf32>
    %337 = arith.subf %333, %336 : vector<8x8xf32>
    %338 = math.exp %337 : vector<8x8xf32>
    %cst_260 = arith.constant dense<0.000000e+00> : vector<8xf32>
    %339 = vector.multi_reduction <add>, %338, %cst_260 [1] : vector<8x8xf32> to vector<8xf32>
    %340 = vector.shape_cast %339 : vector<8xf32> to vector<8x1xf32>
    %341 = tpu.reciprocal %340 {approx = true} : vector<8x1xf32> -> vector<8x1xf32>
    %342 = vector.broadcast %341 : vector<8x1xf32> to vector<8x8xf32>
    %343 = arith.mulf %338, %342 : vector<8x8xf32>
    %344 = arith.truncf %343 : vector<8x8xf32> to vector<8x8xbf16>
    %345 = arith.truncf %328 : vector<8x8xf32> to vector<8x8xbf16>
    %cst_261 = arith.constant dense<0.000000e+00> : vector<8x8xf32>
    %346 = tpu.matmul %344, %345, %cst_261 {dimension_numbers = #tpu.dot_dimension_numbers<[1], [0], [0], [1], [0, 0, 1, 1], [], []>} : vector<8x8xbf16>, vector<8x8xbf16>, vector<8x8xf32> -> vector<8x8xf32>
    %347 = arith.truncf %346 : vector<8x8xf32> to vector<8x8xbf16>
    %c1_262 = arith.constant 1 : index
    %c1_263 = arith.constant 1 : index
    %c0_264 = arith.constant 0 : index
    %c0_265 = arith.constant 0 : index
    %348 = vector.load %arg10[%c1_262, %c1_263, %c0_264, %c0_265] : memref<2x4x8x32xbf16, #tpu.memory_space<vmem>>, vector<1x1x8x32xbf16>
    %349 = vector.shape_cast %348 : vector<1x1x8x32xbf16> to vector<8x32xbf16>
    %cst_266 = arith.constant dense<0.000000e+00> : vector<8x32xf32>
    %350 = tpu.matmul %347, %349, %cst_266 {dimension_numbers = #tpu.dot_dimension_numbers<[1], [0], [0], [1], [0, 0, 1, 1], [], []>} : vector<8x8xbf16>, vector<8x32xbf16>, vector<8x32xf32> -> vector<8x32xf32>
    %351 = arith.addf %307, %350 : vector<8x32xf32>
    %c1_267 = arith.constant 1 : index
    %c2_268 = arith.constant 2 : index
    %c0_269 = arith.constant 0 : index
    %c0_270 = arith.constant 0 : index
    %352 = vector.load %arg4[%c1_267, %c2_268, %c0_269, %c0_270] : memref<2x4x32x8xbf16, #tpu.memory_space<vmem>>, vector<1x1x32x8xbf16>
    %353 = vector.shape_cast %352 : vector<1x1x32x8xbf16> to vector<32x8xbf16>
    %cst_271 = arith.constant dense<0.000000e+00> : vector<8x8xf32>
    %354 = tpu.matmul %262, %353, %cst_271 {dimension_numbers = #tpu.dot_dimension_numbers<[1], [0], [0], [1], [0, 0, 1, 1], [], []>} : vector<8x32xbf16>, vector<32x8xbf16>, vector<8x8xf32> -> vector<8x8xf32>
    %c1_272 = arith.constant 1 : index
    %c2_273 = arith.constant 2 : index
    %c0_274 = arith.constant 0 : index
    %c0_275 = arith.constant 0 : index
    %355 = vector.load %arg5[%c1_272, %c2_273, %c0_274, %c0_275] : memref<2x4x1x8xf32, #tpu.memory_space<vmem>>, vector<1x1x1x8xf32>
    %356 = vector.shape_cast %355 : vector<1x1x1x8xf32> to vector<1x8xf32>
    %357 = vector.broadcast %356 : vector<1x8xf32> to vector<8x8xf32>
    %358 = arith.addf %354, %357 : vector<8x8xf32>
    %c1_276 = arith.constant 1 : index
    %c2_277 = arith.constant 2 : index
    %c0_278 = arith.constant 0 : index
    %c0_279 = arith.constant 0 : index
    %359 = vector.load %arg6[%c1_276, %c2_277, %c0_278, %c0_279] : memref<2x4x32x8xbf16, #tpu.memory_space<vmem>>, vector<1x1x32x8xbf16>
    %360 = vector.shape_cast %359 : vector<1x1x32x8xbf16> to vector<32x8xbf16>
    %cst_280 = arith.constant dense<0.000000e+00> : vector<8x8xf32>
    %361 = tpu.matmul %262, %360, %cst_280 {dimension_numbers = #tpu.dot_dimension_numbers<[1], [0], [0], [1], [0, 0, 1, 1], [], []>} : vector<8x32xbf16>, vector<32x8xbf16>, vector<8x8xf32> -> vector<8x8xf32>
    %c1_281 = arith.constant 1 : index
    %c2_282 = arith.constant 2 : index
    %c0_283 = arith.constant 0 : index
    %c0_284 = arith.constant 0 : index
    %362 = vector.load %arg7[%c1_281, %c2_282, %c0_283, %c0_284] : memref<2x4x1x8xf32, #tpu.memory_space<vmem>>, vector<1x1x1x8xf32>
    %363 = vector.shape_cast %362 : vector<1x1x1x8xf32> to vector<1x8xf32>
    %364 = vector.broadcast %363 : vector<1x8xf32> to vector<8x8xf32>
    %365 = arith.addf %361, %364 : vector<8x8xf32>
    %c1_285 = arith.constant 1 : index
    %c2_286 = arith.constant 2 : index
    %c0_287 = arith.constant 0 : index
    %c0_288 = arith.constant 0 : index
    %366 = vector.load %arg8[%c1_285, %c2_286, %c0_287, %c0_288] : memref<2x4x32x8xbf16, #tpu.memory_space<vmem>>, vector<1x1x32x8xbf16>
    %367 = vector.shape_cast %366 : vector<1x1x32x8xbf16> to vector<32x8xbf16>
    %cst_289 = arith.constant dense<0.000000e+00> : vector<8x8xf32>
    %368 = tpu.matmul %262, %367, %cst_289 {dimension_numbers = #tpu.dot_dimension_numbers<[1], [0], [0], [1], [0, 0, 1, 1], [], []>} : vector<8x32xbf16>, vector<32x8xbf16>, vector<8x8xf32> -> vector<8x8xf32>
    %c1_290 = arith.constant 1 : index
    %c2_291 = arith.constant 2 : index
    %c0_292 = arith.constant 0 : index
    %c0_293 = arith.constant 0 : index
    %369 = vector.load %arg9[%c1_290, %c2_291, %c0_292, %c0_293] : memref<2x4x1x8xf32, #tpu.memory_space<vmem>>, vector<1x1x1x8xf32>
    %370 = vector.shape_cast %369 : vector<1x1x1x8xf32> to vector<1x8xf32>
    %371 = vector.broadcast %370 : vector<1x8xf32> to vector<8x8xf32>
    %372 = arith.addf %368, %371 : vector<8x8xf32>
    %373 = arith.truncf %358 : vector<8x8xf32> to vector<8x8xbf16>
    %374 = arith.truncf %365 : vector<8x8xf32> to vector<8x8xbf16>
    %cst_294 = arith.constant dense<0.000000e+00> : vector<8x8xf32>
    %375 = tpu.matmul %373, %374, %cst_294 {dimension_numbers = #tpu.dot_dimension_numbers<[1], [1], [0], [0], [0, 0, 1, 0], [], []>} : vector<8x8xbf16>, vector<8x8xbf16>, vector<8x8xf32> -> vector<8x8xf32>
    %cst_295 = arith.constant 0.353553385 : f32
    %376 = vector.broadcast %cst_295 : f32 to vector<8x8xf32>
    %377 = arith.mulf %375, %376 : vector<8x8xf32>
    %cst_296 = arith.constant dense<0xFF800000> : vector<8xf32>
    %378 = vector.multi_reduction <maximumf>, %377, %cst_296 [1] : vector<8x8xf32> to vector<8xf32>
    %379 = vector.shape_cast %378 : vector<8xf32> to vector<8x1xf32>
    %380 = vector.broadcast %379 : vector<8x1xf32> to vector<8x8xf32>
    %381 = arith.subf %377, %380 : vector<8x8xf32>
    %382 = math.exp %381 : vector<8x8xf32>
    %cst_297 = arith.constant dense<0.000000e+00> : vector<8xf32>
    %383 = vector.multi_reduction <add>, %382, %cst_297 [1] : vector<8x8xf32> to vector<8xf32>
    %384 = vector.shape_cast %383 : vector<8xf32> to vector<8x1xf32>
    %385 = tpu.reciprocal %384 {approx = true} : vector<8x1xf32> -> vector<8x1xf32>
    %386 = vector.broadcast %385 : vector<8x1xf32> to vector<8x8xf32>
    %387 = arith.mulf %382, %386 : vector<8x8xf32>
    %388 = arith.truncf %387 : vector<8x8xf32> to vector<8x8xbf16>
    %389 = arith.truncf %372 : vector<8x8xf32> to vector<8x8xbf16>
    %cst_298 = arith.constant dense<0.000000e+00> : vector<8x8xf32>
    %390 = tpu.matmul %388, %389, %cst_298 {dimension_numbers = #tpu.dot_dimension_numbers<[1], [0], [0], [1], [0, 0, 1, 1], [], []>} : vector<8x8xbf16>, vector<8x8xbf16>, vector<8x8xf32> -> vector<8x8xf32>
    %391 = arith.truncf %390 : vector<8x8xf32> to vector<8x8xbf16>
    %c1_299 = arith.constant 1 : index
    %c2_300 = arith.constant 2 : index
    %c0_301 = arith.constant 0 : index
    %c0_302 = arith.constant 0 : index
    %392 = vector.load %arg10[%c1_299, %c2_300, %c0_301, %c0_302] : memref<2x4x8x32xbf16, #tpu.memory_space<vmem>>, vector<1x1x8x32xbf16>
    %393 = vector.shape_cast %392 : vector<1x1x8x32xbf16> to vector<8x32xbf16>
    %cst_303 = arith.constant dense<0.000000e+00> : vector<8x32xf32>
    %394 = tpu.matmul %391, %393, %cst_303 {dimension_numbers = #tpu.dot_dimension_numbers<[1], [0], [0], [1], [0, 0, 1, 1], [], []>} : vector<8x8xbf16>, vector<8x32xbf16>, vector<8x32xf32> -> vector<8x32xf32>
    %395 = arith.addf %351, %394 : vector<8x32xf32>
    %c1_304 = arith.constant 1 : index
    %c3_305 = arith.constant 3 : index
    %c0_306 = arith.constant 0 : index
    %c0_307 = arith.constant 0 : index
    %396 = vector.load %arg4[%c1_304, %c3_305, %c0_306, %c0_307] : memref<2x4x32x8xbf16, #tpu.memory_space<vmem>>, vector<1x1x32x8xbf16>
    %397 = vector.shape_cast %396 : vector<1x1x32x8xbf16> to vector<32x8xbf16>
    %cst_308 = arith.constant dense<0.000000e+00> : vector<8x8xf32>
    %398 = tpu.matmul %262, %397, %cst_308 {dimension_numbers = #tpu.dot_dimension_numbers<[1], [0], [0], [1], [0, 0, 1, 1], [], []>} : vector<8x32xbf16>, vector<32x8xbf16>, vector<8x8xf32> -> vector<8x8xf32>
    %c1_309 = arith.constant 1 : index
    %c3_310 = arith.constant 3 : index
    %c0_311 = arith.constant 0 : index
    %c0_312 = arith.constant 0 : index
    %399 = vector.load %arg5[%c1_309, %c3_310, %c0_311, %c0_312] : memref<2x4x1x8xf32, #tpu.memory_space<vmem>>, vector<1x1x1x8xf32>
    %400 = vector.shape_cast %399 : vector<1x1x1x8xf32> to vector<1x8xf32>
    %401 = vector.broadcast %400 : vector<1x8xf32> to vector<8x8xf32>
    %402 = arith.addf %398, %401 : vector<8x8xf32>
    %c1_313 = arith.constant 1 : index
    %c3_314 = arith.constant 3 : index
    %c0_315 = arith.constant 0 : index
    %c0_316 = arith.constant 0 : index
    %403 = vector.load %arg6[%c1_313, %c3_314, %c0_315, %c0_316] : memref<2x4x32x8xbf16, #tpu.memory_space<vmem>>, vector<1x1x32x8xbf16>
    %404 = vector.shape_cast %403 : vector<1x1x32x8xbf16> to vector<32x8xbf16>
    %cst_317 = arith.constant dense<0.000000e+00> : vector<8x8xf32>
    %405 = tpu.matmul %262, %404, %cst_317 {dimension_numbers = #tpu.dot_dimension_numbers<[1], [0], [0], [1], [0, 0, 1, 1], [], []>} : vector<8x32xbf16>, vector<32x8xbf16>, vector<8x8xf32> -> vector<8x8xf32>
    %c1_318 = arith.constant 1 : index
    %c3_319 = arith.constant 3 : index
    %c0_320 = arith.constant 0 : index
    %c0_321 = arith.constant 0 : index
    %406 = vector.load %arg7[%c1_318, %c3_319, %c0_320, %c0_321] : memref<2x4x1x8xf32, #tpu.memory_space<vmem>>, vector<1x1x1x8xf32>
    %407 = vector.shape_cast %406 : vector<1x1x1x8xf32> to vector<1x8xf32>
    %408 = vector.broadcast %407 : vector<1x8xf32> to vector<8x8xf32>
    %409 = arith.addf %405, %408 : vector<8x8xf32>
    %c1_322 = arith.constant 1 : index
    %c3_323 = arith.constant 3 : index
    %c0_324 = arith.constant 0 : index
    %c0_325 = arith.constant 0 : index
    %410 = vector.load %arg8[%c1_322, %c3_323, %c0_324, %c0_325] : memref<2x4x32x8xbf16, #tpu.memory_space<vmem>>, vector<1x1x32x8xbf16>
    %411 = vector.shape_cast %410 : vector<1x1x32x8xbf16> to vector<32x8xbf16>
    %cst_326 = arith.constant dense<0.000000e+00> : vector<8x8xf32>
    %412 = tpu.matmul %262, %411, %cst_326 {dimension_numbers = #tpu.dot_dimension_numbers<[1], [0], [0], [1], [0, 0, 1, 1], [], []>} : vector<8x32xbf16>, vector<32x8xbf16>, vector<8x8xf32> -> vector<8x8xf32>
    %c1_327 = arith.constant 1 : index
    %c3_328 = arith.constant 3 : index
    %c0_329 = arith.constant 0 : index
    %c0_330 = arith.constant 0 : index
    %413 = vector.load %arg9[%c1_327, %c3_328, %c0_329, %c0_330] : memref<2x4x1x8xf32, #tpu.memory_space<vmem>>, vector<1x1x1x8xf32>
    %414 = vector.shape_cast %413 : vector<1x1x1x8xf32> to vector<1x8xf32>
    %415 = vector.broadcast %414 : vector<1x8xf32> to vector<8x8xf32>
    %416 = arith.addf %412, %415 : vector<8x8xf32>
    %417 = arith.truncf %402 : vector<8x8xf32> to vector<8x8xbf16>
    %418 = arith.truncf %409 : vector<8x8xf32> to vector<8x8xbf16>
    %cst_331 = arith.constant dense<0.000000e+00> : vector<8x8xf32>
    %419 = tpu.matmul %417, %418, %cst_331 {dimension_numbers = #tpu.dot_dimension_numbers<[1], [1], [0], [0], [0, 0, 1, 0], [], []>} : vector<8x8xbf16>, vector<8x8xbf16>, vector<8x8xf32> -> vector<8x8xf32>
    %cst_332 = arith.constant 0.353553385 : f32
    %420 = vector.broadcast %cst_332 : f32 to vector<8x8xf32>
    %421 = arith.mulf %419, %420 : vector<8x8xf32>
    %cst_333 = arith.constant dense<0xFF800000> : vector<8xf32>
    %422 = vector.multi_reduction <maximumf>, %421, %cst_333 [1] : vector<8x8xf32> to vector<8xf32>
    %423 = vector.shape_cast %422 : vector<8xf32> to vector<8x1xf32>
    %424 = vector.broadcast %423 : vector<8x1xf32> to vector<8x8xf32>
    %425 = arith.subf %421, %424 : vector<8x8xf32>
    %426 = math.exp %425 : vector<8x8xf32>
    %cst_334 = arith.constant dense<0.000000e+00> : vector<8xf32>
    %427 = vector.multi_reduction <add>, %426, %cst_334 [1] : vector<8x8xf32> to vector<8xf32>
    %428 = vector.shape_cast %427 : vector<8xf32> to vector<8x1xf32>
    %429 = tpu.reciprocal %428 {approx = true} : vector<8x1xf32> -> vector<8x1xf32>
    %430 = vector.broadcast %429 : vector<8x1xf32> to vector<8x8xf32>
    %431 = arith.mulf %426, %430 : vector<8x8xf32>
    %432 = arith.truncf %431 : vector<8x8xf32> to vector<8x8xbf16>
    %433 = arith.truncf %416 : vector<8x8xf32> to vector<8x8xbf16>
    %cst_335 = arith.constant dense<0.000000e+00> : vector<8x8xf32>
    %434 = tpu.matmul %432, %433, %cst_335 {dimension_numbers = #tpu.dot_dimension_numbers<[1], [0], [0], [1], [0, 0, 1, 1], [], []>} : vector<8x8xbf16>, vector<8x8xbf16>, vector<8x8xf32> -> vector<8x8xf32>
    %435 = arith.truncf %434 : vector<8x8xf32> to vector<8x8xbf16>
    %c1_336 = arith.constant 1 : index
    %c3_337 = arith.constant 3 : index
    %c0_338 = arith.constant 0 : index
    %c0_339 = arith.constant 0 : index
    %436 = vector.load %arg10[%c1_336, %c3_337, %c0_338, %c0_339] : memref<2x4x8x32xbf16, #tpu.memory_space<vmem>>, vector<1x1x8x32xbf16>
    %437 = vector.shape_cast %436 : vector<1x1x8x32xbf16> to vector<8x32xbf16>
    %cst_340 = arith.constant dense<0.000000e+00> : vector<8x32xf32>
    %438 = tpu.matmul %435, %437, %cst_340 {dimension_numbers = #tpu.dot_dimension_numbers<[1], [0], [0], [1], [0, 0, 1, 1], [], []>} : vector<8x8xbf16>, vector<8x32xbf16>, vector<8x32xf32> -> vector<8x32xf32>
    %439 = arith.addf %395, %438 : vector<8x32xf32>
    %440 = arith.addf %261, %439 : vector<8x32xf32>
    %c1_341 = arith.constant 1 : index
    %c0_342 = arith.constant 0 : index
    %c0_343 = arith.constant 0 : index
    %441 = vector.load %arg11[%c1_341, %c0_342, %c0_343] : memref<2x1x32xf32, #tpu.memory_space<vmem>>, vector<1x1x32xf32>
    %442 = vector.shape_cast %441 : vector<1x1x32xf32> to vector<1x32xf32>
    %443 = vector.broadcast %442 : vector<1x32xf32> to vector<8x32xf32>
    %444 = arith.addf %440, %443 : vector<8x32xf32>
    %c1_344 = arith.constant 1 : index
    %c0_345 = arith.constant 0 : index
    %c0_346 = arith.constant 0 : index
    %445 = vector.load %arg12[%c1_344, %c0_345, %c0_346] : memref<2x1x32xf32, #tpu.memory_space<vmem>>, vector<1x1x32xf32>
    %446 = vector.shape_cast %445 : vector<1x1x32xf32> to vector<1x32xf32>
    %c1_347 = arith.constant 1 : index
    %c0_348 = arith.constant 0 : index
    %c0_349 = arith.constant 0 : index
    %447 = vector.load %arg13[%c1_347, %c0_348, %c0_349] : memref<2x1x32xf32, #tpu.memory_space<vmem>>, vector<1x1x32xf32>
    %448 = vector.shape_cast %447 : vector<1x1x32xf32> to vector<1x32xf32>
    %cst_350 = arith.constant dense<0.000000e+00> : vector<8xf32>
    %449 = vector.multi_reduction <add>, %444, %cst_350 [1] : vector<8x32xf32> to vector<8xf32>
    %450 = vector.shape_cast %449 : vector<8xf32> to vector<8x1xf32>
    %cst_351 = arith.constant 3.200000e+01 : f32
    %451 = vector.broadcast %cst_351 : f32 to vector<8x1xf32>
    %452 = arith.divf %450, %451 : vector<8x1xf32>
    %453 = vector.broadcast %452 : vector<8x1xf32> to vector<8x32xf32>
    %454 = arith.subf %444, %453 : vector<8x32xf32>
    %455 = arith.mulf %454, %454 : vector<8x32xf32>
    %cst_352 = arith.constant dense<0.000000e+00> : vector<8xf32>
    %456 = vector.multi_reduction <add>, %455, %cst_352 [1] : vector<8x32xf32> to vector<8xf32>
    %457 = vector.shape_cast %456 : vector<8xf32> to vector<8x1xf32>
    %cst_353 = arith.constant 3.200000e+01 : f32
    %458 = vector.broadcast %cst_353 : f32 to vector<8x1xf32>
    %459 = arith.divf %457, %458 : vector<8x1xf32>
    %460 = vector.broadcast %452 : vector<8x1xf32> to vector<8x32xf32>
    %461 = arith.subf %444, %460 : vector<8x32xf32>
    %cst_354 = arith.constant 9.99999974E-6 : f32
    %462 = vector.broadcast %cst_354 : f32 to vector<8x1xf32>
    %463 = arith.addf %459, %462 : vector<8x1xf32>
    %464 = math.rsqrt %463 : vector<8x1xf32>
    %465 = vector.broadcast %464 : vector<8x1xf32> to vector<8x32xf32>
    %466 = arith.mulf %461, %465 : vector<8x32xf32>
    %467 = vector.broadcast %446 : vector<1x32xf32> to vector<8x32xf32>
    %468 = arith.mulf %466, %467 : vector<8x32xf32>
    %469 = vector.broadcast %448 : vector<1x32xf32> to vector<8x32xf32>
    %470 = arith.addf %468, %469 : vector<8x32xf32>
    %471 = arith.truncf %470 : vector<8x32xf32> to vector<8x32xbf16>
    %c1_355 = arith.constant 1 : index
    %c0_356 = arith.constant 0 : index
    %c0_357 = arith.constant 0 : index
    %472 = vector.load %arg14[%c1_355, %c0_356, %c0_357] : memref<2x32x2048xbf16, #tpu.memory_space<vmem>>, vector<1x32x2048xbf16>
    %473 = vector.shape_cast %472 : vector<1x32x2048xbf16> to vector<32x2048xbf16>
    %cst_358 = arith.constant dense<0.000000e+00> : vector<8x2048xf32>
    %474 = tpu.matmul %471, %473, %cst_358 {dimension_numbers = #tpu.dot_dimension_numbers<[1], [0], [0], [1], [0, 0, 1, 1], [], []>} : vector<8x32xbf16>, vector<32x2048xbf16>, vector<8x2048xf32> -> vector<8x2048xf32>
    %c1_359 = arith.constant 1 : index
    %c0_360 = arith.constant 0 : index
    %c0_361 = arith.constant 0 : index
    %475 = vector.load %arg15[%c1_359, %c0_360, %c0_361] : memref<2x1x2048xf32, #tpu.memory_space<vmem>>, vector<1x1x2048xf32>
    %476 = vector.shape_cast %475 : vector<1x1x2048xf32> to vector<1x2048xf32>
    %477 = vector.broadcast %476 : vector<1x2048xf32> to vector<8x2048xf32>
    %478 = arith.addf %474, %477 : vector<8x2048xf32>
    %cst_362 = arith.constant 0.000000e+00 : f32
    %479 = vector.broadcast %cst_362 : f32 to vector<8x2048xf32>
    %480 = arith.maximumf %478, %479 : vector<8x2048xf32>
    %481 = arith.truncf %480 : vector<8x2048xf32> to vector<8x2048xbf16>
    %c1_363 = arith.constant 1 : index
    %c0_364 = arith.constant 0 : index
    %c0_365 = arith.constant 0 : index
    %482 = vector.load %arg16[%c1_363, %c0_364, %c0_365] : memref<2x2048x32xbf16, #tpu.memory_space<vmem>>, vector<1x2048x32xbf16>
    %483 = vector.shape_cast %482 : vector<1x2048x32xbf16> to vector<2048x32xbf16>
    %cst_366 = arith.constant dense<0.000000e+00> : vector<8x32xf32>
    %484 = tpu.matmul %481, %483, %cst_366 {dimension_numbers = #tpu.dot_dimension_numbers<[1], [0], [0], [1], [0, 0, 1, 1], [], []>} : vector<8x2048xbf16>, vector<2048x32xbf16>, vector<8x32xf32> -> vector<8x32xf32>
    %c1_367 = arith.constant 1 : index
    %c0_368 = arith.constant 0 : index
    %c0_369 = arith.constant 0 : index
    %485 = vector.load %arg17[%c1_367, %c0_368, %c0_369] : memref<2x1x32xf32, #tpu.memory_space<vmem>>, vector<1x1x32xf32>
    %486 = vector.shape_cast %485 : vector<1x1x32xf32> to vector<1x32xf32>
    %487 = vector.broadcast %486 : vector<1x32xf32> to vector<8x32xf32>
    %488 = arith.addf %484, %487 : vector<8x32xf32>
    %489 = arith.addf %470, %488 : vector<8x32xf32>
    %c1_370 = arith.constant 1 : index
    %c0_371 = arith.constant 0 : index
    %c0_372 = arith.constant 0 : index
    %490 = vector.load %arg18[%c1_370, %c0_371, %c0_372] : memref<2x1x32xf32, #tpu.memory_space<vmem>>, vector<1x1x32xf32>
    %491 = vector.shape_cast %490 : vector<1x1x32xf32> to vector<1x32xf32>
    %c1_373 = arith.constant 1 : index
    %c0_374 = arith.constant 0 : index
    %c0_375 = arith.constant 0 : index
    %492 = vector.load %arg19[%c1_373, %c0_374, %c0_375] : memref<2x1x32xf32, #tpu.memory_space<vmem>>, vector<1x1x32xf32>
    %493 = vector.shape_cast %492 : vector<1x1x32xf32> to vector<1x32xf32>
    %cst_376 = arith.constant dense<0.000000e+00> : vector<8xf32>
    %494 = vector.multi_reduction <add>, %489, %cst_376 [1] : vector<8x32xf32> to vector<8xf32>
    %495 = vector.shape_cast %494 : vector<8xf32> to vector<8x1xf32>
    %cst_377 = arith.constant 3.200000e+01 : f32
    %496 = vector.broadcast %cst_377 : f32 to vector<8x1xf32>
    %497 = arith.divf %495, %496 : vector<8x1xf32>
    %498 = vector.broadcast %497 : vector<8x1xf32> to vector<8x32xf32>
    %499 = arith.subf %489, %498 : vector<8x32xf32>
    %500 = arith.mulf %499, %499 : vector<8x32xf32>
    %cst_378 = arith.constant dense<0.000000e+00> : vector<8xf32>
    %501 = vector.multi_reduction <add>, %500, %cst_378 [1] : vector<8x32xf32> to vector<8xf32>
    %502 = vector.shape_cast %501 : vector<8xf32> to vector<8x1xf32>
    %cst_379 = arith.constant 3.200000e+01 : f32
    %503 = vector.broadcast %cst_379 : f32 to vector<8x1xf32>
    %504 = arith.divf %502, %503 : vector<8x1xf32>
    %505 = vector.broadcast %497 : vector<8x1xf32> to vector<8x32xf32>
    %506 = arith.subf %489, %505 : vector<8x32xf32>
    %cst_380 = arith.constant 9.99999974E-6 : f32
    %507 = vector.broadcast %cst_380 : f32 to vector<8x1xf32>
    %508 = arith.addf %504, %507 : vector<8x1xf32>
    %509 = math.rsqrt %508 : vector<8x1xf32>
    %510 = vector.broadcast %509 : vector<8x1xf32> to vector<8x32xf32>
    %511 = arith.mulf %506, %510 : vector<8x32xf32>
    %512 = vector.broadcast %491 : vector<1x32xf32> to vector<8x32xf32>
    %513 = arith.mulf %511, %512 : vector<8x32xf32>
    %514 = vector.broadcast %493 : vector<1x32xf32> to vector<8x32xf32>
    %515 = arith.addf %513, %514 : vector<8x32xf32>
    %516 = vector.extract_strided_slice %515 {offsets = [7, 0], sizes = [1, 32], strides = [1, 1]} : vector<8x32xf32> to vector<1x32xf32>
    %517 = arith.truncf %516 : vector<1x32xf32> to vector<1x32xbf16>
    %c0_381 = arith.constant 0 : index
    %c0_382 = arith.constant 0 : index
    %518 = vector.load %arg20[%c0_381, %c0_382] : memref<32x10xbf16, #tpu.memory_space<vmem>>, vector<32x10xbf16>
    %cst_383 = arith.constant dense<0.000000e+00> : vector<1x10xf32>
    %519 = tpu.matmul %517, %518, %cst_383 {dimension_numbers = #tpu.dot_dimension_numbers<[1], [0], [0], [1], [0, 0, 1, 1], [], []>} : vector<1x32xbf16>, vector<32x10xbf16>, vector<1x10xf32> -> vector<1x10xf32>
    %c0_384 = arith.constant 0 : index
    %c0_385 = arith.constant 0 : index
    %520 = vector.load %arg21[%c0_384, %c0_385] : memref<1x10xf32, #tpu.memory_space<vmem>>, vector<1x10xf32>
    %521 = arith.addf %519, %520 : vector<1x10xf32>
    %c0_386 = arith.constant 0 : index
    %c0_387 = arith.constant 0 : index
    %c0_388 = arith.constant 0 : index
    %522 = vector.load %arg22[%c0_386, %c0_387, %c0_388] : memref<1x1x10xf32, #tpu.memory_space<vmem>>, vector<1x1x10xf32>
    %523 = vector.shape_cast %522 : vector<1x1x10xf32> to vector<1x10xf32>
    %524 = vector.shape_cast %521 : vector<1x10xf32> to vector<1x1x10xf32>
    tpu.vector_store %arg22[%c0_386, %c0_387, %c0_388], %524 {strides = array<i32>} : memref<1x1x10xf32, #tpu.memory_space<vmem>>, vector<1x1x10xf32>,
    return
  }
  func.func @transform_0(%arg0: i32) -> (i32, i32, i32) {
    %c0_i32 = arith.constant 0 : i32
    %c0_i32_0 = arith.constant 0 : i32
    %c0_i32_1 = arith.constant 0 : i32
    return %arg0, %c0_i32, %c0_i32_0 : i32, i32, i32
  }
  func.func @transform_1(%arg0: i32) -> (i32, i32) {
    %c0_i32 = arith.constant 0 : i32
    %c0_i32_0 = arith.constant 0 : i32
    %c0_i32_1 = arith.constant 0 : i32
    return %c0_i32, %c0_i32_0 : i32, i32
  }
  func.func @transform_2(%arg0: i32) -> (i32, i32) {
    %c0_i32 = arith.constant 0 : i32
    %c0_i32_0 = arith.constant 0 : i32
    %c0_i32_1 = arith.constant 0 : i32
    return %c0_i32, %c0_i32_0 : i32, i32
  }
  func.func @transform_3(%arg0: i32) -> (i32, i32, i32, i32) {
    %c0_i32 = arith.constant 0 : i32
    %c0_i32_0 = arith.constant 0 : i32
    %c0_i32_1 = arith.constant 0 : i32
    %c0_i32_2 = arith.constant 0 : i32
    %c0_i32_3 = arith.constant 0 : i32
    return %c0_i32, %c0_i32_0, %c0_i32_1, %c0_i32_2 : i32, i32, i32, i32
  }
  func.func @transform_4(%arg0: i32) -> (i32, i32, i32, i32) {
    %c0_i32 = arith.constant 0 : i32
    %c0_i32_0 = arith.constant 0 : i32
    %c0_i32_1 = arith.constant 0 : i32
    %c0_i32_2 = arith.constant 0 : i32
    %c0_i32_3 = arith.constant 0 : i32
    return %c0_i32, %c0_i32_0, %c0_i32_1, %c0_i32_2 : i32, i32, i32, i32
  }
  func.func @transform_5(%arg0: i32) -> (i32, i32, i32, i32) {
    %c0_i32 = arith.constant 0 : i32
    %c0_i32_0 = arith.constant 0 : i32
    %c0_i32_1 = arith.constant 0 : i32
    %c0_i32_2 = arith.constant 0 : i32
    %c0_i32_3 = arith.constant 0 : i32
    return %c0_i32, %c0_i32_0, %c0_i32_1, %c0_i32_2 : i32, i32, i32, i32
  }
  func.func @transform_6(%arg0: i32) -> (i32, i32, i32, i32) {
    %c0_i32 = arith.constant 0 : i32
    %c0_i32_0 = arith.constant 0 : i32
    %c0_i32_1 = arith.constant 0 : i32
    %c0_i32_2 = arith.constant 0 : i32
    %c0_i32_3 = arith.constant 0 : i32
    return %c0_i32, %c0_i32_0, %c0_i32_1, %c0_i32_2 : i32, i32, i32, i32
  }
  func.func @transform_7(%arg0: i32) -> (i32, i32, i32, i32) {
    %c0_i32 = arith.constant 0 : i32
    %c0_i32_0 = arith.constant 0 : i32
    %c0_i32_1 = arith.constant 0 : i32
    %c0_i32_2 = arith.constant 0 : i32
    %c0_i32_3 = arith.constant 0 : i32
    return %c0_i32, %c0_i32_0, %c0_i32_1, %c0_i32_2 : i32, i32, i32, i32
  }
  func.func @transform_8(%arg0: i32) -> (i32, i32, i32, i32) {
    %c0_i32 = arith.constant 0 : i32
    %c0_i32_0 = arith.constant 0 : i32
    %c0_i32_1 = arith.constant 0 : i32
    %c0_i32_2 = arith.constant 0 : i32
    %c0_i32_3 = arith.constant 0 : i32
    return %c0_i32, %c0_i32_0, %c0_i32_1, %c0_i32_2 : i32, i32, i32, i32
  }
  func.func @transform_9(%arg0: i32) -> (i32, i32, i32, i32) {
    %c0_i32 = arith.constant 0 : i32
    %c0_i32_0 = arith.constant 0 : i32
    %c0_i32_1 = arith.constant 0 : i32
    %c0_i32_2 = arith.constant 0 : i32
    %c0_i32_3 = arith.constant 0 : i32
    return %c0_i32, %c0_i32_0, %c0_i32_1, %c0_i32_2 : i32, i32, i32, i32
  }
  func.func @transform_10(%arg0: i32) -> (i32, i32, i32) {
    %c0_i32 = arith.constant 0 : i32
    %c0_i32_0 = arith.constant 0 : i32
    %c0_i32_1 = arith.constant 0 : i32
    %c0_i32_2 = arith.constant 0 : i32
    return %c0_i32, %c0_i32_0, %c0_i32_1 : i32, i32, i32
  }
  func.func @transform_11(%arg0: i32) -> (i32, i32, i32) {
    %c0_i32 = arith.constant 0 : i32
    %c0_i32_0 = arith.constant 0 : i32
    %c0_i32_1 = arith.constant 0 : i32
    %c0_i32_2 = arith.constant 0 : i32
    return %c0_i32, %c0_i32_0, %c0_i32_1 : i32, i32, i32
  }
  func.func @transform_12(%arg0: i32) -> (i32, i32, i32) {
    %c0_i32 = arith.constant 0 : i32
    %c0_i32_0 = arith.constant 0 : i32
    %c0_i32_1 = arith.constant 0 : i32
    %c0_i32_2 = arith.constant 0 : i32
    return %c0_i32, %c0_i32_0, %c0_i32_1 : i32, i32, i32
  }
  func.func @transform_13(%arg0: i32) -> (i32, i32, i32) {
    %c0_i32 = arith.constant 0 : i32
    %c0_i32_0 = arith.constant 0 : i32
    %c0_i32_1 = arith.constant 0 : i32
    %c0_i32_2 = arith.constant 0 : i32
    return %c0_i32, %c0_i32_0, %c0_i32_1 : i32, i32, i32
  }
  func.func @transform_14(%arg0: i32) -> (i32, i32, i32) {
    %c0_i32 = arith.constant 0 : i32
    %c0_i32_0 = arith.constant 0 : i32
    %c0_i32_1 = arith.constant 0 : i32
    %c0_i32_2 = arith.constant 0 : i32
    return %c0_i32, %c0_i32_0, %c0_i32_1 : i32, i32, i32
  }
  func.func @transform_15(%arg0: i32) -> (i32, i32, i32) {
    %c0_i32 = arith.constant 0 : i32
    %c0_i32_0 = arith.constant 0 : i32
    %c0_i32_1 = arith.constant 0 : i32
    %c0_i32_2 = arith.constant 0 : i32
    return %c0_i32, %c0_i32_0, %c0_i32_1 : i32, i32, i32
  }
  func.func @transform_16(%arg0: i32) -> (i32, i32, i32) {
    %c0_i32 = arith.constant 0 : i32
    %c0_i32_0 = arith.constant 0 : i32
    %c0_i32_1 = arith.constant 0 : i32
    %c0_i32_2 = arith.constant 0 : i32
    return %c0_i32, %c0_i32_0, %c0_i32_1 : i32, i32, i32
  }
  func.func @transform_17(%arg0: i32) -> (i32, i32, i32) {
    %c0_i32 = arith.constant 0 : i32
    %c0_i32_0 = arith.constant 0 : i32
    %c0_i32_1 = arith.constant 0 : i32
    %c0_i32_2 = arith.constant 0 : i32
    return %c0_i32, %c0_i32_0, %c0_i32_1 : i32, i32, i32
  }
  func.func @transform_18(%arg0: i32) -> (i32, i32, i32) {
    %c0_i32 = arith.constant 0 : i32
    %c0_i32_0 = arith.constant 0 : i32
    %c0_i32_1 = arith.constant 0 : i32
    %c0_i32_2 = arith.constant 0 : i32
    return %c0_i32, %c0_i32_0, %c0_i32_1 : i32, i32, i32
  }
  func.func @transform_19(%arg0: i32) -> (i32, i32) {
    %c0_i32 = arith.constant 0 : i32
    %c0_i32_0 = arith.constant 0 : i32
    %c0_i32_1 = arith.constant 0 : i32
    return %c0_i32, %c0_i32_0 : i32, i32
  }
  func.func @transform_20(%arg0: i32) -> (i32, i32) {
    %c0_i32 = arith.constant 0 : i32
    %c0_i32_0 = arith.constant 0 : i32
    %c0_i32_1 = arith.constant 0 : i32
    return %c0_i32, %c0_i32_0 : i32, i32
  }
  func.func @transform_21(%arg0: i32) -> (i32, i32, i32) {
    %c0_i32 = arith.constant 0 : i32
    %c0_i32_0 = arith.constant 0 : i32
    %c0_i32_1 = arith.constant 0 : i32
    return %arg0, %c0_i32, %c0_i32_0 : i32, i32, i32
  }
}

</mosaic_0001>

<llo_original>
// kernel: simple_transformer_forward.1
$region0: #{simple_transformer_forward.1}
  #allocation0 [shape = 'u32[]', space=smem, size = 0x4, offset = 0x4, fixed_abs, tag = 'smem constant byte address 0x4 - core index']
  #allocation1 [shape = 'u32[72,128]{1,0:T(1,128)}', space=vmem, size = 0x9000, scoped, tag = 'internal scratch']
  %s0 = inlined_call_operand.vmem [shape: f32[2,8,16], index: 0, kind: input, shape index: {}]
  %s1 = inlined_call_operand.vmem [shape: bf16[16,32], index: 1, kind: input, shape index: {}]
  %s2 = inlined_call_operand.vmem [shape: f32[1,32], index: 2, kind: input, shape index: {}]
  %s3 = inlined_call_operand.vmem [shape: bf16[2,4,32,8], index: 3, kind: input, shape index: {}]
  %s4 = inlined_call_operand.vmem [shape: f32[2,4,1,8], index: 4, kind: input, shape index: {}]
  %s5 = inlined_call_operand.vmem [shape: bf16[2,4,32,8], index: 5, kind: input, shape index: {}]
  %s6 = inlined_call_operand.vmem [shape: f32[2,4,1,8], index: 6, kind: input, shape index: {}]
  %s7 = inlined_call_operand.vmem [shape: bf16[2,4,32,8], index: 7, kind: input, shape index: {}]
  %s8 = inlined_call_operand.vmem [shape: f32[2,4,1,8], index: 8, kind: input, shape index: {}]
  %s9 = inlined_call_operand.vmem [shape: bf16[2,4,8,32], index: 9, kind: input, shape index: {}]
  %s10 = inlined_call_operand.vmem [shape: f32[2,1,32], index: 10, kind: input, shape index: {}]
  %s11 = inlined_call_operand.vmem [shape: f32[2,1,32], index: 11, kind: input, shape index: {}]
  %s12 = inlined_call_operand.vmem [shape: f32[2,1,32], index: 12, kind: input, shape index: {}]
  %s13 = inlined_call_operand.vmem [shape: bf16[2,32,2048], index: 13, kind: input, shape index: {}]
  %s14 = inlined_call_operand.vmem [shape: f32[2,1,2048], index: 14, kind: input, shape index: {}]
  %s15 = inlined_call_operand.vmem [shape: bf16[2,2048,32], index: 15, kind: input, shape index: {}]
  %s16 = inlined_call_operand.vmem [shape: f32[2,1,32], index: 16, kind: input, shape index: {}]
  %s17 = inlined_call_operand.vmem [shape: f32[2,1,32], index: 17, kind: input, shape index: {}]
  %s18 = inlined_call_operand.vmem [shape: f32[2,1,32], index: 18, kind: input, shape index: {}]
  %s19 = inlined_call_operand.vmem [shape: bf16[32,10], index: 19, kind: input, shape index: {}]
  %s20 = inlined_call_operand.vmem [shape: f32[1,10], index: 20, kind: input, shape index: {}]
  %s21 = inlined_call_operand.hbm [shape: f32[2,1,10], index: 21, kind: output, shape index: {}]
  %s22 = sld [smem:[#allocation0]]
  $region117: #{simple_transformer_forward.1} parent=0
    _
  %s24 = ssub.s32 1, %s22
  %s25 = scalar_select 0, %s24, %s22
  $region1: #{simple_transformer_forward.1} parent=0
    #allocation2 [shape = 'u8[1024]{0}', space=vmem, size = 0x400, scoped, tag = 'output window, operand 0']
    #allocation3 [shape = 's32[2]{0}', space=sflag, size = 0x8, scoped, tag = 'scoped memory for simple_transformer_forward.1']
    %26 = vsyncpa [#allocation3], 0
    %s27 = scalar_lea.sflag [#allocation3], 1
    %28 = vsyncpa %s27, 0
    loop: start=0, step=1, limit=4
    $region2: #{simple_transformer_forward.1} parent=1 // loop_pre_header
      _
    $region3: #{simple_transformer_forward.1} parent=1 // loop_header
      %s30 = sphi 0, %s34
      %p31 = scmp.ge.s32.totalorder %s30, 4
      %s40 = sphi 0, %s42
      %s43 = sphi 0, %s40
      %s44 = sphi 0, %s43
      %s60 = sphi 0, %s44
      %s64 = sphi 0, %s64
      %s66 = sphi 0, %s64
      %s67 = sphi 0, %s66
      %s81 = sphi 0, %s67
      %s85 = sphi 0, %s85
      %s87 = sphi 0, %s85
      %s88 = sphi 0, %s87
      %s102 = sphi 0, %s88
      %s106 = sphi 0, %s106
      %s108 = sphi 0, %s106
      %s109 = sphi 0, %s108
      %s123 = sphi 0, %s109
      %s127 = sphi 0, %s127
      %s129 = sphi 0, %s127
      %s130 = sphi 0, %s129
      %s144 = sphi 0, %s130
      %s148 = sphi 0, %s148
      %s150 = sphi 0, %s148
      %s151 = sphi 0, %s150
      %s165 = sphi 0, %s151
      %s169 = sphi 0, %s169
      %s171 = sphi 0, %s169
      %s172 = sphi 0, %s171
      %s186 = sphi 0, %s172
      %s190 = sphi 0, %s190
      %s192 = sphi 0, %s190
      %s193 = sphi 0, %s192
      %s207 = sphi 0, %s193
      %s211 = sphi 0, %s211
      %s213 = sphi 0, %s211
      %s214 = sphi 0, %s213
      %s228 = sphi 0, %s214
      %s232 = sphi 0, %s232
      %s234 = sphi 0, %s232
      %s235 = sphi 0, %s234
      %s249 = sphi 0, %s235
      %s253 = sphi 0, %s253
      %s255 = sphi 0, %s253
      %s256 = sphi 0, %s255
      %s270 = sphi 0, %s256
      %s274 = sphi 0, %s274
      %s276 = sphi 0, %s274
      %s277 = sphi 0, %s276
      %s291 = sphi 0, %s277
      %s295 = sphi 0, %s295
      %s297 = sphi 0, %s295
      %s298 = sphi 0, %s297
      %s312 = sphi 0, %s298
      %s316 = sphi 0, %s316
      %s318 = sphi 0, %s316
      %s319 = sphi 0, %s318
      %s333 = sphi 0, %s319
      %s337 = sphi 0, %s337
      %s339 = sphi 0, %s337
      %s340 = sphi 0, %s339
      %s354 = sphi 0, %s340
      %s358 = sphi 0, %s358
      %s360 = sphi 0, %s358
      %s361 = sphi 0, %s360
      %s375 = sphi 0, %s361
      %s379 = sphi 0, %s379
      %s381 = sphi 0, %s379
      %s382 = sphi 0, %s381
      %s396 = sphi 0, %s382
      %s400 = sphi 0, %s400
      %s402 = sphi 0, %s400
      %s403 = sphi 0, %s402
      %s417 = sphi 0, %s403
      %s421 = sphi 0, %s421
      %s423 = sphi 0, %s421
      %s424 = sphi 0, %s423
      %s438 = sphi 0, %s424
      %s442 = sphi 0, %s442
      %s444 = sphi 0, %s442
      %s445 = sphi 0, %s444
      %s459 = sphi 0, %s445
      %s463 = sphi 0, %s463
      %s465 = sphi 0, %s463
      %s466 = sphi 0, %s465
      %s480 = sphi 0, %s466
      %s486 = sphi 0, %s488
      %s489 = sphi 0, %s486
      %s490 = sphi 0, %s489
      %s506 = sphi 0, %s490
    $region4: #{simple_transformer_forward.1} parent=1 // loop_header_branch
      %33 = sbr.rel (%p31) target = $region8
    $region5: #{simple_transformer_forward.1} parent=1 // loop_body
      %s35 = ssub.s32 %s30, 1
      %s36 = ssub.s32 %s30, 2
      %s37 = sadd.s32 %s30, 1
      %s38 = ssub.s32 %s30, %s37
      %p39 = scmp.eq.s32.totalorder %s38, 0
      %s41 = sadd.s32 %s40, 1
      %s42 = scalar_select %p39, %s40, %s41
      %p45 = pneg %p39
      %p46 = scmp.eq.s32.totalorder %s30, 1
      %p47 = por %p45, %p46
      %p48 = scmp.ne.s32.totalorder %s40, %s43
      %p49 = scmp.eq.s32.totalorder %s30, 0
      %p50 = por %p48, %p49
      %p51 = scmp.ne.s32.totalorder %s40, %s43
      %p52 = scmp.eq.s32.totalorder %s35, 1
      %p53 = por %p51, %p52
      %p54 = scmp.ne.s32.totalorder %s43, %s44
      %p55 = scmp.eq.s32.totalorder %s35, 0
      %p56 = por %p54, %p55
      %p57 = scmp.ne.s32.totalorder %s43, %s44
      %p58 = scmp.eq.s32.totalorder %s36, 1
      %p59 = por %p57, %p58
      %p61 = scmp.ne.s32.totalorder %s44, %s60
      %p62 = scmp.eq.s32.totalorder %s36, 0
      %p63 = por %p61, %p62
      %s65 = sadd.s32 %s64, 1
      %p68 = scmp.eq.s32.totalorder %s30, 1
      %p69 = scmp.ne.s32.totalorder %s64, %s66
      %p70 = scmp.eq.s32.totalorder %s30, 0
      %p71 = por %p69, %p70
      %p72 = scmp.ne.s32.totalorder %s64, %s66
      %p73 = scmp.eq.s32.totalorder %s35, 1
      %p74 = por %p72, %p73
      %p75 = scmp.ne.s32.totalorder %s66, %s67
      %p76 = scmp.eq.s32.totalorder %s35, 0
      %p77 = por %p75, %p76
      %p78 = scmp.ne.s32.totalorder %s66, %s67
      %p79 = scmp.eq.s32.totalorder %s36, 1
      %p80 = por %p78, %p79
      %p82 = scmp.ne.s32.totalorder %s67, %s81
      %p83 = scmp.eq.s32.totalorder %s36, 0
      %p84 = por %p82, %p83
      %s86 = sadd.s32 %s85, 1
      %p89 = scmp.eq.s32.totalorder %s30, 1
      %p90 = scmp.ne.s32.totalorder %s85, %s87
      %p91 = scmp.eq.s32.totalorder %s30, 0
      %p92 = por %p90, %p91
      %p93 = scmp.ne.s32.totalorder %s85, %s87
      %p94 = scmp.eq.s32.totalorder %s35, 1
      %p95 = por %p93, %p94
      %p96 = scmp.ne.s32.totalorder %s87, %s88
      %p97 = scmp.eq.s32.totalorder %s35, 0
      %p98 = por %p96, %p97
      %p99 = scmp.ne.s32.totalorder %s87, %s88
      %p100 = scmp.eq.s32.totalorder %s36, 1
      %p101 = por %p99, %p100
      %p103 = scmp.ne.s32.totalorder %s88, %s102
      %p104 = scmp.eq.s32.totalorder %s36, 0
      %p105 = por %p103, %p104
      %s107 = sadd.s32 %s106, 1
      %p110 = scmp.eq.s32.totalorder %s30, 1
      %p111 = scmp.ne.s32.totalorder %s106, %s108
      %p112 = scmp.eq.s32.totalorder %s30, 0
      %p113 = por %p111, %p112
      %p114 = scmp.ne.s32.totalorder %s106, %s108
      %p115 = scmp.eq.s32.totalorder %s35, 1
      %p116 = por %p114, %p115
      %p117 = scmp.ne.s32.totalorder %s108, %s109
      %p118 = scmp.eq.s32.totalorder %s35, 0
      %p119 = por %p117, %p118
      %p120 = scmp.ne.s32.totalorder %s108, %s109
      %p121 = scmp.eq.s32.totalorder %s36, 1
      %p122 = por %p120, %p121
      %p124 = scmp.ne.s32.totalorder %s109, %s123
      %p125 = scmp.eq.s32.totalorder %s36, 0
      %p126 = por %p124, %p125
      %s128 = sadd.s32 %s127, 1
      %p131 = scmp.eq.s32.totalorder %s30, 1
      %p132 = scmp.ne.s32.totalorder %s127, %s129
      %p133 = scmp.eq.s32.totalorder %s30, 0
      %p134 = por %p132, %p133
      %p135 = scmp.ne.s32.totalorder %s127, %s129
      %p136 = scmp.eq.s32.totalorder %s35, 1
      %p137 = por %p135, %p136
      %p138 = scmp.ne.s32.totalorder %s129, %s130
      %p139 = scmp.eq.s32.totalorder %s35, 0
      %p140 = por %p138, %p139
      %p141 = scmp.ne.s32.totalorder %s129, %s130
      %p142 = scmp.eq.s32.totalorder %s36, 1
      %p143 = por %p141, %p142
      %p145 = scmp.ne.s32.totalorder %s130, %s144
      %p146 = scmp.eq.s32.totalorder %s36, 0
      %p147 = por %p145, %p146
      %s149 = sadd.s32 %s148, 1
      %p152 = scmp.eq.s32.totalorder %s30, 1
      %p153 = scmp.ne.s32.totalorder %s148, %s150
      %p154 = scmp.eq.s32.totalorder %s30, 0
      %p155 = por %p153, %p154
      %p156 = scmp.ne.s32.totalorder %s148, %s150
      %p157 = scmp.eq.s32.totalorder %s35, 1
      %p158 = por %p156, %p157
      %p159 = scmp.ne.s32.totalorder %s150, %s151
      %p160 = scmp.eq.s32.totalorder %s35, 0
      %p161 = por %p159, %p160
      %p162 = scmp.ne.s32.totalorder %s150, %s151
      %p163 = scmp.eq.s32.totalorder %s36, 1
      %p164 = por %p162, %p163
      %p166 = scmp.ne.s32.totalorder %s151, %s165
      %p167 = scmp.eq.s32.totalorder %s36, 0
      %p168 = por %p166, %p167
      %s170 = sadd.s32 %s169, 1
      %p173 = scmp.eq.s32.totalorder %s30, 1
      %p174 = scmp.ne.s32.totalorder %s169, %s171
      %p175 = scmp.eq.s32.totalorder %s30, 0
      %p176 = por %p174, %p175
      %p177 = scmp.ne.s32.totalorder %s169, %s171
      %p178 = scmp.eq.s32.totalorder %s35, 1
      %p179 = por %p177, %p178
      %p180 = scmp.ne.s32.totalorder %s171, %s172
      %p181 = scmp.eq.s32.totalorder %s35, 0
      %p182 = por %p180, %p181
      %p183 = scmp.ne.s32.totalorder %s171, %s172
      %p184 = scmp.eq.s32.totalorder %s36, 1
      %p185 = por %p183, %p184
      %p187 = scmp.ne.s32.totalorder %s172, %s186
      %p188 = scmp.eq.s32.totalorder %s36, 0
      %p189 = por %p187, %p188
      %s191 = sadd.s32 %s190, 1
      %p194 = scmp.eq.s32.totalorder %s30, 1
      %p195 = scmp.ne.s32.totalorder %s190, %s192
      %p196 = scmp.eq.s32.totalorder %s30, 0
      %p197 = por %p195, %p196
      %p198 = scmp.ne.s32.totalorder %s190, %s192
      %p199 = scmp.eq.s32.totalorder %s35, 1
      %p200 = por %p198, %p199
      %p201 = scmp.ne.s32.totalorder %s192, %s193
      %p202 = scmp.eq.s32.totalorder %s35, 0
      %p203 = por %p201, %p202
      %p204 = scmp.ne.s32.totalorder %s192, %s193
      %p205 = scmp.eq.s32.totalorder %s36, 1
      %p206 = por %p204, %p205
      %p208 = scmp.ne.s32.totalorder %s193, %s207
      %p209 = scmp.eq.s32.totalorder %s36, 0
      %p210 = por %p208, %p209
      %s212 = sadd.s32 %s211, 1
      %p215 = scmp.eq.s32.totalorder %s30, 1
      %p216 = scmp.ne.s32.totalorder %s211, %s213
      %p217 = scmp.eq.s32.totalorder %s30, 0
      %p218 = por %p216, %p217
      %p219 = scmp.ne.s32.totalorder %s211, %s213
      %p220 = scmp.eq.s32.totalorder %s35, 1
      %p221 = por %p219, %p220
      %p222 = scmp.ne.s32.totalorder %s213, %s214
      %p223 = scmp.eq.s32.totalorder %s35, 0
      %p224 = por %p222, %p223
      %p225 = scmp.ne.s32.totalorder %s213, %s214
      %p226 = scmp.eq.s32.totalorder %s36, 1
      %p227 = por %p225, %p226
      %p229 = scmp.ne.s32.totalorder %s214, %s228
      %p230 = scmp.eq.s32.totalorder %s36, 0
      %p231 = por %p229, %p230
      %s233 = sadd.s32 %s232, 1
      %p236 = scmp.eq.s32.totalorder %s30, 1
      %p237 = scmp.ne.s32.totalorder %s232, %s234
      %p238 = scmp.eq.s32.totalorder %s30, 0
      %p239 = por %p237, %p238
      %p240 = scmp.ne.s32.totalorder %s232, %s234
      %p241 = scmp.eq.s32.totalorder %s35, 1
      %p242 = por %p240, %p241
      %p243 = scmp.ne.s32.totalorder %s234, %s235
      %p244 = scmp.eq.s32.totalorder %s35, 0
      %p245 = por %p243, %p244
      %p246 = scmp.ne.s32.totalorder %s234, %s235
      %p247 = scmp.eq.s32.totalorder %s36, 1
      %p248 = por %p246, %p247
      %p250 = scmp.ne.s32.totalorder %s235, %s249
      %p251 = scmp.eq.s32.totalorder %s36, 0
      %p252 = por %p250, %p251
      %s254 = sadd.s32 %s253, 1
      %p257 = scmp.eq.s32.totalorder %s30, 1
      %p258 = scmp.ne.s32.totalorder %s253, %s255
      %p259 = scmp.eq.s32.totalorder %s30, 0
      %p260 = por %p258, %p259
      %p261 = scmp.ne.s32.totalorder %s253, %s255
      %p262 = scmp.eq.s32.totalorder %s35, 1
      %p263 = por %p261, %p262
      %p264 = scmp.ne.s32.totalorder %s255, %s256
      %p265 = scmp.eq.s32.totalorder %s35, 0
      %p266 = por %p264, %p265
      %p267 = scmp.ne.s32.totalorder %s255, %s256
      %p268 = scmp.eq.s32.totalorder %s36, 1
      %p269 = por %p267, %p268
      %p271 = scmp.ne.s32.totalorder %s256, %s270
      %p272 = scmp.eq.s32.totalorder %s36, 0
      %p273 = por %p271, %p272
      %s275 = sadd.s32 %s274, 1
      %p278 = scmp.eq.s32.totalorder %s30, 1
      %p279 = scmp.ne.s32.totalorder %s274, %s276
      %p280 = scmp.eq.s32.totalorder %s30, 0
      %p281 = por %p279, %p280
      %p282 = scmp.ne.s32.totalorder %s274, %s276
      %p283 = scmp.eq.s32.totalorder %s35, 1
      %p284 = por %p282, %p283
      %p285 = scmp.ne.s32.totalorder %s276, %s277
      %p286 = scmp.eq.s32.totalorder %s35, 0
      %p287 = por %p285, %p286
      %p288 = scmp.ne.s32.totalorder %s276, %s277
      %p289 = scmp.eq.s32.totalorder %s36, 1
      %p290 = por %p288, %p289
      %p292 = scmp.ne.s32.totalorder %s277, %s291
      %p293 = scmp.eq.s32.totalorder %s36, 0
      %p294 = por %p292, %p293
      %s296 = sadd.s32 %s295, 1
      %p299 = scmp.eq.s32.totalorder %s30, 1
      %p300 = scmp.ne.s32.totalorder %s295, %s297
      %p301 = scmp.eq.s32.totalorder %s30, 0
      %p302 = por %p300, %p301
      %p303 = scmp.ne.s32.totalorder %s295, %s297
      %p304 = scmp.eq.s32.totalorder %s35, 1
      %p305 = por %p303, %p304
      %p306 = scmp.ne.s32.totalorder %s297, %s298
      %p307 = scmp.eq.s32.totalorder %s35, 0
      %p308 = por %p306, %p307
      %p309 = scmp.ne.s32.totalorder %s297, %s298
      %p310 = scmp.eq.s32.totalorder %s36, 1
      %p311 = por %p309, %p310
      %p313 = scmp.ne.s32.totalorder %s298, %s312
      %p314 = scmp.eq.s32.totalorder %s36, 0
      %p315 = por %p313, %p314
      %s317 = sadd.s32 %s316, 1
      %p320 = scmp.eq.s32.totalorder %s30, 1
      %p321 = scmp.ne.s32.totalorder %s316, %s318
      %p322 = scmp.eq.s32.totalorder %s30, 0
      %p323 = por %p321, %p322
      %p324 = scmp.ne.s32.totalorder %s316, %s318
      %p325 = scmp.eq.s32.totalorder %s35, 1
      %p326 = por %p324, %p325
      %p327 = scmp.ne.s32.totalorder %s318, %s319
      %p328 = scmp.eq.s32.totalorder %s35, 0
      %p329 = por %p327, %p328
      %p330 = scmp.ne.s32.totalorder %s318, %s319
      %p331 = scmp.eq.s32.totalorder %s36, 1
      %p332 = por %p330, %p331
      %p334 = scmp.ne.s32.totalorder %s319, %s333
      %p335 = scmp.eq.s32.totalorder %s36, 0
      %p336 = por %p334, %p335
      %s338 = sadd.s32 %s337, 1
      %p341 = scmp.eq.s32.totalorder %s30, 1
      %p342 = scmp.ne.s32.totalorder %s337, %s339
      %p343 = scmp.eq.s32.totalorder %s30, 0
      %p344 = por %p342, %p343
      %p345 = scmp.ne.s32.totalorder %s337, %s339
      %p346 = scmp.eq.s32.totalorder %s35, 1
      %p347 = por %p345, %p346
      %p348 = scmp.ne.s32.totalorder %s339, %s340
      %p349 = scmp.eq.s32.totalorder %s35, 0
      %p350 = por %p348, %p349
      %p351 = scmp.ne.s32.totalorder %s339, %s340
      %p352 = scmp.eq.s32.totalorder %s36, 1
      %p353 = por %p351, %p352
      %p355 = scmp.ne.s32.totalorder %s340, %s354
      %p356 = scmp.eq.s32.totalorder %s36, 0
      %p357 = por %p355, %p356
      %s359 = sadd.s32 %s358, 1
      %p362 = scmp.eq.s32.totalorder %s30, 1
      %p363 = scmp.ne.s32.totalorder %s358, %s360
      %p364 = scmp.eq.s32.totalorder %s30, 0
      %p365 = por %p363, %p364
      %p366 = scmp.ne.s32.totalorder %s358, %s360
      %p367 = scmp.eq.s32.totalorder %s35, 1
      %p368 = por %p366, %p367
      %p369 = scmp.ne.s32.totalorder %s360, %s361
      %p370 = scmp.eq.s32.totalorder %s35, 0
      %p371 = por %p369, %p370
      %p372 = scmp.ne.s32.totalorder %s360, %s361
      %p373 = scmp.eq.s32.totalorder %s36, 1
      %p374 = por %p372, %p373
      %p376 = scmp.ne.s32.totalorder %s361, %s375
      %p377 = scmp.eq.s32.totalorder %s36, 0
      %p378 = por %p376, %p377
      %s380 = sadd.s32 %s379, 1
      %p383 = scmp.eq.s32.totalorder %s30, 1
      %p384 = scmp.ne.s32.totalorder %s379, %s381
      %p385 = scmp.eq.s32.totalorder %s30, 0
      %p386 = por %p384, %p385
      %p387 = scmp.ne.s32.totalorder %s379, %s381
      %p388 = scmp.eq.s32.totalorder %s35, 1
      %p389 = por %p387, %p388
      %p390 = scmp.ne.s32.totalorder %s381, %s382
      %p391 = scmp.eq.s32.totalorder %s35, 0
      %p392 = por %p390, %p391
      %p393 = scmp.ne.s32.totalorder %s381, %s382
      %p394 = scmp.eq.s32.totalorder %s36, 1
      %p395 = por %p393, %p394
      %p397 = scmp.ne.s32.totalorder %s382, %s396
      %p398 = scmp.eq.s32.totalorder %s36, 0
      %p399 = por %p397, %p398
      %s401 = sadd.s32 %s400, 1
      %p404 = scmp.eq.s32.totalorder %s30, 1
      %p405 = scmp.ne.s32.totalorder %s400, %s402
      %p406 = scmp.eq.s32.totalorder %s30, 0
      %p407 = por %p405, %p406
      %p408 = scmp.ne.s32.totalorder %s400, %s402
      %p409 = scmp.eq.s32.totalorder %s35, 1
      %p410 = por %p408, %p409
      %p411 = scmp.ne.s32.totalorder %s402, %s403
      %p412 = scmp.eq.s32.totalorder %s35, 0
      %p413 = por %p411, %p412
      %p414 = scmp.ne.s32.totalorder %s402, %s403
      %p415 = scmp.eq.s32.totalorder %s36, 1
      %p416 = por %p414, %p415
      %p418 = scmp.ne.s32.totalorder %s403, %s417
      %p419 = scmp.eq.s32.totalorder %s36, 0
      %p420 = por %p418, %p419
      %s422 = sadd.s32 %s421, 1
      %p425 = scmp.eq.s32.totalorder %s30, 1
      %p426 = scmp.ne.s32.totalorder %s421, %s423
      %p427 = scmp.eq.s32.totalorder %s30, 0
      %p428 = por %p426, %p427
      %p429 = scmp.ne.s32.totalorder %s421, %s423
      %p430 = scmp.eq.s32.totalorder %s35, 1
      %p431 = por %p429, %p430
      %p432 = scmp.ne.s32.totalorder %s423, %s424
      %p433 = scmp.eq.s32.totalorder %s35, 0
      %p434 = por %p432, %p433
      %p435 = scmp.ne.s32.totalorder %s423, %s424
      %p436 = scmp.eq.s32.totalorder %s36, 1
      %p437 = por %p435, %p436
      %p439 = scmp.ne.s32.totalorder %s424, %s438
      %p440 = scmp.eq.s32.totalorder %s36, 0
      %p441 = por %p439, %p440
      %s443 = sadd.s32 %s442, 1
      %p446 = scmp.eq.s32.totalorder %s30, 1
      %p447 = scmp.ne.s32.totalorder %s442, %s444
      %p448 = scmp.eq.s32.totalorder %s30, 0
      %p449 = por %p447, %p448
      %p450 = scmp.ne.s32.totalorder %s442, %s444
      %p451 = scmp.eq.s32.totalorder %s35, 1
      %p452 = por %p450, %p451
      %p453 = scmp.ne.s32.totalorder %s444, %s445
      %p454 = scmp.eq.s32.totalorder %s35, 0
      %p455 = por %p453, %p454
      %p456 = scmp.ne.s32.totalorder %s444, %s445
      %p457 = scmp.eq.s32.totalorder %s36, 1
      %p458 = por %p456, %p457
      %p460 = scmp.ne.s32.totalorder %s445, %s459
      %p461 = scmp.eq.s32.totalorder %s36, 0
      %p462 = por %p460, %p461
      %s464 = sadd.s32 %s463, 1
      %p467 = scmp.eq.s32.totalorder %s30, 1
      %p468 = scmp.ne.s32.totalorder %s463, %s465
      %p469 = scmp.eq.s32.totalorder %s30, 0
      %p470 = por %p468, %p469
      %p471 = scmp.ne.s32.totalorder %s463, %s465
      %p472 = scmp.eq.s32.totalorder %s35, 1
      %p473 = por %p471, %p472
      %p474 = scmp.ne.s32.totalorder %s465, %s466
      %p475 = scmp.eq.s32.totalorder %s35, 0
      %p476 = por %p474, %p475
      %p477 = scmp.ne.s32.totalorder %s465, %s466
      %p478 = scmp.eq.s32.totalorder %s36, 1
      %p479 = por %p477, %p478
      %p481 = scmp.ne.s32.totalorder %s466, %s480
      %p482 = scmp.eq.s32.totalorder %s36, 0
      %p483 = por %p481, %p482
      %s484 = ssub.s32 %s30, %s37
      %p485 = scmp.eq.s32.totalorder %s484, 0
      %s487 = sadd.s32 %s486, 1
      %s488 = scalar_select %p485, %s486, %s487
      %p491 = pneg %p485
      %p492 = scmp.eq.s32.totalorder %s30, 1
      %p493 = por %p491, %p492
      %p494 = scmp.ne.s32.totalorder %s486, %s489
      %p495 = scmp.eq.s32.totalorder %s30, 0
      %p496 = por %p494, %p495
      %p497 = scmp.ne.s32.totalorder %s486, %s489
      %p498 = scmp.eq.s32.totalorder %s35, 1
      %p499 = por %p497, %p498
      %p500 = scmp.ne.s32.totalorder %s489, %s490
      %p501 = scmp.eq.s32.totalorder %s35, 0
      %p502 = por %p500, %p501
      %p503 = scmp.ne.s32.totalorder %s489, %s490
      %p504 = scmp.eq.s32.totalorder %s36, 1
      %p505 = por %p503, %p504
      %p507 = scmp.ne.s32.totalorder %s490, %s506
      %p508 = scmp.eq.s32.totalorder %s36, 0
      %p509 = por %p507, %p508
      %p510 = scmp.le.s32.totalorder 1, %s30
      %p511 = scmp.lt.s32.totalorder %s30, 3
      %p512 = pnand %p510, %p511
      %p513 = pneg %p512
      // Predicated region
      $region9: #{simple_transformer_forward.1} parent=5 // pred_check
        _
      $region10: #{simple_transformer_forward.1} parent=5 // pred_check_branch
        %515 = sbr.rel (%p512) target = $region12
      $region11: #{simple_transformer_forward.1} parent=5 // pred_region
        %s516 = ssub.s32 %s30, 1
        // Predicated region
        $region13: #{simple_transformer_forward.1} parent=11 // pred_check
          %p517 = pneg %p77
        $region14: #{simple_transformer_forward.1} parent=11 // pred_check_branch
          %519 = sbr.rel (%p517) target = $region16
        $region15: #{simple_transformer_forward.1} parent=11 // pred_region
          _
        $region16: #{simple_transformer_forward.1} parent=11 // pred_fallthru
          _
        // Predicated region
        $region17: #{simple_transformer_forward.1} parent=11 // pred_check
          %p520 = pneg %p98
        $region18: #{simple_transformer_forward.1} parent=11 // pred_check_branch
          %522 = sbr.rel (%p520) target = $region20
        $region19: #{simple_transformer_forward.1} parent=11 // pred_region
          _
        $region20: #{simple_transformer_forward.1} parent=11 // pred_fallthru
          _
        // Predicated region
        $region21: #{simple_transformer_forward.1} parent=11 // pred_check
          %p523 = pneg %p119
        $region22: #{simple_transformer_forward.1} parent=11 // pred_check_branch
          %525 = sbr.rel (%p523) target = $region24
        $region23: #{simple_transformer_forward.1} parent=11 // pred_region
          _
        $region24: #{simple_transformer_forward.1} parent=11 // pred_fallthru
          _
        // Predicated region
        $region25: #{simple_transformer_forward.1} parent=11 // pred_check
          %p526 = pneg %p140
        $region26: #{simple_transformer_forward.1} parent=11 // pred_check_branch
          %528 = sbr.rel (%p526) target = $region28
        $region27: #{simple_transformer_forward.1} parent=11 // pred_region
          _
        $region28: #{simple_transformer_forward.1} parent=11 // pred_fallthru
          _
        // Predicated region
        $region29: #{simple_transformer_forward.1} parent=11 // pred_check
          %p529 = pneg %p161
        $region30: #{simple_transformer_forward.1} parent=11 // pred_check_branch
          %531 = sbr.rel (%p529) target = $region32
        $region31: #{simple_transformer_forward.1} parent=11 // pred_region
          _
        $region32: #{simple_transformer_forward.1} parent=11 // pred_fallthru
          _
        // Predicated region
        $region33: #{simple_transformer_forward.1} parent=11 // pred_check
          %p532 = pneg %p182
        $region34: #{simple_transformer_forward.1} parent=11 // pred_check_branch
          %534 = sbr.rel (%p532) target = $region36
        $region35: #{simple_transformer_forward.1} parent=11 // pred_region
          _
        $region36: #{simple_transformer_forward.1} parent=11 // pred_fallthru
          _
        // Predicated region
        $region37: #{simple_transformer_forward.1} parent=11 // pred_check
          %p535 = pneg %p203
        $region38: #{simple_transformer_forward.1} parent=11 // pred_check_branch
          %537 = sbr.rel (%p535) target = $region40
        $region39: #{simple_transformer_forward.1} parent=11 // pred_region
          _
        $region40: #{simple_transformer_forward.1} parent=11 // pred_fallthru
          _
        // Predicated region
        $region41: #{simple_transformer_forward.1} parent=11 // pred_check
          %p538 = pneg %p224
        $region42: #{simple_transformer_forward.1} parent=11 // pred_check_branch
          %540 = sbr.rel (%p538) target = $region44
        $region43: #{simple_transformer_forward.1} parent=11 // pred_region
          _
        $region44: #{simple_transformer_forward.1} parent=11 // pred_fallthru
          _
        // Predicated region
        $region45: #{simple_transformer_forward.1} parent=11 // pred_check
          %p541 = pneg %p245
        $region46: #{simple_transformer_forward.1} parent=11 // pred_check_branch
          %543 = sbr.rel (%p541) target = $region48
        $region47: #{simple_transformer_forward.1} parent=11 // pred_region
          _
        $region48: #{simple_transformer_forward.1} parent=11 // pred_fallthru
          _
        // Predicated region
        $region49: #{simple_transformer_forward.1} parent=11 // pred_check
          %p544 = pneg %p266
        $region50: #{simple_transformer_forward.1} parent=11 // pred_check_branch
          %546 = sbr.rel (%p544) target = $region52
        $region51: #{simple_transformer_forward.1} parent=11 // pred_region
          _
        $region52: #{simple_transformer_forward.1} parent=11 // pred_fallthru
          _
        // Predicated region
        $region53: #{simple_transformer_forward.1} parent=11 // pred_check
          %p547 = pneg %p287
        $region54: #{simple_transformer_forward.1} parent=11 // pred_check_branch
          %549 = sbr.rel (%p547) target = $region56
        $region55: #{simple_transformer_forward.1} parent=11 // pred_region
          _
        $region56: #{simple_transformer_forward.1} parent=11 // pred_fallthru
          _
        // Predicated region
        $region57: #{simple_transformer_forward.1} parent=11 // pred_check
          %p550 = pneg %p308
        $region58: #{simple_transformer_forward.1} parent=11 // pred_check_branch
          %552 = sbr.rel (%p550) target = $region60
        $region59: #{simple_transformer_forward.1} parent=11 // pred_region
          _
        $region60: #{simple_transformer_forward.1} parent=11 // pred_fallthru
          _
        // Predicated region
        $region61: #{simple_transformer_forward.1} parent=11 // pred_check
          %p553 = pneg %p329
        $region62: #{simple_transformer_forward.1} parent=11 // pred_check_branch
          %555 = sbr.rel (%p553) target = $region64
        $region63: #{simple_transformer_forward.1} parent=11 // pred_region
          _
        $region64: #{simple_transformer_forward.1} parent=11 // pred_fallthru
          _
        // Predicated region
        $region65: #{simple_transformer_forward.1} parent=11 // pred_check
          %p556 = pneg %p350
        $region66: #{simple_transformer_forward.1} parent=11 // pred_check_branch
          %558 = sbr.rel (%p556) target = $region68
        $region67: #{simple_transformer_forward.1} parent=11 // pred_region
          _
        $region68: #{simple_transformer_forward.1} parent=11 // pred_fallthru
          _
        // Predicated region
        $region69: #{simple_transformer_forward.1} parent=11 // pred_check
          %p559 = pneg %p371
        $region70: #{simple_transformer_forward.1} parent=11 // pred_check_branch
          %561 = sbr.rel (%p559) target = $region72
        $region71: #{simple_transformer_forward.1} parent=11 // pred_region
          _
        $region72: #{simple_transformer_forward.1} parent=11 // pred_fallthru
          _
        // Predicated region
        $region73: #{simple_transformer_forward.1} parent=11 // pred_check
          %p562 = pneg %p392
        $region74: #{simple_transformer_forward.1} parent=11 // pred_check_branch
          %564 = sbr.rel (%p562) target = $region76
        $region75: #{simple_transformer_forward.1} parent=11 // pred_region
          _
        $region76: #{simple_transformer_forward.1} parent=11 // pred_fallthru
          _
        // Predicated region
        $region77: #{simple_transformer_forward.1} parent=11 // pred_check
          %p565 = pneg %p413
        $region78: #{simple_transformer_forward.1} parent=11 // pred_check_branch
          %567 = sbr.rel (%p565) target = $region80
        $region79: #{simple_transformer_forward.1} parent=11 // pred_region
          _
        $region80: #{simple_transformer_forward.1} parent=11 // pred_fallthru
          _
        // Predicated region
        $region81: #{simple_transformer_forward.1} parent=11 // pred_check
          %p568 = pneg %p434
        $region82: #{simple_transformer_forward.1} parent=11 // pred_check_branch
          %570 = sbr.rel (%p568) target = $region84
        $region83: #{simple_transformer_forward.1} parent=11 // pred_region
          _
        $region84: #{simple_transformer_forward.1} parent=11 // pred_fallthru
          _
        // Predicated region
        $region85: #{simple_transformer_forward.1} parent=11 // pred_check
          %p571 = pneg %p455
        $region86: #{simple_transformer_forward.1} parent=11 // pred_check_branch
          %573 = sbr.rel (%p571) target = $region88
        $region87: #{simple_transformer_forward.1} parent=11 // pred_region
          _
        $region88: #{simple_transformer_forward.1} parent=11 // pred_fallthru
          _
        // Predicated region
        $region89: #{simple_transformer_forward.1} parent=11 // pred_check
          %p574 = pneg %p476
        $region90: #{simple_transformer_forward.1} parent=11 // pred_check_branch
          %576 = sbr.rel (%p574) target = $region92
        $region91: #{simple_transformer_forward.1} parent=11 // pred_region
          _
        $region92: #{simple_transformer_forward.1} parent=11 // pred_fallthru
          _
      $region12: #{simple_transformer_forward.1} parent=5 // pred_fallthru
        _
      %p577 = scmp.lt.s32.totalorder %s30, 2
      // Predicated region
      $region93: #{simple_transformer_forward.1} parent=5 // pred_check
        %p578 = pneg %p577
      $region94: #{simple_transformer_forward.1} parent=5 // pred_check_branch
        %580 = sbr.rel (%p578) target = $region96
      $region95: #{simple_transformer_forward.1} parent=5 // pred_region
        // Predicated region
        $region97: #{simple_transformer_forward.1} parent=95 // pred_check
          %p581 = pneg %p50
        $region98: #{simple_transformer_forward.1} parent=95 // pred_check_branch
          %583 = sbr.rel (%p581) target = $region100
        $region99: #{simple_transformer_forward.1} parent=95 // pred_region
          %p584 = scmp.lt.s32.totalorder %s30, 1
          %s585 = scalar_select %p584, %s30, 1
          %s586 = smul.addr %s585, 8
          %s587 = scalar_lea.vmem %s0, %s586
        $region100: #{simple_transformer_forward.1} parent=95 // pred_fallthru
          _
      $region96: #{simple_transformer_forward.1} parent=5 // pred_fallthru
        _
      %p588 = scmp.le.s32.totalorder 1, %s30
      %p589 = scmp.lt.s32.totalorder %s30, 3
      %p590 = pnand %p588, %p589
      %p591 = pneg %p590
      // Predicated region
      $region101: #{simple_transformer_forward.1} parent=5 // pred_check
        _
      $region102: #{simple_transformer_forward.1} parent=5 // pred_check_branch
        %593 = sbr.rel (%p590) target = $region104
      $region103: #{simple_transformer_forward.1} parent=5 // pred_region
        %s594 = ssub.s32 %s30, 1
        %p595 = scmp.lt.s32.totalorder %s35, 1
        %s596 = scalar_select %p595, %s35, 1
        %s597 = smul.addr %s596, 8
        %s598 = scalar_lea.vmem %s0, %s597
        %p599 = pneg %p56
        %p600 = pneg %p53
        %p601 = pneg %p77
        %p602 = pneg %p74
        %p603 = pneg %p98
        %p604 = pneg %p95
        %p605 = pneg %p119
        %p606 = pneg %p116
        %p607 = pneg %p140
        %p608 = pneg %p137
        %p609 = pneg %p161
        %p610 = pneg %p158
        %p611 = pneg %p182
        %p612 = pneg %p179
        %p613 = pneg %p203
        %p614 = pneg %p200
        %p615 = pneg %p224
        %p616 = pneg %p221
        %p617 = pneg %p245
        %p618 = pneg %p242
        %p619 = pneg %p266
        %p620 = pneg %p263
        %p621 = pneg %p287
        %p622 = pneg %p284
        %p623 = pneg %p308
        %p624 = pneg %p305
        %p625 = pneg %p329
        %p626 = pneg %p326
        %p627 = pneg %p350
        %p628 = pneg %p347
        %p629 = pneg %p371
        %p630 = pneg %p368
        %p631 = pneg %p392
        %p632 = pneg %p389
        %p633 = pneg %p413
        %p634 = pneg %p410
        %p635 = pneg %p434
        %p636 = pneg %p431
        %p637 = pneg %p455
        %p638 = pneg %p452
        %p639 = pneg %p476
        %p640 = pneg %p473
        %p641 = pneg %p502
        %p642 = pneg %p499
        %s643 = sand.u32 %s489, 1
        %s644 = scalar_lea.sflag [#allocation3], %s643
        %s645 = sand.u32 %s489, 1
        %s646 = scalar_lea.vmem [#allocation2], %s645
        %p647 = scmp.lt.s32.totalorder %s35, 1
        %s648 = scalar_select %p647, %s35, 1
        %s649 = smul.addr %s648, 8
        %s650 = scalar_lea.vmem %s0, %s649
        %v652 = vld [vmem:[%s650] sm:$0xff]
        %v653 = vpack.c.bf16 %v652, %v652
        %v654 = vld [vmem:[%s1] sm:$0xf]
        %v655 = vld [vmem:[%s1 + $0x4] sm:$0xf]
        %v656 = vld [vmem:[%s2] sm:$0x1]
        %v658 = vperm.slane %v656, 0
        %v662 = vunpack.c.l.b16 %v654
        %v663 = vunpack.c.l.b16 %v655
        %v664 = vpack.c.b16 %v663, %v662
        %vm666 = vcmask 130048
        %v668 = vsel %vm666, %v653, 0
        %670 = vmatpush.bf16.msra.mxu0 0
        %671 = vmatpush.bf16.msra.mxu0 0
        %672 = vmatpush.bf16.msra.mxu0 0
        %673 = vmatpush.bf16.msra.mxu0 0
        %674 = vmatpush.bf16.msra.mxu0 0
        %675 = vmatpush.bf16.msra.mxu0 0
        %676 = vmatpush.bf16.msra.mxu0 0
        %677 = vmatpush.bf16.msra.mxu0 %v664
        %678 = vmatmul.bf16.gmra.mxu0 %v668
        %v679 = vpop.f32.mrf.mxu0
        %v680 = vadd.f32 %v658, %v679
        %v681 = vpop.f32.mrf.mxu0
        %682 = vdwg.mxu0
        %v683 = vpack.c.bf16 %v680, %v680
        %v684 = vld [vmem:[%s3] sm:$0xf]
        %v685 = vld [vmem:[%s3 + $0x4] sm:$0xf]
        %v686 = vld [vmem:[%s3 + $0x8] sm:$0xf]
        %v687 = vld [vmem:[%s3 + $0xc] sm:$0xf]
        %v688 = vld [vmem:[%s4] sm:$0x1]
        %v690 = vperm.slane %v688, 0
        %v696 = vunpack.c.l.b16 %v684
        %v697 = vunpack.c.l.b16 %v685
        %v698 = vunpack.c.l.b16 %v686
        %v699 = vunpack.c.l.b16 %v687
        %v700 = vpack.c.b16 %v697, %v696
        %v701 = vpack.c.b16 %v699, %v698
        %vm704 = vcmask 261120
        %v706 = vsel %vm704, %v683, 0
        %708 = vmatpush.bf16.msra.mxu0 0
        %709 = vmatpush.bf16.msra.mxu0 0
        %710 = vmatpush.bf16.msra.mxu0 0
        %711 = vmatpush.bf16.msra.mxu0 0
        %712 = vmatpush.bf16.msra.mxu0 0
        %713 = vmatpush.bf16.msra.mxu0 0
        %714 = vmatpush.bf16.msra.mxu0 %v701
        %715 = vmatpush.bf16.msra.mxu0 %v700
        %716 = vmatmul.bf16.gmra.mxu0 %v706
        %v717 = vpop.f32.mrf.mxu0
        %v718 = vadd.f32 %v690, %v717
        %v719 = vpop.f32.mrf.mxu0
        %720 = vdwg.mxu0
        %v721 = vld [vmem:[%s5] sm:$0xf]
        %v722 = vld [vmem:[%s5 + $0x4] sm:$0xf]
        %v723 = vld [vmem:[%s5 + $0x8] sm:$0xf]
        %v724 = vld [vmem:[%s5 + $0xc] sm:$0xf]
        %v725 = vld [vmem:[%s6] sm:$0x1]
        %v727 = vperm.slane %v725, 0
        %v733 = vunpack.c.l.b16 %v721
        %v734 = vunpack.c.l.b16 %v722
        %v735 = vunpack.c.l.b16 %v723
        %v736 = vunpack.c.l.b16 %v724
        %v737 = vpack.c.b16 %v734, %v733
        %v738 = vpack.c.b16 %v736, %v735
        %741 = vmatpush.bf16.msra.mxu0 0
        %742 = vmatpush.bf16.msra.mxu0 0
        %743 = vmatpush.bf16.msra.mxu0 0
        %744 = vmatpush.bf16.msra.mxu0 0
        %745 = vmatpush.bf16.msra.mxu0 0
        %746 = vmatpush.bf16.msra.mxu0 0
        %747 = vmatpush.bf16.msra.mxu0 %v738
        %748 = vmatpush.bf16.msra.mxu0 %v737
        %749 = vmatmul.bf16.gmra.mxu0 %v706
        %v750 = vpop.f32.mrf.mxu0
        %v751 = vadd.f32 %v727, %v750
        %v752 = vpop.f32.mrf.mxu0
        %753 = vdwg.mxu0
        %v754 = vld [vmem:[%s7] sm:$0xf]
        %v755 = vld [vmem:[%s7 + $0x4] sm:$0xf]
        %v756 = vld [vmem:[%s7 + $0x8] sm:$0xf]
        %v757 = vld [vmem:[%s7 + $0xc] sm:$0xf]
        %v758 = vld [vmem:[%s8] sm:$0x1]
        %v760 = vperm.slane %v758, 0
        %v766 = vunpack.c.l.b16 %v754
        %v767 = vunpack.c.l.b16 %v755
        %v768 = vunpack.c.l.b16 %v756
        %v769 = vunpack.c.l.b16 %v757
        %v770 = vpack.c.b16 %v767, %v766
        %v771 = vpack.c.b16 %v769, %v768
        %774 = vmatpush.bf16.msra.mxu0 0
        %775 = vmatpush.bf16.msra.mxu0 0
        %776 = vmatpush.bf16.msra.mxu0 0
        %777 = vmatpush.bf16.msra.mxu0 0
        %778 = vmatpush.bf16.msra.mxu0 0
        %779 = vmatpush.bf16.msra.mxu0 0
        %780 = vmatpush.bf16.msra.mxu0 %v771
        %781 = vmatpush.bf16.msra.mxu0 %v770
        %782 = vmatmul.bf16.gmra.mxu0 %v706
        %v783 = vpop.f32.mrf.mxu0
        %v784 = vadd.f32 %v760, %v783
        %v785 = vpop.f32.mrf.mxu0
        %786 = vdwg.mxu0
        %v787 = vpack.c.bf16 %v718, %v718
        %v788 = vpack.c.bf16 %v751, %v751
        %vm789 = vcmask 64512
        %v791 = vsel %vm789, %v787, 0
        %v794 = vsel %vm789, %v788, 0
        %796 = vmatpush.bf16.xpose.msra.mxu0 0
        %797 = vmatpush.bf16.xpose.msra.mxu0 0
        %798 = vmatpush.bf16.xpose.msra.mxu0 0
        %799 = vmatpush.bf16.xpose.msra.mxu0 0
        %800 = vmatpush.bf16.xpose.msra.mxu0 0
        %801 = vmatpush.bf16.xpose.msra.mxu0 0
        %802 = vmatpush.bf16.xpose.msra.mxu0 0
        %803 = vmatpush.bf16.xpose.msra.mxu0 %v794
        %804 = vmatmul.bf16.gmra.mxu0 %v791
        %v805 = vpop.f32.mrf.mxu0
        %v806 = vadd.f32 0.0, %v805
        %v807 = vpop.f32.mrf.mxu0
        %808 = vdwg.mxu0
        %v809 = vmul.f32 %v806, 0.35355338
        %v810 = vsel %vm789, %v809, -inf
        %811 = vmax.xlane.f32.xlu0 %v810
        %v812 = vpop.xlane.xlu0 %811
        %v813 = vsub.f32 %v809, %v812
        %v814 = vmul.f32 %v813, 1.442695
        %v815 = vpow.pop %v814
        %v816 = vsel %vm789, %v815, 0.0
        %817 = vadd.xlane.f32.xlu0 %v816
        %v818 = vpop.xlane.xlu0 %817
        %v819 = vrcp.pop %v818
        %v820 = vmul.f32 %v815, %v819
        %v821 = vpack.c.bf16 %v820, %v820
        %v822 = vpack.c.bf16 %v784, %v784
        %v824 = vsel %vm789, %v821, 0
        %vm826 = vcmask 1043456
        %v828 = vsel %vm826, %v822, 0
        %830 = vmatpush.bf16.msra.mxu0 0
        %831 = vmatpush.bf16.msra.mxu0 0
        %832 = vmatpush.bf16.msra.mxu0 0
        %833 = vmatpush.bf16.msra.mxu0 0
        %834 = vmatpush.bf16.msra.mxu0 0
        %835 = vmatpush.bf16.msra.mxu0 0
        %836 = vmatpush.bf16.msra.mxu0 0
        %837 = vmatpush.bf16.msra.mxu0 %v828
        %838 = vmatmul.bf16.gmra.mxu0 %v824
        %v839 = vpop.f32.mrf.mxu0
        %v840 = vadd.f32 0.0, %v839
        %v841 = vpop.f32.mrf.mxu0
        %842 = vdwg.mxu0
        %v843 = vpack.c.bf16 %v840, %v840
        %v844 = vld [vmem:[%s9] sm:$0xf]
        %s845 = scalar_lea.vmem %s3, 16
        %v846 = vld [vmem:[%s845] sm:$0xf]
        %v847 = vld [vmem:[%s845 + $0x4] sm:$0xf]
        %v848 = vld [vmem:[%s845 + $0x8] sm:$0xf]
        %v849 = vld [vmem:[%s845 + $0xc] sm:$0xf]
        %s850 = scalar_lea.vmem %s4, 1
        %v851 = vld [vmem:[%s850] sm:$0x1]
        %v853 = vperm.slane %v851, 0
        %v859 = vunpack.c.l.b16 %v846
        %v860 = vunpack.c.l.b16 %v847
        %v861 = vunpack.c.l.b16 %v848
        %v862 = vunpack.c.l.b16 %v849
        %v863 = vpack.c.b16 %v860, %v859
        %v864 = vpack.c.b16 %v862, %v861
        %867 = vmatpush.bf16.msra.mxu0 0
        %868 = vmatpush.bf16.msra.mxu0 0
        %869 = vmatpush.bf16.msra.mxu0 0
        %870 = vmatpush.bf16.msra.mxu0 0
        %871 = vmatpush.bf16.msra.mxu0 0
        %872 = vmatpush.bf16.msra.mxu0 0
        %873 = vmatpush.bf16.msra.mxu0 %v864
        %874 = vmatpush.bf16.msra.mxu0 %v863
        %875 = vmatmul.bf16.gmra.mxu0 %v706
        %v876 = vpop.f32.mrf.mxu0
        %v877 = vadd.f32 %v853, %v876
        %v878 = vpop.f32.mrf.mxu0
        %879 = vdwg.mxu0
        %s880 = scalar_lea.vmem %s5, 16
        %v881 = vld [vmem:[%s880] sm:$0xf]
        %v882 = vld [vmem:[%s880 + $0x4] sm:$0xf]
        %v883 = vld [vmem:[%s880 + $0x8] sm:$0xf]
        %v884 = vld [vmem:[%s880 + $0xc] sm:$0xf]
        %s885 = scalar_lea.vmem %s6, 1
        %v886 = vld [vmem:[%s885] sm:$0x1]
        %v888 = vperm.slane %v886, 0
        %v894 = vunpack.c.l.b16 %v881
        %v895 = vunpack.c.l.b16 %v882
        %v896 = vunpack.c.l.b16 %v883
        %v897 = vunpack.c.l.b16 %v884
        %v898 = vpack.c.b16 %v895, %v894
        %v899 = vpack.c.b16 %v897, %v896
        %902 = vmatpush.bf16.msra.mxu0 0
        %903 = vmatpush.bf16.msra.mxu0 0
        %904 = vmatpush.bf16.msra.mxu0 0
        %905 = vmatpush.bf16.msra.mxu0 0
        %906 = vmatpush.bf16.msra.mxu0 0
        %907 = vmatpush.bf16.msra.mxu0 0
        %908 = vmatpush.bf16.msra.mxu0 %v899
        %909 = vmatpush.bf16.msra.mxu0 %v898
        %910 = vmatmul.bf16.gmra.mxu0 %v706
        %v911 = vpop.f32.mrf.mxu0
        %v912 = vadd.f32 %v888, %v911
        %v913 = vpop.f32.mrf.mxu0
        %914 = vdwg.mxu0
        %s915 = scalar_lea.vmem %s7, 16
        %v916 = vld [vmem:[%s915] sm:$0xf]
        %v917 = vld [vmem:[%s915 + $0x4] sm:$0xf]
        %v918 = vld [vmem:[%s915 + $0x8] sm:$0xf]
        %v919 = vld [vmem:[%s915 + $0xc] sm:$0xf]
        %s920 = scalar_lea.vmem %s8, 1
        %v921 = vld [vmem:[%s920] sm:$0x1]
        %v923 = vperm.slane %v921, 0
        %v929 = vunpack.c.l.b16 %v916
        %v930 = vunpack.c.l.b16 %v917
        %v931 = vunpack.c.l.b16 %v918
        %v932 = vunpack.c.l.b16 %v919
        %v933 = vpack.c.b16 %v930, %v929
        %v934 = vpack.c.b16 %v932, %v931
        %937 = vmatpush.bf16.msra.mxu0 0
        %938 = vmatpush.bf16.msra.mxu0 0
        %939 = vmatpush.bf16.msra.mxu0 0
        %940 = vmatpush.bf16.msra.mxu0 0
        %941 = vmatpush.bf16.msra.mxu0 0
        %942 = vmatpush.bf16.msra.mxu0 0
        %943 = vmatpush.bf16.msra.mxu0 %v934
        %944 = vmatpush.bf16.msra.mxu0 %v933
        %945 = vmatmul.bf16.gmra.mxu0 %v706
        %v946 = vpop.f32.mrf.mxu0
        %v947 = vadd.f32 %v923, %v946
        %v948 = vpop.f32.mrf.mxu0
        %949 = vdwg.mxu0
        %v950 = vpack.c.bf16 %v877, %v877
        %v951 = vpack.c.bf16 %v912, %v912
        %v953 = vsel %vm789, %v950, 0
        %v956 = vsel %vm789, %v951, 0
        %958 = vmatpush.bf16.xpose.msra.mxu0 0
        %959 = vmatpush.bf16.xpose.msra.mxu0 0
        %960 = vmatpush.bf16.xpose.msra.mxu0 0
        %961 = vmatpush.bf16.xpose.msra.mxu0 0
        %962 = vmatpush.bf16.xpose.msra.mxu0 0
        %963 = vmatpush.bf16.xpose.msra.mxu0 0
        %964 = vmatpush.bf16.xpose.msra.mxu0 0
        %965 = vmatpush.bf16.xpose.msra.mxu0 %v956
        %966 = vmatmul.bf16.gmra.mxu0 %v953
        %v967 = vpop.f32.mrf.mxu0
        %v968 = vadd.f32 0.0, %v967
        %v969 = vpop.f32.mrf.mxu0
        %970 = vdwg.mxu0
        %v971 = vmul.f32 %v968, 0.35355338
        %v972 = vsel %vm789, %v971, -inf
        %973 = vmax.xlane.f32.xlu0 %v972
        %v974 = vpop.xlane.xlu0 %973
        %v975 = vsub.f32 %v971, %v974
        %v976 = vmul.f32 %v975, 1.442695
        %v977 = vpow.pop %v976
        %v978 = vsel %vm789, %v977, 0.0
        %979 = vadd.xlane.f32.xlu0 %v978
        %v980 = vpop.xlane.xlu0 %979
        %v981 = vrcp.pop %v980
        %v982 = vmul.f32 %v977, %v981
        %v983 = vpack.c.bf16 %v982, %v982
        %v984 = vpack.c.bf16 %v947, %v947
        %v986 = vsel %vm789, %v983, 0
        %v989 = vsel %vm826, %v984, 0
        %991 = vmatpush.bf16.msra.mxu0 0
        %992 = vmatpush.bf16.msra.mxu0 0
        %993 = vmatpush.bf16.msra.mxu0 0
        %994 = vmatpush.bf16.msra.mxu0 0
        %995 = vmatpush.bf16.msra.mxu0 0
        %996 = vmatpush.bf16.msra.mxu0 0
        %997 = vmatpush.bf16.msra.mxu0 0
        %998 = vmatpush.bf16.msra.mxu0 %v989
        %999 = vmatmul.bf16.gmra.mxu0 %v986
        %v1000 = vpop.f32.mrf.mxu0
        %v1001 = vadd.f32 0.0, %v1000
        %v1002 = vpop.f32.mrf.mxu0
        %1003 = vdwg.mxu0
        %v1004 = vpack.c.bf16 %v1001, %v1001
        %s1005 = scalar_lea.vmem %s9, 4
        %v1006 = vld [vmem:[%s1005] sm:$0xf]
        %v1008 = vsel %vm789, %v1004, 0
        %v1011 = vsel %vm826, %v1006, 0
        %1013 = vmatpush.bf16.msra.mxu0 0
        %1014 = vmatpush.bf16.msra.mxu0 0
        %1015 = vmatpush.bf16.msra.mxu0 0
        %1016 = vmatpush.bf16.msra.mxu0 0
        %1017 = vmatpush.bf16.msra.mxu0 0
        %1018 = vmatpush.bf16.msra.mxu0 0
        %1019 = vmatpush.bf16.msra.mxu0 0
        %1020 = vmatpush.bf16.msra.mxu0 %v1011
        %1021 = vmatmul.bf16.gmra.mxu0 %v1008
        %v1022 = vpop.f32.mrf.mxu0
        %v1023 = vadd.f32 0.0, %v1022
        %v1024 = vpop.f32.mrf.mxu0
        %1025 = vdwg.mxu0
        %v1027 = vsel %vm789, %v843, 0
        %v1030 = vsel %vm826, %v844, 0
        %1032 = vmatpush.bf16.msra.mxu0 0
        %1033 = vmatpush.bf16.msra.mxu0 0
        %1034 = vmatpush.bf16.msra.mxu0 0
        %1035 = vmatpush.bf16.msra.mxu0 0
        %1036 = vmatpush.bf16.msra.mxu0 0
        %1037 = vmatpush.bf16.msra.mxu0 0
        %1038 = vmatpush.bf16.msra.mxu0 0
        %1039 = vmatpush.bf16.msra.mxu0 %v1030
        %1040 = vmatmul.bf16.gmra.mxu0 %v1027
        %v1041 = vpop.f32.mrf.mxu0
        %v1042 = vadd.f32 %v1023, %v1041
        %v1043 = vpop.f32.mrf.mxu0
        %1044 = vdwg.mxu0
        %s1045 = scalar_lea.vmem %s3, 32
        %v1046 = vld [vmem:[%s1045] sm:$0xf]
        %v1047 = vld [vmem:[%s1045 + $0x4] sm:$0xf]
        %v1048 = vld [vmem:[%s1045 + $0x8] sm:$0xf]
        %v1049 = vld [vmem:[%s1045 + $0xc] sm:$0xf]
        %s1050 = scalar_lea.vmem %s4, 2
        %v1051 = vld [vmem:[%s1050] sm:$0x1]
        %v1053 = vperm.slane %v1051, 0
        %v1059 = vunpack.c.l.b16 %v1046
        %v1060 = vunpack.c.l.b16 %v1047
        %v1061 = vunpack.c.l.b16 %v1048
        %v1062 = vunpack.c.l.b16 %v1049
        %v1063 = vpack.c.b16 %v1060, %v1059
        %v1064 = vpack.c.b16 %v1062, %v1061
        %1067 = vmatpush.bf16.msra.mxu0 0
        %1068 = vmatpush.bf16.msra.mxu0 0
        %1069 = vmatpush.bf16.msra.mxu0 0
        %1070 = vmatpush.bf16.msra.mxu0 0
        %1071 = vmatpush.bf16.msra.mxu0 0
        %1072 = vmatpush.bf16.msra.mxu0 0
        %1073 = vmatpush.bf16.msra.mxu0 %v1064
        %1074 = vmatpush.bf16.msra.mxu0 %v1063
        %1075 = vmatmul.bf16.gmra.mxu0 %v706
        %v1076 = vpop.f32.mrf.mxu0
        %v1077 = vadd.f32 %v1053, %v1076
        %v1078 = vpop.f32.mrf.mxu0
        %1079 = vdwg.mxu0
        %s1080 = scalar_lea.vmem %s5, 32
        %v1081 = vld [vmem:[%s1080] sm:$0xf]
        %v1082 = vld [vmem:[%s1080 + $0x4] sm:$0xf]
        %v1083 = vld [vmem:[%s1080 + $0x8] sm:$0xf]
        %v1084 = vld [vmem:[%s1080 + $0xc] sm:$0xf]
        %s1085 = scalar_lea.vmem %s6, 2
        %v1086 = vld [vmem:[%s1085] sm:$0x1]
        %v1088 = vperm.slane %v1086, 0
        %v1094 = vunpack.c.l.b16 %v1081
        %v1095 = vunpack.c.l.b16 %v1082
        %v1096 = vunpack.c.l.b16 %v1083
        %v1097 = vunpack.c.l.b16 %v1084
        %v1098 = vpack.c.b16 %v1095, %v1094
        %v1099 = vpack.c.b16 %v1097, %v1096
        %1102 = vmatpush.bf16.msra.mxu0 0
        %1103 = vmatpush.bf16.msra.mxu0 0
        %1104 = vmatpush.bf16.msra.mxu0 0
        %1105 = vmatpush.bf16.msra.mxu0 0
        %1106 = vmatpush.bf16.msra.mxu0 0
        %1107 = vmatpush.bf16.msra.mxu0 0
        %1108 = vmatpush.bf16.msra.mxu0 %v1099
        %1109 = vmatpush.bf16.msra.mxu0 %v1098
        %1110 = vmatmul.bf16.gmra.mxu0 %v706
        %v1111 = vpop.f32.mrf.mxu0
        %v1112 = vadd.f32 %v1088, %v1111
        %v1113 = vpop.f32.mrf.mxu0
        %1114 = vdwg.mxu0
        %s1115 = scalar_lea.vmem %s7, 32
        %v1116 = vld [vmem:[%s1115] sm:$0xf]
        %v1117 = vld [vmem:[%s1115 + $0x4] sm:$0xf]
        %v1118 = vld [vmem:[%s1115 + $0x8] sm:$0xf]
        %v1119 = vld [vmem:[%s1115 + $0xc] sm:$0xf]
        %s1120 = scalar_lea.vmem %s8, 2
        %v1121 = vld [vmem:[%s1120] sm:$0x1]
        %v1123 = vperm.slane %v1121, 0
        %v1129 = vunpack.c.l.b16 %v1116
        %v1130 = vunpack.c.l.b16 %v1117
        %v1131 = vunpack.c.l.b16 %v1118
        %v1132 = vunpack.c.l.b16 %v1119
        %v1133 = vpack.c.b16 %v1130, %v1129
        %v1134 = vpack.c.b16 %v1132, %v1131
        %1137 = vmatpush.bf16.msra.mxu0 0
        %1138 = vmatpush.bf16.msra.mxu0 0
        %1139 = vmatpush.bf16.msra.mxu0 0
        %1140 = vmatpush.bf16.msra.mxu0 0
        %1141 = vmatpush.bf16.msra.mxu0 0
        %1142 = vmatpush.bf16.msra.mxu0 0
        %1143 = vmatpush.bf16.msra.mxu0 %v1134
        %1144 = vmatpush.bf16.msra.mxu0 %v1133
        %1145 = vmatmul.bf16.gmra.mxu0 %v706
        %v1146 = vpop.f32.mrf.mxu0
        %v1147 = vadd.f32 %v1123, %v1146
        %v1148 = vpop.f32.mrf.mxu0
        %1149 = vdwg.mxu0
        %v1150 = vpack.c.bf16 %v1077, %v1077
        %v1151 = vpack.c.bf16 %v1112, %v1112
        %v1153 = vsel %vm789, %v1150, 0
        %v1156 = vsel %vm789, %v1151, 0
        %1158 = vmatpush.bf16.xpose.msra.mxu0 0
        %1159 = vmatpush.bf16.xpose.msra.mxu0 0
        %1160 = vmatpush.bf16.xpose.msra.mxu0 0
        %1161 = vmatpush.bf16.xpose.msra.mxu0 0
        %1162 = vmatpush.bf16.xpose.msra.mxu0 0
        %1163 = vmatpush.bf16.xpose.msra.mxu0 0
        %1164 = vmatpush.bf16.xpose.msra.mxu0 0
        %1165 = vmatpush.bf16.xpose.msra.mxu0 %v1156
        %1166 = vmatmul.bf16.gmra.mxu0 %v1153
        %v1167 = vpop.f32.mrf.mxu0
        %v1168 = vadd.f32 0.0, %v1167
        %v1169 = vpop.f32.mrf.mxu0
        %1170 = vdwg.mxu0
        %v1171 = vmul.f32 %v1168, 0.35355338
        %v1172 = vsel %vm789, %v1171, -inf
        %1173 = vmax.xlane.f32.xlu0 %v1172
        %v1174 = vpop.xlane.xlu0 %1173
        %v1175 = vsub.f32 %v1171, %v1174
        %v1176 = vmul.f32 %v1175, 1.442695
        %v1177 = vpow.pop %v1176
        %v1178 = vsel %vm789, %v1177, 0.0
        %1179 = vadd.xlane.f32.xlu0 %v1178
        %v1180 = vpop.xlane.xlu0 %1179
        %v1181 = vrcp.pop %v1180
        %v1182 = vmul.f32 %v1177, %v1181
        %v1183 = vpack.c.bf16 %v1182, %v1182
        %v1184 = vpack.c.bf16 %v1147, %v1147
        %v1186 = vsel %vm789, %v1183, 0
        %v1189 = vsel %vm826, %v1184, 0
        %1191 = vmatpush.bf16.msra.mxu0 0
        %1192 = vmatpush.bf16.msra.mxu0 0
        %1193 = vmatpush.bf16.msra.mxu0 0
        %1194 = vmatpush.bf16.msra.mxu0 0
        %1195 = vmatpush.bf16.msra.mxu0 0
        %1196 = vmatpush.bf16.msra.mxu0 0
        %1197 = vmatpush.bf16.msra.mxu0 0
        %1198 = vmatpush.bf16.msra.mxu0 %v1189
        %1199 = vmatmul.bf16.gmra.mxu0 %v1186
        %v1200 = vpop.f32.mrf.mxu0
        %v1201 = vadd.f32 0.0, %v1200
        %v1202 = vpop.f32.mrf.mxu0
        %1203 = vdwg.mxu0
        %v1204 = vpack.c.bf16 %v1201, %v1201
        %s1205 = scalar_lea.vmem %s9, 8
        %v1206 = vld [vmem:[%s1205] sm:$0xf]
        %v1208 = vsel %vm789, %v1204, 0
        %v1211 = vsel %vm826, %v1206, 0
        %1213 = vmatpush.bf16.msra.mxu0 0
        %1214 = vmatpush.bf16.msra.mxu0 0
        %1215 = vmatpush.bf16.msra.mxu0 0
        %1216 = vmatpush.bf16.msra.mxu0 0
        %1217 = vmatpush.bf16.msra.mxu0 0
        %1218 = vmatpush.bf16.msra.mxu0 0
        %1219 = vmatpush.bf16.msra.mxu0 0
        %1220 = vmatpush.bf16.msra.mxu0 %v1211
        %1221 = vmatmul.bf16.gmra.mxu0 %v1208
        %v1222 = vpop.f32.mrf.mxu0
        %v1223 = vadd.f32 0.0, %v1222
        %v1224 = vpop.f32.mrf.mxu0
        %1225 = vdwg.mxu0
        %v1226 = vadd.f32 %v1042, %v1223
        %s1227 = scalar_lea.vmem %s3, 48
        %v1228 = vld [vmem:[%s1227] sm:$0xf]
        %v1229 = vld [vmem:[%s1227 + $0x4] sm:$0xf]
        %v1230 = vld [vmem:[%s1227 + $0x8] sm:$0xf]
        %v1231 = vld [vmem:[%s1227 + $0xc] sm:$0xf]
        %s1232 = scalar_lea.vmem %s4, 3
        %v1233 = vld [vmem:[%s1232] sm:$0x1]
        %v1235 = vperm.slane %v1233, 0
        %v1241 = vunpack.c.l.b16 %v1228
        %v1242 = vunpack.c.l.b16 %v1229
        %v1243 = vunpack.c.l.b16 %v1230
        %v1244 = vunpack.c.l.b16 %v1231
        %v1245 = vpack.c.b16 %v1242, %v1241
        %v1246 = vpack.c.b16 %v1244, %v1243
        %1249 = vmatpush.bf16.msra.mxu0 0
        %1250 = vmatpush.bf16.msra.mxu0 0
        %1251 = vmatpush.bf16.msra.mxu0 0
        %1252 = vmatpush.bf16.msra.mxu0 0
        %1253 = vmatpush.bf16.msra.mxu0 0
        %1254 = vmatpush.bf16.msra.mxu0 0
        %1255 = vmatpush.bf16.msra.mxu0 %v1246
        %1256 = vmatpush.bf16.msra.mxu0 %v1245
        %1257 = vmatmul.bf16.gmra.mxu0 %v706
        %v1258 = vpop.f32.mrf.mxu0
        %v1259 = vadd.f32 %v1235, %v1258
        %v1260 = vpop.f32.mrf.mxu0
        %1261 = vdwg.mxu0
        %s1262 = scalar_lea.vmem %s5, 48
        %v1263 = vld [vmem:[%s1262] sm:$0xf]
        %v1264 = vld [vmem:[%s1262 + $0x4] sm:$0xf]
        %v1265 = vld [vmem:[%s1262 + $0x8] sm:$0xf]
        %v1266 = vld [vmem:[%s1262 + $0xc] sm:$0xf]
        %s1267 = scalar_lea.vmem %s6, 3
        %v1268 = vld [vmem:[%s1267] sm:$0x1]
        %v1270 = vperm.slane %v1268, 0
        %v1276 = vunpack.c.l.b16 %v1263
        %v1277 = vunpack.c.l.b16 %v1264
        %v1278 = vunpack.c.l.b16 %v1265
        %v1279 = vunpack.c.l.b16 %v1266
        %v1280 = vpack.c.b16 %v1277, %v1276
        %v1281 = vpack.c.b16 %v1279, %v1278
        %1284 = vmatpush.bf16.msra.mxu0 0
        %1285 = vmatpush.bf16.msra.mxu0 0
        %1286 = vmatpush.bf16.msra.mxu0 0
        %1287 = vmatpush.bf16.msra.mxu0 0
        %1288 = vmatpush.bf16.msra.mxu0 0
        %1289 = vmatpush.bf16.msra.mxu0 0
        %1290 = vmatpush.bf16.msra.mxu0 %v1281
        %1291 = vmatpush.bf16.msra.mxu0 %v1280
        %1292 = vmatmul.bf16.gmra.mxu0 %v706
        %v1293 = vpop.f32.mrf.mxu0
        %v1294 = vadd.f32 %v1270, %v1293
        %v1295 = vpop.f32.mrf.mxu0
        %1296 = vdwg.mxu0
        %s1297 = scalar_lea.vmem %s7, 48
        %v1298 = vld [vmem:[%s1297] sm:$0xf]
        %v1299 = vld [vmem:[%s1297 + $0x4] sm:$0xf]
        %v1300 = vld [vmem:[%s1297 + $0x8] sm:$0xf]
        %v1301 = vld [vmem:[%s1297 + $0xc] sm:$0xf]
        %s1302 = scalar_lea.vmem %s8, 3
        %v1303 = vld [vmem:[%s1302] sm:$0x1]
        %v1305 = vperm.slane %v1303, 0
        %v1311 = vunpack.c.l.b16 %v1298
        %v1312 = vunpack.c.l.b16 %v1299
        %v1313 = vunpack.c.l.b16 %v1300
        %v1314 = vunpack.c.l.b16 %v1301
        %v1315 = vpack.c.b16 %v1312, %v1311
        %v1316 = vpack.c.b16 %v1314, %v1313
        %1319 = vmatpush.bf16.msra.mxu0 0
        %1320 = vmatpush.bf16.msra.mxu0 0
        %1321 = vmatpush.bf16.msra.mxu0 0
        %1322 = vmatpush.bf16.msra.mxu0 0
        %1323 = vmatpush.bf16.msra.mxu0 0
        %1324 = vmatpush.bf16.msra.mxu0 0
        %1325 = vmatpush.bf16.msra.mxu0 %v1316
        %1326 = vmatpush.bf16.msra.mxu0 %v1315
        %1327 = vmatmul.bf16.gmra.mxu0 %v706
        %v1328 = vpop.f32.mrf.mxu0
        %v1329 = vadd.f32 %v1305, %v1328
        %v1330 = vpop.f32.mrf.mxu0
        %1331 = vdwg.mxu0
        %v1332 = vpack.c.bf16 %v1259, %v1259
        %v1333 = vpack.c.bf16 %v1294, %v1294
        %v1335 = vsel %vm789, %v1332, 0
        %v1338 = vsel %vm789, %v1333, 0
        %1340 = vmatpush.bf16.xpose.msra.mxu0 0
        %1341 = vmatpush.bf16.xpose.msra.mxu0 0
        %1342 = vmatpush.bf16.xpose.msra.mxu0 0
        %1343 = vmatpush.bf16.xpose.msra.mxu0 0
        %1344 = vmatpush.bf16.xpose.msra.mxu0 0
        %1345 = vmatpush.bf16.xpose.msra.mxu0 0
        %1346 = vmatpush.bf16.xpose.msra.mxu0 0
        %1347 = vmatpush.bf16.xpose.msra.mxu0 %v1338
        %1348 = vmatmul.bf16.gmra.mxu0 %v1335
        %v1349 = vpop.f32.mrf.mxu0
        %v1350 = vadd.f32 0.0, %v1349
        %v1351 = vpop.f32.mrf.mxu0
        %1352 = vdwg.mxu0
        %v1353 = vmul.f32 %v1350, 0.35355338
        %v1354 = vsel %vm789, %v1353, -inf
        %1355 = vmax.xlane.f32.xlu0 %v1354
        %v1356 = vpop.xlane.xlu0 %1355
        %v1357 = vsub.f32 %v1353, %v1356
        %v1358 = vmul.f32 %v1357, 1.442695
        %v1359 = vpow.pop %v1358
        %v1360 = vsel %vm789, %v1359, 0.0
        %1361 = vadd.xlane.f32.xlu0 %v1360
        %v1362 = vpop.xlane.xlu0 %1361
        %v1363 = vrcp.pop %v1362
        %v1364 = vmul.f32 %v1359, %v1363
        %v1365 = vpack.c.bf16 %v1364, %v1364
        %v1366 = vpack.c.bf16 %v1329, %v1329
        %v1368 = vsel %vm789, %v1365, 0
        %v1371 = vsel %vm826, %v1366, 0
        %1373 = vmatpush.bf16.msra.mxu0 0
        %1374 = vmatpush.bf16.msra.mxu0 0
        %1375 = vmatpush.bf16.msra.mxu0 0
        %1376 = vmatpush.bf16.msra.mxu0 0
        %1377 = vmatpush.bf16.msra.mxu0 0
        %1378 = vmatpush.bf16.msra.mxu0 0
        %1379 = vmatpush.bf16.msra.mxu0 0
        %1380 = vmatpush.bf16.msra.mxu0 %v1371
        %1381 = vmatmul.bf16.gmra.mxu0 %v1368
        %v1382 = vpop.f32.mrf.mxu0
        %v1383 = vadd.f32 0.0, %v1382
        %v1384 = vpop.f32.mrf.mxu0
        %1385 = vdwg.mxu0
        %v1386 = vpack.c.bf16 %v1383, %v1383
        %s1387 = scalar_lea.vmem %s9, 12
        %v1388 = vld [vmem:[%s1387] sm:$0xf]
        %v1390 = vsel %vm789, %v1386, 0
        %v1393 = vsel %vm826, %v1388, 0
        %1395 = vmatpush.bf16.msra.mxu0 0
        %1396 = vmatpush.bf16.msra.mxu0 0
        %1397 = vmatpush.bf16.msra.mxu0 0
        %1398 = vmatpush.bf16.msra.mxu0 0
        %1399 = vmatpush.bf16.msra.mxu0 0
        %1400 = vmatpush.bf16.msra.mxu0 0
        %1401 = vmatpush.bf16.msra.mxu0 0
        %1402 = vmatpush.bf16.msra.mxu0 %v1393
        %1403 = vmatmul.bf16.gmra.mxu0 %v1390
        %v1404 = vpop.f32.mrf.mxu0
        %v1405 = vadd.f32 0.0, %v1404
        %v1406 = vpop.f32.mrf.mxu0
        %1407 = vdwg.mxu0
        %v1408 = vadd.f32 %v1226, %v1405
        %v1409 = vadd.f32 %v680, %v1408
        %v1410 = vld [vmem:[%s10] sm:$0x1]
        %v1412 = vperm.slane %v1410, 0
        %v1414 = vadd.f32 %v1409, %v1412
        %v1415 = vld [vmem:[%s11] sm:$0x1]
        %v1416 = vld [vmem:[%s12] sm:$0x1]
        %v1417 = vsel %vm704, %v1414, 0.0
        %1418 = vadd.xlane.f32.xlu0 %v1417
        %v1419 = vpop.xlane.xlu0 %1418
        %v1420 = vrcp.pop 32.0
        %v1421 = vmul.f32 32.0, %v1420
        %v1422 = vsub.f32 1.0, %v1421
        %v1423 = vmul.f32 %v1420, %v1422
        %v1424 = vadd.f32 %v1420, %v1423
        %vm1425 = vweird.f32 %v1420
        %v1426 = vsel %vm1425, %v1420, %v1424
        %v1427 = vmul.f32 %v1419, %v1426
        %v1428 = vsub.f32 %v1414, %v1427
        %v1429 = vmul.f32 %v1428, %v1428
        %v1430 = vsel %vm704, %v1429, 0.0
        %1431 = vadd.xlane.f32.xlu0 %v1430
        %v1432 = vpop.xlane.xlu0 %1431
        %v1433 = vmul.f32 %v1432, %v1426
        %v1434 = vadd.f32 %v1433, 1e-05
        %v1435 = vrsqrt.pop %v1434
        %v1436 = vmul.f32 %v1435, %v1434
        %v1437 = vmul.f32 %v1436, %v1435
        %v1438 = vmul.f32 0.5, %v1437
        %v1439 = vsub.f32 1.5, %v1438
        %v1440 = vmul.f32 %v1435, %v1439
        %vm1441 = vweird.f32 %v1434
        %vm1442 = vweird.f32 %v1435
        %vm1443 = vmor %vm1441, %vm1442
        %v1444 = vsel %vm1443, %v1435, %v1440
        %v1445 = vmul.f32 %v1428, %v1444
        %v1447 = vperm.slane %v1415, 0
        %v1449 = vmul.f32 %v1445, %v1447
        %v1451 = vperm.slane %v1416, 0
        %v1453 = vadd.f32 %v1449, %v1451
        %v1454 = vpack.c.bf16 %v1453, %v1453
        %v1455 = vld [vmem:[%s13] sm:$0xff]
        %v1456 = vld [vmem:[%s13 + $0x8] sm:$0xff]
        %v1457 = vld [vmem:[%s13 + $0x10] sm:$0xff]
        %v1458 = vld [vmem:[%s13 + $0x18] sm:$0xff]
        %v1459 = vld [vmem:[%s13 + $0x20] sm:$0xff]
        %v1460 = vld [vmem:[%s13 + $0x28] sm:$0xff]
        %v1461 = vld [vmem:[%s13 + $0x30] sm:$0xff]
        %v1462 = vld [vmem:[%s13 + $0x38] sm:$0xff]
        %v1463 = vld [vmem:[%s13 + $0x40] sm:$0xff]
        %v1464 = vld [vmem:[%s13 + $0x48] sm:$0xff]
        %v1465 = vld [vmem:[%s13 + $0x50] sm:$0xff]
        %v1466 = vld [vmem:[%s13 + $0x58] sm:$0xff]
        %v1467 = vld [vmem:[%s13 + $0x60] sm:$0xff]
        %v1468 = vld [vmem:[%s13 + $0x68] sm:$0xff]
        %v1469 = vld [vmem:[%s13 + $0x70] sm:$0xff]
        %v1470 = vld [vmem:[%s13 + $0x78] sm:$0xff]
        %v1471 = vld [vmem:[%s13 + $0x80] sm:$0xff]
        %v1472 = vld [vmem:[%s13 + $0x88] sm:$0xff]
        %v1473 = vld [vmem:[%s13 + $0x90] sm:$0xff]
        %v1474 = vld [vmem:[%s13 + $0x98] sm:$0xff]
        %v1475 = vld [vmem:[%s13 + $0xa0] sm:$0xff]
        %v1476 = vld [vmem:[%s13 + $0xa8] sm:$0xff]
        %v1477 = vld [vmem:[%s13 + $0xb0] sm:$0xff]
        %v1478 = vld [vmem:[%s13 + $0xb8] sm:$0xff]
        %v1479 = vld [vmem:[%s13 + $0xc0] sm:$0xff]
        %v1480 = vld [vmem:[%s13 + $0xc8] sm:$0xff]
        %v1481 = vld [vmem:[%s13 + $0xd0] sm:$0xff]
        %v1482 = vld [vmem:[%s13 + $0xd8] sm:$0xff]
        %v1483 = vld [vmem:[%s13 + $0xe0] sm:$0xff]
        %v1484 = vld [vmem:[%s13 + $0xe8] sm:$0xff]
        %v1485 = vld [vmem:[%s13 + $0xf0] sm:$0xff]
        %v1486 = vld [vmem:[%s13 + $0xf8] sm:$0xff]
        %v1487 = vld [vmem:[%s14] sm:$0xff]
        %v1488 = vld [vmem:[%s14 + $0x8] sm:$0xff]
        %v1491 = vperm.slane %v1487, 0
        %v1492 = vperm.slane %v1487, 1
        %v1493 = vperm.slane %v1487, 2
        %v1494 = vperm.slane %v1487, 3
        %v1495 = vperm.slane %v1487, 4
        %v1496 = vperm.slane %v1487, 5
        %v1497 = vperm.slane %v1487, 6
        %v1498 = vperm.slane %v1487, 7
        %v1499 = vperm.slane %v1488, 0
        %v1500 = vperm.slane %v1488, 1
        %v1501 = vperm.slane %v1488, 2
        %v1502 = vperm.slane %v1488, 3
        %v1503 = vperm.slane %v1488, 4
        %v1504 = vperm.slane %v1488, 5
        %v1505 = vperm.slane %v1488, 6
        %v1506 = vperm.slane %v1488, 7
        %v1555 = vunpack.c.l.b16 %v1455
        %v1556 = vunpack.c.h.b16 %v1455
        %v1557 = vunpack.c.l.b16 %v1456
        %v1558 = vunpack.c.h.b16 %v1456
        %v1559 = vunpack.c.l.b16 %v1457
        %v1560 = vunpack.c.h.b16 %v1457
        %v1561 = vunpack.c.l.b16 %v1458
        %v1562 = vunpack.c.h.b16 %v1458
        %v1563 = vunpack.c.l.b16 %v1459
        %v1564 = vunpack.c.h.b16 %v1459
        %v1565 = vunpack.c.l.b16 %v1460
        %v1566 = vunpack.c.h.b16 %v1460
        %v1567 = vunpack.c.l.b16 %v1461
        %v1568 = vunpack.c.h.b16 %v1461
        %v1569 = vunpack.c.l.b16 %v1462
        %v1570 = vunpack.c.h.b16 %v1462
        %v1571 = vunpack.c.l.b16 %v1463
        %v1572 = vunpack.c.h.b16 %v1463
        %v1573 = vunpack.c.l.b16 %v1464
        %v1574 = vunpack.c.h.b16 %v1464
        %v1575 = vunpack.c.l.b16 %v1465
        %v1576 = vunpack.c.h.b16 %v1465
        %v1577 = vunpack.c.l.b16 %v1466
        %v1578 = vunpack.c.h.b16 %v1466
        %v1579 = vunpack.c.l.b16 %v1467
        %v1580 = vunpack.c.h.b16 %v1467
        %v1581 = vunpack.c.l.b16 %v1468
        %v1582 = vunpack.c.h.b16 %v1468
        %v1583 = vunpack.c.l.b16 %v1469
        %v1584 = vunpack.c.h.b16 %v1469
        %v1585 = vunpack.c.l.b16 %v1470
        %v1586 = vunpack.c.h.b16 %v1470
        %v1587 = vunpack.c.l.b16 %v1471
        %v1588 = vunpack.c.h.b16 %v1471
        %v1589 = vunpack.c.l.b16 %v1472
        %v1590 = vunpack.c.h.b16 %v1472
        %v1591 = vunpack.c.l.b16 %v1473
        %v1592 = vunpack.c.h.b16 %v1473
        %v1593 = vunpack.c.l.b16 %v1474
        %v1594 = vunpack.c.h.b16 %v1474
        %v1595 = vunpack.c.l.b16 %v1475
        %v1596 = vunpack.c.h.b16 %v1475
        %v1597 = vunpack.c.l.b16 %v1476
        %v1598 = vunpack.c.h.b16 %v1476
        %v1599 = vunpack.c.l.b16 %v1477
        %v1600 = vunpack.c.h.b16 %v1477
        %v1601 = vunpack.c.l.b16 %v1478
        %v1602 = vunpack.c.h.b16 %v1478
        %v1603 = vunpack.c.l.b16 %v1479
        %v1604 = vunpack.c.h.b16 %v1479
        %v1605 = vunpack.c.l.b16 %v1480
        %v1606 = vunpack.c.h.b16 %v1480
        %v1607 = vunpack.c.l.b16 %v1481
        %v1608 = vunpack.c.h.b16 %v1481
        %v1609 = vunpack.c.l.b16 %v1482
        %v1610 = vunpack.c.h.b16 %v1482
        %v1611 = vunpack.c.l.b16 %v1483
        %v1612 = vunpack.c.h.b16 %v1483
        %v1613 = vunpack.c.l.b16 %v1484
        %v1614 = vunpack.c.h.b16 %v1484
        %v1615 = vunpack.c.l.b16 %v1485
        %v1616 = vunpack.c.h.b16 %v1485
        %v1617 = vunpack.c.l.b16 %v1486
        %v1618 = vunpack.c.h.b16 %v1486
        %v1619 = vpack.c.b16 %v1571, %v1555
        %v1620 = vpack.c.b16 %v1572, %v1556
        %v1621 = vpack.c.b16 %v1573, %v1557
        %v1622 = vpack.c.b16 %v1574, %v1558
        %v1623 = vpack.c.b16 %v1575, %v1559
        %v1624 = vpack.c.b16 %v1576, %v1560
        %v1625 = vpack.c.b16 %v1577, %v1561
        %v1626 = vpack.c.b16 %v1578, %v1562
        %v1627 = vpack.c.b16 %v1579, %v1563
        %v1628 = vpack.c.b16 %v1580, %v1564
        %v1629 = vpack.c.b16 %v1581, %v1565
        %v1630 = vpack.c.b16 %v1582, %v1566
        %v1631 = vpack.c.b16 %v1583, %v1567
        %v1632 = vpack.c.b16 %v1584, %v1568
        %v1633 = vpack.c.b16 %v1585, %v1569
        %v1634 = vpack.c.b16 %v1586, %v1570
        %v1635 = vpack.c.b16 %v1603, %v1587
        %v1636 = vpack.c.b16 %v1604, %v1588
        %v1637 = vpack.c.b16 %v1605, %v1589
        %v1638 = vpack.c.b16 %v1606, %v1590
        %v1639 = vpack.c.b16 %v1607, %v1591
        %v1640 = vpack.c.b16 %v1608, %v1592
        %v1641 = vpack.c.b16 %v1609, %v1593
        %v1642 = vpack.c.b16 %v1610, %v1594
        %v1643 = vpack.c.b16 %v1611, %v1595
        %v1644 = vpack.c.b16 %v1612, %v1596
        %v1645 = vpack.c.b16 %v1613, %v1597
        %v1646 = vpack.c.b16 %v1614, %v1598
        %v1647 = vpack.c.b16 %v1615, %v1599
        %v1648 = vpack.c.b16 %v1616, %v1600
        %v1649 = vpack.c.b16 %v1617, %v1601
        %v1650 = vpack.c.b16 %v1618, %v1602
        %v1684 = vsel %vm704, %v1454, 0
        %1686 = vmatpush.bf16.msra.mxu0 0
        %1687 = vmatpush.bf16.msra.mxu0 0
        %1688 = vmatpush.bf16.msra.mxu0 0
        %1689 = vmatpush.bf16.msra.mxu0 0
        %1690 = vmatpush.bf16.msra.mxu0 0
        %1691 = vmatpush.bf16.msra.mxu0 0
        %1692 = vmatpush.bf16.msra.mxu0 %v1635
        %1693 = vmatpush.bf16.msra.mxu0 %v1619
        %1694 = vmatmul.bf16.gmra.mxu0 %v1684
        %v1695 = vpop.f32.mrf.mxu0
        %v1696 = vadd.f32 %v1491, %v1695
        %v1697 = vpop.f32.mrf.mxu0
        %1698 = vdwg.mxu0
        %1699 = vmatpush.bf16.msra.mxu0 0
        %1700 = vmatpush.bf16.msra.mxu0 0
        %1701 = vmatpush.bf16.msra.mxu0 0
        %1702 = vmatpush.bf16.msra.mxu0 0
        %1703 = vmatpush.bf16.msra.mxu0 0
        %1704 = vmatpush.bf16.msra.mxu0 0
        %1705 = vmatpush.bf16.msra.mxu0 %v1636
        %1706 = vmatpush.bf16.msra.mxu0 %v1620
        %1707 = vmatmul.bf16.gmra.mxu0 %v1684
        %v1708 = vpop.f32.mrf.mxu0
        %v1709 = vadd.f32 %v1492, %v1708
        %v1710 = vpop.f32.mrf.mxu0
        %1711 = vdwg.mxu0
        %1712 = vmatpush.bf16.msra.mxu0 0
        %1713 = vmatpush.bf16.msra.mxu0 0
        %1714 = vmatpush.bf16.msra.mxu0 0
        %1715 = vmatpush.bf16.msra.mxu0 0
        %1716 = vmatpush.bf16.msra.mxu0 0
        %1717 = vmatpush.bf16.msra.mxu0 0
        %1718 = vmatpush.bf16.msra.mxu0 %v1637
        %1719 = vmatpush.bf16.msra.mxu0 %v1621
        %1720 = vmatmul.bf16.gmra.mxu0 %v1684
        %v1721 = vpop.f32.mrf.mxu0
        %v1722 = vadd.f32 %v1493, %v1721
        %v1723 = vpop.f32.mrf.mxu0
        %1724 = vdwg.mxu0
        %1725 = vmatpush.bf16.msra.mxu0 0
        %1726 = vmatpush.bf16.msra.mxu0 0
        %1727 = vmatpush.bf16.msra.mxu0 0
        %1728 = vmatpush.bf16.msra.mxu0 0
        %1729 = vmatpush.bf16.msra.mxu0 0
        %1730 = vmatpush.bf16.msra.mxu0 0
        %1731 = vmatpush.bf16.msra.mxu0 %v1638
        %1732 = vmatpush.bf16.msra.mxu0 %v1622
        %1733 = vmatmul.bf16.gmra.mxu0 %v1684
        %v1734 = vpop.f32.mrf.mxu0
        %v1735 = vadd.f32 %v1494, %v1734
        %v1736 = vpop.f32.mrf.mxu0
        %1737 = vdwg.mxu0
        %1738 = vmatpush.bf16.msra.mxu0 0
        %1739 = vmatpush.bf16.msra.mxu0 0
        %1740 = vmatpush.bf16.msra.mxu0 0
        %1741 = vmatpush.bf16.msra.mxu0 0
        %1742 = vmatpush.bf16.msra.mxu0 0
        %1743 = vmatpush.bf16.msra.mxu0 0
        %1744 = vmatpush.bf16.msra.mxu0 %v1639
        %1745 = vmatpush.bf16.msra.mxu0 %v1623
        %1746 = vmatmul.bf16.gmra.mxu0 %v1684
        %v1747 = vpop.f32.mrf.mxu0
        %v1748 = vadd.f32 %v1495, %v1747
        %v1749 = vpop.f32.mrf.mxu0
        %1750 = vdwg.mxu0
        %1751 = vmatpush.bf16.msra.mxu0 0
        %1752 = vmatpush.bf16.msra.mxu0 0
        %1753 = vmatpush.bf16.msra.mxu0 0
        %1754 = vmatpush.bf16.msra.mxu0 0
        %1755 = vmatpush.bf16.msra.mxu0 0
        %1756 = vmatpush.bf16.msra.mxu0 0
        %1757 = vmatpush.bf16.msra.mxu0 %v1640
        %1758 = vmatpush.bf16.msra.mxu0 %v1624
        %1759 = vmatmul.bf16.gmra.mxu0 %v1684
        %v1760 = vpop.f32.mrf.mxu0
        %v1761 = vadd.f32 %v1496, %v1760
        %v1762 = vpop.f32.mrf.mxu0
        %1763 = vdwg.mxu0
        %1764 = vmatpush.bf16.msra.mxu0 0
        %1765 = vmatpush.bf16.msra.mxu0 0
        %1766 = vmatpush.bf16.msra.mxu0 0
        %1767 = vmatpush.bf16.msra.mxu0 0
        %1768 = vmatpush.bf16.msra.mxu0 0
        %1769 = vmatpush.bf16.msra.mxu0 0
        %1770 = vmatpush.bf16.msra.mxu0 %v1641
        %1771 = vmatpush.bf16.msra.mxu0 %v1625
        %1772 = vmatmul.bf16.gmra.mxu0 %v1684
        %v1773 = vpop.f32.mrf.mxu0
        %v1774 = vadd.f32 %v1497, %v1773
        %v1775 = vpop.f32.mrf.mxu0
        %1776 = vdwg.mxu0
        %1777 = vmatpush.bf16.msra.mxu0 0
        %1778 = vmatpush.bf16.msra.mxu0 0
        %1779 = vmatpush.bf16.msra.mxu0 0
        %1780 = vmatpush.bf16.msra.mxu0 0
        %1781 = vmatpush.bf16.msra.mxu0 0
        %1782 = vmatpush.bf16.msra.mxu0 0
        %1783 = vmatpush.bf16.msra.mxu0 %v1642
        %1784 = vmatpush.bf16.msra.mxu0 %v1626
        %1785 = vmatmul.bf16.gmra.mxu0 %v1684
        %v1786 = vpop.f32.mrf.mxu0
        %v1787 = vadd.f32 %v1498, %v1786
        %v1788 = vpop.f32.mrf.mxu0
        %1789 = vdwg.mxu0
        %1790 = vmatpush.bf16.msra.mxu0 0
        %1791 = vmatpush.bf16.msra.mxu0 0
        %1792 = vmatpush.bf16.msra.mxu0 0
        %1793 = vmatpush.bf16.msra.mxu0 0
        %1794 = vmatpush.bf16.msra.mxu0 0
        %1795 = vmatpush.bf16.msra.mxu0 0
        %1796 = vmatpush.bf16.msra.mxu0 %v1643
        %1797 = vmatpush.bf16.msra.mxu0 %v1627
        %1798 = vmatmul.bf16.gmra.mxu0 %v1684
        %v1799 = vpop.f32.mrf.mxu0
        %v1800 = vadd.f32 %v1499, %v1799
        %v1801 = vpop.f32.mrf.mxu0
        %1802 = vdwg.mxu0
        %1803 = vmatpush.bf16.msra.mxu0 0
        %1804 = vmatpush.bf16.msra.mxu0 0
        %1805 = vmatpush.bf16.msra.mxu0 0
        %1806 = vmatpush.bf16.msra.mxu0 0
        %1807 = vmatpush.bf16.msra.mxu0 0
        %1808 = vmatpush.bf16.msra.mxu0 0
        %1809 = vmatpush.bf16.msra.mxu0 %v1644
        %1810 = vmatpush.bf16.msra.mxu0 %v1628
        %1811 = vmatmul.bf16.gmra.mxu0 %v1684
        %v1812 = vpop.f32.mrf.mxu0
        %v1813 = vadd.f32 %v1500, %v1812
        %v1814 = vpop.f32.mrf.mxu0
        %1815 = vdwg.mxu0
        %1816 = vmatpush.bf16.msra.mxu0 0
        %1817 = vmatpush.bf16.msra.mxu0 0
        %1818 = vmatpush.bf16.msra.mxu0 0
        %1819 = vmatpush.bf16.msra.mxu0 0
        %1820 = vmatpush.bf16.msra.mxu0 0
        %1821 = vmatpush.bf16.msra.mxu0 0
        %1822 = vmatpush.bf16.msra.mxu0 %v1645
        %1823 = vmatpush.bf16.msra.mxu0 %v1629
        %1824 = vmatmul.bf16.gmra.mxu0 %v1684
        %v1825 = vpop.f32.mrf.mxu0
        %v1826 = vadd.f32 %v1501, %v1825
        %v1827 = vpop.f32.mrf.mxu0
        %1828 = vdwg.mxu0
        %1829 = vmatpush.bf16.msra.mxu0 0
        %1830 = vmatpush.bf16.msra.mxu0 0
        %1831 = vmatpush.bf16.msra.mxu0 0
        %1832 = vmatpush.bf16.msra.mxu0 0
        %1833 = vmatpush.bf16.msra.mxu0 0
        %1834 = vmatpush.bf16.msra.mxu0 0
        %1835 = vmatpush.bf16.msra.mxu0 %v1646
        %1836 = vmatpush.bf16.msra.mxu0 %v1630
        %1837 = vmatmul.bf16.gmra.mxu0 %v1684
        %v1838 = vpop.f32.mrf.mxu0
        %v1839 = vadd.f32 %v1502, %v1838
        %v1840 = vpop.f32.mrf.mxu0
        %1841 = vdwg.mxu0
        %1842 = vmatpush.bf16.msra.mxu0 0
        %1843 = vmatpush.bf16.msra.mxu0 0
        %1844 = vmatpush.bf16.msra.mxu0 0
        %1845 = vmatpush.bf16.msra.mxu0 0
        %1846 = vmatpush.bf16.msra.mxu0 0
        %1847 = vmatpush.bf16.msra.mxu0 0
        %1848 = vmatpush.bf16.msra.mxu0 %v1647
        %1849 = vmatpush.bf16.msra.mxu0 %v1631
        %1850 = vmatmul.bf16.gmra.mxu0 %v1684
        %v1851 = vpop.f32.mrf.mxu0
        %v1852 = vadd.f32 %v1503, %v1851
        %v1853 = vpop.f32.mrf.mxu0
        %1854 = vdwg.mxu0
        %1855 = vmatpush.bf16.msra.mxu0 0
        %1856 = vmatpush.bf16.msra.mxu0 0
        %1857 = vmatpush.bf16.msra.mxu0 0
        %1858 = vmatpush.bf16.msra.mxu0 0
        %1859 = vmatpush.bf16.msra.mxu0 0
        %1860 = vmatpush.bf16.msra.mxu0 0
        %1861 = vmatpush.bf16.msra.mxu0 %v1648
        %1862 = vmatpush.bf16.msra.mxu0 %v1632
        %1863 = vmatmul.bf16.gmra.mxu0 %v1684
        %v1864 = vpop.f32.mrf.mxu0
        %v1865 = vadd.f32 %v1504, %v1864
        %v1866 = vpop.f32.mrf.mxu0
        %1867 = vdwg.mxu0
        %1868 = vmatpush.bf16.msra.mxu0 0
        %1869 = vmatpush.bf16.msra.mxu0 0
        %1870 = vmatpush.bf16.msra.mxu0 0
        %1871 = vmatpush.bf16.msra.mxu0 0
        %1872 = vmatpush.bf16.msra.mxu0 0
        %1873 = vmatpush.bf16.msra.mxu0 0
        %1874 = vmatpush.bf16.msra.mxu0 %v1649
        %1875 = vmatpush.bf16.msra.mxu0 %v1633
        %1876 = vmatmul.bf16.gmra.mxu0 %v1684
        %v1877 = vpop.f32.mrf.mxu0
        %v1878 = vadd.f32 %v1505, %v1877
        %v1879 = vpop.f32.mrf.mxu0
        %1880 = vdwg.mxu0
        %1881 = vmatpush.bf16.msra.mxu0 0
        %1882 = vmatpush.bf16.msra.mxu0 0
        %1883 = vmatpush.bf16.msra.mxu0 0
        %1884 = vmatpush.bf16.msra.mxu0 0
        %1885 = vmatpush.bf16.msra.mxu0 0
        %1886 = vmatpush.bf16.msra.mxu0 0
        %1887 = vmatpush.bf16.msra.mxu0 %v1650
        %1888 = vmatpush.bf16.msra.mxu0 %v1634
        %1889 = vmatmul.bf16.gmra.mxu0 %v1684
        %v1890 = vpop.f32.mrf.mxu0
        %v1891 = vadd.f32 %v1506, %v1890
        %v1892 = vpop.f32.mrf.mxu0
        %1893 = vdwg.mxu0
        %v1894 = vmax.f32 %v1696, 0.0
        %v1895 = vmax.f32 %v1709, 0.0
        %v1896 = vmax.f32 %v1722, 0.0
        %v1897 = vmax.f32 %v1735, 0.0
        %v1898 = vmax.f32 %v1748, 0.0
        %v1899 = vmax.f32 %v1761, 0.0
        %v1900 = vmax.f32 %v1774, 0.0
        %v1901 = vmax.f32 %v1787, 0.0
        %v1902 = vmax.f32 %v1800, 0.0
        %v1903 = vmax.f32 %v1813, 0.0
        %v1904 = vmax.f32 %v1826, 0.0
        %v1905 = vmax.f32 %v1839, 0.0
        %v1906 = vmax.f32 %v1852, 0.0
        %v1907 = vmax.f32 %v1865, 0.0
        %v1908 = vmax.f32 %v1878, 0.0
        %v1909 = vmax.f32 %v1891, 0.0
        %v1910 = vpack.c.bf16 %v1894, %v1894
        %v1911 = vpack.c.bf16 %v1895, %v1895
        %v1912 = vpack.c.bf16 %v1896, %v1896
        %v1913 = vpack.c.bf16 %v1897, %v1897
        %v1914 = vpack.c.bf16 %v1898, %v1898
        %v1915 = vpack.c.bf16 %v1899, %v1899
        %v1916 = vpack.c.bf16 %v1900, %v1900
        %v1917 = vpack.c.bf16 %v1901, %v1901
        %v1918 = vpack.c.bf16 %v1902, %v1902
        %v1919 = vpack.c.bf16 %v1903, %v1903
        %v1920 = vpack.c.bf16 %v1904, %v1904
        %v1921 = vpack.c.bf16 %v1905, %v1905
        %v1922 = vpack.c.bf16 %v1906, %v1906
        %v1923 = vpack.c.bf16 %v1907, %v1907
        %v1924 = vpack.c.bf16 %v1908, %v1908
        %v1925 = vpack.c.bf16 %v1909, %v1909
        %v1926 = vld [vmem:[%s15] sm:$0xf]
        %v1927 = vld [vmem:[%s15 + $0x4] sm:$0xf]
        %v1928 = vld [vmem:[%s15 + $0x8] sm:$0xf]
        %v1929 = vld [vmem:[%s15 + $0xc] sm:$0xf]
        %v1930 = vld [vmem:[%s15 + $0x10] sm:$0xf]
        %v1931 = vld [vmem:[%s15 + $0x14] sm:$0xf]
        %v1932 = vld [vmem:[%s15 + $0x18] sm:$0xf]
        %v1933 = vld [vmem:[%s15 + $0x1c] sm:$0xf]
        %v1934 = vld [vmem:[%s15 + $0x20] sm:$0xf]
        %v1935 = vld [vmem:[%s15 + $0x24] sm:$0xf]
        %v1936 = vld [vmem:[%s15 + $0x28] sm:$0xf]
        %v1937 = vld [vmem:[%s15 + $0x2c] sm:$0xf]
        %v1938 = vld [vmem:[%s15 + $0x30] sm:$0xf]
        %v1939 = vld [vmem:[%s15 + $0x34] sm:$0xf]
        %v1940 = vld [vmem:[%s15 + $0x38] sm:$0xf]
        %v1941 = vld [vmem:[%s15 + $0x3c] sm:$0xf]
        %v1942 = vld [vmem:[%s15 + $0x40] sm:$0xf]
        %v1943 = vld [vmem:[%s15 + $0x44] sm:$0xf]
        %v1944 = vld [vmem:[%s15 + $0x48] sm:$0xf]
        %v1945 = vld [vmem:[%s15 + $0x4c] sm:$0xf]
        %v1946 = vld [vmem:[%s15 + $0x50] sm:$0xf]
        %v1947 = vld [vmem:[%s15 + $0x54] sm:$0xf]
        %v1948 = vld [vmem:[%s15 + $0x58] sm:$0xf]
        %v1949 = vld [vmem:[%s15 + $0x5c] sm:$0xf]
        %v1950 = vld [vmem:[%s15 + $0x60] sm:$0xf]
        %v1951 = vld [vmem:[%s15 + $0x64] sm:$0xf]
        %v1952 = vld [vmem:[%s15 + $0x68] sm:$0xf]
        %v1953 = vld [vmem:[%s15 + $0x6c] sm:$0xf]
        %v1954 = vld [vmem:[%s15 + $0x70] sm:$0xf]
        %v1955 = vld [vmem:[%s15 + $0x74] sm:$0xf]
        %v1956 = vld [vmem:[%s15 + $0x78] sm:$0xf]
        %v1957 = vld [vmem:[%s15 + $0x7c] sm:$0xf]
        %v1958 = vld [vmem:[%s15 + $0x80] sm:$0xf]
        %v1959 = vld [vmem:[%s15 + $0x84] sm:$0xf]
        %v1960 = vld [vmem:[%s15 + $0x88] sm:$0xf]
        %v1961 = vld [vmem:[%s15 + $0x8c] sm:$0xf]
        %v1962 = vld [vmem:[%s15 + $0x90] sm:$0xf]
        %v1963 = vld [vmem:[%s15 + $0x94] sm:$0xf]
        %v1964 = vld [vmem:[%s15 + $0x98] sm:$0xf]
        %v1965 = vld [vmem:[%s15 + $0x9c] sm:$0xf]
        %v1966 = vld [vmem:[%s15 + $0xa0] sm:$0xf]
        %v1967 = vld [vmem:[%s15 + $0xa4] sm:$0xf]
        %v1968 = vld [vmem:[%s15 + $0xa8] sm:$0xf]
        %v1969 = vld [vmem:[%s15 + $0xac] sm:$0xf]
        %v1970 = vld [vmem:[%s15 + $0xb0] sm:$0xf]
        %v1971 = vld [vmem:[%s15 + $0xb4] sm:$0xf]
        %v1972 = vld [vmem:[%s15 + $0xb8] sm:$0xf]
        %v1973 = vld [vmem:[%s15 + $0xbc] sm:$0xf]
        %v1974 = vld [vmem:[%s15 + $0xc0] sm:$0xf]
        %v1975 = vld [vmem:[%s15 + $0xc4] sm:$0xf]
        %v1976 = vld [vmem:[%s15 + $0xc8] sm:$0xf]
        %v1977 = vld [vmem:[%s15 + $0xcc] sm:$0xf]
        %v1978 = vld [vmem:[%s15 + $0xd0] sm:$0xf]
        %v1979 = vld [vmem:[%s15 + $0xd4] sm:$0xf]
        %v1980 = vld [vmem:[%s15 + $0xd8] sm:$0xf]
        %v1981 = vld [vmem:[%s15 + $0xdc] sm:$0xf]
        %v1982 = vld [vmem:[%s15 + $0xe0] sm:$0xf]
        %v1983 = vld [vmem:[%s15 + $0xe4] sm:$0xf]
        %v1984 = vld [vmem:[%s15 + $0xe8] sm:$0xf]
        %v1985 = vld [vmem:[%s15 + $0xec] sm:$0xf]
        %v1986 = vld [vmem:[%s15 + $0xf0] sm:$0xf]
        %v1987 = vld [vmem:[%s15 + $0xf4] sm:$0xf]
        %v1988 = vld [vmem:[%s15 + $0xf8] sm:$0xf]
        %v1989 = vld [vmem:[%s15 + $0xfc] sm:$0xf]
        %v1990 = vld [vmem:[%s15 + $0x100] sm:$0xf]
        %v1991 = vld [vmem:[%s15 + $0x104] sm:$0xf]
        %v1992 = vld [vmem:[%s15 + $0x108] sm:$0xf]
        %v1993 = vld [vmem:[%s15 + $0x10c] sm:$0xf]
        %v1994 = vld [vmem:[%s15 + $0x110] sm:$0xf]
        %v1995 = vld [vmem:[%s15 + $0x114] sm:$0xf]
        %v1996 = vld [vmem:[%s15 + $0x118] sm:$0xf]
        %v1997 = vld [vmem:[%s15 + $0x11c] sm:$0xf]
        %v1998 = vld [vmem:[%s15 + $0x120] sm:$0xf]
        %v1999 = vld [vmem:[%s15 + $0x124] sm:$0xf]
        %v2000 = vld [vmem:[%s15 + $0x128] sm:$0xf]
        %v2001 = vld [vmem:[%s15 + $0x12c] sm:$0xf]
        %v2002 = vld [vmem:[%s15 + $0x130] sm:$0xf]
        %v2003 = vld [vmem:[%s15 + $0x134] sm:$0xf]
        %v2004 = vld [vmem:[%s15 + $0x138] sm:$0xf]
        %v2005 = vld [vmem:[%s15 + $0x13c] sm:$0xf]
        %v2006 = vld [vmem:[%s15 + $0x140] sm:$0xf]
        %v2007 = vld [vmem:[%s15 + $0x144] sm:$0xf]
        %v2008 = vld [vmem:[%s15 + $0x148] sm:$0xf]
        %v2009 = vld [vmem:[%s15 + $0x14c] sm:$0xf]
        %v2010 = vld [vmem:[%s15 + $0x150] sm:$0xf]
        %v2011 = vld [vmem:[%s15 + $0x154] sm:$0xf]
        %v2012 = vld [vmem:[%s15 + $0x158] sm:$0xf]
        %v2013 = vld [vmem:[%s15 + $0x15c] sm:$0xf]
        %v2014 = vld [vmem:[%s15 + $0x160] sm:$0xf]
        %v2015 = vld [vmem:[%s15 + $0x164] sm:$0xf]
        %v2016 = vld [vmem:[%s15 + $0x168] sm:$0xf]
        %v2017 = vld [vmem:[%s15 + $0x16c] sm:$0xf]
        %v2018 = vld [vmem:[%s15 + $0x170] sm:$0xf]
        %v2019 = vld [vmem:[%s15 + $0x174] sm:$0xf]
        %v2020 = vld [vmem:[%s15 + $0x178] sm:$0xf]
        %v2021 = vld [vmem:[%s15 + $0x17c] sm:$0xf]
        %v2022 = vld [vmem:[%s15 + $0x180] sm:$0xf]
        %v2023 = vld [vmem:[%s15 + $0x184] sm:$0xf]
        %v2024 = vld [vmem:[%s15 + $0x188] sm:$0xf]
        %v2025 = vld [vmem:[%s15 + $0x18c] sm:$0xf]
        %v2026 = vld [vmem:[%s15 + $0x190] sm:$0xf]
        %v2027 = vld [vmem:[%s15 + $0x194] sm:$0xf]
        %v2028 = vld [vmem:[%s15 + $0x198] sm:$0xf]
        %v2029 = vld [vmem:[%s15 + $0x19c] sm:$0xf]
        %v2030 = vld [vmem:[%s15 + $0x1a0] sm:$0xf]
        %v2031 = vld [vmem:[%s15 + $0x1a4] sm:$0xf]
        %v2032 = vld [vmem:[%s15 + $0x1a8] sm:$0xf]
        %v2033 = vld [vmem:[%s15 + $0x1ac] sm:$0xf]
        %v2034 = vld [vmem:[%s15 + $0x1b0] sm:$0xf]
        %v2035 = vld [vmem:[%s15 + $0x1b4] sm:$0xf]
        %v2036 = vld [vmem:[%s15 + $0x1b8] sm:$0xf]
        %v2037 = vld [vmem:[%s15 + $0x1bc] sm:$0xf]
        %v2038 = vld [vmem:[%s15 + $0x1c0] sm:$0xf]
        %v2039 = vld [vmem:[%s15 + $0x1c4] sm:$0xf]
        %v2040 = vld [vmem:[%s15 + $0x1c8] sm:$0xf]
        %v2041 = vld [vmem:[%s15 + $0x1cc] sm:$0xf]
        %v2042 = vld [vmem:[%s15 + $0x1d0] sm:$0xf]
        %v2043 = vld [vmem:[%s15 + $0x1d4] sm:$0xf]
        %v2044 = vld [vmem:[%s15 + $0x1d8] sm:$0xf]
        %v2045 = vld [vmem:[%s15 + $0x1dc] sm:$0xf]
        %v2046 = vld [vmem:[%s15 + $0x1e0] sm:$0xf]
        %v2047 = vld [vmem:[%s15 + $0x1e4] sm:$0xf]
        %v2048 = vld [vmem:[%s15 + $0x1e8] sm:$0xf]
        %v2049 = vld [vmem:[%s15 + $0x1ec] sm:$0xf]
        %v2050 = vld [vmem:[%s15 + $0x1f0] sm:$0xf]
        %v2051 = vld [vmem:[%s15 + $0x1f4] sm:$0xf]
        %v2052 = vld [vmem:[%s15 + $0x1f8] sm:$0xf]
        %v2053 = vld [vmem:[%s15 + $0x1fc] sm:$0xf]
        %v2054 = vld [vmem:[%s15 + $0x200] sm:$0xf]
        %v2055 = vld [vmem:[%s15 + $0x204] sm:$0xf]
        %v2056 = vld [vmem:[%s15 + $0x208] sm:$0xf]
        %v2057 = vld [vmem:[%s15 + $0x20c] sm:$0xf]
        %v2058 = vld [vmem:[%s15 + $0x210] sm:$0xf]
        %v2059 = vld [vmem:[%s15 + $0x214] sm:$0xf]
        %v2060 = vld [vmem:[%s15 + $0x218] sm:$0xf]
        %v2061 = vld [vmem:[%s15 + $0x21c] sm:$0xf]
        %v2062 = vld [vmem:[%s15 + $0x220] sm:$0xf]
        %v2063 = vld [vmem:[%s15 + $0x224] sm:$0xf]
        %v2064 = vld [vmem:[%s15 + $0x228] sm:$0xf]
        %v2065 = vld [vmem:[%s15 + $0x22c] sm:$0xf]
        %v2066 = vld [vmem:[%s15 + $0x230] sm:$0xf]
        %v2067 = vld [vmem:[%s15 + $0x234] sm:$0xf]
        %v2068 = vld [vmem:[%s15 + $0x238] sm:$0xf]
        %v2069 = vld [vmem:[%s15 + $0x23c] sm:$0xf]
        %v2070 = vld [vmem:[%s15 + $0x240] sm:$0xf]
        %v2071 = vld [vmem:[%s15 + $0x244] sm:$0xf]
        %v2072 = vld [vmem:[%s15 + $0x248] sm:$0xf]
        %v2073 = vld [vmem:[%s15 + $0x24c] sm:$0xf]
        %v2074 = vld [vmem:[%s15 + $0x250] sm:$0xf]
        %v2075 = vld [vmem:[%s15 + $0x254] sm:$0xf]
        %v2076 = vld [vmem:[%s15 + $0x258] sm:$0xf]
        %v2077 = vld [vmem:[%s15 + $0x25c] sm:$0xf]
        %v2078 = vld [vmem:[%s15 + $0x260] sm:$0xf]
        %v2079 = vld [vmem:[%s15 + $0x264] sm:$0xf]
        %v2080 = vld [vmem:[%s15 + $0x268] sm:$0xf]
        %v2081 = vld [vmem:[%s15 + $0x26c] sm:$0xf]
        %v2082 = vld [vmem:[%s15 + $0x270] sm:$0xf]
        %v2083 = vld [vmem:[%s15 + $0x274] sm:$0xf]
        %v2084 = vld [vmem:[%s15 + $0x278] sm:$0xf]
        %v2085 = vld [vmem:[%s15 + $0x27c] sm:$0xf]
        %v2086 = vld [vmem:[%s15 + $0x280] sm:$0xf]
        %v2087 = vld [vmem:[%s15 + $0x284] sm:$0xf]
        %v2088 = vld [vmem:[%s15 + $0x288] sm:$0xf]
        %v2089 = vld [vmem:[%s15 + $0x28c] sm:$0xf]
        %v2090 = vld [vmem:[%s15 + $0x290] sm:$0xf]
        %v2091 = vld [vmem:[%s15 + $0x294] sm:$0xf]
        %v2092 = vld [vmem:[%s15 + $0x298] sm:$0xf]
        %v2093 = vld [vmem:[%s15 + $0x29c] sm:$0xf]
        %v2094 = vld [vmem:[%s15 + $0x2a0] sm:$0xf]
        %v2095 = vld [vmem:[%s15 + $0x2a4] sm:$0xf]
        %v2096 = vld [vmem:[%s15 + $0x2a8] sm:$0xf]
        %v2097 = vld [vmem:[%s15 + $0x2ac] sm:$0xf]
        %v2098 = vld [vmem:[%s15 + $0x2b0] sm:$0xf]
        %v2099 = vld [vmem:[%s15 + $0x2b4] sm:$0xf]
        %v2100 = vld [vmem:[%s15 + $0x2b8] sm:$0xf]
        %v2101 = vld [vmem:[%s15 + $0x2bc] sm:$0xf]
        %v2102 = vld [vmem:[%s15 + $0x2c0] sm:$0xf]
        %v2103 = vld [vmem:[%s15 + $0x2c4] sm:$0xf]
        %v2104 = vld [vmem:[%s15 + $0x2c8] sm:$0xf]
        %v2105 = vld [vmem:[%s15 + $0x2cc] sm:$0xf]
        %v2106 = vld [vmem:[%s15 + $0x2d0] sm:$0xf]
        %v2107 = vld [vmem:[%s15 + $0x2d4] sm:$0xf]
        %v2108 = vld [vmem:[%s15 + $0x2d8] sm:$0xf]
        %v2109 = vld [vmem:[%s15 + $0x2dc] sm:$0xf]
        %v2110 = vld [vmem:[%s15 + $0x2e0] sm:$0xf]
        %v2111 = vld [vmem:[%s15 + $0x2e4] sm:$0xf]
        %v2112 = vld [vmem:[%s15 + $0x2e8] sm:$0xf]
        %v2113 = vld [vmem:[%s15 + $0x2ec] sm:$0xf]
        %v2114 = vld [vmem:[%s15 + $0x2f0] sm:$0xf]
        %v2115 = vld [vmem:[%s15 + $0x2f4] sm:$0xf]
        %v2116 = vld [vmem:[%s15 + $0x2f8] sm:$0xf]
        %v2117 = vld [vmem:[%s15 + $0x2fc] sm:$0xf]
        %v2118 = vld [vmem:[%s15 + $0x300] sm:$0xf]
        %v2119 = vld [vmem:[%s15 + $0x304] sm:$0xf]
        %v2120 = vld [vmem:[%s15 + $0x308] sm:$0xf]
        %v2121 = vld [vmem:[%s15 + $0x30c] sm:$0xf]
        %v2122 = vld [vmem:[%s15 + $0x310] sm:$0xf]
        %v2123 = vld [vmem:[%s15 + $0x314] sm:$0xf]
        %v2124 = vld [vmem:[%s15 + $0x318] sm:$0xf]
        %v2125 = vld [vmem:[%s15 + $0x31c] sm:$0xf]
        %v2126 = vld [vmem:[%s15 + $0x320] sm:$0xf]
        %v2127 = vld [vmem:[%s15 + $0x324] sm:$0xf]
        %v2128 = vld [vmem:[%s15 + $0x328] sm:$0xf]
        %v2129 = vld [vmem:[%s15 + $0x32c] sm:$0xf]
        %v2130 = vld [vmem:[%s15 + $0x330] sm:$0xf]
        %v2131 = vld [vmem:[%s15 + $0x334] sm:$0xf]
        %v2132 = vld [vmem:[%s15 + $0x338] sm:$0xf]
        %v2133 = vld [vmem:[%s15 + $0x33c] sm:$0xf]
        %v2134 = vld [vmem:[%s15 + $0x340] sm:$0xf]
        %v2135 = vld [vmem:[%s15 + $0x344] sm:$0xf]
        %v2136 = vld [vmem:[%s15 + $0x348] sm:$0xf]
        %v2137 = vld [vmem:[%s15 + $0x34c] sm:$0xf]
        %v2138 = vld [vmem:[%s15 + $0x350] sm:$0xf]
        %v2139 = vld [vmem:[%s15 + $0x354] sm:$0xf]
        %v2140 = vld [vmem:[%s15 + $0x358] sm:$0xf]
        %v2141 = vld [vmem:[%s15 + $0x35c] sm:$0xf]
        %v2142 = vld [vmem:[%s15 + $0x360] sm:$0xf]
        %v2143 = vld [vmem:[%s15 + $0x364] sm:$0xf]
        %v2144 = vld [vmem:[%s15 + $0x368] sm:$0xf]
        %v2145 = vld [vmem:[%s15 + $0x36c] sm:$0xf]
        %v2146 = vld [vmem:[%s15 + $0x370] sm:$0xf]
        %v2147 = vld [vmem:[%s15 + $0x374] sm:$0xf]
        %v2148 = vld [vmem:[%s15 + $0x378] sm:$0xf]
        %v2149 = vld [vmem:[%s15 + $0x37c] sm:$0xf]
        %v2150 = vld [vmem:[%s15 + $0x380] sm:$0xf]
        %v2151 = vld [vmem:[%s15 + $0x384] sm:$0xf]
        %v2152 = vld [vmem:[%s15 + $0x388] sm:$0xf]
        %v2153 = vld [vmem:[%s15 + $0x38c] sm:$0xf]
        %v2154 = vld [vmem:[%s15 + $0x390] sm:$0xf]
        %v2155 = vld [vmem:[%s15 + $0x394] sm:$0xf]
        %v2156 = vld [vmem:[%s15 + $0x398] sm:$0xf]
        %v2157 = vld [vmem:[%s15 + $0x39c] sm:$0xf]
        %v2158 = vld [vmem:[%s15 + $0x3a0] sm:$0xf]
        %v2159 = vld [vmem:[%s15 + $0x3a4] sm:$0xf]
        %v2160 = vld [vmem:[%s15 + $0x3a8] sm:$0xf]
        %v2161 = vld [vmem:[%s15 + $0x3ac] sm:$0xf]
        %v2162 = vld [vmem:[%s15 + $0x3b0] sm:$0xf]
        %v2163 = vld [vmem:[%s15 + $0x3b4] sm:$0xf]
        %v2164 = vld [vmem:[%s15 + $0x3b8] sm:$0xf]
        %v2165 = vld [vmem:[%s15 + $0x3bc] sm:$0xf]
        %v2166 = vld [vmem:[%s15 + $0x3c0] sm:$0xf]
        %v2167 = vld [vmem:[%s15 + $0x3c4] sm:$0xf]
        %v2168 = vld [vmem:[%s15 + $0x3c8] sm:$0xf]
        %v2169 = vld [vmem:[%s15 + $0x3cc] sm:$0xf]
        %v2170 = vld [vmem:[%s15 + $0x3d0] sm:$0xf]
        %v2171 = vld [vmem:[%s15 + $0x3d4] sm:$0xf]
        %v2172 = vld [vmem:[%s15 + $0x3d8] sm:$0xf]
        %v2173 = vld [vmem:[%s15 + $0x3dc] sm:$0xf]
        %v2174 = vld [vmem:[%s15 + $0x3e0] sm:$0xf]
        %v2175 = vld [vmem:[%s15 + $0x3e4] sm:$0xf]
        %v2176 = vld [vmem:[%s15 + $0x3e8] sm:$0xf]
        %v2177 = vld [vmem:[%s15 + $0x3ec] sm:$0xf]
        %v2178 = vld [vmem:[%s15 + $0x3f0] sm:$0xf]
        %v2179 = vld [vmem:[%s15 + $0x3f4] sm:$0xf]
        %v2180 = vld [vmem:[%s15 + $0x3f8] sm:$0xf]
        %v2181 = vld [vmem:[%s15 + $0x3fc] sm:$0xf]
        %v2182 = vld [vmem:[%s16] sm:$0x1]
        %v2184 = vperm.slane %v2182, 0
        %v2442 = vunpack.c.l.b16 %v1926
        %v2443 = vunpack.c.l.b16 %v1927
        %v2444 = vunpack.c.l.b16 %v1928
        %v2445 = vunpack.c.l.b16 %v1929
        %v2446 = vunpack.c.l.b16 %v1930
        %v2447 = vunpack.c.l.b16 %v1931
        %v2448 = vunpack.c.l.b16 %v1932
        %v2449 = vunpack.c.l.b16 %v1933
        %v2450 = vunpack.c.l.b16 %v1934
        %v2451 = vunpack.c.l.b16 %v1935
        %v2452 = vunpack.c.l.b16 %v1936
        %v2453 = vunpack.c.l.b16 %v1937
        %v2454 = vunpack.c.l.b16 %v1938
        %v2455 = vunpack.c.l.b16 %v1939
        %v2456 = vunpack.c.l.b16 %v1940
        %v2457 = vunpack.c.l.b16 %v1941
        %v2458 = vunpack.c.l.b16 %v1942
        %v2459 = vunpack.c.l.b16 %v1943
        %v2460 = vunpack.c.l.b16 %v1944
        %v2461 = vunpack.c.l.b16 %v1945
        %v2462 = vunpack.c.l.b16 %v1946
        %v2463 = vunpack.c.l.b16 %v1947
        %v2464 = vunpack.c.l.b16 %v1948
        %v2465 = vunpack.c.l.b16 %v1949
        %v2466 = vunpack.c.l.b16 %v1950
        %v2467 = vunpack.c.l.b16 %v1951
        %v2468 = vunpack.c.l.b16 %v1952
        %v2469 = vunpack.c.l.b16 %v1953
        %v2470 = vunpack.c.l.b16 %v1954
        %v2471 = vunpack.c.l.b16 %v1955
        %v2472 = vunpack.c.l.b16 %v1956
        %v2473 = vunpack.c.l.b16 %v1957
        %v2474 = vunpack.c.l.b16 %v1958
        %v2475 = vunpack.c.l.b16 %v1959
        %v2476 = vunpack.c.l.b16 %v1960
        %v2477 = vunpack.c.l.b16 %v1961
        %v2478 = vunpack.c.l.b16 %v1962
        %v2479 = vunpack.c.l.b16 %v1963
        %v2480 = vunpack.c.l.b16 %v1964
        %v2481 = vunpack.c.l.b16 %v1965
        %v2482 = vunpack.c.l.b16 %v1966
        %v2483 = vunpack.c.l.b16 %v1967
        %v2484 = vunpack.c.l.b16 %v1968
        %v2485 = vunpack.c.l.b16 %v1969
        %v2486 = vunpack.c.l.b16 %v1970
        %v2487 = vunpack.c.l.b16 %v1971
        %v2488 = vunpack.c.l.b16 %v1972
        %v2489 = vunpack.c.l.b16 %v1973
        %v2490 = vunpack.c.l.b16 %v1974
        %v2491 = vunpack.c.l.b16 %v1975
        %v2492 = vunpack.c.l.b16 %v1976
        %v2493 = vunpack.c.l.b16 %v1977
        %v2494 = vunpack.c.l.b16 %v1978
        %v2495 = vunpack.c.l.b16 %v1979
        %v2496 = vunpack.c.l.b16 %v1980
        %v2497 = vunpack.c.l.b16 %v1981
        %v2498 = vunpack.c.l.b16 %v1982
        %v2499 = vunpack.c.l.b16 %v1983
        %v2500 = vunpack.c.l.b16 %v1984
        %v2501 = vunpack.c.l.b16 %v1985
        %v2502 = vunpack.c.l.b16 %v1986
        %v2503 = vunpack.c.l.b16 %v1987
        %v2504 = vunpack.c.l.b16 %v1988
        %v2505 = vunpack.c.l.b16 %v1989
        %v2506 = vunpack.c.l.b16 %v1990
        %v2507 = vunpack.c.l.b16 %v1991
        %v2508 = vunpack.c.l.b16 %v1992
        %v2509 = vunpack.c.l.b16 %v1993
        %v2510 = vunpack.c.l.b16 %v1994
        %v2511 = vunpack.c.l.b16 %v1995
        %v2512 = vunpack.c.l.b16 %v1996
        %v2513 = vunpack.c.l.b16 %v1997
        %v2514 = vunpack.c.l.b16 %v1998
        %v2515 = vunpack.c.l.b16 %v1999
        %v2516 = vunpack.c.l.b16 %v2000
        %v2517 = vunpack.c.l.b16 %v2001
        %v2518 = vunpack.c.l.b16 %v2002
        %v2519 = vunpack.c.l.b16 %v2003
        %v2520 = vunpack.c.l.b16 %v2004
        %v2521 = vunpack.c.l.b16 %v2005
        %v2522 = vunpack.c.l.b16 %v2006
        %v2523 = vunpack.c.l.b16 %v2007
        %v2524 = vunpack.c.l.b16 %v2008
        %v2525 = vunpack.c.l.b16 %v2009
        %v2526 = vunpack.c.l.b16 %v2010
        %v2527 = vunpack.c.l.b16 %v2011
        %v2528 = vunpack.c.l.b16 %v2012
        %v2529 = vunpack.c.l.b16 %v2013
        %v2530 = vunpack.c.l.b16 %v2014
        %v2531 = vunpack.c.l.b16 %v2015
        %v2532 = vunpack.c.l.b16 %v2016
        %v2533 = vunpack.c.l.b16 %v2017
        %v2534 = vunpack.c.l.b16 %v2018
        %v2535 = vunpack.c.l.b16 %v2019
        %v2536 = vunpack.c.l.b16 %v2020
        %v2537 = vunpack.c.l.b16 %v2021
        %v2538 = vunpack.c.l.b16 %v2022
        %v2539 = vunpack.c.l.b16 %v2023
        %v2540 = vunpack.c.l.b16 %v2024
        %v2541 = vunpack.c.l.b16 %v2025
        %v2542 = vunpack.c.l.b16 %v2026
        %v2543 = vunpack.c.l.b16 %v2027
        %v2544 = vunpack.c.l.b16 %v2028
        %v2545 = vunpack.c.l.b16 %v2029
        %v2546 = vunpack.c.l.b16 %v2030
        %v2547 = vunpack.c.l.b16 %v2031
        %v2548 = vunpack.c.l.b16 %v2032
        %v2549 = vunpack.c.l.b16 %v2033
        %v2550 = vunpack.c.l.b16 %v2034
        %v2551 = vunpack.c.l.b16 %v2035
        %v2552 = vunpack.c.l.b16 %v2036
        %v2553 = vunpack.c.l.b16 %v2037
        %v2554 = vunpack.c.l.b16 %v2038
        %v2555 = vunpack.c.l.b16 %v2039
        %v2556 = vunpack.c.l.b16 %v2040
        %v2557 = vunpack.c.l.b16 %v2041
        %v2558 = vunpack.c.l.b16 %v2042
        %v2559 = vunpack.c.l.b16 %v2043
        %v2560 = vunpack.c.l.b16 %v2044
        %v2561 = vunpack.c.l.b16 %v2045
        %v2562 = vunpack.c.l.b16 %v2046
        %v2563 = vunpack.c.l.b16 %v2047
        %v2564 = vunpack.c.l.b16 %v2048
        %v2565 = vunpack.c.l.b16 %v2049
        %v2566 = vunpack.c.l.b16 %v2050
        %v2567 = vunpack.c.l.b16 %v2051
        %v2568 = vunpack.c.l.b16 %v2052
        %v2569 = vunpack.c.l.b16 %v2053
        %v2570 = vunpack.c.l.b16 %v2054
        %v2571 = vunpack.c.l.b16 %v2055
        %v2572 = vunpack.c.l.b16 %v2056
        %v2573 = vunpack.c.l.b16 %v2057
        %v2574 = vunpack.c.l.b16 %v2058
        %v2575 = vunpack.c.l.b16 %v2059
        %v2576 = vunpack.c.l.b16 %v2060
        %v2577 = vunpack.c.l.b16 %v2061
        %v2578 = vunpack.c.l.b16 %v2062
        %v2579 = vunpack.c.l.b16 %v2063
        %v2580 = vunpack.c.l.b16 %v2064
        %v2581 = vunpack.c.l.b16 %v2065
        %v2582 = vunpack.c.l.b16 %v2066
        %v2583 = vunpack.c.l.b16 %v2067
        %v2584 = vunpack.c.l.b16 %v2068
        %v2585 = vunpack.c.l.b16 %v2069
        %v2586 = vunpack.c.l.b16 %v2070
        %v2587 = vunpack.c.l.b16 %v2071
        %v2588 = vunpack.c.l.b16 %v2072
        %v2589 = vunpack.c.l.b16 %v2073
        %v2590 = vunpack.c.l.b16 %v2074
        %v2591 = vunpack.c.l.b16 %v2075
        %v2592 = vunpack.c.l.b16 %v2076
        %v2593 = vunpack.c.l.b16 %v2077
        %v2594 = vunpack.c.l.b16 %v2078
        %v2595 = vunpack.c.l.b16 %v2079
        %v2596 = vunpack.c.l.b16 %v2080
        %v2597 = vunpack.c.l.b16 %v2081
        %v2598 = vunpack.c.l.b16 %v2082
        %v2599 = vunpack.c.l.b16 %v2083
        %v2600 = vunpack.c.l.b16 %v2084
        %v2601 = vunpack.c.l.b16 %v2085
        %v2602 = vunpack.c.l.b16 %v2086
        %v2603 = vunpack.c.l.b16 %v2087
        %v2604 = vunpack.c.l.b16 %v2088
        %v2605 = vunpack.c.l.b16 %v2089
        %v2606 = vunpack.c.l.b16 %v2090
        %v2607 = vunpack.c.l.b16 %v2091
        %v2608 = vunpack.c.l.b16 %v2092
        %v2609 = vunpack.c.l.b16 %v2093
        %v2610 = vunpack.c.l.b16 %v2094
        %v2611 = vunpack.c.l.b16 %v2095
        %v2612 = vunpack.c.l.b16 %v2096
        %v2613 = vunpack.c.l.b16 %v2097
        %v2614 = vunpack.c.l.b16 %v2098
        %v2615 = vunpack.c.l.b16 %v2099
        %v2616 = vunpack.c.l.b16 %v2100
        %v2617 = vunpack.c.l.b16 %v2101
        %v2618 = vunpack.c.l.b16 %v2102
        %v2619 = vunpack.c.l.b16 %v2103
        %v2620 = vunpack.c.l.b16 %v2104
        %v2621 = vunpack.c.l.b16 %v2105
        %v2622 = vunpack.c.l.b16 %v2106
        %v2623 = vunpack.c.l.b16 %v2107
        %v2624 = vunpack.c.l.b16 %v2108
        %v2625 = vunpack.c.l.b16 %v2109
        %v2626 = vunpack.c.l.b16 %v2110
        %v2627 = vunpack.c.l.b16 %v2111
        %v2628 = vunpack.c.l.b16 %v2112
        %v2629 = vunpack.c.l.b16 %v2113
        %v2630 = vunpack.c.l.b16 %v2114
        %v2631 = vunpack.c.l.b16 %v2115
        %v2632 = vunpack.c.l.b16 %v2116
        %v2633 = vunpack.c.l.b16 %v2117
        %v2634 = vunpack.c.l.b16 %v2118
        %v2635 = vunpack.c.l.b16 %v2119
        %v2636 = vunpack.c.l.b16 %v2120
        %v2637 = vunpack.c.l.b16 %v2121
        %v2638 = vunpack.c.l.b16 %v2122
        %v2639 = vunpack.c.l.b16 %v2123
        %v2640 = vunpack.c.l.b16 %v2124
        %v2641 = vunpack.c.l.b16 %v2125
        %v2642 = vunpack.c.l.b16 %v2126
        %v2643 = vunpack.c.l.b16 %v2127
        %v2644 = vunpack.c.l.b16 %v2128
        %v2645 = vunpack.c.l.b16 %v2129
        %v2646 = vunpack.c.l.b16 %v2130
        %v2647 = vunpack.c.l.b16 %v2131
        %v2648 = vunpack.c.l.b16 %v2132
        %v2649 = vunpack.c.l.b16 %v2133
        %v2650 = vunpack.c.l.b16 %v2134
        %v2651 = vunpack.c.l.b16 %v2135
        %v2652 = vunpack.c.l.b16 %v2136
        %v2653 = vunpack.c.l.b16 %v2137
        %v2654 = vunpack.c.l.b16 %v2138
        %v2655 = vunpack.c.l.b16 %v2139
        %v2656 = vunpack.c.l.b16 %v2140
        %v2657 = vunpack.c.l.b16 %v2141
        %v2658 = vunpack.c.l.b16 %v2142
        %v2659 = vunpack.c.l.b16 %v2143
        %v2660 = vunpack.c.l.b16 %v2144
        %v2661 = vunpack.c.l.b16 %v2145
        %v2662 = vunpack.c.l.b16 %v2146
        %v2663 = vunpack.c.l.b16 %v2147
        %v2664 = vunpack.c.l.b16 %v2148
        %v2665 = vunpack.c.l.b16 %v2149
        %v2666 = vunpack.c.l.b16 %v2150
        %v2667 = vunpack.c.l.b16 %v2151
        %v2668 = vunpack.c.l.b16 %v2152
        %v2669 = vunpack.c.l.b16 %v2153
        %v2670 = vunpack.c.l.b16 %v2154
        %v2671 = vunpack.c.l.b16 %v2155
        %v2672 = vunpack.c.l.b16 %v2156
        %v2673 = vunpack.c.l.b16 %v2157
        %v2674 = vunpack.c.l.b16 %v2158
        %v2675 = vunpack.c.l.b16 %v2159
        %v2676 = vunpack.c.l.b16 %v2160
        %v2677 = vunpack.c.l.b16 %v2161
        %v2678 = vunpack.c.l.b16 %v2162
        %v2679 = vunpack.c.l.b16 %v2163
        %v2680 = vunpack.c.l.b16 %v2164
        %v2681 = vunpack.c.l.b16 %v2165
        %v2682 = vunpack.c.l.b16 %v2166
        %v2683 = vunpack.c.l.b16 %v2167
        %v2684 = vunpack.c.l.b16 %v2168
        %v2685 = vunpack.c.l.b16 %v2169
        %v2686 = vunpack.c.l.b16 %v2170
        %v2687 = vunpack.c.l.b16 %v2171
        %v2688 = vunpack.c.l.b16 %v2172
        %v2689 = vunpack.c.l.b16 %v2173
        %v2690 = vunpack.c.l.b16 %v2174
        %v2691 = vunpack.c.l.b16 %v2175
        %v2692 = vunpack.c.l.b16 %v2176
        %v2693 = vunpack.c.l.b16 %v2177
        %v2694 = vunpack.c.l.b16 %v2178
        %v2695 = vunpack.c.l.b16 %v2179
        %v2696 = vunpack.c.l.b16 %v2180
        %v2697 = vunpack.c.l.b16 %v2181
        %v2698 = vpack.c.b16 %v2443, %v2442
        %v2699 = vpack.c.b16 %v2445, %v2444
        %v2700 = vpack.c.b16 %v2447, %v2446
        %v2701 = vpack.c.b16 %v2449, %v2448
        %v2702 = vpack.c.b16 %v2451, %v2450
        %v2703 = vpack.c.b16 %v2453, %v2452
        %v2704 = vpack.c.b16 %v2455, %v2454
        %v2705 = vpack.c.b16 %v2457, %v2456
        %v2706 = vpack.c.b16 %v2459, %v2458
        %v2707 = vpack.c.b16 %v2461, %v2460
        %v2708 = vpack.c.b16 %v2463, %v2462
        %v2709 = vpack.c.b16 %v2465, %v2464
        %v2710 = vpack.c.b16 %v2467, %v2466
        %v2711 = vpack.c.b16 %v2469, %v2468
        %v2712 = vpack.c.b16 %v2471, %v2470
        %v2713 = vpack.c.b16 %v2473, %v2472
        %v2714 = vpack.c.b16 %v2475, %v2474
        %v2715 = vpack.c.b16 %v2477, %v2476
        %v2716 = vpack.c.b16 %v2479, %v2478
        %v2717 = vpack.c.b16 %v2481, %v2480
        %v2718 = vpack.c.b16 %v2483, %v2482
        %v2719 = vpack.c.b16 %v2485, %v2484
        %v2720 = vpack.c.b16 %v2487, %v2486
        %v2721 = vpack.c.b16 %v2489, %v2488
        %v2722 = vpack.c.b16 %v2491, %v2490
        %v2723 = vpack.c.b16 %v2493, %v2492
        %v2724 = vpack.c.b16 %v2495, %v2494
        %v2725 = vpack.c.b16 %v2497, %v2496
        %v2726 = vpack.c.b16 %v2499, %v2498
        %v2727 = vpack.c.b16 %v2501, %v2500
        %v2728 = vpack.c.b16 %v2503, %v2502
        %v2729 = vpack.c.b16 %v2505, %v2504
        %v2730 = vpack.c.b16 %v2507, %v2506
        %v2731 = vpack.c.b16 %v2509, %v2508
        %v2732 = vpack.c.b16 %v2511, %v2510
        %v2733 = vpack.c.b16 %v2513, %v2512
        %v2734 = vpack.c.b16 %v2515, %v2514
        %v2735 = vpack.c.b16 %v2517, %v2516
        %v2736 = vpack.c.b16 %v2519, %v2518
        %v2737 = vpack.c.b16 %v2521, %v2520
        %v2738 = vpack.c.b16 %v2523, %v2522
        %v2739 = vpack.c.b16 %v2525, %v2524
        %v2740 = vpack.c.b16 %v2527, %v2526
        %v2741 = vpack.c.b16 %v2529, %v2528
        %v2742 = vpack.c.b16 %v2531, %v2530
        %v2743 = vpack.c.b16 %v2533, %v2532
        %v2744 = vpack.c.b16 %v2535, %v2534
        %v2745 = vpack.c.b16 %v2537, %v2536
        %v2746 = vpack.c.b16 %v2539, %v2538
        %v2747 = vpack.c.b16 %v2541, %v2540
        %v2748 = vpack.c.b16 %v2543, %v2542
        %v2749 = vpack.c.b16 %v2545, %v2544
        %v2750 = vpack.c.b16 %v2547, %v2546
        %v2751 = vpack.c.b16 %v2549, %v2548
        %v2752 = vpack.c.b16 %v2551, %v2550
        %v2753 = vpack.c.b16 %v2553, %v2552
        %v2754 = vpack.c.b16 %v2555, %v2554
        %v2755 = vpack.c.b16 %v2557, %v2556
        %v2756 = vpack.c.b16 %v2559, %v2558
        %v2757 = vpack.c.b16 %v2561, %v2560
        %v2758 = vpack.c.b16 %v2563, %v2562
        %v2759 = vpack.c.b16 %v2565, %v2564
        %v2760 = vpack.c.b16 %v2567, %v2566
        %v2761 = vpack.c.b16 %v2569, %v2568
        %v2762 = vpack.c.b16 %v2571, %v2570
        %v2763 = vpack.c.b16 %v2573, %v2572
        %v2764 = vpack.c.b16 %v2575, %v2574
        %v2765 = vpack.c.b16 %v2577, %v2576
        %v2766 = vpack.c.b16 %v2579, %v2578
        %v2767 = vpack.c.b16 %v2581, %v2580
        %v2768 = vpack.c.b16 %v2583, %v2582
        %v2769 = vpack.c.b16 %v2585, %v2584
        %v2770 = vpack.c.b16 %v2587, %v2586
        %v2771 = vpack.c.b16 %v2589, %v2588
        %v2772 = vpack.c.b16 %v2591, %v2590
        %v2773 = vpack.c.b16 %v2593, %v2592
        %v2774 = vpack.c.b16 %v2595, %v2594
        %v2775 = vpack.c.b16 %v2597, %v2596
        %v2776 = vpack.c.b16 %v2599, %v2598
        %v2777 = vpack.c.b16 %v2601, %v2600
        %v2778 = vpack.c.b16 %v2603, %v2602
        %v2779 = vpack.c.b16 %v2605, %v2604
        %v2780 = vpack.c.b16 %v2607, %v2606
        %v2781 = vpack.c.b16 %v2609, %v2608
        %v2782 = vpack.c.b16 %v2611, %v2610
        %v2783 = vpack.c.b16 %v2613, %v2612
        %v2784 = vpack.c.b16 %v2615, %v2614
        %v2785 = vpack.c.b16 %v2617, %v2616
        %v2786 = vpack.c.b16 %v2619, %v2618
        %v2787 = vpack.c.b16 %v2621, %v2620
        %v2788 = vpack.c.b16 %v2623, %v2622
        %v2789 = vpack.c.b16 %v2625, %v2624
        %v2790 = vpack.c.b16 %v2627, %v2626
        %v2791 = vpack.c.b16 %v2629, %v2628
        %v2792 = vpack.c.b16 %v2631, %v2630
        %v2793 = vpack.c.b16 %v2633, %v2632
        %v2794 = vpack.c.b16 %v2635, %v2634
        %v2795 = vpack.c.b16 %v2637, %v2636
        %v2796 = vpack.c.b16 %v2639, %v2638
        %v2797 = vpack.c.b16 %v2641, %v2640
        %v2798 = vpack.c.b16 %v2643, %v2642
        %v2799 = vpack.c.b16 %v2645, %v2644
        %v2800 = vpack.c.b16 %v2647, %v2646
        %v2801 = vpack.c.b16 %v2649, %v2648
        %v2802 = vpack.c.b16 %v2651, %v2650
        %v2803 = vpack.c.b16 %v2653, %v2652
        %v2804 = vpack.c.b16 %v2655, %v2654
        %v2805 = vpack.c.b16 %v2657, %v2656
        %v2806 = vpack.c.b16 %v2659, %v2658
        %v2807 = vpack.c.b16 %v2661, %v2660
        %v2808 = vpack.c.b16 %v2663, %v2662
        %v2809 = vpack.c.b16 %v2665, %v2664
        %v2810 = vpack.c.b16 %v2667, %v2666
        %v2811 = vpack.c.b16 %v2669, %v2668
        %v2812 = vpack.c.b16 %v2671, %v2670
        %v2813 = vpack.c.b16 %v2673, %v2672
        %v2814 = vpack.c.b16 %v2675, %v2674
        %v2815 = vpack.c.b16 %v2677, %v2676
        %v2816 = vpack.c.b16 %v2679, %v2678
        %v2817 = vpack.c.b16 %v2681, %v2680
        %v2818 = vpack.c.b16 %v2683, %v2682
        %v2819 = vpack.c.b16 %v2685, %v2684
        %v2820 = vpack.c.b16 %v2687, %v2686
        %v2821 = vpack.c.b16 %v2689, %v2688
        %v2822 = vpack.c.b16 %v2691, %v2690
        %v2823 = vpack.c.b16 %v2693, %v2692
        %v2824 = vpack.c.b16 %v2695, %v2694
        %v2825 = vpack.c.b16 %v2697, %v2696
        %2954 = vmatpush.bf16.msra.mxu0 %v2705
        %2955 = vmatpush.bf16.msra.mxu0 %v2704
        %2956 = vmatpush.bf16.msra.mxu0 %v2703
        %2957 = vmatpush.bf16.msra.mxu0 %v2702
        %2958 = vmatpush.bf16.msra.mxu0 %v2701
        %2959 = vmatpush.bf16.msra.mxu0 %v2700
        %2960 = vmatpush.bf16.msra.mxu0 %v2699
        %2961 = vmatpush.bf16.msra.mxu0 %v2698
        %2962 = vmatmul.bf16.gmra.mxu0 %v1910
        %v2963 = vpop.f32.mrf.mxu0
        %v2964 = vadd.f32 %v2184, %v2963
        %v2965 = vpop.f32.mrf.mxu0
        %2966 = vdwg.mxu0
        %2967 = vmatpush.bf16.msra.mxu0 %v2713
        %2968 = vmatpush.bf16.msra.mxu0 %v2712
        %2969 = vmatpush.bf16.msra.mxu0 %v2711
        %2970 = vmatpush.bf16.msra.mxu0 %v2710
        %2971 = vmatpush.bf16.msra.mxu0 %v2709
        %2972 = vmatpush.bf16.msra.mxu0 %v2708
        %2973 = vmatpush.bf16.msra.mxu0 %v2707
        %2974 = vmatpush.bf16.msra.mxu0 %v2706
        %2975 = vmatmul.bf16.gmra.mxu0 %v1911
        %v2976 = vpop.f32.mrf.mxu0
        %v2977 = vadd.f32 %v2964, %v2976
        %v2978 = vpop.f32.mrf.mxu0
        %2979 = vdwg.mxu0
        %2980 = vmatpush.bf16.msra.mxu0 %v2721
        %2981 = vmatpush.bf16.msra.mxu0 %v2720
        %2982 = vmatpush.bf16.msra.mxu0 %v2719
        %2983 = vmatpush.bf16.msra.mxu0 %v2718
        %2984 = vmatpush.bf16.msra.mxu0 %v2717
        %2985 = vmatpush.bf16.msra.mxu0 %v2716
        %2986 = vmatpush.bf16.msra.mxu0 %v2715
        %2987 = vmatpush.bf16.msra.mxu0 %v2714
        %2988 = vmatmul.bf16.gmra.mxu0 %v1912
        %v2989 = vpop.f32.mrf.mxu0
        %v2990 = vadd.f32 %v2977, %v2989
        %v2991 = vpop.f32.mrf.mxu0
        %2992 = vdwg.mxu0
        %2993 = vmatpush.bf16.msra.mxu0 %v2729
        %2994 = vmatpush.bf16.msra.mxu0 %v2728
        %2995 = vmatpush.bf16.msra.mxu0 %v2727
        %2996 = vmatpush.bf16.msra.mxu0 %v2726
        %2997 = vmatpush.bf16.msra.mxu0 %v2725
        %2998 = vmatpush.bf16.msra.mxu0 %v2724
        %2999 = vmatpush.bf16.msra.mxu0 %v2723
        %3000 = vmatpush.bf16.msra.mxu0 %v2722
        %3001 = vmatmul.bf16.gmra.mxu0 %v1913
        %v3002 = vpop.f32.mrf.mxu0
        %v3003 = vadd.f32 %v2990, %v3002
        %v3004 = vpop.f32.mrf.mxu0
        %3005 = vdwg.mxu0
        %3006 = vmatpush.bf16.msra.mxu0 %v2737
        %3007 = vmatpush.bf16.msra.mxu0 %v2736
        %3008 = vmatpush.bf16.msra.mxu0 %v2735
        %3009 = vmatpush.bf16.msra.mxu0 %v2734
        %3010 = vmatpush.bf16.msra.mxu0 %v2733
        %3011 = vmatpush.bf16.msra.mxu0 %v2732
        %3012 = vmatpush.bf16.msra.mxu0 %v2731
        %3013 = vmatpush.bf16.msra.mxu0 %v2730
        %3014 = vmatmul.bf16.gmra.mxu0 %v1914
        %v3015 = vpop.f32.mrf.mxu0
        %v3016 = vadd.f32 %v3003, %v3015
        %v3017 = vpop.f32.mrf.mxu0
        %3018 = vdwg.mxu0
        %3019 = vmatpush.bf16.msra.mxu0 %v2745
        %3020 = vmatpush.bf16.msra.mxu0 %v2744
        %3021 = vmatpush.bf16.msra.mxu0 %v2743
        %3022 = vmatpush.bf16.msra.mxu0 %v2742
        %3023 = vmatpush.bf16.msra.mxu0 %v2741
        %3024 = vmatpush.bf16.msra.mxu0 %v2740
        %3025 = vmatpush.bf16.msra.mxu0 %v2739
        %3026 = vmatpush.bf16.msra.mxu0 %v2738
        %3027 = vmatmul.bf16.gmra.mxu0 %v1915
        %v3028 = vpop.f32.mrf.mxu0
        %v3029 = vadd.f32 %v3016, %v3028
        %v3030 = vpop.f32.mrf.mxu0
        %3031 = vdwg.mxu0
        %3032 = vmatpush.bf16.msra.mxu0 %v2753
        %3033 = vmatpush.bf16.msra.mxu0 %v2752
        %3034 = vmatpush.bf16.msra.mxu0 %v2751
        %3035 = vmatpush.bf16.msra.mxu0 %v2750
        %3036 = vmatpush.bf16.msra.mxu0 %v2749
        %3037 = vmatpush.bf16.msra.mxu0 %v2748
        %3038 = vmatpush.bf16.msra.mxu0 %v2747
        %3039 = vmatpush.bf16.msra.mxu0 %v2746
        %3040 = vmatmul.bf16.gmra.mxu0 %v1916
        %v3041 = vpop.f32.mrf.mxu0
        %v3042 = vadd.f32 %v3029, %v3041
        %v3043 = vpop.f32.mrf.mxu0
        %3044 = vdwg.mxu0
        %3045 = vmatpush.bf16.msra.mxu0 %v2761
        %3046 = vmatpush.bf16.msra.mxu0 %v2760
        %3047 = vmatpush.bf16.msra.mxu0 %v2759
        %3048 = vmatpush.bf16.msra.mxu0 %v2758
        %3049 = vmatpush.bf16.msra.mxu0 %v2757
        %3050 = vmatpush.bf16.msra.mxu0 %v2756
        %3051 = vmatpush.bf16.msra.mxu0 %v2755
        %3052 = vmatpush.bf16.msra.mxu0 %v2754
        %3053 = vmatmul.bf16.gmra.mxu0 %v1917
        %v3054 = vpop.f32.mrf.mxu0
        %v3055 = vadd.f32 %v3042, %v3054
        %v3056 = vpop.f32.mrf.mxu0
        %3057 = vdwg.mxu0
        %3058 = vmatpush.bf16.msra.mxu0 %v2769
        %3059 = vmatpush.bf16.msra.mxu0 %v2768
        %3060 = vmatpush.bf16.msra.mxu0 %v2767
        %3061 = vmatpush.bf16.msra.mxu0 %v2766
        %3062 = vmatpush.bf16.msra.mxu0 %v2765
        %3063 = vmatpush.bf16.msra.mxu0 %v2764
        %3064 = vmatpush.bf16.msra.mxu0 %v2763
        %3065 = vmatpush.bf16.msra.mxu0 %v2762
        %3066 = vmatmul.bf16.gmra.mxu0 %v1918
        %v3067 = vpop.f32.mrf.mxu0
        %v3068 = vadd.f32 %v3055, %v3067
        %v3069 = vpop.f32.mrf.mxu0
        %3070 = vdwg.mxu0
        %3071 = vmatpush.bf16.msra.mxu0 %v2777
        %3072 = vmatpush.bf16.msra.mxu0 %v2776
        %3073 = vmatpush.bf16.msra.mxu0 %v2775
        %3074 = vmatpush.bf16.msra.mxu0 %v2774
        %3075 = vmatpush.bf16.msra.mxu0 %v2773
        %3076 = vmatpush.bf16.msra.mxu0 %v2772
        %3077 = vmatpush.bf16.msra.mxu0 %v2771
        %3078 = vmatpush.bf16.msra.mxu0 %v2770
        %3079 = vmatmul.bf16.gmra.mxu0 %v1919
        %v3080 = vpop.f32.mrf.mxu0
        %v3081 = vadd.f32 %v3068, %v3080
        %v3082 = vpop.f32.mrf.mxu0
        %3083 = vdwg.mxu0
        %3084 = vmatpush.bf16.msra.mxu0 %v2785
        %3085 = vmatpush.bf16.msra.mxu0 %v2784
        %3086 = vmatpush.bf16.msra.mxu0 %v2783
        %3087 = vmatpush.bf16.msra.mxu0 %v2782
        %3088 = vmatpush.bf16.msra.mxu0 %v2781
        %3089 = vmatpush.bf16.msra.mxu0 %v2780
        %3090 = vmatpush.bf16.msra.mxu0 %v2779
        %3091 = vmatpush.bf16.msra.mxu0 %v2778
        %3092 = vmatmul.bf16.gmra.mxu0 %v1920
        %v3093 = vpop.f32.mrf.mxu0
        %v3094 = vadd.f32 %v3081, %v3093
        %v3095 = vpop.f32.mrf.mxu0
        %3096 = vdwg.mxu0
        %3097 = vmatpush.bf16.msra.mxu0 %v2793
        %3098 = vmatpush.bf16.msra.mxu0 %v2792
        %3099 = vmatpush.bf16.msra.mxu0 %v2791
        %3100 = vmatpush.bf16.msra.mxu0 %v2790
        %3101 = vmatpush.bf16.msra.mxu0 %v2789
        %3102 = vmatpush.bf16.msra.mxu0 %v2788
        %3103 = vmatpush.bf16.msra.mxu0 %v2787
        %3104 = vmatpush.bf16.msra.mxu0 %v2786
        %3105 = vmatmul.bf16.gmra.mxu0 %v1921
        %v3106 = vpop.f32.mrf.mxu0
        %v3107 = vadd.f32 %v3094, %v3106
        %v3108 = vpop.f32.mrf.mxu0
        %3109 = vdwg.mxu0
        %3110 = vmatpush.bf16.msra.mxu0 %v2801
        %3111 = vmatpush.bf16.msra.mxu0 %v2800
        %3112 = vmatpush.bf16.msra.mxu0 %v2799
        %3113 = vmatpush.bf16.msra.mxu0 %v2798
        %3114 = vmatpush.bf16.msra.mxu0 %v2797
        %3115 = vmatpush.bf16.msra.mxu0 %v2796
        %3116 = vmatpush.bf16.msra.mxu0 %v2795
        %3117 = vmatpush.bf16.msra.mxu0 %v2794
        %3118 = vmatmul.bf16.gmra.mxu0 %v1922
        %v3119 = vpop.f32.mrf.mxu0
        %v3120 = vadd.f32 %v3107, %v3119
        %v3121 = vpop.f32.mrf.mxu0
        %3122 = vdwg.mxu0
        %3123 = vmatpush.bf16.msra.mxu0 %v2809
        %3124 = vmatpush.bf16.msra.mxu0 %v2808
        %3125 = vmatpush.bf16.msra.mxu0 %v2807
        %3126 = vmatpush.bf16.msra.mxu0 %v2806
        %3127 = vmatpush.bf16.msra.mxu0 %v2805
        %3128 = vmatpush.bf16.msra.mxu0 %v2804
        %3129 = vmatpush.bf16.msra.mxu0 %v2803
        %3130 = vmatpush.bf16.msra.mxu0 %v2802
        %3131 = vmatmul.bf16.gmra.mxu0 %v1923
        %v3132 = vpop.f32.mrf.mxu0
        %v3133 = vadd.f32 %v3120, %v3132
        %v3134 = vpop.f32.mrf.mxu0
        %3135 = vdwg.mxu0
        %3136 = vmatpush.bf16.msra.mxu0 %v2817
        %3137 = vmatpush.bf16.msra.mxu0 %v2816
        %3138 = vmatpush.bf16.msra.mxu0 %v2815
        %3139 = vmatpush.bf16.msra.mxu0 %v2814
        %3140 = vmatpush.bf16.msra.mxu0 %v2813
        %3141 = vmatpush.bf16.msra.mxu0 %v2812
        %3142 = vmatpush.bf16.msra.mxu0 %v2811
        %3143 = vmatpush.bf16.msra.mxu0 %v2810
        %3144 = vmatmul.bf16.gmra.mxu0 %v1924
        %v3145 = vpop.f32.mrf.mxu0
        %v3146 = vadd.f32 %v3133, %v3145
        %v3147 = vpop.f32.mrf.mxu0
        %3148 = vdwg.mxu0
        %3149 = vmatpush.bf16.msra.mxu0 %v2825
        %3150 = vmatpush.bf16.msra.mxu0 %v2824
        %3151 = vmatpush.bf16.msra.mxu0 %v2823
        %3152 = vmatpush.bf16.msra.mxu0 %v2822
        %3153 = vmatpush.bf16.msra.mxu0 %v2821
        %3154 = vmatpush.bf16.msra.mxu0 %v2820
        %3155 = vmatpush.bf16.msra.mxu0 %v2819
        %3156 = vmatpush.bf16.msra.mxu0 %v2818
        %3157 = vmatmul.bf16.gmra.mxu0 %v1925
        %v3158 = vpop.f32.mrf.mxu0
        %v3159 = vadd.f32 %v3146, %v3158
        %v3160 = vpop.f32.mrf.mxu0
        %3161 = vdwg.mxu0
        %v3162 = vadd.f32 %v1453, %v3159
        %v3163 = vld [vmem:[%s17] sm:$0x1]
        %v3164 = vld [vmem:[%s18] sm:$0x1]
        %v3165 = vsel %vm704, %v3162, 0.0
        %3166 = vadd.xlane.f32.xlu0 %v3165
        %v3167 = vpop.xlane.xlu0 %3166
        %v3168 = vmul.f32 %v3167, %v1426
        %v3169 = vsub.f32 %v3162, %v3168
        %v3170 = vmul.f32 %v3169, %v3169
        %v3171 = vsel %vm704, %v3170, 0.0
        %3172 = vadd.xlane.f32.xlu0 %v3171
        %v3173 = vpop.xlane.xlu0 %3172
        %v3174 = vmul.f32 %v3173, %v1426
        %v3175 = vadd.f32 %v3174, 1e-05
        %v3176 = vrsqrt.pop %v3175
        %v3177 = vmul.f32 %v3176, %v3175
        %v3178 = vmul.f32 %v3177, %v3176
        %v3179 = vmul.f32 0.5, %v3178
        %v3180 = vsub.f32 1.5, %v3179
        %v3181 = vmul.f32 %v3176, %v3180
        %vm3182 = vweird.f32 %v3175
        %vm3183 = vweird.f32 %v3176
        %vm3184 = vmor %vm3182, %vm3183
        %v3185 = vsel %vm3184, %v3176, %v3181
        %v3186 = vmul.f32 %v3169, %v3185
        %v3188 = vperm.slane %v3163, 0
        %v3190 = vmul.f32 %v3186, %v3188
        %v3192 = vperm.slane %v3164, 0
        %v3194 = vadd.f32 %v3190, %v3192
        %v3195 = vpack.c.bf16 %v3194, %v3194
        %s3196 = scalar_lea.vmem %s3, 64
        %v3197 = vld [vmem:[%s3196] sm:$0xf]
        %v3198 = vld [vmem:[%s3196 + $0x4] sm:$0xf]
        %v3199 = vld [vmem:[%s3196 + $0x8] sm:$0xf]
        %v3200 = vld [vmem:[%s3196 + $0xc] sm:$0xf]
        %s3201 = scalar_lea.vmem %s4, 4
        %v3202 = vld [vmem:[%s3201] sm:$0x1]
        %v3204 = vperm.slane %v3202, 0
        %v3210 = vunpack.c.l.b16 %v3197
        %v3211 = vunpack.c.l.b16 %v3198
        %v3212 = vunpack.c.l.b16 %v3199
        %v3213 = vunpack.c.l.b16 %v3200
        %v3214 = vpack.c.b16 %v3211, %v3210
        %v3215 = vpack.c.b16 %v3213, %v3212
        %v3219 = vsel %vm704, %v3195, 0
        %3221 = vmatpush.bf16.msra.mxu0 0
        %3222 = vmatpush.bf16.msra.mxu0 0
        %3223 = vmatpush.bf16.msra.mxu0 0
        %3224 = vmatpush.bf16.msra.mxu0 0
        %3225 = vmatpush.bf16.msra.mxu0 0
        %3226 = vmatpush.bf16.msra.mxu0 0
        %3227 = vmatpush.bf16.msra.mxu0 %v3215
        %3228 = vmatpush.bf16.msra.mxu0 %v3214
        %3229 = vmatmul.bf16.gmra.mxu0 %v3219
        %v3230 = vpop.f32.mrf.mxu0
        %v3231 = vadd.f32 %v3204, %v3230
        %v3232 = vpop.f32.mrf.mxu0
        %3233 = vdwg.mxu0
        %s3234 = scalar_lea.vmem %s5, 64
        %v3235 = vld [vmem:[%s3234] sm:$0xf]
        %v3236 = vld [vmem:[%s3234 + $0x4] sm:$0xf]
        %v3237 = vld [vmem:[%s3234 + $0x8] sm:$0xf]
        %v3238 = vld [vmem:[%s3234 + $0xc] sm:$0xf]
        %s3239 = scalar_lea.vmem %s6, 4
        %v3240 = vld [vmem:[%s3239] sm:$0x1]
        %v3242 = vperm.slane %v3240, 0
        %v3248 = vunpack.c.l.b16 %v3235
        %v3249 = vunpack.c.l.b16 %v3236
        %v3250 = vunpack.c.l.b16 %v3237
        %v3251 = vunpack.c.l.b16 %v3238
        %v3252 = vpack.c.b16 %v3249, %v3248
        %v3253 = vpack.c.b16 %v3251, %v3250
        %3256 = vmatpush.bf16.msra.mxu0 0
        %3257 = vmatpush.bf16.msra.mxu0 0
        %3258 = vmatpush.bf16.msra.mxu0 0
        %3259 = vmatpush.bf16.msra.mxu0 0
        %3260 = vmatpush.bf16.msra.mxu0 0
        %3261 = vmatpush.bf16.msra.mxu0 0
        %3262 = vmatpush.bf16.msra.mxu0 %v3253
        %3263 = vmatpush.bf16.msra.mxu0 %v3252
        %3264 = vmatmul.bf16.gmra.mxu0 %v3219
        %v3265 = vpop.f32.mrf.mxu0
        %v3266 = vadd.f32 %v3242, %v3265
        %v3267 = vpop.f32.mrf.mxu0
        %3268 = vdwg.mxu0
        %s3269 = scalar_lea.vmem %s7, 64
        %v3270 = vld [vmem:[%s3269] sm:$0xf]
        %v3271 = vld [vmem:[%s3269 + $0x4] sm:$0xf]
        %v3272 = vld [vmem:[%s3269 + $0x8] sm:$0xf]
        %v3273 = vld [vmem:[%s3269 + $0xc] sm:$0xf]
        %s3274 = scalar_lea.vmem %s8, 4
        %v3275 = vld [vmem:[%s3274] sm:$0x1]
        %v3277 = vperm.slane %v3275, 0
        %v3283 = vunpack.c.l.b16 %v3270
        %v3284 = vunpack.c.l.b16 %v3271
        %v3285 = vunpack.c.l.b16 %v3272
        %v3286 = vunpack.c.l.b16 %v3273
        %v3287 = vpack.c.b16 %v3284, %v3283
        %v3288 = vpack.c.b16 %v3286, %v3285
        %3291 = vmatpush.bf16.msra.mxu0 0
        %3292 = vmatpush.bf16.msra.mxu0 0
        %3293 = vmatpush.bf16.msra.mxu0 0
        %3294 = vmatpush.bf16.msra.mxu0 0
        %3295 = vmatpush.bf16.msra.mxu0 0
        %3296 = vmatpush.bf16.msra.mxu0 0
        %3297 = vmatpush.bf16.msra.mxu0 %v3288
        %3298 = vmatpush.bf16.msra.mxu0 %v3287
        %3299 = vmatmul.bf16.gmra.mxu0 %v3219
        %v3300 = vpop.f32.mrf.mxu0
        %v3301 = vadd.f32 %v3277, %v3300
        %v3302 = vpop.f32.mrf.mxu0
        %3303 = vdwg.mxu0
        %v3304 = vpack.c.bf16 %v3231, %v3231
        %v3305 = vpack.c.bf16 %v3266, %v3266
        %v3307 = vsel %vm789, %v3304, 0
        %v3310 = vsel %vm789, %v3305, 0
        %3312 = vmatpush.bf16.xpose.msra.mxu0 0
        %3313 = vmatpush.bf16.xpose.msra.mxu0 0
        %3314 = vmatpush.bf16.xpose.msra.mxu0 0
        %3315 = vmatpush.bf16.xpose.msra.mxu0 0
        %3316 = vmatpush.bf16.xpose.msra.mxu0 0
        %3317 = vmatpush.bf16.xpose.msra.mxu0 0
        %3318 = vmatpush.bf16.xpose.msra.mxu0 0
        %3319 = vmatpush.bf16.xpose.msra.mxu0 %v3310
        %3320 = vmatmul.bf16.gmra.mxu0 %v3307
        %v3321 = vpop.f32.mrf.mxu0
        %v3322 = vadd.f32 0.0, %v3321
        %v3323 = vpop.f32.mrf.mxu0
        %3324 = vdwg.mxu0
        %v3325 = vmul.f32 %v3322, 0.35355338
        %v3326 = vsel %vm789, %v3325, -inf
        %3327 = vmax.xlane.f32.xlu0 %v3326
        %v3328 = vpop.xlane.xlu0 %3327
        %v3329 = vsub.f32 %v3325, %v3328
        %v3330 = vmul.f32 %v3329, 1.442695
        %v3331 = vpow.pop %v3330
        %v3332 = vsel %vm789, %v3331, 0.0
        %3333 = vadd.xlane.f32.xlu0 %v3332
        %v3334 = vpop.xlane.xlu0 %3333
        %v3335 = vrcp.pop %v3334
        %v3336 = vmul.f32 %v3331, %v3335
        %v3337 = vpack.c.bf16 %v3336, %v3336
        %v3338 = vpack.c.bf16 %v3301, %v3301
        %v3340 = vsel %vm789, %v3337, 0
        %v3343 = vsel %vm826, %v3338, 0
        %3345 = vmatpush.bf16.msra.mxu0 0
        %3346 = vmatpush.bf16.msra.mxu0 0
        %3347 = vmatpush.bf16.msra.mxu0 0
        %3348 = vmatpush.bf16.msra.mxu0 0
        %3349 = vmatpush.bf16.msra.mxu0 0
        %3350 = vmatpush.bf16.msra.mxu0 0
        %3351 = vmatpush.bf16.msra.mxu0 0
        %3352 = vmatpush.bf16.msra.mxu0 %v3343
        %3353 = vmatmul.bf16.gmra.mxu0 %v3340
        %v3354 = vpop.f32.mrf.mxu0
        %v3355 = vadd.f32 0.0, %v3354
        %v3356 = vpop.f32.mrf.mxu0
        %3357 = vdwg.mxu0
        %v3358 = vpack.c.bf16 %v3355, %v3355
        %s3359 = scalar_lea.vmem %s9, 16
        %v3360 = vld [vmem:[%s3359] sm:$0xf]
        %s3361 = scalar_lea.vmem %s3, 80
        %v3362 = vld [vmem:[%s3361] sm:$0xf]
        %v3363 = vld [vmem:[%s3361 + $0x4] sm:$0xf]
        %v3364 = vld [vmem:[%s3361 + $0x8] sm:$0xf]
        %v3365 = vld [vmem:[%s3361 + $0xc] sm:$0xf]
        %s3366 = scalar_lea.vmem %s4, 5
        %v3367 = vld [vmem:[%s3366] sm:$0x1]
        %v3369 = vperm.slane %v3367, 0
        %v3375 = vunpack.c.l.b16 %v3362
        %v3376 = vunpack.c.l.b16 %v3363
        %v3377 = vunpack.c.l.b16 %v3364
        %v3378 = vunpack.c.l.b16 %v3365
        %v3379 = vpack.c.b16 %v3376, %v3375
        %v3380 = vpack.c.b16 %v3378, %v3377
        %3383 = vmatpush.bf16.msra.mxu0 0
        %3384 = vmatpush.bf16.msra.mxu0 0
        %3385 = vmatpush.bf16.msra.mxu0 0
        %3386 = vmatpush.bf16.msra.mxu0 0
        %3387 = vmatpush.bf16.msra.mxu0 0
        %3388 = vmatpush.bf16.msra.mxu0 0
        %3389 = vmatpush.bf16.msra.mxu0 %v3380
        %3390 = vmatpush.bf16.msra.mxu0 %v3379
        %3391 = vmatmul.bf16.gmra.mxu0 %v3219
        %v3392 = vpop.f32.mrf.mxu0
        %v3393 = vadd.f32 %v3369, %v3392
        %v3394 = vpop.f32.mrf.mxu0
        %3395 = vdwg.mxu0
        %s3396 = scalar_lea.vmem %s5, 80
        %v3397 = vld [vmem:[%s3396] sm:$0xf]
        %v3398 = vld [vmem:[%s3396 + $0x4] sm:$0xf]
        %v3399 = vld [vmem:[%s3396 + $0x8] sm:$0xf]
        %v3400 = vld [vmem:[%s3396 + $0xc] sm:$0xf]
        %s3401 = scalar_lea.vmem %s6, 5
        %v3402 = vld [vmem:[%s3401] sm:$0x1]
        %v3404 = vperm.slane %v3402, 0
        %v3410 = vunpack.c.l.b16 %v3397
        %v3411 = vunpack.c.l.b16 %v3398
        %v3412 = vunpack.c.l.b16 %v3399
        %v3413 = vunpack.c.l.b16 %v3400
        %v3414 = vpack.c.b16 %v3411, %v3410
        %v3415 = vpack.c.b16 %v3413, %v3412
        %3418 = vmatpush.bf16.msra.mxu0 0
        %3419 = vmatpush.bf16.msra.mxu0 0
        %3420 = vmatpush.bf16.msra.mxu0 0
        %3421 = vmatpush.bf16.msra.mxu0 0
        %3422 = vmatpush.bf16.msra.mxu0 0
        %3423 = vmatpush.bf16.msra.mxu0 0
        %3424 = vmatpush.bf16.msra.mxu0 %v3415
        %3425 = vmatpush.bf16.msra.mxu0 %v3414
        %3426 = vmatmul.bf16.gmra.mxu0 %v3219
        %v3427 = vpop.f32.mrf.mxu0
        %v3428 = vadd.f32 %v3404, %v3427
        %v3429 = vpop.f32.mrf.mxu0
        %3430 = vdwg.mxu0
        %s3431 = scalar_lea.vmem %s7, 80
        %v3432 = vld [vmem:[%s3431] sm:$0xf]
        %v3433 = vld [vmem:[%s3431 + $0x4] sm:$0xf]
        %v3434 = vld [vmem:[%s3431 + $0x8] sm:$0xf]
        %v3435 = vld [vmem:[%s3431 + $0xc] sm:$0xf]
        %s3436 = scalar_lea.vmem %s8, 5
        %v3437 = vld [vmem:[%s3436] sm:$0x1]
        %v3439 = vperm.slane %v3437, 0
        %v3445 = vunpack.c.l.b16 %v3432
        %v3446 = vunpack.c.l.b16 %v3433
        %v3447 = vunpack.c.l.b16 %v3434
        %v3448 = vunpack.c.l.b16 %v3435
        %v3449 = vpack.c.b16 %v3446, %v3445
        %v3450 = vpack.c.b16 %v3448, %v3447
        %3453 = vmatpush.bf16.msra.mxu0 0
        %3454 = vmatpush.bf16.msra.mxu0 0
        %3455 = vmatpush.bf16.msra.mxu0 0
        %3456 = vmatpush.bf16.msra.mxu0 0
        %3457 = vmatpush.bf16.msra.mxu0 0
        %3458 = vmatpush.bf16.msra.mxu0 0
        %3459 = vmatpush.bf16.msra.mxu0 %v3450
        %3460 = vmatpush.bf16.msra.mxu0 %v3449
        %3461 = vmatmul.bf16.gmra.mxu0 %v3219
        %v3462 = vpop.f32.mrf.mxu0
        %v3463 = vadd.f32 %v3439, %v3462
        %v3464 = vpop.f32.mrf.mxu0
        %3465 = vdwg.mxu0
        %v3466 = vpack.c.bf16 %v3393, %v3393
        %v3467 = vpack.c.bf16 %v3428, %v3428
        %v3469 = vsel %vm789, %v3466, 0
        %v3472 = vsel %vm789, %v3467, 0
        %3474 = vmatpush.bf16.xpose.msra.mxu0 0
        %3475 = vmatpush.bf16.xpose.msra.mxu0 0
        %3476 = vmatpush.bf16.xpose.msra.mxu0 0
        %3477 = vmatpush.bf16.xpose.msra.mxu0 0
        %3478 = vmatpush.bf16.xpose.msra.mxu0 0
        %3479 = vmatpush.bf16.xpose.msra.mxu0 0
        %3480 = vmatpush.bf16.xpose.msra.mxu0 0
        %3481 = vmatpush.bf16.xpose.msra.mxu0 %v3472
        %3482 = vmatmul.bf16.gmra.mxu0 %v3469
        %v3483 = vpop.f32.mrf.mxu0
        %v3484 = vadd.f32 0.0, %v3483
        %v3485 = vpop.f32.mrf.mxu0
        %3486 = vdwg.mxu0
        %v3487 = vmul.f32 %v3484, 0.35355338
        %v3488 = vsel %vm789, %v3487, -inf
        %3489 = vmax.xlane.f32.xlu0 %v3488
        %v3490 = vpop.xlane.xlu0 %3489
        %v3491 = vsub.f32 %v3487, %v3490
        %v3492 = vmul.f32 %v3491, 1.442695
        %v3493 = vpow.pop %v3492
        %v3494 = vsel %vm789, %v3493, 0.0
        %3495 = vadd.xlane.f32.xlu0 %v3494
        %v3496 = vpop.xlane.xlu0 %3495
        %v3497 = vrcp.pop %v3496
        %v3498 = vmul.f32 %v3493, %v3497
        %v3499 = vpack.c.bf16 %v3498, %v3498
        %v3500 = vpack.c.bf16 %v3463, %v3463
        %v3502 = vsel %vm789, %v3499, 0
        %v3505 = vsel %vm826, %v3500, 0
        %3507 = vmatpush.bf16.msra.mxu0 0
        %3508 = vmatpush.bf16.msra.mxu0 0
        %3509 = vmatpush.bf16.msra.mxu0 0
        %3510 = vmatpush.bf16.msra.mxu0 0
        %3511 = vmatpush.bf16.msra.mxu0 0
        %3512 = vmatpush.bf16.msra.mxu0 0
        %3513 = vmatpush.bf16.msra.mxu0 0
        %3514 = vmatpush.bf16.msra.mxu0 %v3505
        %3515 = vmatmul.bf16.gmra.mxu0 %v3502
        %v3516 = vpop.f32.mrf.mxu0
        %v3517 = vadd.f32 0.0, %v3516
        %v3518 = vpop.f32.mrf.mxu0
        %3519 = vdwg.mxu0
        %v3520 = vpack.c.bf16 %v3517, %v3517
        %s3521 = scalar_lea.vmem %s9, 20
        %v3522 = vld [vmem:[%s3521] sm:$0xf]
        %v3524 = vsel %vm789, %v3520, 0
        %v3527 = vsel %vm826, %v3522, 0
        %3529 = vmatpush.bf16.msra.mxu0 0
        %3530 = vmatpush.bf16.msra.mxu0 0
        %3531 = vmatpush.bf16.msra.mxu0 0
        %3532 = vmatpush.bf16.msra.mxu0 0
        %3533 = vmatpush.bf16.msra.mxu0 0
        %3534 = vmatpush.bf16.msra.mxu0 0
        %3535 = vmatpush.bf16.msra.mxu0 0
        %3536 = vmatpush.bf16.msra.mxu0 %v3527
        %3537 = vmatmul.bf16.gmra.mxu0 %v3524
        %v3538 = vpop.f32.mrf.mxu0
        %v3539 = vadd.f32 0.0, %v3538
        %v3540 = vpop.f32.mrf.mxu0
        %3541 = vdwg.mxu0
        %v3543 = vsel %vm789, %v3358, 0
        %v3546 = vsel %vm826, %v3360, 0
        %3548 = vmatpush.bf16.msra.mxu0 0
        %3549 = vmatpush.bf16.msra.mxu0 0
        %3550 = vmatpush.bf16.msra.mxu0 0
        %3551 = vmatpush.bf16.msra.mxu0 0
        %3552 = vmatpush.bf16.msra.mxu0 0
        %3553 = vmatpush.bf16.msra.mxu0 0
        %3554 = vmatpush.bf16.msra.mxu0 0
        %3555 = vmatpush.bf16.msra.mxu0 %v3546
        %3556 = vmatmul.bf16.gmra.mxu0 %v3543
        %v3557 = vpop.f32.mrf.mxu0
        %v3558 = vadd.f32 %v3539, %v3557
        %v3559 = vpop.f32.mrf.mxu0
        %3560 = vdwg.mxu0
        %s3561 = scalar_lea.vmem %s3, 96
        %v3562 = vld [vmem:[%s3561] sm:$0xf]
        %v3563 = vld [vmem:[%s3561 + $0x4] sm:$0xf]
        %v3564 = vld [vmem:[%s3561 + $0x8] sm:$0xf]
        %v3565 = vld [vmem:[%s3561 + $0xc] sm:$0xf]
        %s3566 = scalar_lea.vmem %s4, 6
        %v3567 = vld [vmem:[%s3566] sm:$0x1]
        %v3569 = vperm.slane %v3567, 0
        %v3575 = vunpack.c.l.b16 %v3562
        %v3576 = vunpack.c.l.b16 %v3563
        %v3577 = vunpack.c.l.b16 %v3564
        %v3578 = vunpack.c.l.b16 %v3565
        %v3579 = vpack.c.b16 %v3576, %v3575
        %v3580 = vpack.c.b16 %v3578, %v3577
        %3583 = vmatpush.bf16.msra.mxu0 0
        %3584 = vmatpush.bf16.msra.mxu0 0
        %3585 = vmatpush.bf16.msra.mxu0 0
        %3586 = vmatpush.bf16.msra.mxu0 0
        %3587 = vmatpush.bf16.msra.mxu0 0
        %3588 = vmatpush.bf16.msra.mxu0 0
        %3589 = vmatpush.bf16.msra.mxu0 %v3580
        %3590 = vmatpush.bf16.msra.mxu0 %v3579
        %3591 = vmatmul.bf16.gmra.mxu0 %v3219
        %v3592 = vpop.f32.mrf.mxu0
        %v3593 = vadd.f32 %v3569, %v3592
        %v3594 = vpop.f32.mrf.mxu0
        %3595 = vdwg.mxu0
        %s3596 = scalar_lea.vmem %s5, 96
        %v3597 = vld [vmem:[%s3596] sm:$0xf]
        %v3598 = vld [vmem:[%s3596 + $0x4] sm:$0xf]
        %v3599 = vld [vmem:[%s3596 + $0x8] sm:$0xf]
        %v3600 = vld [vmem:[%s3596 + $0xc] sm:$0xf]
        %s3601 = scalar_lea.vmem %s6, 6
        %v3602 = vld [vmem:[%s3601] sm:$0x1]
        %v3604 = vperm.slane %v3602, 0
        %v3610 = vunpack.c.l.b16 %v3597
        %v3611 = vunpack.c.l.b16 %v3598
        %v3612 = vunpack.c.l.b16 %v3599
        %v3613 = vunpack.c.l.b16 %v3600
        %v3614 = vpack.c.b16 %v3611, %v3610
        %v3615 = vpack.c.b16 %v3613, %v3612
        %3618 = vmatpush.bf16.msra.mxu0 0
        %3619 = vmatpush.bf16.msra.mxu0 0
        %3620 = vmatpush.bf16.msra.mxu0 0
        %3621 = vmatpush.bf16.msra.mxu0 0
        %3622 = vmatpush.bf16.msra.mxu0 0
        %3623 = vmatpush.bf16.msra.mxu0 0
        %3624 = vmatpush.bf16.msra.mxu0 %v3615
        %3625 = vmatpush.bf16.msra.mxu0 %v3614
        %3626 = vmatmul.bf16.gmra.mxu0 %v3219
        %v3627 = vpop.f32.mrf.mxu0
        %v3628 = vadd.f32 %v3604, %v3627
        %v3629 = vpop.f32.mrf.mxu0
        %3630 = vdwg.mxu0
        %s3631 = scalar_lea.vmem %s7, 96
        %v3632 = vld [vmem:[%s3631] sm:$0xf]
        %v3633 = vld [vmem:[%s3631 + $0x4] sm:$0xf]
        %v3634 = vld [vmem:[%s3631 + $0x8] sm:$0xf]
        %v3635 = vld [vmem:[%s3631 + $0xc] sm:$0xf]
        %s3636 = scalar_lea.vmem %s8, 6
        %v3637 = vld [vmem:[%s3636] sm:$0x1]
        %v3639 = vperm.slane %v3637, 0
        %v3645 = vunpack.c.l.b16 %v3632
        %v3646 = vunpack.c.l.b16 %v3633
        %v3647 = vunpack.c.l.b16 %v3634
        %v3648 = vunpack.c.l.b16 %v3635
        %v3649 = vpack.c.b16 %v3646, %v3645
        %v3650 = vpack.c.b16 %v3648, %v3647
        %3653 = vmatpush.bf16.msra.mxu0 0
        %3654 = vmatpush.bf16.msra.mxu0 0
        %3655 = vmatpush.bf16.msra.mxu0 0
        %3656 = vmatpush.bf16.msra.mxu0 0
        %3657 = vmatpush.bf16.msra.mxu0 0
        %3658 = vmatpush.bf16.msra.mxu0 0
        %3659 = vmatpush.bf16.msra.mxu0 %v3650
        %3660 = vmatpush.bf16.msra.mxu0 %v3649
        %3661 = vmatmul.bf16.gmra.mxu0 %v3219
        %v3662 = vpop.f32.mrf.mxu0
        %v3663 = vadd.f32 %v3639, %v3662
        %v3664 = vpop.f32.mrf.mxu0
        %3665 = vdwg.mxu0
        %v3666 = vpack.c.bf16 %v3593, %v3593
        %v3667 = vpack.c.bf16 %v3628, %v3628
        %v3669 = vsel %vm789, %v3666, 0
        %v3672 = vsel %vm789, %v3667, 0
        %3674 = vmatpush.bf16.xpose.msra.mxu0 0
        %3675 = vmatpush.bf16.xpose.msra.mxu0 0
        %3676 = vmatpush.bf16.xpose.msra.mxu0 0
        %3677 = vmatpush.bf16.xpose.msra.mxu0 0
        %3678 = vmatpush.bf16.xpose.msra.mxu0 0
        %3679 = vmatpush.bf16.xpose.msra.mxu0 0
        %3680 = vmatpush.bf16.xpose.msra.mxu0 0
        %3681 = vmatpush.bf16.xpose.msra.mxu0 %v3672
        %3682 = vmatmul.bf16.gmra.mxu0 %v3669
        %v3683 = vpop.f32.mrf.mxu0
        %v3684 = vadd.f32 0.0, %v3683
        %v3685 = vpop.f32.mrf.mxu0
        %3686 = vdwg.mxu0
        %v3687 = vmul.f32 %v3684, 0.35355338
        %v3688 = vsel %vm789, %v3687, -inf
        %3689 = vmax.xlane.f32.xlu0 %v3688
        %v3690 = vpop.xlane.xlu0 %3689
        %v3691 = vsub.f32 %v3687, %v3690
        %v3692 = vmul.f32 %v3691, 1.442695
        %v3693 = vpow.pop %v3692
        %v3694 = vsel %vm789, %v3693, 0.0
        %3695 = vadd.xlane.f32.xlu0 %v3694
        %v3696 = vpop.xlane.xlu0 %3695
        %v3697 = vrcp.pop %v3696
        %v3698 = vmul.f32 %v3693, %v3697
        %v3699 = vpack.c.bf16 %v3698, %v3698
        %v3700 = vpack.c.bf16 %v3663, %v3663
        %v3702 = vsel %vm789, %v3699, 0
        %v3705 = vsel %vm826, %v3700, 0
        %3707 = vmatpush.bf16.msra.mxu0 0
        %3708 = vmatpush.bf16.msra.mxu0 0
        %3709 = vmatpush.bf16.msra.mxu0 0
        %3710 = vmatpush.bf16.msra.mxu0 0
        %3711 = vmatpush.bf16.msra.mxu0 0
        %3712 = vmatpush.bf16.msra.mxu0 0
        %3713 = vmatpush.bf16.msra.mxu0 0
        %3714 = vmatpush.bf16.msra.mxu0 %v3705
        %3715 = vmatmul.bf16.gmra.mxu0 %v3702
        %v3716 = vpop.f32.mrf.mxu0
        %v3717 = vadd.f32 0.0, %v3716
        %v3718 = vpop.f32.mrf.mxu0
        %3719 = vdwg.mxu0
        %v3720 = vpack.c.bf16 %v3717, %v3717
        %s3721 = scalar_lea.vmem %s9, 24
        %v3722 = vld [vmem:[%s3721] sm:$0xf]
        %v3724 = vsel %vm789, %v3720, 0
        %v3727 = vsel %vm826, %v3722, 0
        %3729 = vmatpush.bf16.msra.mxu0 0
        %3730 = vmatpush.bf16.msra.mxu0 0
        %3731 = vmatpush.bf16.msra.mxu0 0
        %3732 = vmatpush.bf16.msra.mxu0 0
        %3733 = vmatpush.bf16.msra.mxu0 0
        %3734 = vmatpush.bf16.msra.mxu0 0
        %3735 = vmatpush.bf16.msra.mxu0 0
        %3736 = vmatpush.bf16.msra.mxu0 %v3727
        %3737 = vmatmul.bf16.gmra.mxu0 %v3724
        %v3738 = vpop.f32.mrf.mxu0
        %v3739 = vadd.f32 0.0, %v3738
        %v3740 = vpop.f32.mrf.mxu0
        %3741 = vdwg.mxu0
        %v3742 = vadd.f32 %v3558, %v3739
        %s3743 = scalar_lea.vmem %s3, 112
        %v3744 = vld [vmem:[%s3743] sm:$0xf]
        %v3745 = vld [vmem:[%s3743 + $0x4] sm:$0xf]
        %v3746 = vld [vmem:[%s3743 + $0x8] sm:$0xf]
        %v3747 = vld [vmem:[%s3743 + $0xc] sm:$0xf]
        %s3748 = scalar_lea.vmem %s4, 7
        %v3749 = vld [vmem:[%s3748] sm:$0x1]
        %v3751 = vperm.slane %v3749, 0
        %v3757 = vunpack.c.l.b16 %v3744
        %v3758 = vunpack.c.l.b16 %v3745
        %v3759 = vunpack.c.l.b16 %v3746
        %v3760 = vunpack.c.l.b16 %v3747
        %v3761 = vpack.c.b16 %v3758, %v3757
        %v3762 = vpack.c.b16 %v3760, %v3759
        %3765 = vmatpush.bf16.msra.mxu0 0
        %3766 = vmatpush.bf16.msra.mxu0 0
        %3767 = vmatpush.bf16.msra.mxu0 0
        %3768 = vmatpush.bf16.msra.mxu0 0
        %3769 = vmatpush.bf16.msra.mxu0 0
        %3770 = vmatpush.bf16.msra.mxu0 0
        %3771 = vmatpush.bf16.msra.mxu0 %v3762
        %3772 = vmatpush.bf16.msra.mxu0 %v3761
        %3773 = vmatmul.bf16.gmra.mxu0 %v3219
        %v3774 = vpop.f32.mrf.mxu0
        %v3775 = vadd.f32 %v3751, %v3774
        %v3776 = vpop.f32.mrf.mxu0
        %3777 = vdwg.mxu0
        %s3778 = scalar_lea.vmem %s5, 112
        %v3779 = vld [vmem:[%s3778] sm:$0xf]
        %v3780 = vld [vmem:[%s3778 + $0x4] sm:$0xf]
        %v3781 = vld [vmem:[%s3778 + $0x8] sm:$0xf]
        %v3782 = vld [vmem:[%s3778 + $0xc] sm:$0xf]
        %s3783 = scalar_lea.vmem %s6, 7
        %v3784 = vld [vmem:[%s3783] sm:$0x1]
        %v3786 = vperm.slane %v3784, 0
        %v3792 = vunpack.c.l.b16 %v3779
        %v3793 = vunpack.c.l.b16 %v3780
        %v3794 = vunpack.c.l.b16 %v3781
        %v3795 = vunpack.c.l.b16 %v3782
        %v3796 = vpack.c.b16 %v3793, %v3792
        %v3797 = vpack.c.b16 %v3795, %v3794
        %3800 = vmatpush.bf16.msra.mxu0 0
        %3801 = vmatpush.bf16.msra.mxu0 0
        %3802 = vmatpush.bf16.msra.mxu0 0
        %3803 = vmatpush.bf16.msra.mxu0 0
        %3804 = vmatpush.bf16.msra.mxu0 0
        %3805 = vmatpush.bf16.msra.mxu0 0
        %3806 = vmatpush.bf16.msra.mxu0 %v3797
        %3807 = vmatpush.bf16.msra.mxu0 %v3796
        %3808 = vmatmul.bf16.gmra.mxu0 %v3219
        %v3809 = vpop.f32.mrf.mxu0
        %v3810 = vadd.f32 %v3786, %v3809
        %v3811 = vpop.f32.mrf.mxu0
        %3812 = vdwg.mxu0
        %s3813 = scalar_lea.vmem %s7, 112
        %v3814 = vld [vmem:[%s3813] sm:$0xf]
        %v3815 = vld [vmem:[%s3813 + $0x4] sm:$0xf]
        %v3816 = vld [vmem:[%s3813 + $0x8] sm:$0xf]
        %v3817 = vld [vmem:[%s3813 + $0xc] sm:$0xf]
        %s3818 = scalar_lea.vmem %s8, 7
        %v3819 = vld [vmem:[%s3818] sm:$0x1]
        %v3821 = vperm.slane %v3819, 0
        %v3827 = vunpack.c.l.b16 %v3814
        %v3828 = vunpack.c.l.b16 %v3815
        %v3829 = vunpack.c.l.b16 %v3816
        %v3830 = vunpack.c.l.b16 %v3817
        %v3831 = vpack.c.b16 %v3828, %v3827
        %v3832 = vpack.c.b16 %v3830, %v3829
        %3835 = vmatpush.bf16.msra.mxu0 0
        %3836 = vmatpush.bf16.msra.mxu0 0
        %3837 = vmatpush.bf16.msra.mxu0 0
        %3838 = vmatpush.bf16.msra.mxu0 0
        %3839 = vmatpush.bf16.msra.mxu0 0
        %3840 = vmatpush.bf16.msra.mxu0 0
        %3841 = vmatpush.bf16.msra.mxu0 %v3832
        %3842 = vmatpush.bf16.msra.mxu0 %v3831
        %3843 = vmatmul.bf16.gmra.mxu0 %v3219
        %v3844 = vpop.f32.mrf.mxu0
        %v3845 = vadd.f32 %v3821, %v3844
        %v3846 = vpop.f32.mrf.mxu0
        %3847 = vdwg.mxu0
        %v3848 = vpack.c.bf16 %v3775, %v3775
        %v3849 = vpack.c.bf16 %v3810, %v3810
        %v3851 = vsel %vm789, %v3848, 0
        %v3854 = vsel %vm789, %v3849, 0
        %3856 = vmatpush.bf16.xpose.msra.mxu0 0
        %3857 = vmatpush.bf16.xpose.msra.mxu0 0
        %3858 = vmatpush.bf16.xpose.msra.mxu0 0
        %3859 = vmatpush.bf16.xpose.msra.mxu0 0
        %3860 = vmatpush.bf16.xpose.msra.mxu0 0
        %3861 = vmatpush.bf16.xpose.msra.mxu0 0
        %3862 = vmatpush.bf16.xpose.msra.mxu0 0
        %3863 = vmatpush.bf16.xpose.msra.mxu0 %v3854
        %3864 = vmatmul.bf16.gmra.mxu0 %v3851
        %v3865 = vpop.f32.mrf.mxu0
        %v3866 = vadd.f32 0.0, %v3865
        %v3867 = vpop.f32.mrf.mxu0
        %3868 = vdwg.mxu0
        %v3869 = vmul.f32 %v3866, 0.35355338
        %v3870 = vsel %vm789, %v3869, -inf
        %3871 = vmax.xlane.f32.xlu0 %v3870
        %v3872 = vpop.xlane.xlu0 %3871
        %v3873 = vsub.f32 %v3869, %v3872
        %v3874 = vmul.f32 %v3873, 1.442695
        %v3875 = vpow.pop %v3874
        %v3876 = vsel %vm789, %v3875, 0.0
        %3877 = vadd.xlane.f32.xlu0 %v3876
        %v3878 = vpop.xlane.xlu0 %3877
        %v3879 = vrcp.pop %v3878
        %v3880 = vmul.f32 %v3875, %v3879
        %v3881 = vpack.c.bf16 %v3880, %v3880
        %v3882 = vpack.c.bf16 %v3845, %v3845
        %v3884 = vsel %vm789, %v3881, 0
        %v3887 = vsel %vm826, %v3882, 0
        %3889 = vmatpush.bf16.msra.mxu0 0
        %3890 = vmatpush.bf16.msra.mxu0 0
        %3891 = vmatpush.bf16.msra.mxu0 0
        %3892 = vmatpush.bf16.msra.mxu0 0
        %3893 = vmatpush.bf16.msra.mxu0 0
        %3894 = vmatpush.bf16.msra.mxu0 0
        %3895 = vmatpush.bf16.msra.mxu0 0
        %3896 = vmatpush.bf16.msra.mxu0 %v3887
        %3897 = vmatmul.bf16.gmra.mxu0 %v3884
        %v3898 = vpop.f32.mrf.mxu0
        %v3899 = vadd.f32 0.0, %v3898
        %v3900 = vpop.f32.mrf.mxu0
        %3901 = vdwg.mxu0
        %v3902 = vpack.c.bf16 %v3899, %v3899
        %s3903 = scalar_lea.vmem %s9, 28
        %v3904 = vld [vmem:[%s3903] sm:$0xf]
        %v3906 = vsel %vm789, %v3902, 0
        %v3909 = vsel %vm826, %v3904, 0
        %3911 = vmatpush.bf16.msra.mxu0 0
        %3912 = vmatpush.bf16.msra.mxu0 0
        %3913 = vmatpush.bf16.msra.mxu0 0
        %3914 = vmatpush.bf16.msra.mxu0 0
        %3915 = vmatpush.bf16.msra.mxu0 0
        %3916 = vmatpush.bf16.msra.mxu0 0
        %3917 = vmatpush.bf16.msra.mxu0 0
        %3918 = vmatpush.bf16.msra.mxu0 %v3909
        %3919 = vmatmul.bf16.gmra.mxu0 %v3906
        %v3920 = vpop.f32.mrf.mxu0
        %v3921 = vadd.f32 0.0, %v3920
        %v3922 = vpop.f32.mrf.mxu0
        %3923 = vdwg.mxu0
        %v3924 = vadd.f32 %v3742, %v3921
        %v3925 = vadd.f32 %v3194, %v3924
        %s3926 = scalar_lea.vmem %s10, 1
        %v3927 = vld [vmem:[%s3926] sm:$0x1]
        %v3929 = vperm.slane %v3927, 0
        %v3931 = vadd.f32 %v3925, %v3929
        %s3932 = scalar_lea.vmem %s11, 1
        %v3933 = vld [vmem:[%s3932] sm:$0x1]
        %s3934 = scalar_lea.vmem %s12, 1
        %v3935 = vld [vmem:[%s3934] sm:$0x1]
        %v3936 = vsel %vm704, %v3931, 0.0
        %3937 = vadd.xlane.f32.xlu0 %v3936
        %v3938 = vpop.xlane.xlu0 %3937
        %v3939 = vmul.f32 %v3938, %v1426
        %v3940 = vsub.f32 %v3931, %v3939
        %v3941 = vmul.f32 %v3940, %v3940
        %v3942 = vsel %vm704, %v3941, 0.0
        %3943 = vadd.xlane.f32.xlu0 %v3942
        %v3944 = vpop.xlane.xlu0 %3943
        %v3945 = vmul.f32 %v3944, %v1426
        %v3946 = vadd.f32 %v3945, 1e-05
        %v3947 = vrsqrt.pop %v3946
        %v3948 = vmul.f32 %v3947, %v3946
        %v3949 = vmul.f32 %v3948, %v3947
        %v3950 = vmul.f32 0.5, %v3949
        %v3951 = vsub.f32 1.5, %v3950
        %v3952 = vmul.f32 %v3947, %v3951
        %vm3953 = vweird.f32 %v3946
        %vm3954 = vweird.f32 %v3947
        %vm3955 = vmor %vm3953, %vm3954
        %v3956 = vsel %vm3955, %v3947, %v3952
        %v3957 = vmul.f32 %v3940, %v3956
        %v3959 = vperm.slane %v3933, 0
        %v3961 = vmul.f32 %v3957, %v3959
        %v3963 = vperm.slane %v3935, 0
        %v3965 = vadd.f32 %v3961, %v3963
        %v3966 = vpack.c.bf16 %v3965, %v3965
        %s3967 = scalar_lea.vmem %s13, 256
        %v3968 = vld [vmem:[%s3967] sm:$0xff]
        %v3969 = vld [vmem:[%s3967 + $0x8] sm:$0xff]
        %v3970 = vld [vmem:[%s3967 + $0x10] sm:$0xff]
        %v3971 = vld [vmem:[%s3967 + $0x18] sm:$0xff]
        %v3972 = vld [vmem:[%s3967 + $0x20] sm:$0xff]
        %v3973 = vld [vmem:[%s3967 + $0x28] sm:$0xff]
        %v3974 = vld [vmem:[%s3967 + $0x30] sm:$0xff]
        %v3975 = vld [vmem:[%s3967 + $0x38] sm:$0xff]
        %v3976 = vld [vmem:[%s3967 + $0x40] sm:$0xff]
        %v3977 = vld [vmem:[%s3967 + $0x48] sm:$0xff]
        %v3978 = vld [vmem:[%s3967 + $0x50] sm:$0xff]
        %v3979 = vld [vmem:[%s3967 + $0x58] sm:$0xff]
        %v3980 = vld [vmem:[%s3967 + $0x60] sm:$0xff]
        %v3981 = vld [vmem:[%s3967 + $0x68] sm:$0xff]
        %v3982 = vld [vmem:[%s3967 + $0x70] sm:$0xff]
        %v3983 = vld [vmem:[%s3967 + $0x78] sm:$0xff]
        %v3984 = vld [vmem:[%s3967 + $0x80] sm:$0xff]
        %v3985 = vld [vmem:[%s3967 + $0x88] sm:$0xff]
        %v3986 = vld [vmem:[%s3967 + $0x90] sm:$0xff]
        %v3987 = vld [vmem:[%s3967 + $0x98] sm:$0xff]
        %v3988 = vld [vmem:[%s3967 + $0xa0] sm:$0xff]
        %v3989 = vld [vmem:[%s3967 + $0xa8] sm:$0xff]
        %v3990 = vld [vmem:[%s3967 + $0xb0] sm:$0xff]
        %v3991 = vld [vmem:[%s3967 + $0xb8] sm:$0xff]
        %v3992 = vld [vmem:[%s3967 + $0xc0] sm:$0xff]
        %v3993 = vld [vmem:[%s3967 + $0xc8] sm:$0xff]
        %v3994 = vld [vmem:[%s3967 + $0xd0] sm:$0xff]
        %v3995 = vld [vmem:[%s3967 + $0xd8] sm:$0xff]
        %v3996 = vld [vmem:[%s3967 + $0xe0] sm:$0xff]
        %v3997 = vld [vmem:[%s3967 + $0xe8] sm:$0xff]
        %v3998 = vld [vmem:[%s3967 + $0xf0] sm:$0xff]
        %v3999 = vld [vmem:[%s3967 + $0xf8] sm:$0xff]
        %s4000 = scalar_lea.vmem %s14, 16
        %v4001 = vld [vmem:[%s4000] sm:$0xff]
        %v4002 = vld [vmem:[%s4000 + $0x8] sm:$0xff]
        %v4005 = vperm.slane %v4001, 0
        %v4006 = vperm.slane %v4001, 1
        %v4007 = vperm.slane %v4001, 2
        %v4008 = vperm.slane %v4001, 3
        %v4009 = vperm.slane %v4001, 4
        %v4010 = vperm.slane %v4001, 5
        %v4011 = vperm.slane %v4001, 6
        %v4012 = vperm.slane %v4001, 7
        %v4013 = vperm.slane %v4002, 0
        %v4014 = vperm.slane %v4002, 1
        %v4015 = vperm.slane %v4002, 2
        %v4016 = vperm.slane %v4002, 3
        %v4017 = vperm.slane %v4002, 4
        %v4018 = vperm.slane %v4002, 5
        %v4019 = vperm.slane %v4002, 6
        %v4020 = vperm.slane %v4002, 7
        %v4069 = vunpack.c.l.b16 %v3968
        %v4070 = vunpack.c.h.b16 %v3968
        %v4071 = vunpack.c.l.b16 %v3969
        %v4072 = vunpack.c.h.b16 %v3969
        %v4073 = vunpack.c.l.b16 %v3970
        %v4074 = vunpack.c.h.b16 %v3970
        %v4075 = vunpack.c.l.b16 %v3971
        %v4076 = vunpack.c.h.b16 %v3971
        %v4077 = vunpack.c.l.b16 %v3972
        %v4078 = vunpack.c.h.b16 %v3972
        %v4079 = vunpack.c.l.b16 %v3973
        %v4080 = vunpack.c.h.b16 %v3973
        %v4081 = vunpack.c.l.b16 %v3974
        %v4082 = vunpack.c.h.b16 %v3974
        %v4083 = vunpack.c.l.b16 %v3975
        %v4084 = vunpack.c.h.b16 %v3975
        %v4085 = vunpack.c.l.b16 %v3976
        %v4086 = vunpack.c.h.b16 %v3976
        %v4087 = vunpack.c.l.b16 %v3977
        %v4088 = vunpack.c.h.b16 %v3977
        %v4089 = vunpack.c.l.b16 %v3978
        %v4090 = vunpack.c.h.b16 %v3978
        %v4091 = vunpack.c.l.b16 %v3979
        %v4092 = vunpack.c.h.b16 %v3979
        %v4093 = vunpack.c.l.b16 %v3980
        %v4094 = vunpack.c.h.b16 %v3980
        %v4095 = vunpack.c.l.b16 %v3981
        %v4096 = vunpack.c.h.b16 %v3981
        %v4097 = vunpack.c.l.b16 %v3982
        %v4098 = vunpack.c.h.b16 %v3982
        %v4099 = vunpack.c.l.b16 %v3983
        %v4100 = vunpack.c.h.b16 %v3983
        %v4101 = vunpack.c.l.b16 %v3984
        %v4102 = vunpack.c.h.b16 %v3984
        %v4103 = vunpack.c.l.b16 %v3985
        %v4104 = vunpack.c.h.b16 %v3985
        %v4105 = vunpack.c.l.b16 %v3986
        %v4106 = vunpack.c.h.b16 %v3986
        %v4107 = vunpack.c.l.b16 %v3987
        %v4108 = vunpack.c.h.b16 %v3987
        %v4109 = vunpack.c.l.b16 %v3988
        %v4110 = vunpack.c.h.b16 %v3988
        %v4111 = vunpack.c.l.b16 %v3989
        %v4112 = vunpack.c.h.b16 %v3989
        %v4113 = vunpack.c.l.b16 %v3990
        %v4114 = vunpack.c.h.b16 %v3990
        %v4115 = vunpack.c.l.b16 %v3991
        %v4116 = vunpack.c.h.b16 %v3991
        %v4117 = vunpack.c.l.b16 %v3992
        %v4118 = vunpack.c.h.b16 %v3992
        %v4119 = vunpack.c.l.b16 %v3993
        %v4120 = vunpack.c.h.b16 %v3993
        %v4121 = vunpack.c.l.b16 %v3994
        %v4122 = vunpack.c.h.b16 %v3994
        %v4123 = vunpack.c.l.b16 %v3995
        %v4124 = vunpack.c.h.b16 %v3995
        %v4125 = vunpack.c.l.b16 %v3996
        %v4126 = vunpack.c.h.b16 %v3996
        %v4127 = vunpack.c.l.b16 %v3997
        %v4128 = vunpack.c.h.b16 %v3997
        %v4129 = vunpack.c.l.b16 %v3998
        %v4130 = vunpack.c.h.b16 %v3998
        %v4131 = vunpack.c.l.b16 %v3999
        %v4132 = vunpack.c.h.b16 %v3999
        %v4133 = vpack.c.b16 %v4085, %v4069
        %v4134 = vpack.c.b16 %v4086, %v4070
        %v4135 = vpack.c.b16 %v4087, %v4071
        %v4136 = vpack.c.b16 %v4088, %v4072
        %v4137 = vpack.c.b16 %v4089, %v4073
        %v4138 = vpack.c.b16 %v4090, %v4074
        %v4139 = vpack.c.b16 %v4091, %v4075
        %v4140 = vpack.c.b16 %v4092, %v4076
        %v4141 = vpack.c.b16 %v4093, %v4077
        %v4142 = vpack.c.b16 %v4094, %v4078
        %v4143 = vpack.c.b16 %v4095, %v4079
        %v4144 = vpack.c.b16 %v4096, %v4080
        %v4145 = vpack.c.b16 %v4097, %v4081
        %v4146 = vpack.c.b16 %v4098, %v4082
        %v4147 = vpack.c.b16 %v4099, %v4083
        %v4148 = vpack.c.b16 %v4100, %v4084
        %v4149 = vpack.c.b16 %v4117, %v4101
        %v4150 = vpack.c.b16 %v4118, %v4102
        %v4151 = vpack.c.b16 %v4119, %v4103
        %v4152 = vpack.c.b16 %v4120, %v4104
        %v4153 = vpack.c.b16 %v4121, %v4105
        %v4154 = vpack.c.b16 %v4122, %v4106
        %v4155 = vpack.c.b16 %v4123, %v4107
        %v4156 = vpack.c.b16 %v4124, %v4108
        %v4157 = vpack.c.b16 %v4125, %v4109
        %v4158 = vpack.c.b16 %v4126, %v4110
        %v4159 = vpack.c.b16 %v4127, %v4111
        %v4160 = vpack.c.b16 %v4128, %v4112
        %v4161 = vpack.c.b16 %v4129, %v4113
        %v4162 = vpack.c.b16 %v4130, %v4114
        %v4163 = vpack.c.b16 %v4131, %v4115
        %v4164 = vpack.c.b16 %v4132, %v4116
        %v4198 = vsel %vm704, %v3966, 0
        %4200 = vmatpush.bf16.msra.mxu0 0
        %4201 = vmatpush.bf16.msra.mxu0 0
        %4202 = vmatpush.bf16.msra.mxu0 0
        %4203 = vmatpush.bf16.msra.mxu0 0
        %4204 = vmatpush.bf16.msra.mxu0 0
        %4205 = vmatpush.bf16.msra.mxu0 0
        %4206 = vmatpush.bf16.msra.mxu0 %v4149
        %4207 = vmatpush.bf16.msra.mxu0 %v4133
        %4208 = vmatmul.bf16.gmra.mxu0 %v4198
        %v4209 = vpop.f32.mrf.mxu0
        %v4210 = vadd.f32 %v4005, %v4209
        %v4211 = vpop.f32.mrf.mxu0
        %4212 = vdwg.mxu0
        %4213 = vmatpush.bf16.msra.mxu0 0
        %4214 = vmatpush.bf16.msra.mxu0 0
        %4215 = vmatpush.bf16.msra.mxu0 0
        %4216 = vmatpush.bf16.msra.mxu0 0
        %4217 = vmatpush.bf16.msra.mxu0 0
        %4218 = vmatpush.bf16.msra.mxu0 0
        %4219 = vmatpush.bf16.msra.mxu0 %v4150
        %4220 = vmatpush.bf16.msra.mxu0 %v4134
        %4221 = vmatmul.bf16.gmra.mxu0 %v4198
        %v4222 = vpop.f32.mrf.mxu0
        %v4223 = vadd.f32 %v4006, %v4222
        %v4224 = vpop.f32.mrf.mxu0
        %4225 = vdwg.mxu0
        %4226 = vmatpush.bf16.msra.mxu0 0
        %4227 = vmatpush.bf16.msra.mxu0 0
        %4228 = vmatpush.bf16.msra.mxu0 0
        %4229 = vmatpush.bf16.msra.mxu0 0
        %4230 = vmatpush.bf16.msra.mxu0 0
        %4231 = vmatpush.bf16.msra.mxu0 0
        %4232 = vmatpush.bf16.msra.mxu0 %v4151
        %4233 = vmatpush.bf16.msra.mxu0 %v4135
        %4234 = vmatmul.bf16.gmra.mxu0 %v4198
        %v4235 = vpop.f32.mrf.mxu0
        %v4236 = vadd.f32 %v4007, %v4235
        %v4237 = vpop.f32.mrf.mxu0
        %4238 = vdwg.mxu0
        %4239 = vmatpush.bf16.msra.mxu0 0
        %4240 = vmatpush.bf16.msra.mxu0 0
        %4241 = vmatpush.bf16.msra.mxu0 0
        %4242 = vmatpush.bf16.msra.mxu0 0
        %4243 = vmatpush.bf16.msra.mxu0 0
        %4244 = vmatpush.bf16.msra.mxu0 0
        %4245 = vmatpush.bf16.msra.mxu0 %v4152
        %4246 = vmatpush.bf16.msra.mxu0 %v4136
        %4247 = vmatmul.bf16.gmra.mxu0 %v4198
        %v4248 = vpop.f32.mrf.mxu0
        %v4249 = vadd.f32 %v4008, %v4248
        %v4250 = vpop.f32.mrf.mxu0
        %4251 = vdwg.mxu0
        %4252 = vmatpush.bf16.msra.mxu0 0
        %4253 = vmatpush.bf16.msra.mxu0 0
        %4254 = vmatpush.bf16.msra.mxu0 0
        %4255 = vmatpush.bf16.msra.mxu0 0
        %4256 = vmatpush.bf16.msra.mxu0 0
        %4257 = vmatpush.bf16.msra.mxu0 0
        %4258 = vmatpush.bf16.msra.mxu0 %v4153
        %4259 = vmatpush.bf16.msra.mxu0 %v4137
        %4260 = vmatmul.bf16.gmra.mxu0 %v4198
        %v4261 = vpop.f32.mrf.mxu0
        %v4262 = vadd.f32 %v4009, %v4261
        %v4263 = vpop.f32.mrf.mxu0
        %4264 = vdwg.mxu0
        %4265 = vmatpush.bf16.msra.mxu0 0
        %4266 = vmatpush.bf16.msra.mxu0 0
        %4267 = vmatpush.bf16.msra.mxu0 0
        %4268 = vmatpush.bf16.msra.mxu0 0
        %4269 = vmatpush.bf16.msra.mxu0 0
        %4270 = vmatpush.bf16.msra.mxu0 0
        %4271 = vmatpush.bf16.msra.mxu0 %v4154
        %4272 = vmatpush.bf16.msra.mxu0 %v4138
        %4273 = vmatmul.bf16.gmra.mxu0 %v4198
        %v4274 = vpop.f32.mrf.mxu0
        %v4275 = vadd.f32 %v4010, %v4274
        %v4276 = vpop.f32.mrf.mxu0
        %4277 = vdwg.mxu0
        %4278 = vmatpush.bf16.msra.mxu0 0
        %4279 = vmatpush.bf16.msra.mxu0 0
        %4280 = vmatpush.bf16.msra.mxu0 0
        %4281 = vmatpush.bf16.msra.mxu0 0
        %4282 = vmatpush.bf16.msra.mxu0 0
        %4283 = vmatpush.bf16.msra.mxu0 0
        %4284 = vmatpush.bf16.msra.mxu0 %v4155
        %4285 = vmatpush.bf16.msra.mxu0 %v4139
        %4286 = vmatmul.bf16.gmra.mxu0 %v4198
        %v4287 = vpop.f32.mrf.mxu0
        %v4288 = vadd.f32 %v4011, %v4287
        %v4289 = vpop.f32.mrf.mxu0
        %4290 = vdwg.mxu0
        %4291 = vmatpush.bf16.msra.mxu0 0
        %4292 = vmatpush.bf16.msra.mxu0 0
        %4293 = vmatpush.bf16.msra.mxu0 0
        %4294 = vmatpush.bf16.msra.mxu0 0
        %4295 = vmatpush.bf16.msra.mxu0 0
        %4296 = vmatpush.bf16.msra.mxu0 0
        %4297 = vmatpush.bf16.msra.mxu0 %v4156
        %4298 = vmatpush.bf16.msra.mxu0 %v4140
        %4299 = vmatmul.bf16.gmra.mxu0 %v4198
        %v4300 = vpop.f32.mrf.mxu0
        %v4301 = vadd.f32 %v4012, %v4300
        %v4302 = vpop.f32.mrf.mxu0
        %4303 = vdwg.mxu0
        %4304 = vmatpush.bf16.msra.mxu0 0
        %4305 = vmatpush.bf16.msra.mxu0 0
        %4306 = vmatpush.bf16.msra.mxu0 0
        %4307 = vmatpush.bf16.msra.mxu0 0
        %4308 = vmatpush.bf16.msra.mxu0 0
        %4309 = vmatpush.bf16.msra.mxu0 0
        %4310 = vmatpush.bf16.msra.mxu0 %v4157
        %4311 = vmatpush.bf16.msra.mxu0 %v4141
        %4312 = vmatmul.bf16.gmra.mxu0 %v4198
        %v4313 = vpop.f32.mrf.mxu0
        %v4314 = vadd.f32 %v4013, %v4313
        %v4315 = vpop.f32.mrf.mxu0
        %4316 = vdwg.mxu0
        %4317 = vmatpush.bf16.msra.mxu0 0
        %4318 = vmatpush.bf16.msra.mxu0 0
        %4319 = vmatpush.bf16.msra.mxu0 0
        %4320 = vmatpush.bf16.msra.mxu0 0
        %4321 = vmatpush.bf16.msra.mxu0 0
        %4322 = vmatpush.bf16.msra.mxu0 0
        %4323 = vmatpush.bf16.msra.mxu0 %v4158
        %4324 = vmatpush.bf16.msra.mxu0 %v4142
        %4325 = vmatmul.bf16.gmra.mxu0 %v4198
        %v4326 = vpop.f32.mrf.mxu0
        %v4327 = vadd.f32 %v4014, %v4326
        %v4328 = vpop.f32.mrf.mxu0
        %4329 = vdwg.mxu0
        %4330 = vmatpush.bf16.msra.mxu0 0
        %4331 = vmatpush.bf16.msra.mxu0 0
        %4332 = vmatpush.bf16.msra.mxu0 0
        %4333 = vmatpush.bf16.msra.mxu0 0
        %4334 = vmatpush.bf16.msra.mxu0 0
        %4335 = vmatpush.bf16.msra.mxu0 0
        %4336 = vmatpush.bf16.msra.mxu0 %v4159
        %4337 = vmatpush.bf16.msra.mxu0 %v4143
        %4338 = vmatmul.bf16.gmra.mxu0 %v4198
        %v4339 = vpop.f32.mrf.mxu0
        %v4340 = vadd.f32 %v4015, %v4339
        %v4341 = vpop.f32.mrf.mxu0
        %4342 = vdwg.mxu0
        %4343 = vmatpush.bf16.msra.mxu0 0
        %4344 = vmatpush.bf16.msra.mxu0 0
        %4345 = vmatpush.bf16.msra.mxu0 0
        %4346 = vmatpush.bf16.msra.mxu0 0
        %4347 = vmatpush.bf16.msra.mxu0 0
        %4348 = vmatpush.bf16.msra.mxu0 0
        %4349 = vmatpush.bf16.msra.mxu0 %v4160
        %4350 = vmatpush.bf16.msra.mxu0 %v4144
        %4351 = vmatmul.bf16.gmra.mxu0 %v4198
        %v4352 = vpop.f32.mrf.mxu0
        %v4353 = vadd.f32 %v4016, %v4352
        %v4354 = vpop.f32.mrf.mxu0
        %4355 = vdwg.mxu0
        %4356 = vmatpush.bf16.msra.mxu0 0
        %4357 = vmatpush.bf16.msra.mxu0 0
        %4358 = vmatpush.bf16.msra.mxu0 0
        %4359 = vmatpush.bf16.msra.mxu0 0
        %4360 = vmatpush.bf16.msra.mxu0 0
        %4361 = vmatpush.bf16.msra.mxu0 0
        %4362 = vmatpush.bf16.msra.mxu0 %v4161
        %4363 = vmatpush.bf16.msra.mxu0 %v4145
        %4364 = vmatmul.bf16.gmra.mxu0 %v4198
        %v4365 = vpop.f32.mrf.mxu0
        %v4366 = vadd.f32 %v4017, %v4365
        %v4367 = vpop.f32.mrf.mxu0
        %4368 = vdwg.mxu0
        %4369 = vmatpush.bf16.msra.mxu0 0
        %4370 = vmatpush.bf16.msra.mxu0 0
        %4371 = vmatpush.bf16.msra.mxu0 0
        %4372 = vmatpush.bf16.msra.mxu0 0
        %4373 = vmatpush.bf16.msra.mxu0 0
        %4374 = vmatpush.bf16.msra.mxu0 0
        %4375 = vmatpush.bf16.msra.mxu0 %v4162
        %4376 = vmatpush.bf16.msra.mxu0 %v4146
        %4377 = vmatmul.bf16.gmra.mxu0 %v4198
        %v4378 = vpop.f32.mrf.mxu0
        %v4379 = vadd.f32 %v4018, %v4378
        %v4380 = vpop.f32.mrf.mxu0
        %4381 = vdwg.mxu0
        %4382 = vmatpush.bf16.msra.mxu0 0
        %4383 = vmatpush.bf16.msra.mxu0 0
        %4384 = vmatpush.bf16.msra.mxu0 0
        %4385 = vmatpush.bf16.msra.mxu0 0
        %4386 = vmatpush.bf16.msra.mxu0 0
        %4387 = vmatpush.bf16.msra.mxu0 0
        %4388 = vmatpush.bf16.msra.mxu0 %v4163
        %4389 = vmatpush.bf16.msra.mxu0 %v4147
        %4390 = vmatmul.bf16.gmra.mxu0 %v4198
        %v4391 = vpop.f32.mrf.mxu0
        %v4392 = vadd.f32 %v4019, %v4391
        %v4393 = vpop.f32.mrf.mxu0
        %4394 = vdwg.mxu0
        %4395 = vmatpush.bf16.msra.mxu0 0
        %4396 = vmatpush.bf16.msra.mxu0 0
        %4397 = vmatpush.bf16.msra.mxu0 0
        %4398 = vmatpush.bf16.msra.mxu0 0
        %4399 = vmatpush.bf16.msra.mxu0 0
        %4400 = vmatpush.bf16.msra.mxu0 0
        %4401 = vmatpush.bf16.msra.mxu0 %v4164
        %4402 = vmatpush.bf16.msra.mxu0 %v4148
        %4403 = vmatmul.bf16.gmra.mxu0 %v4198
        %v4404 = vpop.f32.mrf.mxu0
        %v4405 = vadd.f32 %v4020, %v4404
        %v4406 = vpop.f32.mrf.mxu0
        %4407 = vdwg.mxu0
        %v4408 = vmax.f32 %v4210, 0.0
        %v4409 = vmax.f32 %v4223, 0.0
        %v4410 = vmax.f32 %v4236, 0.0
        %v4411 = vmax.f32 %v4249, 0.0
        %v4412 = vmax.f32 %v4262, 0.0
        %v4413 = vmax.f32 %v4275, 0.0
        %v4414 = vmax.f32 %v4288, 0.0
        %v4415 = vmax.f32 %v4301, 0.0
        %v4416 = vmax.f32 %v4314, 0.0
        %v4417 = vmax.f32 %v4327, 0.0
        %v4418 = vmax.f32 %v4340, 0.0
        %v4419 = vmax.f32 %v4353, 0.0
        %v4420 = vmax.f32 %v4366, 0.0
        %v4421 = vmax.f32 %v4379, 0.0
        %v4422 = vmax.f32 %v4392, 0.0
        %v4423 = vmax.f32 %v4405, 0.0
        %v4424 = vpack.c.bf16 %v4408, %v4408
        %v4425 = vpack.c.bf16 %v4409, %v4409
        %v4426 = vpack.c.bf16 %v4410, %v4410
        %v4427 = vpack.c.bf16 %v4411, %v4411
        %v4428 = vpack.c.bf16 %v4412, %v4412
        %v4429 = vpack.c.bf16 %v4413, %v4413
        %v4430 = vpack.c.bf16 %v4414, %v4414
        %v4431 = vpack.c.bf16 %v4415, %v4415
        %v4432 = vpack.c.bf16 %v4416, %v4416
        %v4433 = vpack.c.bf16 %v4417, %v4417
        %v4434 = vpack.c.bf16 %v4418, %v4418
        %v4435 = vpack.c.bf16 %v4419, %v4419
        %v4436 = vpack.c.bf16 %v4420, %v4420
        %v4437 = vpack.c.bf16 %v4421, %v4421
        %v4438 = vpack.c.bf16 %v4422, %v4422
        %v4439 = vpack.c.bf16 %v4423, %v4423
        %s4440 = scalar_lea.vmem %s15, 1024
        %v4441 = vld [vmem:[%s4440] sm:$0xf]
        %v4442 = vld [vmem:[%s4440 + $0x4] sm:$0xf]
        %v4443 = vld [vmem:[%s4440 + $0x8] sm:$0xf]
        %v4444 = vld [vmem:[%s4440 + $0xc] sm:$0xf]
        %v4445 = vld [vmem:[%s4440 + $0x10] sm:$0xf]
        %v4446 = vld [vmem:[%s4440 + $0x14] sm:$0xf]
        %v4447 = vld [vmem:[%s4440 + $0x18] sm:$0xf]
        %v4448 = vld [vmem:[%s4440 + $0x1c] sm:$0xf]
        %v4449 = vld [vmem:[%s4440 + $0x20] sm:$0xf]
        %v4450 = vld [vmem:[%s4440 + $0x24] sm:$0xf]
        %v4451 = vld [vmem:[%s4440 + $0x28] sm:$0xf]
        %v4452 = vld [vmem:[%s4440 + $0x2c] sm:$0xf]
        %v4453 = vld [vmem:[%s4440 + $0x30] sm:$0xf]
        %v4454 = vld [vmem:[%s4440 + $0x34] sm:$0xf]
        %v4455 = vld [vmem:[%s4440 + $0x38] sm:$0xf]
        %v4456 = vld [vmem:[%s4440 + $0x3c] sm:$0xf]
        %v4457 = vld [vmem:[%s4440 + $0x40] sm:$0xf]
        %v4458 = vld [vmem:[%s4440 + $0x44] sm:$0xf]
        %v4459 = vld [vmem:[%s4440 + $0x48] sm:$0xf]
        %v4460 = vld [vmem:[%s4440 + $0x4c] sm:$0xf]
        %v4461 = vld [vmem:[%s4440 + $0x50] sm:$0xf]
        %v4462 = vld [vmem:[%s4440 + $0x54] sm:$0xf]
        %v4463 = vld [vmem:[%s4440 + $0x58] sm:$0xf]
        %v4464 = vld [vmem:[%s4440 + $0x5c] sm:$0xf]
        %v4465 = vld [vmem:[%s4440 + $0x60] sm:$0xf]
        %v4466 = vld [vmem:[%s4440 + $0x64] sm:$0xf]
        %v4467 = vld [vmem:[%s4440 + $0x68] sm:$0xf]
        %v4468 = vld [vmem:[%s4440 + $0x6c] sm:$0xf]
        %v4469 = vld [vmem:[%s4440 + $0x70] sm:$0xf]
        %v4470 = vld [vmem:[%s4440 + $0x74] sm:$0xf]
        %v4471 = vld [vmem:[%s4440 + $0x78] sm:$0xf]
        %v4472 = vld [vmem:[%s4440 + $0x7c] sm:$0xf]
        %v4473 = vld [vmem:[%s4440 + $0x80] sm:$0xf]
        %v4474 = vld [vmem:[%s4440 + $0x84] sm:$0xf]
        %v4475 = vld [vmem:[%s4440 + $0x88] sm:$0xf]
        %v4476 = vld [vmem:[%s4440 + $0x8c] sm:$0xf]
        %v4477 = vld [vmem:[%s4440 + $0x90] sm:$0xf]
        %v4478 = vld [vmem:[%s4440 + $0x94] sm:$0xf]
        %v4479 = vld [vmem:[%s4440 + $0x98] sm:$0xf]
        %v4480 = vld [vmem:[%s4440 + $0x9c] sm:$0xf]
        %v4481 = vld [vmem:[%s4440 + $0xa0] sm:$0xf]
        %v4482 = vld [vmem:[%s4440 + $0xa4] sm:$0xf]
        %v4483 = vld [vmem:[%s4440 + $0xa8] sm:$0xf]
        %v4484 = vld [vmem:[%s4440 + $0xac] sm:$0xf]
        %v4485 = vld [vmem:[%s4440 + $0xb0] sm:$0xf]
        %v4486 = vld [vmem:[%s4440 + $0xb4] sm:$0xf]
        %v4487 = vld [vmem:[%s4440 + $0xb8] sm:$0xf]
        %v4488 = vld [vmem:[%s4440 + $0xbc] sm:$0xf]
        %v4489 = vld [vmem:[%s4440 + $0xc0] sm:$0xf]
        %v4490 = vld [vmem:[%s4440 + $0xc4] sm:$0xf]
        %v4491 = vld [vmem:[%s4440 + $0xc8] sm:$0xf]
        %v4492 = vld [vmem:[%s4440 + $0xcc] sm:$0xf]
        %v4493 = vld [vmem:[%s4440 + $0xd0] sm:$0xf]
        %v4494 = vld [vmem:[%s4440 + $0xd4] sm:$0xf]
        %v4495 = vld [vmem:[%s4440 + $0xd8] sm:$0xf]
        %v4496 = vld [vmem:[%s4440 + $0xdc] sm:$0xf]
        %v4497 = vld [vmem:[%s4440 + $0xe0] sm:$0xf]
        %v4498 = vld [vmem:[%s4440 + $0xe4] sm:$0xf]
        %v4499 = vld [vmem:[%s4440 + $0xe8] sm:$0xf]
        %v4500 = vld [vmem:[%s4440 + $0xec] sm:$0xf]
        %v4501 = vld [vmem:[%s4440 + $0xf0] sm:$0xf]
        %v4502 = vld [vmem:[%s4440 + $0xf4] sm:$0xf]
        %v4503 = vld [vmem:[%s4440 + $0xf8] sm:$0xf]
        %v4504 = vld [vmem:[%s4440 + $0xfc] sm:$0xf]
        %v4505 = vld [vmem:[%s4440 + $0x100] sm:$0xf]
        %v4506 = vld [vmem:[%s4440 + $0x104] sm:$0xf]
        %v4507 = vld [vmem:[%s4440 + $0x108] sm:$0xf]
        %v4508 = vld [vmem:[%s4440 + $0x10c] sm:$0xf]
        %v4509 = vld [vmem:[%s4440 + $0x110] sm:$0xf]
        %v4510 = vld [vmem:[%s4440 + $0x114] sm:$0xf]
        %v4511 = vld [vmem:[%s4440 + $0x118] sm:$0xf]
        %v4512 = vld [vmem:[%s4440 + $0x11c] sm:$0xf]
        %v4513 = vld [vmem:[%s4440 + $0x120] sm:$0xf]
        %v4514 = vld [vmem:[%s4440 + $0x124] sm:$0xf]
        %v4515 = vld [vmem:[%s4440 + $0x128] sm:$0xf]
        %v4516 = vld [vmem:[%s4440 + $0x12c] sm:$0xf]
        %v4517 = vld [vmem:[%s4440 + $0x130] sm:$0xf]
        %v4518 = vld [vmem:[%s4440 + $0x134] sm:$0xf]
        %v4519 = vld [vmem:[%s4440 + $0x138] sm:$0xf]
        %v4520 = vld [vmem:[%s4440 + $0x13c] sm:$0xf]
        %v4521 = vld [vmem:[%s4440 + $0x140] sm:$0xf]
        %v4522 = vld [vmem:[%s4440 + $0x144] sm:$0xf]
        %v4523 = vld [vmem:[%s4440 + $0x148] sm:$0xf]
        %v4524 = vld [vmem:[%s4440 + $0x14c] sm:$0xf]
        %v4525 = vld [vmem:[%s4440 + $0x150] sm:$0xf]
        %v4526 = vld [vmem:[%s4440 + $0x154] sm:$0xf]
        %v4527 = vld [vmem:[%s4440 + $0x158] sm:$0xf]
        %v4528 = vld [vmem:[%s4440 + $0x15c] sm:$0xf]
        %v4529 = vld [vmem:[%s4440 + $0x160] sm:$0xf]
        %v4530 = vld [vmem:[%s4440 + $0x164] sm:$0xf]
        %v4531 = vld [vmem:[%s4440 + $0x168] sm:$0xf]
        %v4532 = vld [vmem:[%s4440 + $0x16c] sm:$0xf]
        %v4533 = vld [vmem:[%s4440 + $0x170] sm:$0xf]
        %v4534 = vld [vmem:[%s4440 + $0x174] sm:$0xf]
        %v4535 = vld [vmem:[%s4440 + $0x178] sm:$0xf]
        %v4536 = vld [vmem:[%s4440 + $0x17c] sm:$0xf]
        %v4537 = vld [vmem:[%s4440 + $0x180] sm:$0xf]
        %v4538 = vld [vmem:[%s4440 + $0x184] sm:$0xf]
        %v4539 = vld [vmem:[%s4440 + $0x188] sm:$0xf]
        %v4540 = vld [vmem:[%s4440 + $0x18c] sm:$0xf]
        %v4541 = vld [vmem:[%s4440 + $0x190] sm:$0xf]
        %v4542 = vld [vmem:[%s4440 + $0x194] sm:$0xf]
        %v4543 = vld [vmem:[%s4440 + $0x198] sm:$0xf]
        %v4544 = vld [vmem:[%s4440 + $0x19c] sm:$0xf]
        %v4545 = vld [vmem:[%s4440 + $0x1a0] sm:$0xf]
        %v4546 = vld [vmem:[%s4440 + $0x1a4] sm:$0xf]
        %v4547 = vld [vmem:[%s4440 + $0x1a8] sm:$0xf]
        %v4548 = vld [vmem:[%s4440 + $0x1ac] sm:$0xf]
        %v4549 = vld [vmem:[%s4440 + $0x1b0] sm:$0xf]
        %v4550 = vld [vmem:[%s4440 + $0x1b4] sm:$0xf]
        %v4551 = vld [vmem:[%s4440 + $0x1b8] sm:$0xf]
        %v4552 = vld [vmem:[%s4440 + $0x1bc] sm:$0xf]
        %v4553 = vld [vmem:[%s4440 + $0x1c0] sm:$0xf]
        %v4554 = vld [vmem:[%s4440 + $0x1c4] sm:$0xf]
        %v4555 = vld [vmem:[%s4440 + $0x1c8] sm:$0xf]
        %v4556 = vld [vmem:[%s4440 + $0x1cc] sm:$0xf]
        %v4557 = vld [vmem:[%s4440 + $0x1d0] sm:$0xf]
        %v4558 = vld [vmem:[%s4440 + $0x1d4] sm:$0xf]
        %v4559 = vld [vmem:[%s4440 + $0x1d8] sm:$0xf]
        %v4560 = vld [vmem:[%s4440 + $0x1dc] sm:$0xf]
        %v4561 = vld [vmem:[%s4440 + $0x1e0] sm:$0xf]
        %v4562 = vld [vmem:[%s4440 + $0x1e4] sm:$0xf]
        %v4563 = vld [vmem:[%s4440 + $0x1e8] sm:$0xf]
        %v4564 = vld [vmem:[%s4440 + $0x1ec] sm:$0xf]
        %v4565 = vld [vmem:[%s4440 + $0x1f0] sm:$0xf]
        %v4566 = vld [vmem:[%s4440 + $0x1f4] sm:$0xf]
        %v4567 = vld [vmem:[%s4440 + $0x1f8] sm:$0xf]
        %v4568 = vld [vmem:[%s4440 + $0x1fc] sm:$0xf]
        %v4569 = vld [vmem:[%s4440 + $0x200] sm:$0xf]
        %v4570 = vld [vmem:[%s4440 + $0x204] sm:$0xf]
        %v4571 = vld [vmem:[%s4440 + $0x208] sm:$0xf]
        %v4572 = vld [vmem:[%s4440 + $0x20c] sm:$0xf]
        %v4573 = vld [vmem:[%s4440 + $0x210] sm:$0xf]
        %v4574 = vld [vmem:[%s4440 + $0x214] sm:$0xf]
        %v4575 = vld [vmem:[%s4440 + $0x218] sm:$0xf]
        %v4576 = vld [vmem:[%s4440 + $0x21c] sm:$0xf]
        %v4577 = vld [vmem:[%s4440 + $0x220] sm:$0xf]
        %v4578 = vld [vmem:[%s4440 + $0x224] sm:$0xf]
        %v4579 = vld [vmem:[%s4440 + $0x228] sm:$0xf]
        %v4580 = vld [vmem:[%s4440 + $0x22c] sm:$0xf]
        %v4581 = vld [vmem:[%s4440 + $0x230] sm:$0xf]
        %v4582 = vld [vmem:[%s4440 + $0x234] sm:$0xf]
        %v4583 = vld [vmem:[%s4440 + $0x238] sm:$0xf]
        %v4584 = vld [vmem:[%s4440 + $0x23c] sm:$0xf]
        %v4585 = vld [vmem:[%s4440 + $0x240] sm:$0xf]
        %v4586 = vld [vmem:[%s4440 + $0x244] sm:$0xf]
        %v4587 = vld [vmem:[%s4440 + $0x248] sm:$0xf]
        %v4588 = vld [vmem:[%s4440 + $0x24c] sm:$0xf]
        %v4589 = vld [vmem:[%s4440 + $0x250] sm:$0xf]
        %v4590 = vld [vmem:[%s4440 + $0x254] sm:$0xf]
        %v4591 = vld [vmem:[%s4440 + $0x258] sm:$0xf]
        %v4592 = vld [vmem:[%s4440 + $0x25c] sm:$0xf]
        %v4593 = vld [vmem:[%s4440 + $0x260] sm:$0xf]
        %v4594 = vld [vmem:[%s4440 + $0x264] sm:$0xf]
        %v4595 = vld [vmem:[%s4440 + $0x268] sm:$0xf]
        %v4596 = vld [vmem:[%s4440 + $0x26c] sm:$0xf]
        %v4597 = vld [vmem:[%s4440 + $0x270] sm:$0xf]
        %v4598 = vld [vmem:[%s4440 + $0x274] sm:$0xf]
        %v4599 = vld [vmem:[%s4440 + $0x278] sm:$0xf]
        %v4600 = vld [vmem:[%s4440 + $0x27c] sm:$0xf]
        %v4601 = vld [vmem:[%s4440 + $0x280] sm:$0xf]
        %v4602 = vld [vmem:[%s4440 + $0x284] sm:$0xf]
        %v4603 = vld [vmem:[%s4440 + $0x288] sm:$0xf]
        %v4604 = vld [vmem:[%s4440 + $0x28c] sm:$0xf]
        %v4605 = vld [vmem:[%s4440 + $0x290] sm:$0xf]
        %v4606 = vld [vmem:[%s4440 + $0x294] sm:$0xf]
        %v4607 = vld [vmem:[%s4440 + $0x298] sm:$0xf]
        %v4608 = vld [vmem:[%s4440 + $0x29c] sm:$0xf]
        %v4609 = vld [vmem:[%s4440 + $0x2a0] sm:$0xf]
        %v4610 = vld [vmem:[%s4440 + $0x2a4] sm:$0xf]
        %v4611 = vld [vmem:[%s4440 + $0x2a8] sm:$0xf]
        %v4612 = vld [vmem:[%s4440 + $0x2ac] sm:$0xf]
        %v4613 = vld [vmem:[%s4440 + $0x2b0] sm:$0xf]
        %v4614 = vld [vmem:[%s4440 + $0x2b4] sm:$0xf]
        %v4615 = vld [vmem:[%s4440 + $0x2b8] sm:$0xf]
        %v4616 = vld [vmem:[%s4440 + $0x2bc] sm:$0xf]
        %v4617 = vld [vmem:[%s4440 + $0x2c0] sm:$0xf]
        %v4618 = vld [vmem:[%s4440 + $0x2c4] sm:$0xf]
        %v4619 = vld [vmem:[%s4440 + $0x2c8] sm:$0xf]
        %v4620 = vld [vmem:[%s4440 + $0x2cc] sm:$0xf]
        %v4621 = vld [vmem:[%s4440 + $0x2d0] sm:$0xf]
        %v4622 = vld [vmem:[%s4440 + $0x2d4] sm:$0xf]
        %v4623 = vld [vmem:[%s4440 + $0x2d8] sm:$0xf]
        %v4624 = vld [vmem:[%s4440 + $0x2dc] sm:$0xf]
        %v4625 = vld [vmem:[%s4440 + $0x2e0] sm:$0xf]
        %v4626 = vld [vmem:[%s4440 + $0x2e4] sm:$0xf]
        %v4627 = vld [vmem:[%s4440 + $0x2e8] sm:$0xf]
        %v4628 = vld [vmem:[%s4440 + $0x2ec] sm:$0xf]
        %v4629 = vld [vmem:[%s4440 + $0x2f0] sm:$0xf]
        %v4630 = vld [vmem:[%s4440 + $0x2f4] sm:$0xf]
        %v4631 = vld [vmem:[%s4440 + $0x2f8] sm:$0xf]
        %v4632 = vld [vmem:[%s4440 + $0x2fc] sm:$0xf]
        %v4633 = vld [vmem:[%s4440 + $0x300] sm:$0xf]
        %v4634 = vld [vmem:[%s4440 + $0x304] sm:$0xf]
        %v4635 = vld [vmem:[%s4440 + $0x308] sm:$0xf]
        %v4636 = vld [vmem:[%s4440 + $0x30c] sm:$0xf]
        %v4637 = vld [vmem:[%s4440 + $0x310] sm:$0xf]
        %v4638 = vld [vmem:[%s4440 + $0x314] sm:$0xf]
        %v4639 = vld [vmem:[%s4440 + $0x318] sm:$0xf]
        %v4640 = vld [vmem:[%s4440 + $0x31c] sm:$0xf]
        %v4641 = vld [vmem:[%s4440 + $0x320] sm:$0xf]
        %v4642 = vld [vmem:[%s4440 + $0x324] sm:$0xf]
        %v4643 = vld [vmem:[%s4440 + $0x328] sm:$0xf]
        %v4644 = vld [vmem:[%s4440 + $0x32c] sm:$0xf]
        %v4645 = vld [vmem:[%s4440 + $0x330] sm:$0xf]
        %v4646 = vld [vmem:[%s4440 + $0x334] sm:$0xf]
        %v4647 = vld [vmem:[%s4440 + $0x338] sm:$0xf]
        %v4648 = vld [vmem:[%s4440 + $0x33c] sm:$0xf]
        %v4649 = vld [vmem:[%s4440 + $0x340] sm:$0xf]
        %v4650 = vld [vmem:[%s4440 + $0x344] sm:$0xf]
        %v4651 = vld [vmem:[%s4440 + $0x348] sm:$0xf]
        %v4652 = vld [vmem:[%s4440 + $0x34c] sm:$0xf]
        %v4653 = vld [vmem:[%s4440 + $0x350] sm:$0xf]
        %v4654 = vld [vmem:[%s4440 + $0x354] sm:$0xf]
        %v4655 = vld [vmem:[%s4440 + $0x358] sm:$0xf]
        %v4656 = vld [vmem:[%s4440 + $0x35c] sm:$0xf]
        %v4657 = vld [vmem:[%s4440 + $0x360] sm:$0xf]
        %v4658 = vld [vmem:[%s4440 + $0x364] sm:$0xf]
        %v4659 = vld [vmem:[%s4440 + $0x368] sm:$0xf]
        %v4660 = vld [vmem:[%s4440 + $0x36c] sm:$0xf]
        %v4661 = vld [vmem:[%s4440 + $0x370] sm:$0xf]
        %v4662 = vld [vmem:[%s4440 + $0x374] sm:$0xf]
        %v4663 = vld [vmem:[%s4440 + $0x378] sm:$0xf]
        %v4664 = vld [vmem:[%s4440 + $0x37c] sm:$0xf]
        %v4665 = vld [vmem:[%s4440 + $0x380] sm:$0xf]
        %v4666 = vld [vmem:[%s4440 + $0x384] sm:$0xf]
        %v4667 = vld [vmem:[%s4440 + $0x388] sm:$0xf]
        %v4668 = vld [vmem:[%s4440 + $0x38c] sm:$0xf]
        %v4669 = vld [vmem:[%s4440 + $0x390] sm:$0xf]
        %v4670 = vld [vmem:[%s4440 + $0x394] sm:$0xf]
        %v4671 = vld [vmem:[%s4440 + $0x398] sm:$0xf]
        %v4672 = vld [vmem:[%s4440 + $0x39c] sm:$0xf]
        %v4673 = vld [vmem:[%s4440 + $0x3a0] sm:$0xf]
        %v4674 = vld [vmem:[%s4440 + $0x3a4] sm:$0xf]
        %v4675 = vld [vmem:[%s4440 + $0x3a8] sm:$0xf]
        %v4676 = vld [vmem:[%s4440 + $0x3ac] sm:$0xf]
        %v4677 = vld [vmem:[%s4440 + $0x3b0] sm:$0xf]
        %v4678 = vld [vmem:[%s4440 + $0x3b4] sm:$0xf]
        %v4679 = vld [vmem:[%s4440 + $0x3b8] sm:$0xf]
        %v4680 = vld [vmem:[%s4440 + $0x3bc] sm:$0xf]
        %v4681 = vld [vmem:[%s4440 + $0x3c0] sm:$0xf]
        %v4682 = vld [vmem:[%s4440 + $0x3c4] sm:$0xf]
        %v4683 = vld [vmem:[%s4440 + $0x3c8] sm:$0xf]
        %v4684 = vld [vmem:[%s4440 + $0x3cc] sm:$0xf]
        %v4685 = vld [vmem:[%s4440 + $0x3d0] sm:$0xf]
        %v4686 = vld [vmem:[%s4440 + $0x3d4] sm:$0xf]
        %v4687 = vld [vmem:[%s4440 + $0x3d8] sm:$0xf]
        %v4688 = vld [vmem:[%s4440 + $0x3dc] sm:$0xf]
        %v4689 = vld [vmem:[%s4440 + $0x3e0] sm:$0xf]
        %v4690 = vld [vmem:[%s4440 + $0x3e4] sm:$0xf]
        %v4691 = vld [vmem:[%s4440 + $0x3e8] sm:$0xf]
        %v4692 = vld [vmem:[%s4440 + $0x3ec] sm:$0xf]
        %v4693 = vld [vmem:[%s4440 + $0x3f0] sm:$0xf]
        %v4694 = vld [vmem:[%s4440 + $0x3f4] sm:$0xf]
        %v4695 = vld [vmem:[%s4440 + $0x3f8] sm:$0xf]
        %v4696 = vld [vmem:[%s4440 + $0x3fc] sm:$0xf]
        %s4697 = scalar_lea.vmem %s16, 1
        %v4698 = vld [vmem:[%s4697] sm:$0x1]
        %v4700 = vperm.slane %v4698, 0
        %v4958 = vunpack.c.l.b16 %v4441
        %v4959 = vunpack.c.l.b16 %v4442
        %v4960 = vunpack.c.l.b16 %v4443
        %v4961 = vunpack.c.l.b16 %v4444
        %v4962 = vunpack.c.l.b16 %v4445
        %v4963 = vunpack.c.l.b16 %v4446
        %v4964 = vunpack.c.l.b16 %v4447
        %v4965 = vunpack.c.l.b16 %v4448
        %v4966 = vunpack.c.l.b16 %v4449
        %v4967 = vunpack.c.l.b16 %v4450
        %v4968 = vunpack.c.l.b16 %v4451
        %v4969 = vunpack.c.l.b16 %v4452
        %v4970 = vunpack.c.l.b16 %v4453
        %v4971 = vunpack.c.l.b16 %v4454
        %v4972 = vunpack.c.l.b16 %v4455
        %v4973 = vunpack.c.l.b16 %v4456
        %v4974 = vunpack.c.l.b16 %v4457
        %v4975 = vunpack.c.l.b16 %v4458
        %v4976 = vunpack.c.l.b16 %v4459
        %v4977 = vunpack.c.l.b16 %v4460
        %v4978 = vunpack.c.l.b16 %v4461
        %v4979 = vunpack.c.l.b16 %v4462
        %v4980 = vunpack.c.l.b16 %v4463
        %v4981 = vunpack.c.l.b16 %v4464
        %v4982 = vunpack.c.l.b16 %v4465
        %v4983 = vunpack.c.l.b16 %v4466
        %v4984 = vunpack.c.l.b16 %v4467
        %v4985 = vunpack.c.l.b16 %v4468
        %v4986 = vunpack.c.l.b16 %v4469
        %v4987 = vunpack.c.l.b16 %v4470
        %v4988 = vunpack.c.l.b16 %v4471
        %v4989 = vunpack.c.l.b16 %v4472
        %v4990 = vunpack.c.l.b16 %v4473
        %v4991 = vunpack.c.l.b16 %v4474
        %v4992 = vunpack.c.l.b16 %v4475
        %v4993 = vunpack.c.l.b16 %v4476
        %v4994 = vunpack.c.l.b16 %v4477
        %v4995 = vunpack.c.l.b16 %v4478
        %v4996 = vunpack.c.l.b16 %v4479
        %v4997 = vunpack.c.l.b16 %v4480
        %v4998 = vunpack.c.l.b16 %v4481
        %v4999 = vunpack.c.l.b16 %v4482
        %v5000 = vunpack.c.l.b16 %v4483
        %v5001 = vunpack.c.l.b16 %v4484
        %v5002 = vunpack.c.l.b16 %v4485
        %v5003 = vunpack.c.l.b16 %v4486
        %v5004 = vunpack.c.l.b16 %v4487
        %v5005 = vunpack.c.l.b16 %v4488
        %v5006 = vunpack.c.l.b16 %v4489
        %v5007 = vunpack.c.l.b16 %v4490
        %v5008 = vunpack.c.l.b16 %v4491
        %v5009 = vunpack.c.l.b16 %v4492
        %v5010 = vunpack.c.l.b16 %v4493
        %v5011 = vunpack.c.l.b16 %v4494
        %v5012 = vunpack.c.l.b16 %v4495
        %v5013 = vunpack.c.l.b16 %v4496
        %v5014 = vunpack.c.l.b16 %v4497
        %v5015 = vunpack.c.l.b16 %v4498
        %v5016 = vunpack.c.l.b16 %v4499
        %v5017 = vunpack.c.l.b16 %v4500
        %v5018 = vunpack.c.l.b16 %v4501
        %v5019 = vunpack.c.l.b16 %v4502
        %v5020 = vunpack.c.l.b16 %v4503
        %v5021 = vunpack.c.l.b16 %v4504
        %v5022 = vunpack.c.l.b16 %v4505
        %v5023 = vunpack.c.l.b16 %v4506
        %v5024 = vunpack.c.l.b16 %v4507
        %v5025 = vunpack.c.l.b16 %v4508
        %v5026 = vunpack.c.l.b16 %v4509
        %v5027 = vunpack.c.l.b16 %v4510
        %v5028 = vunpack.c.l.b16 %v4511
        %v5029 = vunpack.c.l.b16 %v4512
        %v5030 = vunpack.c.l.b16 %v4513
        %v5031 = vunpack.c.l.b16 %v4514
        %v5032 = vunpack.c.l.b16 %v4515
        %v5033 = vunpack.c.l.b16 %v4516
        %v5034 = vunpack.c.l.b16 %v4517
        %v5035 = vunpack.c.l.b16 %v4518
        %v5036 = vunpack.c.l.b16 %v4519
        %v5037 = vunpack.c.l.b16 %v4520
        %v5038 = vunpack.c.l.b16 %v4521
        %v5039 = vunpack.c.l.b16 %v4522
        %v5040 = vunpack.c.l.b16 %v4523
        %v5041 = vunpack.c.l.b16 %v4524
        %v5042 = vunpack.c.l.b16 %v4525
        %v5043 = vunpack.c.l.b16 %v4526
        %v5044 = vunpack.c.l.b16 %v4527
        %v5045 = vunpack.c.l.b16 %v4528
        %v5046 = vunpack.c.l.b16 %v4529
        %v5047 = vunpack.c.l.b16 %v4530
        %v5048 = vunpack.c.l.b16 %v4531
        %v5049 = vunpack.c.l.b16 %v4532
        %v5050 = vunpack.c.l.b16 %v4533
        %v5051 = vunpack.c.l.b16 %v4534
        %v5052 = vunpack.c.l.b16 %v4535
        %v5053 = vunpack.c.l.b16 %v4536
        %v5054 = vunpack.c.l.b16 %v4537
        %v5055 = vunpack.c.l.b16 %v4538
        %v5056 = vunpack.c.l.b16 %v4539
        %v5057 = vunpack.c.l.b16 %v4540
        %v5058 = vunpack.c.l.b16 %v4541
        %v5059 = vunpack.c.l.b16 %v4542
        %v5060 = vunpack.c.l.b16 %v4543
        %v5061 = vunpack.c.l.b16 %v4544
        %v5062 = vunpack.c.l.b16 %v4545
        %v5063 = vunpack.c.l.b16 %v4546
        %v5064 = vunpack.c.l.b16 %v4547
        %v5065 = vunpack.c.l.b16 %v4548
        %v5066 = vunpack.c.l.b16 %v4549
        %v5067 = vunpack.c.l.b16 %v4550
        %v5068 = vunpack.c.l.b16 %v4551
        %v5069 = vunpack.c.l.b16 %v4552
        %v5070 = vunpack.c.l.b16 %v4553
        %v5071 = vunpack.c.l.b16 %v4554
        %v5072 = vunpack.c.l.b16 %v4555
        %v5073 = vunpack.c.l.b16 %v4556
        %v5074 = vunpack.c.l.b16 %v4557
        %v5075 = vunpack.c.l.b16 %v4558
        %v5076 = vunpack.c.l.b16 %v4559
        %v5077 = vunpack.c.l.b16 %v4560
        %v5078 = vunpack.c.l.b16 %v4561
        %v5079 = vunpack.c.l.b16 %v4562
        %v5080 = vunpack.c.l.b16 %v4563
        %v5081 = vunpack.c.l.b16 %v4564
        %v5082 = vunpack.c.l.b16 %v4565
        %v5083 = vunpack.c.l.b16 %v4566
        %v5084 = vunpack.c.l.b16 %v4567
        %v5085 = vunpack.c.l.b16 %v4568
        %v5086 = vunpack.c.l.b16 %v4569
        %v5087 = vunpack.c.l.b16 %v4570
        %v5088 = vunpack.c.l.b16 %v4571
        %v5089 = vunpack.c.l.b16 %v4572
        %v5090 = vunpack.c.l.b16 %v4573
        %v5091 = vunpack.c.l.b16 %v4574
        %v5092 = vunpack.c.l.b16 %v4575
        %v5093 = vunpack.c.l.b16 %v4576
        %v5094 = vunpack.c.l.b16 %v4577
        %v5095 = vunpack.c.l.b16 %v4578
        %v5096 = vunpack.c.l.b16 %v4579
        %v5097 = vunpack.c.l.b16 %v4580
        %v5098 = vunpack.c.l.b16 %v4581
        %v5099 = vunpack.c.l.b16 %v4582
        %v5100 = vunpack.c.l.b16 %v4583
        %v5101 = vunpack.c.l.b16 %v4584
        %v5102 = vunpack.c.l.b16 %v4585
        %v5103 = vunpack.c.l.b16 %v4586
        %v5104 = vunpack.c.l.b16 %v4587
        %v5105 = vunpack.c.l.b16 %v4588
        %v5106 = vunpack.c.l.b16 %v4589
        %v5107 = vunpack.c.l.b16 %v4590
        %v5108 = vunpack.c.l.b16 %v4591
        %v5109 = vunpack.c.l.b16 %v4592
        %v5110 = vunpack.c.l.b16 %v4593
        %v5111 = vunpack.c.l.b16 %v4594
        %v5112 = vunpack.c.l.b16 %v4595
        %v5113 = vunpack.c.l.b16 %v4596
        %v5114 = vunpack.c.l.b16 %v4597
        %v5115 = vunpack.c.l.b16 %v4598
        %v5116 = vunpack.c.l.b16 %v4599
        %v5117 = vunpack.c.l.b16 %v4600
        %v5118 = vunpack.c.l.b16 %v4601
        %v5119 = vunpack.c.l.b16 %v4602
        %v5120 = vunpack.c.l.b16 %v4603
        %v5121 = vunpack.c.l.b16 %v4604
        %v5122 = vunpack.c.l.b16 %v4605
        %v5123 = vunpack.c.l.b16 %v4606
        %v5124 = vunpack.c.l.b16 %v4607
        %v5125 = vunpack.c.l.b16 %v4608
        %v5126 = vunpack.c.l.b16 %v4609
        %v5127 = vunpack.c.l.b16 %v4610
        %v5128 = vunpack.c.l.b16 %v4611
        %v5129 = vunpack.c.l.b16 %v4612
        %v5130 = vunpack.c.l.b16 %v4613
        %v5131 = vunpack.c.l.b16 %v4614
        %v5132 = vunpack.c.l.b16 %v4615
        %v5133 = vunpack.c.l.b16 %v4616
        %v5134 = vunpack.c.l.b16 %v4617
        %v5135 = vunpack.c.l.b16 %v4618
        %v5136 = vunpack.c.l.b16 %v4619
        %v5137 = vunpack.c.l.b16 %v4620
        %v5138 = vunpack.c.l.b16 %v4621
        %v5139 = vunpack.c.l.b16 %v4622
        %v5140 = vunpack.c.l.b16 %v4623
        %v5141 = vunpack.c.l.b16 %v4624
        %v5142 = vunpack.c.l.b16 %v4625
        %v5143 = vunpack.c.l.b16 %v4626
        %v5144 = vunpack.c.l.b16 %v4627
        %v5145 = vunpack.c.l.b16 %v4628
        %v5146 = vunpack.c.l.b16 %v4629
        %v5147 = vunpack.c.l.b16 %v4630
        %v5148 = vunpack.c.l.b16 %v4631
        %v5149 = vunpack.c.l.b16 %v4632
        %v5150 = vunpack.c.l.b16 %v4633
        %v5151 = vunpack.c.l.b16 %v4634
        %v5152 = vunpack.c.l.b16 %v4635
        %v5153 = vunpack.c.l.b16 %v4636
        %v5154 = vunpack.c.l.b16 %v4637
        %v5155 = vunpack.c.l.b16 %v4638
        %v5156 = vunpack.c.l.b16 %v4639
        %v5157 = vunpack.c.l.b16 %v4640
        %v5158 = vunpack.c.l.b16 %v4641
        %v5159 = vunpack.c.l.b16 %v4642
        %v5160 = vunpack.c.l.b16 %v4643
        %v5161 = vunpack.c.l.b16 %v4644
        %v5162 = vunpack.c.l.b16 %v4645
        %v5163 = vunpack.c.l.b16 %v4646
        %v5164 = vunpack.c.l.b16 %v4647
        %v5165 = vunpack.c.l.b16 %v4648
        %v5166 = vunpack.c.l.b16 %v4649
        %v5167 = vunpack.c.l.b16 %v4650
        %v5168 = vunpack.c.l.b16 %v4651
        %v5169 = vunpack.c.l.b16 %v4652
        %v5170 = vunpack.c.l.b16 %v4653
        %v5171 = vunpack.c.l.b16 %v4654
        %v5172 = vunpack.c.l.b16 %v4655
        %v5173 = vunpack.c.l.b16 %v4656
        %v5174 = vunpack.c.l.b16 %v4657
        %v5175 = vunpack.c.l.b16 %v4658
        %v5176 = vunpack.c.l.b16 %v4659
        %v5177 = vunpack.c.l.b16 %v4660
        %v5178 = vunpack.c.l.b16 %v4661
        %v5179 = vunpack.c.l.b16 %v4662
        %v5180 = vunpack.c.l.b16 %v4663
        %v5181 = vunpack.c.l.b16 %v4664
        %v5182 = vunpack.c.l.b16 %v4665
        %v5183 = vunpack.c.l.b16 %v4666
        %v5184 = vunpack.c.l.b16 %v4667
        %v5185 = vunpack.c.l.b16 %v4668
        %v5186 = vunpack.c.l.b16 %v4669
        %v5187 = vunpack.c.l.b16 %v4670
        %v5188 = vunpack.c.l.b16 %v4671
        %v5189 = vunpack.c.l.b16 %v4672
        %v5190 = vunpack.c.l.b16 %v4673
        %v5191 = vunpack.c.l.b16 %v4674
        %v5192 = vunpack.c.l.b16 %v4675
        %v5193 = vunpack.c.l.b16 %v4676
        %v5194 = vunpack.c.l.b16 %v4677
        %v5195 = vunpack.c.l.b16 %v4678
        %v5196 = vunpack.c.l.b16 %v4679
        %v5197 = vunpack.c.l.b16 %v4680
        %v5198 = vunpack.c.l.b16 %v4681
        %v5199 = vunpack.c.l.b16 %v4682
        %v5200 = vunpack.c.l.b16 %v4683
        %v5201 = vunpack.c.l.b16 %v4684
        %v5202 = vunpack.c.l.b16 %v4685
        %v5203 = vunpack.c.l.b16 %v4686
        %v5204 = vunpack.c.l.b16 %v4687
        %v5205 = vunpack.c.l.b16 %v4688
        %v5206 = vunpack.c.l.b16 %v4689
        %v5207 = vunpack.c.l.b16 %v4690
        %v5208 = vunpack.c.l.b16 %v4691
        %v5209 = vunpack.c.l.b16 %v4692
        %v5210 = vunpack.c.l.b16 %v4693
        %v5211 = vunpack.c.l.b16 %v4694
        %v5212 = vunpack.c.l.b16 %v4695
        %v5213 = vunpack.c.l.b16 %v4696
        %v5214 = vpack.c.b16 %v4959, %v4958
        %v5215 = vpack.c.b16 %v4961, %v4960
        %v5216 = vpack.c.b16 %v4963, %v4962
        %v5217 = vpack.c.b16 %v4965, %v4964
        %v5218 = vpack.c.b16 %v4967, %v4966
        %v5219 = vpack.c.b16 %v4969, %v4968
        %v5220 = vpack.c.b16 %v4971, %v4970
        %v5221 = vpack.c.b16 %v4973, %v4972
        %v5222 = vpack.c.b16 %v4975, %v4974
        %v5223 = vpack.c.b16 %v4977, %v4976
        %v5224 = vpack.c.b16 %v4979, %v4978
        %v5225 = vpack.c.b16 %v4981, %v4980
        %v5226 = vpack.c.b16 %v4983, %v4982
        %v5227 = vpack.c.b16 %v4985, %v4984
        %v5228 = vpack.c.b16 %v4987, %v4986
        %v5229 = vpack.c.b16 %v4989, %v4988
        %v5230 = vpack.c.b16 %v4991, %v4990
        %v5231 = vpack.c.b16 %v4993, %v4992
        %v5232 = vpack.c.b16 %v4995, %v4994
        %v5233 = vpack.c.b16 %v4997, %v4996
        %v5234 = vpack.c.b16 %v4999, %v4998
        %v5235 = vpack.c.b16 %v5001, %v5000
        %v5236 = vpack.c.b16 %v5003, %v5002
        %v5237 = vpack.c.b16 %v5005, %v5004
        %v5238 = vpack.c.b16 %v5007, %v5006
        %v5239 = vpack.c.b16 %v5009, %v5008
        %v5240 = vpack.c.b16 %v5011, %v5010
        %v5241 = vpack.c.b16 %v5013, %v5012
        %v5242 = vpack.c.b16 %v5015, %v5014
        %v5243 = vpack.c.b16 %v5017, %v5016
        %v5244 = vpack.c.b16 %v5019, %v5018
        %v5245 = vpack.c.b16 %v5021, %v5020
        %v5246 = vpack.c.b16 %v5023, %v5022
        %v5247 = vpack.c.b16 %v5025, %v5024
        %v5248 = vpack.c.b16 %v5027, %v5026
        %v5249 = vpack.c.b16 %v5029, %v5028
        %v5250 = vpack.c.b16 %v5031, %v5030
        %v5251 = vpack.c.b16 %v5033, %v5032
        %v5252 = vpack.c.b16 %v5035, %v5034
        %v5253 = vpack.c.b16 %v5037, %v5036
        %v5254 = vpack.c.b16 %v5039, %v5038
        %v5255 = vpack.c.b16 %v5041, %v5040
        %v5256 = vpack.c.b16 %v5043, %v5042
        %v5257 = vpack.c.b16 %v5045, %v5044
        %v5258 = vpack.c.b16 %v5047, %v5046
        %v5259 = vpack.c.b16 %v5049, %v5048
        %v5260 = vpack.c.b16 %v5051, %v5050
        %v5261 = vpack.c.b16 %v5053, %v5052
        %v5262 = vpack.c.b16 %v5055, %v5054
        %v5263 = vpack.c.b16 %v5057, %v5056
        %v5264 = vpack.c.b16 %v5059, %v5058
        %v5265 = vpack.c.b16 %v5061, %v5060
        %v5266 = vpack.c.b16 %v5063, %v5062
        %v5267 = vpack.c.b16 %v5065, %v5064
        %v5268 = vpack.c.b16 %v5067, %v5066
        %v5269 = vpack.c.b16 %v5069, %v5068
        %v5270 = vpack.c.b16 %v5071, %v5070
        %v5271 = vpack.c.b16 %v5073, %v5072
        %v5272 = vpack.c.b16 %v5075, %v5074
        %v5273 = vpack.c.b16 %v5077, %v5076
        %v5274 = vpack.c.b16 %v5079, %v5078
        %v5275 = vpack.c.b16 %v5081, %v5080
        %v5276 = vpack.c.b16 %v5083, %v5082
        %v5277 = vpack.c.b16 %v5085, %v5084
        %v5278 = vpack.c.b16 %v5087, %v5086
        %v5279 = vpack.c.b16 %v5089, %v5088
        %v5280 = vpack.c.b16 %v5091, %v5090
        %v5281 = vpack.c.b16 %v5093, %v5092
        %v5282 = vpack.c.b16 %v5095, %v5094
        %v5283 = vpack.c.b16 %v5097, %v5096
        %v5284 = vpack.c.b16 %v5099, %v5098
        %v5285 = vpack.c.b16 %v5101, %v5100
        %v5286 = vpack.c.b16 %v5103, %v5102
        %v5287 = vpack.c.b16 %v5105, %v5104
        %v5288 = vpack.c.b16 %v5107, %v5106
        %v5289 = vpack.c.b16 %v5109, %v5108
        %v5290 = vpack.c.b16 %v5111, %v5110
        %v5291 = vpack.c.b16 %v5113, %v5112
        %v5292 = vpack.c.b16 %v5115, %v5114
        %v5293 = vpack.c.b16 %v5117, %v5116
        %v5294 = vpack.c.b16 %v5119, %v5118
        %v5295 = vpack.c.b16 %v5121, %v5120
        %v5296 = vpack.c.b16 %v5123, %v5122
        %v5297 = vpack.c.b16 %v5125, %v5124
        %v5298 = vpack.c.b16 %v5127, %v5126
        %v5299 = vpack.c.b16 %v5129, %v5128
        %v5300 = vpack.c.b16 %v5131, %v5130
        %v5301 = vpack.c.b16 %v5133, %v5132
        %v5302 = vpack.c.b16 %v5135, %v5134
        %v5303 = vpack.c.b16 %v5137, %v5136
        %v5304 = vpack.c.b16 %v5139, %v5138
        %v5305 = vpack.c.b16 %v5141, %v5140
        %v5306 = vpack.c.b16 %v5143, %v5142
        %v5307 = vpack.c.b16 %v5145, %v5144
        %v5308 = vpack.c.b16 %v5147, %v5146
        %v5309 = vpack.c.b16 %v5149, %v5148
        %v5310 = vpack.c.b16 %v5151, %v5150
        %v5311 = vpack.c.b16 %v5153, %v5152
        %v5312 = vpack.c.b16 %v5155, %v5154
        %v5313 = vpack.c.b16 %v5157, %v5156
        %v5314 = vpack.c.b16 %v5159, %v5158
        %v5315 = vpack.c.b16 %v5161, %v5160
        %v5316 = vpack.c.b16 %v5163, %v5162
        %v5317 = vpack.c.b16 %v5165, %v5164
        %v5318 = vpack.c.b16 %v5167, %v5166
        %v5319 = vpack.c.b16 %v5169, %v5168
        %v5320 = vpack.c.b16 %v5171, %v5170
        %v5321 = vpack.c.b16 %v5173, %v5172
        %v5322 = vpack.c.b16 %v5175, %v5174
        %v5323 = vpack.c.b16 %v5177, %v5176
        %v5324 = vpack.c.b16 %v5179, %v5178
        %v5325 = vpack.c.b16 %v5181, %v5180
        %v5326 = vpack.c.b16 %v5183, %v5182
        %v5327 = vpack.c.b16 %v5185, %v5184
        %v5328 = vpack.c.b16 %v5187, %v5186
        %v5329 = vpack.c.b16 %v5189, %v5188
        %v5330 = vpack.c.b16 %v5191, %v5190
        %v5331 = vpack.c.b16 %v5193, %v5192
        %v5332 = vpack.c.b16 %v5195, %v5194
        %v5333 = vpack.c.b16 %v5197, %v5196
        %v5334 = vpack.c.b16 %v5199, %v5198
        %v5335 = vpack.c.b16 %v5201, %v5200
        %v5336 = vpack.c.b16 %v5203, %v5202
        %v5337 = vpack.c.b16 %v5205, %v5204
        %v5338 = vpack.c.b16 %v5207, %v5206
        %v5339 = vpack.c.b16 %v5209, %v5208
        %v5340 = vpack.c.b16 %v5211, %v5210
        %v5341 = vpack.c.b16 %v5213, %v5212
        %5470 = vmatpush.bf16.msra.mxu0 %v5221
        %5471 = vmatpush.bf16.msra.mxu0 %v5220
        %5472 = vmatpush.bf16.msra.mxu0 %v5219
        %5473 = vmatpush.bf16.msra.mxu0 %v5218
        %5474 = vmatpush.bf16.msra.mxu0 %v5217
        %5475 = vmatpush.bf16.msra.mxu0 %v5216
        %5476 = vmatpush.bf16.msra.mxu0 %v5215
        %5477 = vmatpush.bf16.msra.mxu0 %v5214
        %5478 = vmatmul.bf16.gmra.mxu0 %v4424
        %v5479 = vpop.f32.mrf.mxu0
        %v5480 = vadd.f32 %v4700, %v5479
        %v5481 = vpop.f32.mrf.mxu0
        %5482 = vdwg.mxu0
        %5483 = vmatpush.bf16.msra.mxu0 %v5229
        %5484 = vmatpush.bf16.msra.mxu0 %v5228
        %5485 = vmatpush.bf16.msra.mxu0 %v5227
        %5486 = vmatpush.bf16.msra.mxu0 %v5226
        %5487 = vmatpush.bf16.msra.mxu0 %v5225
        %5488 = vmatpush.bf16.msra.mxu0 %v5224
        %5489 = vmatpush.bf16.msra.mxu0 %v5223
        %5490 = vmatpush.bf16.msra.mxu0 %v5222
        %5491 = vmatmul.bf16.gmra.mxu0 %v4425
        %v5492 = vpop.f32.mrf.mxu0
        %v5493 = vadd.f32 %v5480, %v5492
        %v5494 = vpop.f32.mrf.mxu0
        %5495 = vdwg.mxu0
        %5496 = vmatpush.bf16.msra.mxu0 %v5237
        %5497 = vmatpush.bf16.msra.mxu0 %v5236
        %5498 = vmatpush.bf16.msra.mxu0 %v5235
        %5499 = vmatpush.bf16.msra.mxu0 %v5234
        %5500 = vmatpush.bf16.msra.mxu0 %v5233
        %5501 = vmatpush.bf16.msra.mxu0 %v5232
        %5502 = vmatpush.bf16.msra.mxu0 %v5231
        %5503 = vmatpush.bf16.msra.mxu0 %v5230
        %5504 = vmatmul.bf16.gmra.mxu0 %v4426
        %v5505 = vpop.f32.mrf.mxu0
        %v5506 = vadd.f32 %v5493, %v5505
        %v5507 = vpop.f32.mrf.mxu0
        %5508 = vdwg.mxu0
        %5509 = vmatpush.bf16.msra.mxu0 %v5245
        %5510 = vmatpush.bf16.msra.mxu0 %v5244
        %5511 = vmatpush.bf16.msra.mxu0 %v5243
        %5512 = vmatpush.bf16.msra.mxu0 %v5242
        %5513 = vmatpush.bf16.msra.mxu0 %v5241
        %5514 = vmatpush.bf16.msra.mxu0 %v5240
        %5515 = vmatpush.bf16.msra.mxu0 %v5239
        %5516 = vmatpush.bf16.msra.mxu0 %v5238
        %5517 = vmatmul.bf16.gmra.mxu0 %v4427
        %v5518 = vpop.f32.mrf.mxu0
        %v5519 = vadd.f32 %v5506, %v5518
        %v5520 = vpop.f32.mrf.mxu0
        %5521 = vdwg.mxu0
        %5522 = vmatpush.bf16.msra.mxu0 %v5253
        %5523 = vmatpush.bf16.msra.mxu0 %v5252
        %5524 = vmatpush.bf16.msra.mxu0 %v5251
        %5525 = vmatpush.bf16.msra.mxu0 %v5250
        %5526 = vmatpush.bf16.msra.mxu0 %v5249
        %5527 = vmatpush.bf16.msra.mxu0 %v5248
        %5528 = vmatpush.bf16.msra.mxu0 %v5247
        %5529 = vmatpush.bf16.msra.mxu0 %v5246
        %5530 = vmatmul.bf16.gmra.mxu0 %v4428
        %v5531 = vpop.f32.mrf.mxu0
        %v5532 = vadd.f32 %v5519, %v5531
        %v5533 = vpop.f32.mrf.mxu0
        %5534 = vdwg.mxu0
        %5535 = vmatpush.bf16.msra.mxu0 %v5261
        %5536 = vmatpush.bf16.msra.mxu0 %v5260
        %5537 = vmatpush.bf16.msra.mxu0 %v5259
        %5538 = vmatpush.bf16.msra.mxu0 %v5258
        %5539 = vmatpush.bf16.msra.mxu0 %v5257
        %5540 = vmatpush.bf16.msra.mxu0 %v5256
        %5541 = vmatpush.bf16.msra.mxu0 %v5255
        %5542 = vmatpush.bf16.msra.mxu0 %v5254
        %5543 = vmatmul.bf16.gmra.mxu0 %v4429
        %v5544 = vpop.f32.mrf.mxu0
        %v5545 = vadd.f32 %v5532, %v5544
        %v5546 = vpop.f32.mrf.mxu0
        %5547 = vdwg.mxu0
        %5548 = vmatpush.bf16.msra.mxu0 %v5269
        %5549 = vmatpush.bf16.msra.mxu0 %v5268
        %5550 = vmatpush.bf16.msra.mxu0 %v5267
        %5551 = vmatpush.bf16.msra.mxu0 %v5266
        %5552 = vmatpush.bf16.msra.mxu0 %v5265
        %5553 = vmatpush.bf16.msra.mxu0 %v5264
        %5554 = vmatpush.bf16.msra.mxu0 %v5263
        %5555 = vmatpush.bf16.msra.mxu0 %v5262
        %5556 = vmatmul.bf16.gmra.mxu0 %v4430
        %v5557 = vpop.f32.mrf.mxu0
        %v5558 = vadd.f32 %v5545, %v5557
        %v5559 = vpop.f32.mrf.mxu0
        %5560 = vdwg.mxu0
        %5561 = vmatpush.bf16.msra.mxu0 %v5277
        %5562 = vmatpush.bf16.msra.mxu0 %v5276
        %5563 = vmatpush.bf16.msra.mxu0 %v5275
        %5564 = vmatpush.bf16.msra.mxu0 %v5274
        %5565 = vmatpush.bf16.msra.mxu0 %v5273
        %5566 = vmatpush.bf16.msra.mxu0 %v5272
        %5567 = vmatpush.bf16.msra.mxu0 %v5271
        %5568 = vmatpush.bf16.msra.mxu0 %v5270
        %5569 = vmatmul.bf16.gmra.mxu0 %v4431
        %v5570 = vpop.f32.mrf.mxu0
        %v5571 = vadd.f32 %v5558, %v5570
        %v5572 = vpop.f32.mrf.mxu0
        %5573 = vdwg.mxu0
        %5574 = vmatpush.bf16.msra.mxu0 %v5285
        %5575 = vmatpush.bf16.msra.mxu0 %v5284
        %5576 = vmatpush.bf16.msra.mxu0 %v5283
        %5577 = vmatpush.bf16.msra.mxu0 %v5282
        %5578 = vmatpush.bf16.msra.mxu0 %v5281
        %5579 = vmatpush.bf16.msra.mxu0 %v5280
        %5580 = vmatpush.bf16.msra.mxu0 %v5279
        %5581 = vmatpush.bf16.msra.mxu0 %v5278
        %5582 = vmatmul.bf16.gmra.mxu0 %v4432
        %v5583 = vpop.f32.mrf.mxu0
        %v5584 = vadd.f32 %v5571, %v5583
        %v5585 = vpop.f32.mrf.mxu0
        %5586 = vdwg.mxu0
        %5587 = vmatpush.bf16.msra.mxu0 %v5293
        %5588 = vmatpush.bf16.msra.mxu0 %v5292
        %5589 = vmatpush.bf16.msra.mxu0 %v5291
        %5590 = vmatpush.bf16.msra.mxu0 %v5290
        %5591 = vmatpush.bf16.msra.mxu0 %v5289
        %5592 = vmatpush.bf16.msra.mxu0 %v5288
        %5593 = vmatpush.bf16.msra.mxu0 %v5287
        %5594 = vmatpush.bf16.msra.mxu0 %v5286
        %5595 = vmatmul.bf16.gmra.mxu0 %v4433
        %v5596 = vpop.f32.mrf.mxu0
        %v5597 = vadd.f32 %v5584, %v5596
        %v5598 = vpop.f32.mrf.mxu0
        %5599 = vdwg.mxu0
        %5600 = vmatpush.bf16.msra.mxu0 %v5301
        %5601 = vmatpush.bf16.msra.mxu0 %v5300
        %5602 = vmatpush.bf16.msra.mxu0 %v5299
        %5603 = vmatpush.bf16.msra.mxu0 %v5298
        %5604 = vmatpush.bf16.msra.mxu0 %v5297
        %5605 = vmatpush.bf16.msra.mxu0 %v5296
        %5606 = vmatpush.bf16.msra.mxu0 %v5295
        %5607 = vmatpush.bf16.msra.mxu0 %v5294
        %5608 = vmatmul.bf16.gmra.mxu0 %v4434
        %v5609 = vpop.f32.mrf.mxu0
        %v5610 = vadd.f32 %v5597, %v5609
        %v5611 = vpop.f32.mrf.mxu0
        %5612 = vdwg.mxu0
        %5613 = vmatpush.bf16.msra.mxu0 %v5309
        %5614 = vmatpush.bf16.msra.mxu0 %v5308
        %5615 = vmatpush.bf16.msra.mxu0 %v5307
        %5616 = vmatpush.bf16.msra.mxu0 %v5306
        %5617 = vmatpush.bf16.msra.mxu0 %v5305
        %5618 = vmatpush.bf16.msra.mxu0 %v5304
        %5619 = vmatpush.bf16.msra.mxu0 %v5303
        %5620 = vmatpush.bf16.msra.mxu0 %v5302
        %5621 = vmatmul.bf16.gmra.mxu0 %v4435
        %v5622 = vpop.f32.mrf.mxu0
        %v5623 = vadd.f32 %v5610, %v5622
        %v5624 = vpop.f32.mrf.mxu0
        %5625 = vdwg.mxu0
        %5626 = vmatpush.bf16.msra.mxu0 %v5317
        %5627 = vmatpush.bf16.msra.mxu0 %v5316
        %5628 = vmatpush.bf16.msra.mxu0 %v5315
        %5629 = vmatpush.bf16.msra.mxu0 %v5314
        %5630 = vmatpush.bf16.msra.mxu0 %v5313
        %5631 = vmatpush.bf16.msra.mxu0 %v5312
        %5632 = vmatpush.bf16.msra.mxu0 %v5311
        %5633 = vmatpush.bf16.msra.mxu0 %v5310
        %5634 = vmatmul.bf16.gmra.mxu0 %v4436
        %v5635 = vpop.f32.mrf.mxu0
        %v5636 = vadd.f32 %v5623, %v5635
        %v5637 = vpop.f32.mrf.mxu0
        %5638 = vdwg.mxu0
        %5639 = vmatpush.bf16.msra.mxu0 %v5325
        %5640 = vmatpush.bf16.msra.mxu0 %v5324
        %5641 = vmatpush.bf16.msra.mxu0 %v5323
        %5642 = vmatpush.bf16.msra.mxu0 %v5322
        %5643 = vmatpush.bf16.msra.mxu0 %v5321
        %5644 = vmatpush.bf16.msra.mxu0 %v5320
        %5645 = vmatpush.bf16.msra.mxu0 %v5319
        %5646 = vmatpush.bf16.msra.mxu0 %v5318
        %5647 = vmatmul.bf16.gmra.mxu0 %v4437
        %v5648 = vpop.f32.mrf.mxu0
        %v5649 = vadd.f32 %v5636, %v5648
        %v5650 = vpop.f32.mrf.mxu0
        %5651 = vdwg.mxu0
        %5652 = vmatpush.bf16.msra.mxu0 %v5333
        %5653 = vmatpush.bf16.msra.mxu0 %v5332
        %5654 = vmatpush.bf16.msra.mxu0 %v5331
        %5655 = vmatpush.bf16.msra.mxu0 %v5330
        %5656 = vmatpush.bf16.msra.mxu0 %v5329
        %5657 = vmatpush.bf16.msra.mxu0 %v5328
        %5658 = vmatpush.bf16.msra.mxu0 %v5327
        %5659 = vmatpush.bf16.msra.mxu0 %v5326
        %5660 = vmatmul.bf16.gmra.mxu0 %v4438
        %v5661 = vpop.f32.mrf.mxu0
        %v5662 = vadd.f32 %v5649, %v5661
        %v5663 = vpop.f32.mrf.mxu0
        %5664 = vdwg.mxu0
        %5665 = vmatpush.bf16.msra.mxu0 %v5341
        %5666 = vmatpush.bf16.msra.mxu0 %v5340
        %5667 = vmatpush.bf16.msra.mxu0 %v5339
        %5668 = vmatpush.bf16.msra.mxu0 %v5338
        %5669 = vmatpush.bf16.msra.mxu0 %v5337
        %5670 = vmatpush.bf16.msra.mxu0 %v5336
        %5671 = vmatpush.bf16.msra.mxu0 %v5335
        %5672 = vmatpush.bf16.msra.mxu0 %v5334
        %5673 = vmatmul.bf16.gmra.mxu0 %v4439
        %v5674 = vpop.f32.mrf.mxu0
        %v5675 = vadd.f32 %v5662, %v5674
        %v5676 = vpop.f32.mrf.mxu0
        %5677 = vdwg.mxu0
        %v5678 = vadd.f32 %v3965, %v5675
        %s5679 = scalar_lea.vmem %s17, 1
        %v5680 = vld [vmem:[%s5679] sm:$0x1]
        %s5681 = scalar_lea.vmem %s18, 1
        %v5682 = vld [vmem:[%s5681] sm:$0x1]
        %v5683 = vsel %vm704, %v5678, 0.0
        %5684 = vadd.xlane.f32.xlu0 %v5683
        %v5685 = vpop.xlane.xlu0 %5684
        %v5686 = vmul.f32 %v5685, %v1426
        %v5687 = vsub.f32 %v5678, %v5686
        %v5688 = vmul.f32 %v5687, %v5687
        %v5689 = vsel %vm704, %v5688, 0.0
        %5690 = vadd.xlane.f32.xlu0 %v5689
        %v5691 = vpop.xlane.xlu0 %5690
        %v5692 = vmul.f32 %v5691, %v1426
        %v5693 = vadd.f32 %v5692, 1e-05
        %v5694 = vrsqrt.pop %v5693
        %v5695 = vmul.f32 %v5694, %v5693
        %v5696 = vmul.f32 %v5695, %v5694
        %v5697 = vmul.f32 0.5, %v5696
        %v5698 = vsub.f32 1.5, %v5697
        %v5699 = vmul.f32 %v5694, %v5698
        %vm5700 = vweird.f32 %v5693
        %vm5701 = vweird.f32 %v5694
        %vm5702 = vmor %vm5700, %vm5701
        %v5703 = vsel %vm5702, %v5694, %v5699
        %v5704 = vmul.f32 %v5687, %v5703
        %v5706 = vperm.slane %v5680, 0
        %v5708 = vmul.f32 %v5704, %v5706
        %v5710 = vperm.slane %v5682, 0
        %v5712 = vadd.f32 %v5708, %v5710
        %v5713 = vpack.c.bf16 %v5712, %v5712
        %v5714 = vld [vmem:[%s19] sm:$0xf]
        %v5715 = vld [vmem:[%s19 + $0x4] sm:$0xf]
        %v5716 = vld [vmem:[%s19 + $0x8] sm:$0xf]
        %v5717 = vld [vmem:[%s19 + $0xc] sm:$0xf]
        %v5718 = vld [vmem:[%s20] sm:$0x1]
        %v5720 = vshrl.u32 %v5713, 16
        %v5722 = vrot.slane %v5720, 3
        %v5727 = vunpack.c.l.b16 %v5714
        %v5728 = vunpack.c.l.b16 %v5715
        %v5729 = vunpack.c.l.b16 %v5716
        %v5730 = vunpack.c.l.b16 %v5717
        %v5731 = vpack.c.b16 %v5728, %v5727
        %v5732 = vpack.c.b16 %v5730, %v5729
        %v5736 = vsel %vm704, %v5722, 0
        %5738 = vmatpush.bf16.msra.mxu0 0
        %5739 = vmatpush.bf16.msra.mxu0 0
        %5740 = vmatpush.bf16.msra.mxu0 0
        %5741 = vmatpush.bf16.msra.mxu0 0
        %5742 = vmatpush.bf16.msra.mxu0 0
        %5743 = vmatpush.bf16.msra.mxu0 0
        %5744 = vmatpush.bf16.msra.mxu0 %v5732
        %5745 = vmatpush.bf16.msra.mxu0 %v5731
        %5746 = vmatmul.bf16.gmra.mxu0 %v5736
        %v5747 = vpop.f32.mrf.mxu0
        %v5748 = vadd.f32 %v5718, %v5747
        %v5749 = vpop.f32.mrf.mxu0
        %5750 = vdwg.mxu0
        %vm5751 = vcmask 73728
        %5752 = vst.msk [vmem:[%s646] sm:$0x1] %vm5751, %v5748
        %s5753 = sand.u32 %s489, 1
        %s5754 = scalar_lea.sflag [#allocation3], %s5753
        %s5755 = sand.u32 %s489, 1
        %s5756 = scalar_lea.vmem [#allocation2], %s5755
        // Predicated region
        $region105: #{simple_transformer_forward.1} parent=103 // pred_check
          %p5757 = pneg %p499
        $region106: #{simple_transformer_forward.1} parent=103 // pred_check_branch
          %5759 = sbr.rel (%p5757) target = $region108
        $region107: #{simple_transformer_forward.1} parent=103 // pred_region
          %5761 = vsyncadd %s5754, 0
          %s5762 = scalar_lea.hbm %s21, %s35
          %s5764 = sshll.u32 %s5756, 4
          %s5765 = int_to_ptr.vmem [resolvable:$true] %s5764
          %s5766 = sshll.u32 %s5762, 4
          %s5767 = int_to_ptr.hbm [resolvable:$true] %s5766
          %5769 = dma.vmem_to_hbm [thread:$0]  %s5765, 16, %s5767, %s5754
        $region108: #{simple_transformer_forward.1} parent=103 // pred_fallthru
          _
      $region104: #{simple_transformer_forward.1} parent=5 // pred_fallthru
        _
      %p5770 = scmp.le.s32.totalorder 2, %s30
      // Predicated region
      $region109: #{simple_transformer_forward.1} parent=5 // pred_check
        %p5771 = pneg %p5770
      $region110: #{simple_transformer_forward.1} parent=5 // pred_check_branch
        %5773 = sbr.rel (%p5771) target = $region112
      $region111: #{simple_transformer_forward.1} parent=5 // pred_region
        %s5774 = ssub.s32 %s30, 2
        // Predicated region
        $region113: #{simple_transformer_forward.1} parent=111 // pred_check
          %p5775 = pneg %p505
        $region114: #{simple_transformer_forward.1} parent=111 // pred_check_branch
          %5777 = sbr.rel (%p5775) target = $region116
        $region115: #{simple_transformer_forward.1} parent=111 // pred_region
          %s5778 = sand.u32 %s490, 1
          %s5779 = scalar_lea.sflag [#allocation3], %s5778
          %s5780 = sand.u32 %s490, 1
          %s5781 = scalar_lea.vmem [#allocation2], %s5780
          %5783 = dma.done %s5779, 16
        $region116: #{simple_transformer_forward.1} parent=111 // pred_fallthru
          _
      $region112: #{simple_transformer_forward.1} parent=5 // pred_fallthru
        _
    $region6: #{simple_transformer_forward.1} parent=1 // loop_footer
      %s34 = sadd.s32 1, %s30
    $region7: #{simple_transformer_forward.1} parent=1 // loop_footer_branch
      %29 = sbr.rel target = $region3
    $region8: #{simple_transformer_forward.1} parent=1 // loop_exit
      _
    %5784 = vsyncpa [#allocation3], 1
    %s5785 = scalar_lea.sflag [#allocation3], 1
    %5786 = vsyncpa %s5785, 1

</llo_original>
